<compile_context>
chip_gen: v6e
topology: v6e:2x2x1
jax: 0.10.0
libtpu: 0.0.40
codegen_flags: <defaults>
</compile_context>

<pallas_src>
import functools

import numpy as np
import jax
import jax.numpy as jnp
from jax.experimental import pallas as pl
from jax.experimental.pallas import tpu as pltpu

BN_EPS = 1e-5

# NAS-Bench-201 style genotype: nodes[i+1] = sum_j op(nodes[j]) over its edges.
GENOTYPE = (
    (("nor_conv_3x3", 0),),
    (("nor_conv_1x1", 0), ("nor_conv_3x3", 1)),
    (("skip_connect", 0), ("avg_pool_3x3", 1), ("nor_conv_3x3", 2)),
)

_VMEM = functools.partial(pl.BlockSpec, memory_space=pltpu.MemorySpace.VMEM)


def _round_up(x, m):
  return (x + m - 1) // m * m


def _cpad(c):
  """Channel count padded to the f32 sublane tile (8)."""
  return max(8, _round_up(c, 8))


class _Level:
  """Static geometry of one resolution level (padded, flattened layout)."""

  def __init__(self, b, h, w):
    self.b, self.h, self.w = b, h, w
    self.hp, self.wp = h + 2, w + 2
    self.m_raw = b * self.hp * self.wp
    self.m = _round_up(self.m_raw, 128)          # lane-dense flat length

  def flat(self, b, hp, wp):
    return (b * self.hp + hp) * self.wp + wp


def make_plan(c_base, n_cells, batch, h, w):
  layer_channels = ([c_base] * n_cells + [2 * c_base] + [2 * c_base] * n_cells
                    + [4 * c_base] + [4 * c_base] * n_cells)
  layer_reductions = ([False] * n_cells + [True] + [False] * n_cells + [True]
                      + [False] * n_cells)
  levels = [_Level(batch, h, w)]
  cells = []
  c_prev, level = c_base, 0
  for c_curr, red in zip(layer_channels, layer_reductions):
    if red:
      assert levels[level].h % 2 == 0 and levels[level].w % 2 == 0
      levels.append(_Level(batch, levels[level].h // 2, levels[level].w // 2))
      cells.append(dict(kind="reduce", lin=level, lout=level + 1,
                        cin=c_prev, cout=c_curr))
      level += 1
    else:
      assert c_prev == c_curr
      cells.append(dict(kind="normal", level=level, c=c_curr))
    c_prev = c_curr
  return dict(levels=levels, cells=cells, c_base=c_base, c_last=c_prev,
              batch=batch)


# ----------------------------------------------------------------------------
# Synthetic, deterministic parameters (PyTorch-like layout), then packing
# ----------------------------------------------------------------------------
def bn_fold(gamma, beta, eps=BN_EPS):
  # Inference-mode BN with running_mean=0, running_var=1 folded to scale/bias.
  scale = gamma / jnp.sqrt(1.0 + eps)
  return scale.astype(jnp.float32), beta.astype(jnp.float32)


def conv_weight(key, k, cin, cout):
  fan_in = cin * k * k
  return jax.random.normal(key, (k * k, cin, cout), jnp.float32) * (
      2.0 / fan_in) ** 0.5


def make_convbn(key, k, cin, cout):
  k1, k2, k3 = jax.random.split(key, 3)
  w = conv_weight(k1, k, cin, cout)
  gamma = 1.0 + 0.1 * jax.random.normal(k2, (cout,), jnp.float32)
  beta = 0.1 * jax.random.normal(k3, (cout,), jnp.float32)
  scale, bias = bn_fold(gamma, beta)
  return {"w": w, "scale": scale, "bias": bias}


def init_params(key, plan, num_classes):
  keys = iter(jax.random.split(key, 256))
  params = {"stem": make_convbn(next(keys), 3, 3, plan["c_base"])}
  cells = []
  for cell in plan["cells"]:
    if cell["kind"] == "reduce":
      cells.append({
          "conv_a": make_convbn(next(keys), 3, cell["cin"], cell["cout"]),
          "conv_b": make_convbn(next(keys), 3, cell["cout"], cell["cout"]),
          "down_w": conv_weight(next(keys), 1, cell["cin"], cell["cout"]),
      })
    else:
      c = cell["c"]
      node_params = []
      for node_info in GENOTYPE:
        ops = []
        for op_name, _ in node_info:
          if op_name == "nor_conv_3x3":
            ops.append(make_convbn(next(keys), 3, c, c))
          elif op_name == "nor_conv_1x1":
            ops.append(make_convbn(next(keys), 1, c, c))
          else:
            ops.append(None)
        node_params.append(ops)
      cells.append({"nodes": node_params})
  params["cells"] = cells
  c_last = plan["c_last"]
  gamma = 1.0 + 0.1 * jax.random.normal(next(keys), (c_last,), jnp.float32)
  beta = 0.1 * jax.random.normal(next(keys), (c_last,), jnp.float32)
  params["last_scale"], params["last_bias"] = bn_fold(gamma, beta)
  params["fc_w"] = jax.random.normal(
      next(keys), (c_last, num_classes), jnp.float32) * (1.0 / c_last) ** 0.5
  params["fc_b"] = 0.01 * jax.random.normal(
      next(keys), (num_classes,), jnp.float32)
  return params


def _pack_conv_w(w, cin_p, cout_p):
  """(k*k, cin, cout) -> (cout_p, k*k*cin_p) im2col weight (tap-major K)."""
  kk, cin, cout = w.shape
  out = np.zeros((cout_p, kk * cin_p), np.float32)
  w_np = np.asarray(w)
  for t in range(kk):
    out[:cout, t * cin_p:t * cin_p + cin] = w_np[t].T
  return jnp.asarray(out)


def _pack_scale_bias(scale, bias, cout_p):
  cout = scale.shape[0]
  s = np.ones((cout_p, 1), np.float32)
  b = np.zeros((cout_p, 1), np.float32)
  s[:cout, 0] = np.asarray(scale)
  b[:cout, 0] = np.asarray(bias)
  return jnp.asarray(s), jnp.asarray(b)


def _make_mask_recip(level):
  """Interior mask and avg_pool_3x3 (count_include_pad=False) reciprocal."""
  mask = np.zeros((1, level.m), np.float32)
  recip = np.zeros((1, level.m), np.float32)
  for b in range(level.b):
    for h in range(level.h):
      for w in range(level.w):
        m = level.flat(b, h + 1, w + 1)
        mask[0, m] = 1.0
        cnt = sum(1 for dh in (-1, 0, 1) for dw in (-1, 0, 1)
                  if 0 <= h + dh < level.h and 0 <= w + dw < level.w)
        recip[0, m] = 1.0 / cnt
  return jnp.asarray(mask), jnp.asarray(recip)


def _make_downsample(lin, lout):
  """D: stride-2 column selection; A: AvgPool2d(2,2) averaging matrix."""
  d = np.zeros((lin.m, lout.m), np.float32)
  a = np.zeros((lin.m, lout.m), np.float32)
  for b in range(lout.b):
    for ho in range(lout.h):
      for wo in range(lout.w):
        mo = lout.flat(b, ho + 1, wo + 1)
        d[lin.flat(b, 2 * ho + 1, 2 * wo + 1), mo] = 1.0
        for dy in (0, 1):
          for dx in (0, 1):
            a[lin.flat(b, 2 * ho + 1 + dy, 2 * wo + 1 + dx), mo] = 0.25
  return jnp.asarray(d), jnp.asarray(a)


def _make_pool_matrix(level):
  """Global average pooling matrix: (M_last, B)."""
  p = np.zeros((level.m, level.b), np.float32)
  inv = 1.0 / (level.h * level.w)
  for b in range(level.b):
    for h in range(level.h):
      for w in range(level.w):
        p[level.flat(b, h + 1, w + 1), b] = inv
  return jnp.asarray(p)


def pack_input(x_nchw, level, cin_p):
  """NCHW -> channel-major padded flat (cin_p, M) layout."""
  b, c, _, _ = x_nchw.shape
  x = jnp.transpose(x_nchw, (1, 0, 2, 3)).astype(jnp.float32)   # (C, B, H, W)
  x = jnp.pad(x, ((0, cin_p - c), (0, 0), (1, 1), (1, 1)))
  x = x.reshape(cin_p, level.m_raw)
  return jnp.pad(x, ((0, 0), (0, level.m - level.m_raw)))


def _assemble_operands(plan, params, num_classes):
  levels = plan["levels"]
  names, arrays = [], []

  def add(name, arr):
    names.append(name)
    arrays.append(arr)

  for li, lvl in enumerate(levels):
    mask, recip = _make_mask_recip(lvl)
    add(f"mask{li}", mask)
    add(f"recip{li}", recip)

  for ci, cell in enumerate(plan["cells"]):
    if cell["kind"] == "reduce":
      d, a = _make_downsample(levels[cell["lin"]], levels[cell["lout"]])
      add(f"c{ci}_D", d)
      add(f"c{ci}_A", a)

  add("pool_P", _make_pool_matrix(levels[-1]))

  c0p = _cpad(plan["c_base"])
  add("stem_w", _pack_conv_w(params["stem"]["w"], _cpad(3), c0p))
  s, b = _pack_scale_bias(params["stem"]["scale"], params["stem"]["bias"], c0p)
  add("stem_s", s)
  add("stem_b", b)

  for ci, (cell, cp) in enumerate(zip(plan["cells"], params["cells"])):
    if cell["kind"] == "reduce":
      cinp, coutp = _cpad(cell["cin"]), _cpad(cell["cout"])
      add(f"c{ci}_a_w", _pack_conv_w(cp["conv_a"]["w"], cinp, coutp))
      s, b = _pack_scale_bias(cp["conv_a"]["scale"], cp["conv_a"]["bias"], coutp)
      add(f"c{ci}_a_s", s)
      add(f"c{ci}_a_b", b)
      add(f"c{ci}_b_w", _pack_conv_w(cp["conv_b"]["w"], coutp, coutp))
      s, b = _pack_scale_bias(cp["conv_b"]["scale"], cp["conv_b"]["bias"], coutp)
      add(f"c{ci}_b_s", s)
      add(f"c{ci}_b_b", b)
      add(f"c{ci}_down_w", _pack_conv_w(cp["down_w"], cinp, coutp))
    else:
      cpd = _cpad(cell["c"])
      for ni, (ops_p, node_info) in enumerate(zip(cp["nodes"], GENOTYPE)):
        for ei, (p, (op_name, _)) in enumerate(zip(ops_p, node_info)):
          if op_name in ("nor_conv_3x3", "nor_conv_1x1"):
            add(f"c{ci}_n{ni}_e{ei}_w", _pack_conv_w(p["w"], cpd, cpd))
            s, b = _pack_scale_bias(p["scale"], p["bias"], cpd)
            add(f"c{ci}_n{ni}_e{ei}_s", s)
            add(f"c{ci}_n{ni}_e{ei}_b", b)

  c_last_p = _cpad(plan["c_last"])
  s, b = _pack_scale_bias(params["last_scale"], params["last_bias"], c_last_p)
  add("last_s", s)
  add("last_b", b)
  fc_w = np.zeros((num_classes, c_last_p), np.float32)
  fc_w[:, :plan["c_last"]] = np.asarray(params["fc_w"]).T
  add("fc_w", jnp.asarray(fc_w))
  add("fc_b", jnp.asarray(np.asarray(params["fc_b"]).reshape(num_classes, 1)))
  return names, arrays


# ----------------------------------------------------------------------------
# The single fused Pallas kernel
# ----------------------------------------------------------------------------
def _fused_kernel(x_ref, *refs, names, plan):
  consts = {n: r for n, r in zip(names, refs)}
  out_ref = refs[len(names)]
  levels = plan["levels"]
  masks = [consts[f"mask{i}"][...] for i in range(len(levels))]
  recips = [consts[f"recip{i}"][...] for i in range(len(levels))]

  def shifted(x, s, m):
    # Zero borders of the flat layout make roll's wraparound harmless.
    return x if s == 0 else pltpu.roll(x, shift=(-s) % m, axis=1)

  def conv(x, base, lvl, pre_relu, ksize):
    if pre_relu:
      x = jnp.maximum(x, 0.0)
    if ksize == 3:
      taps = [shifted(x, dh * lvl.wp + dw, lvl.m)
              for dh in (-1, 0, 1) for dw in (-1, 0, 1)]
      t = jnp.concatenate(taps, axis=0)          # (9*C_pad, M) im2col
    else:
      t = x
    return jnp.dot(consts[base + "_w"][...], t,
                   preferred_element_type=jnp.float32)

  def conv_bn(x, base, lvl, pre_relu, ksize, mask):
    y = conv(x, base, lvl, pre_relu, ksize)
    y = y * consts[base + "_s"][...] + consts[base + "_b"][...]
    return y * mask                              # keep borders exactly zero

  def avg_pool3(x, lvl, recip):
    acc = x
    for dh in (-1, 0, 1):
      for dw in (-1, 0, 1):
        s = dh * lvl.wp + dw
        if s != 0:
          acc = acc + shifted(x, s, lvl.m)
    return acc * recip                           # recip is 0 on borders

  # stem: Conv3x3 + BN
  feat = conv_bn(x_ref[...], "stem", levels[0], False, 3, masks[0])

  for ci, cell in enumerate(plan["cells"]):
    if cell["kind"] == "normal":
      lvl = levels[cell["level"]]
      mk, rc = masks[cell["level"]], recips[cell["level"]]
      nodes = [feat]
      for ni, node_info in enumerate(GENOTYPE):
        acc = None
        for ei, (op_name, idx) in enumerate(node_info):
          h = nodes[idx]
          if op_name == "skip_connect":
            f = h
          elif op_name == "avg_pool_3x3":
            f = avg_pool3(h, lvl, rc)
          elif op_name == "nor_conv_3x3":
            f = conv_bn(h, f"c{ci}_n{ni}_e{ei}", lvl, True, 3, mk)
          elif op_name == "nor_conv_1x1":
            f = conv_bn(h, f"c{ci}_n{ni}_e{ei}", lvl, True, 1, mk)
          else:  # "none"
            f = jnp.zeros_like(h)
          acc = f if acc is None else acc + f
        nodes.append(acc)
      feat = nodes[-1]
    else:
      lin, lout = levels[cell["lin"]], levels[cell["lout"]]
      mk_out = masks[cell["lout"]]
      # conv_a: ReLU -> Conv3x3 stride-2 -> BN (full-res conv + column select).
      y = conv(feat, f"c{ci}_a", lin, True, 3)
      y = jnp.dot(y, consts[f"c{ci}_D"][...],
                  preferred_element_type=jnp.float32)
      y = y * consts[f"c{ci}_a_s"][...] + consts[f"c{ci}_a_b"][...]
      y = y * mk_out
      # conv_b: ReLU -> Conv3x3 stride-1 -> BN at the reduced resolution.
      y = conv_bn(y, f"c{ci}_b", lout, True, 3, mk_out)
      # residual: AvgPool2d(2,2) -> Conv1x1 (no bias).
      res = jnp.dot(feat, consts[f"c{ci}_A"][...],
                    preferred_element_type=jnp.float32)
      res = jnp.dot(consts[f"c{ci}_down_w"][...], res,
                    preferred_element_type=jnp.float32)
      feat = y + res

  # lastact (BN + ReLU) + global average pool + classifier (transposed out).
  f = jnp.maximum(feat * consts["last_s"][...] + consts["last_b"][...], 0.0)
  pooled = jnp.dot(f, consts["pool_P"][...],
                   preferred_element_type=jnp.float32)          # (C_pad, B)
  out_ref[...] = (jnp.dot(consts["fc_w"][...], pooled,
                          preferred_element_type=jnp.float32)
                  + consts["fc_b"][...])                         # (classes, B)


def make_forward(plan, params, num_classes):
  names, const_arrays = _assemble_operands(plan, params, num_classes)
  level0 = plan["levels"][0]
  cin_p = _cpad(3)
  kernel = functools.partial(_fused_kernel, names=tuple(names), plan=plan)
  fused = pl.pallas_call(
      kernel,
      out_shape=jax.ShapeDtypeStruct((num_classes, plan["batch"]), jnp.float32),
      in_specs=[_VMEM()] * (1 + len(const_arrays)),
      out_specs=_VMEM(),
  )

  def forward(x_nchw):
    x0 = pack_input(x_nchw, level0, cin_p)
    logits_t = fused(x0, *const_arrays)
    return jnp.transpose(logits_t)               # (B, num_classes)

  return jax.jit(forward)


if __name__ == "__main__":
  key = jax.random.PRNGKey(0)
  pkey, xkey = jax.random.split(key)
  C, N_CELLS, NUM_CLASSES = 4, 1, 10
  B, H, W = 2, 16, 16
  plan = make_plan(C, N_CELLS, B, H, W)
  params = init_params(pkey, plan, NUM_CLASSES)
  forward = make_forward(plan, params, NUM_CLASSES)
  x = jax.random.normal(xkey, (B, 3, H, W), jnp.float32)   # NCHW, as PyTorch
  logits = forward(x)
  jax.block_until_ready(logits)
  assert logits.shape == (B, NUM_CLASSES), logits.shape
  assert bool(jnp.all(jnp.isfinite(logits)))
  print("KERNEL_OK")
</pallas_src>

<mosaic_0001>
module attributes {stable_mosaic.version = 11 : i64} {
  func.func @_fused_kernel(%arg0: memref<8x768xf32, #tpu.memory_space<vmem>>, %arg1: memref<1x768xf32, #tpu.memory_space<vmem>>, %arg2: memref<1x768xf32, #tpu.memory_space<vmem>>, %arg3: memref<1x256xf32, #tpu.memory_space<vmem>>, %arg4: memref<1x256xf32, #tpu.memory_space<vmem>>, %arg5: memref<1x128xf32, #tpu.memory_space<vmem>>, %arg6: memref<1x128xf32, #tpu.memory_space<vmem>>, %arg7: memref<768x256xf32, #tpu.memory_space<vmem>>, %arg8: memref<768x256xf32, #tpu.memory_space<vmem>>, %arg9: memref<256x128xf32, #tpu.memory_space<vmem>>, %arg10: memref<256x128xf32, #tpu.memory_space<vmem>>, %arg11: memref<128x2xf32, #tpu.memory_space<vmem>>, %arg12: memref<8x72xf32, #tpu.memory_space<vmem>>, %arg13: memref<8x1xf32, #tpu.memory_space<vmem>>, %arg14: memref<8x1xf32, #tpu.memory_space<vmem>>, %arg15: memref<8x72xf32, #tpu.memory_space<vmem>>, %arg16: memref<8x1xf32, #tpu.memory_space<vmem>>, %arg17: memref<8x1xf32, #tpu.memory_space<vmem>>, %arg18: memref<8x8xf32, #tpu.memory_space<vmem>>, %arg19: memref<8x1xf32, #tpu.memory_space<vmem>>, %arg20: memref<8x1xf32, #tpu.memory_space<vmem>>, %arg21: memref<8x72xf32, #tpu.memory_space<vmem>>, %arg22: memref<8x1xf32, #tpu.memory_space<vmem>>, %arg23: memref<8x1xf32, #tpu.memory_space<vmem>>, %arg24: memref<8x72xf32, #tpu.memory_space<vmem>>, %arg25: memref<8x1xf32, #tpu.memory_space<vmem>>, %arg26: memref<8x1xf32, #tpu.memory_space<vmem>>, %arg27: memref<8x72xf32, #tpu.memory_space<vmem>>, %arg28: memref<8x1xf32, #tpu.memory_space<vmem>>, %arg29: memref<8x1xf32, #tpu.memory_space<vmem>>, %arg30: memref<8x72xf32, #tpu.memory_space<vmem>>, %arg31: memref<8x1xf32, #tpu.memory_space<vmem>>, %arg32: memref<8x1xf32, #tpu.memory_space<vmem>>, %arg33: memref<8x8xf32, #tpu.memory_space<vmem>>, %arg34: memref<8x72xf32, #tpu.memory_space<vmem>>, %arg35: memref<8x1xf32, #tpu.memory_space<vmem>>, %arg36: memref<8x1xf32, #tpu.memory_space<vmem>>, %arg37: memref<8x8xf32, #tpu.memory_space<vmem>>, %arg38: memref<8x1xf32, #tpu.memory_space<vmem>>, %arg39: memref<8x1xf32, #tpu.memory_space<vmem>>, %arg40: memref<8x72xf32, #tpu.memory_space<vmem>>, %arg41: memref<8x1xf32, #tpu.memory_space<vmem>>, %arg42: memref<8x1xf32, #tpu.memory_space<vmem>>, %arg43: memref<8x72xf32, #tpu.memory_space<vmem>>, %arg44: memref<8x1xf32, #tpu.memory_space<vmem>>, %arg45: memref<8x1xf32, #tpu.memory_space<vmem>>, %arg46: memref<16x72xf32, #tpu.memory_space<vmem>>, %arg47: memref<16x1xf32, #tpu.memory_space<vmem>>, %arg48: memref<16x1xf32, #tpu.memory_space<vmem>>, %arg49: memref<16x144xf32, #tpu.memory_space<vmem>>, %arg50: memref<16x1xf32, #tpu.memory_space<vmem>>, %arg51: memref<16x1xf32, #tpu.memory_space<vmem>>, %arg52: memref<16x8xf32, #tpu.memory_space<vmem>>, %arg53: memref<16x144xf32, #tpu.memory_space<vmem>>, %arg54: memref<16x1xf32, #tpu.memory_space<vmem>>, %arg55: memref<16x1xf32, #tpu.memory_space<vmem>>, %arg56: memref<16x16xf32, #tpu.memory_space<vmem>>, %arg57: memref<16x1xf32, #tpu.memory_space<vmem>>, %arg58: memref<16x1xf32, #tpu.memory_space<vmem>>, %arg59: memref<16x144xf32, #tpu.memory_space<vmem>>, %arg60: memref<16x1xf32, #tpu.memory_space<vmem>>, %arg61: memref<16x1xf32, #tpu.memory_space<vmem>>, %arg62: memref<16x144xf32, #tpu.memory_space<vmem>>, %arg63: memref<16x1xf32, #tpu.memory_space<vmem>>, %arg64: memref<16x1xf32, #tpu.memory_space<vmem>>, %arg65: memref<16x1xf32, #tpu.memory_space<vmem>>, %arg66: memref<16x1xf32, #tpu.memory_space<vmem>>, %arg67: memref<10x16xf32, #tpu.memory_space<vmem>>, %arg68: memref<10x1xf32, #tpu.memory_space<vmem>>, %arg69: memref<10x2xf32, #tpu.memory_space<vmem>>) attributes {dimension_semantics = [], scalar_prefetch = 0 : i64, scratch_operands = 0 : i64, tpu.core_type = #tpu.core_type<tc>} {
    %c0 = arith.constant 0 : index
    %c0_0 = arith.constant 0 : index
    %0 = vector.load %arg1[%c0, %c0_0] : memref<1x768xf32, #tpu.memory_space<vmem>>, vector<1x768xf32>
    %c0_1 = arith.constant 0 : index
    %c0_2 = arith.constant 0 : index
    %1 = vector.load %arg3[%c0_1, %c0_2] : memref<1x256xf32, #tpu.memory_space<vmem>>, vector<1x256xf32>
    %c0_3 = arith.constant 0 : index
    %c0_4 = arith.constant 0 : index
    %2 = vector.load %arg5[%c0_3, %c0_4] : memref<1x128xf32, #tpu.memory_space<vmem>>, vector<1x128xf32>
    %c0_5 = arith.constant 0 : index
    %c0_6 = arith.constant 0 : index
    %3 = vector.load %arg2[%c0_5, %c0_6] : memref<1x768xf32, #tpu.memory_space<vmem>>, vector<1x768xf32>
    %c0_7 = arith.constant 0 : index
    %c0_8 = arith.constant 0 : index
    %4 = vector.load %arg4[%c0_7, %c0_8] : memref<1x256xf32, #tpu.memory_space<vmem>>, vector<1x256xf32>
    %c0_9 = arith.constant 0 : index
    %c0_10 = arith.constant 0 : index
    %5 = vector.load %arg6[%c0_9, %c0_10] : memref<1x128xf32, #tpu.memory_space<vmem>>, vector<1x128xf32>
    %c0_11 = arith.constant 0 : index
    %c0_12 = arith.constant 0 : index
    %6 = vector.load %arg0[%c0_11, %c0_12] : memref<8x768xf32, #tpu.memory_space<vmem>>, vector<8x768xf32>
    %c19_i32 = arith.constant 19 : i32
    %7 = tpu.dynamic_rotate %6 by %c19_i32 dim 1 : vector<8x768xf32>, i32 -> vector<8x768xf32>
    %c18_i32 = arith.constant 18 : i32
    %8 = tpu.dynamic_rotate %6 by %c18_i32 dim 1 : vector<8x768xf32>, i32 -> vector<8x768xf32>
    %c17_i32 = arith.constant 17 : i32
    %9 = tpu.dynamic_rotate %6 by %c17_i32 dim 1 : vector<8x768xf32>, i32 -> vector<8x768xf32>
    %c1_i32 = arith.constant 1 : i32
    %10 = tpu.dynamic_rotate %6 by %c1_i32 dim 1 : vector<8x768xf32>, i32 -> vector<8x768xf32>
    %c767_i32 = arith.constant 767 : i32
    %11 = tpu.dynamic_rotate %6 by %c767_i32 dim 1 : vector<8x768xf32>, i32 -> vector<8x768xf32>
    %c751_i32 = arith.constant 751 : i32
    %12 = tpu.dynamic_rotate %6 by %c751_i32 dim 1 : vector<8x768xf32>, i32 -> vector<8x768xf32>
    %c750_i32 = arith.constant 750 : i32
    %13 = tpu.dynamic_rotate %6 by %c750_i32 dim 1 : vector<8x768xf32>, i32 -> vector<8x768xf32>
    %c749_i32 = arith.constant 749 : i32
    %14 = tpu.dynamic_rotate %6 by %c749_i32 dim 1 : vector<8x768xf32>, i32 -> vector<8x768xf32>
    %15 = tpu.concatenate %7, %8, %9, %10, %6, %11, %12, %13, %14 in 0 : vector<8x768xf32>, vector<8x768xf32>, vector<8x768xf32>, vector<8x768xf32>, vector<8x768xf32>, vector<8x768xf32>, vector<8x768xf32>, vector<8x768xf32>, vector<8x768xf32> -> vector<72x768xf32>
    %c0_13 = arith.constant 0 : index
    %c0_14 = arith.constant 0 : index
    %16 = vector.load %arg12[%c0_13, %c0_14] : memref<8x72xf32, #tpu.memory_space<vmem>>, vector<8x72xf32>
    %cst = arith.constant dense<0.000000e+00> : vector<8x768xf32>
    %17 = tpu.matmul %16, %15, %cst {dimension_numbers = #tpu.dot_dimension_numbers<[1], [0], [0], [1], [0, 0, 1, 1], [], []>} : vector<8x72xf32>, vector<72x768xf32>, vector<8x768xf32> -> vector<8x768xf32>
    %c0_15 = arith.constant 0 : index
    %c0_16 = arith.constant 0 : index
    %18 = vector.load %arg13[%c0_15, %c0_16] : memref<8x1xf32, #tpu.memory_space<vmem>>, vector<8x1xf32>
    %19 = vector.broadcast %18 : vector<8x1xf32> to vector<8x768xf32>
    %20 = arith.mulf %17, %19 : vector<8x768xf32>
    %c0_17 = arith.constant 0 : index
    %c0_18 = arith.constant 0 : index
    %21 = vector.load %arg14[%c0_17, %c0_18] : memref<8x1xf32, #tpu.memory_space<vmem>>, vector<8x1xf32>
    %22 = vector.broadcast %21 : vector<8x1xf32> to vector<8x768xf32>
    %23 = arith.addf %20, %22 : vector<8x768xf32>
    %24 = vector.broadcast %0 : vector<1x768xf32> to vector<8x768xf32>
    %25 = arith.mulf %23, %24 : vector<8x768xf32>
    %cst_19 = arith.constant 0.000000e+00 : f32
    %26 = vector.broadcast %cst_19 : f32 to vector<8x768xf32>
    %27 = arith.maximumf %25, %26 : vector<8x768xf32>
    %c19_i32_20 = arith.constant 19 : i32
    %28 = tpu.dynamic_rotate %27 by %c19_i32_20 dim 1 : vector<8x768xf32>, i32 -> vector<8x768xf32>
    %c18_i32_21 = arith.constant 18 : i32
    %29 = tpu.dynamic_rotate %27 by %c18_i32_21 dim 1 : vector<8x768xf32>, i32 -> vector<8x768xf32>
    %c17_i32_22 = arith.constant 17 : i32
    %30 = tpu.dynamic_rotate %27 by %c17_i32_22 dim 1 : vector<8x768xf32>, i32 -> vector<8x768xf32>
    %c1_i32_23 = arith.constant 1 : i32
    %31 = tpu.dynamic_rotate %27 by %c1_i32_23 dim 1 : vector<8x768xf32>, i32 -> vector<8x768xf32>
    %c767_i32_24 = arith.constant 767 : i32
    %32 = tpu.dynamic_rotate %27 by %c767_i32_24 dim 1 : vector<8x768xf32>, i32 -> vector<8x768xf32>
    %c751_i32_25 = arith.constant 751 : i32
    %33 = tpu.dynamic_rotate %27 by %c751_i32_25 dim 1 : vector<8x768xf32>, i32 -> vector<8x768xf32>
    %c750_i32_26 = arith.constant 750 : i32
    %34 = tpu.dynamic_rotate %27 by %c750_i32_26 dim 1 : vector<8x768xf32>, i32 -> vector<8x768xf32>
    %c749_i32_27 = arith.constant 749 : i32
    %35 = tpu.dynamic_rotate %27 by %c749_i32_27 dim 1 : vector<8x768xf32>, i32 -> vector<8x768xf32>
    %36 = tpu.concatenate %28, %29, %30, %31, %27, %32, %33, %34, %35 in 0 : vector<8x768xf32>, vector<8x768xf32>, vector<8x768xf32>, vector<8x768xf32>, vector<8x768xf32>, vector<8x768xf32>, vector<8x768xf32>, vector<8x768xf32>, vector<8x768xf32> -> vector<72x768xf32>
    %c0_28 = arith.constant 0 : index
    %c0_29 = arith.constant 0 : index
    %37 = vector.load %arg15[%c0_28, %c0_29] : memref<8x72xf32, #tpu.memory_space<vmem>>, vector<8x72xf32>
    %cst_30 = arith.constant dense<0.000000e+00> : vector<8x768xf32>
    %38 = tpu.matmul %37, %36, %cst_30 {dimension_numbers = #tpu.dot_dimension_numbers<[1], [0], [0], [1], [0, 0, 1, 1], [], []>} : vector<8x72xf32>, vector<72x768xf32>, vector<8x768xf32> -> vector<8x768xf32>
    %c0_31 = arith.constant 0 : index
    %c0_32 = arith.constant 0 : index
    %39 = vector.load %arg16[%c0_31, %c0_32] : memref<8x1xf32, #tpu.memory_space<vmem>>, vector<8x1xf32>
    %40 = vector.broadcast %39 : vector<8x1xf32> to vector<8x768xf32>
    %41 = arith.mulf %38, %40 : vector<8x768xf32>
    %c0_33 = arith.constant 0 : index
    %c0_34 = arith.constant 0 : index
    %42 = vector.load %arg17[%c0_33, %c0_34] : memref<8x1xf32, #tpu.memory_space<vmem>>, vector<8x1xf32>
    %43 = vector.broadcast %42 : vector<8x1xf32> to vector<8x768xf32>
    %44 = arith.addf %41, %43 : vector<8x768xf32>
    %45 = vector.broadcast %0 : vector<1x768xf32> to vector<8x768xf32>
    %46 = arith.mulf %44, %45 : vector<8x768xf32>
    %cst_35 = arith.constant 0.000000e+00 : f32
    %47 = vector.broadcast %cst_35 : f32 to vector<8x768xf32>
    %48 = arith.maximumf %25, %47 : vector<8x768xf32>
    %c0_36 = arith.constant 0 : index
    %c0_37 = arith.constant 0 : index
    %49 = vector.load %arg18[%c0_36, %c0_37] : memref<8x8xf32, #tpu.memory_space<vmem>>, vector<8x8xf32>
    %cst_38 = arith.constant dense<0.000000e+00> : vector<8x768xf32>
    %50 = tpu.matmul %49, %48, %cst_38 {dimension_numbers = #tpu.dot_dimension_numbers<[1], [0], [0], [1], [0, 0, 1, 1], [], []>} : vector<8x8xf32>, vector<8x768xf32>, vector<8x768xf32> -> vector<8x768xf32>
    %c0_39 = arith.constant 0 : index
    %c0_40 = arith.constant 0 : index
    %51 = vector.load %arg19[%c0_39, %c0_40] : memref<8x1xf32, #tpu.memory_space<vmem>>, vector<8x1xf32>
    %52 = vector.broadcast %51 : vector<8x1xf32> to vector<8x768xf32>
    %53 = arith.mulf %50, %52 : vector<8x768xf32>
    %c0_41 = arith.constant 0 : index
    %c0_42 = arith.constant 0 : index
    %54 = vector.load %arg20[%c0_41, %c0_42] : memref<8x1xf32, #tpu.memory_space<vmem>>, vector<8x1xf32>
    %55 = vector.broadcast %54 : vector<8x1xf32> to vector<8x768xf32>
    %56 = arith.addf %53, %55 : vector<8x768xf32>
    %57 = vector.broadcast %0 : vector<1x768xf32> to vector<8x768xf32>
    %58 = arith.mulf %56, %57 : vector<8x768xf32>
    %cst_43 = arith.constant 0.000000e+00 : f32
    %59 = vector.broadcast %cst_43 : f32 to vector<8x768xf32>
    %60 = arith.maximumf %46, %59 : vector<8x768xf32>
    %c19_i32_44 = arith.constant 19 : i32
    %61 = tpu.dynamic_rotate %60 by %c19_i32_44 dim 1 : vector<8x768xf32>, i32 -> vector<8x768xf32>
    %c18_i32_45 = arith.constant 18 : i32
    %62 = tpu.dynamic_rotate %60 by %c18_i32_45 dim 1 : vector<8x768xf32>, i32 -> vector<8x768xf32>
    %c17_i32_46 = arith.constant 17 : i32
    %63 = tpu.dynamic_rotate %60 by %c17_i32_46 dim 1 : vector<8x768xf32>, i32 -> vector<8x768xf32>
    %c1_i32_47 = arith.constant 1 : i32
    %64 = tpu.dynamic_rotate %60 by %c1_i32_47 dim 1 : vector<8x768xf32>, i32 -> vector<8x768xf32>
    %c767_i32_48 = arith.constant 767 : i32
    %65 = tpu.dynamic_rotate %60 by %c767_i32_48 dim 1 : vector<8x768xf32>, i32 -> vector<8x768xf32>
    %c751_i32_49 = arith.constant 751 : i32
    %66 = tpu.dynamic_rotate %60 by %c751_i32_49 dim 1 : vector<8x768xf32>, i32 -> vector<8x768xf32>
    %c750_i32_50 = arith.constant 750 : i32
    %67 = tpu.dynamic_rotate %60 by %c750_i32_50 dim 1 : vector<8x768xf32>, i32 -> vector<8x768xf32>
    %c749_i32_51 = arith.constant 749 : i32
    %68 = tpu.dynamic_rotate %60 by %c749_i32_51 dim 1 : vector<8x768xf32>, i32 -> vector<8x768xf32>
    %69 = tpu.concatenate %61, %62, %63, %64, %60, %65, %66, %67, %68 in 0 : vector<8x768xf32>, vector<8x768xf32>, vector<8x768xf32>, vector<8x768xf32>, vector<8x768xf32>, vector<8x768xf32>, vector<8x768xf32>, vector<8x768xf32>, vector<8x768xf32> -> vector<72x768xf32>
    %c0_52 = arith.constant 0 : index
    %c0_53 = arith.constant 0 : index
    %70 = vector.load %arg21[%c0_52, %c0_53] : memref<8x72xf32, #tpu.memory_space<vmem>>, vector<8x72xf32>
    %cst_54 = arith.constant dense<0.000000e+00> : vector<8x768xf32>
    %71 = tpu.matmul %70, %69, %cst_54 {dimension_numbers = #tpu.dot_dimension_numbers<[1], [0], [0], [1], [0, 0, 1, 1], [], []>} : vector<8x72xf32>, vector<72x768xf32>, vector<8x768xf32> -> vector<8x768xf32>
    %c0_55 = arith.constant 0 : index
    %c0_56 = arith.constant 0 : index
    %72 = vector.load %arg22[%c0_55, %c0_56] : memref<8x1xf32, #tpu.memory_space<vmem>>, vector<8x1xf32>
    %73 = vector.broadcast %72 : vector<8x1xf32> to vector<8x768xf32>
    %74 = arith.mulf %71, %73 : vector<8x768xf32>
    %c0_57 = arith.constant 0 : index
    %c0_58 = arith.constant 0 : index
    %75 = vector.load %arg23[%c0_57, %c0_58] : memref<8x1xf32, #tpu.memory_space<vmem>>, vector<8x1xf32>
    %76 = vector.broadcast %75 : vector<8x1xf32> to vector<8x768xf32>
    %77 = arith.addf %74, %76 : vector<8x768xf32>
    %78 = vector.broadcast %0 : vector<1x768xf32> to vector<8x768xf32>
    %79 = arith.mulf %77, %78 : vector<8x768xf32>
    %80 = arith.addf %58, %79 : vector<8x768xf32>
    %c19_i32_59 = arith.constant 19 : i32
    %81 = tpu.dynamic_rotate %46 by %c19_i32_59 dim 1 : vector<8x768xf32>, i32 -> vector<8x768xf32>
    %82 = arith.addf %46, %81 : vector<8x768xf32>
    %c18_i32_60 = arith.constant 18 : i32
    %83 = tpu.dynamic_rotate %46 by %c18_i32_60 dim 1 : vector<8x768xf32>, i32 -> vector<8x768xf32>
    %84 = arith.addf %82, %83 : vector<8x768xf32>
    %c17_i32_61 = arith.constant 17 : i32
    %85 = tpu.dynamic_rotate %46 by %c17_i32_61 dim 1 : vector<8x768xf32>, i32 -> vector<8x768xf32>
    %86 = arith.addf %84, %85 : vector<8x768xf32>
    %c1_i32_62 = arith.constant 1 : i32
    %87 = tpu.dynamic_rotate %46 by %c1_i32_62 dim 1 : vector<8x768xf32>, i32 -> vector<8x768xf32>
    %88 = arith.addf %86, %87 : vector<8x768xf32>
    %c767_i32_63 = arith.constant 767 : i32
    %89 = tpu.dynamic_rotate %46 by %c767_i32_63 dim 1 : vector<8x768xf32>, i32 -> vector<8x768xf32>
    %90 = arith.addf %88, %89 : vector<8x768xf32>
    %c751_i32_64 = arith.constant 751 : i32
    %91 = tpu.dynamic_rotate %46 by %c751_i32_64 dim 1 : vector<8x768xf32>, i32 -> vector<8x768xf32>
    %92 = arith.addf %90, %91 : vector<8x768xf32>
    %c750_i32_65 = arith.constant 750 : i32
    %93 = tpu.dynamic_rotate %46 by %c750_i32_65 dim 1 : vector<8x768xf32>, i32 -> vector<8x768xf32>
    %94 = arith.addf %92, %93 : vector<8x768xf32>
    %c749_i32_66 = arith.constant 749 : i32
    %95 = tpu.dynamic_rotate %46 by %c749_i32_66 dim 1 : vector<8x768xf32>, i32 -> vector<8x768xf32>
    %96 = arith.addf %94, %95 : vector<8x768xf32>
    %97 = vector.broadcast %3 : vector<1x768xf32> to vector<8x768xf32>
    %98 = arith.mulf %96, %97 : vector<8x768xf32>
    %99 = arith.addf %25, %98 : vector<8x768xf32>
    %cst_67 = arith.constant 0.000000e+00 : f32
    %100 = vector.broadcast %cst_67 : f32 to vector<8x768xf32>
    %101 = arith.maximumf %80, %100 : vector<8x768xf32>
    %c19_i32_68 = arith.constant 19 : i32
    %102 = tpu.dynamic_rotate %101 by %c19_i32_68 dim 1 : vector<8x768xf32>, i32 -> vector<8x768xf32>
    %c18_i32_69 = arith.constant 18 : i32
    %103 = tpu.dynamic_rotate %101 by %c18_i32_69 dim 1 : vector<8x768xf32>, i32 -> vector<8x768xf32>
    %c17_i32_70 = arith.constant 17 : i32
    %104 = tpu.dynamic_rotate %101 by %c17_i32_70 dim 1 : vector<8x768xf32>, i32 -> vector<8x768xf32>
    %c1_i32_71 = arith.constant 1 : i32
    %105 = tpu.dynamic_rotate %101 by %c1_i32_71 dim 1 : vector<8x768xf32>, i32 -> vector<8x768xf32>
    %c767_i32_72 = arith.constant 767 : i32
    %106 = tpu.dynamic_rotate %101 by %c767_i32_72 dim 1 : vector<8x768xf32>, i32 -> vector<8x768xf32>
    %c751_i32_73 = arith.constant 751 : i32
    %107 = tpu.dynamic_rotate %101 by %c751_i32_73 dim 1 : vector<8x768xf32>, i32 -> vector<8x768xf32>
    %c750_i32_74 = arith.constant 750 : i32
    %108 = tpu.dynamic_rotate %101 by %c750_i32_74 dim 1 : vector<8x768xf32>, i32 -> vector<8x768xf32>
    %c749_i32_75 = arith.constant 749 : i32
    %109 = tpu.dynamic_rotate %101 by %c749_i32_75 dim 1 : vector<8x768xf32>, i32 -> vector<8x768xf32>
    %110 = tpu.concatenate %102, %103, %104, %105, %101, %106, %107, %108, %109 in 0 : vector<8x768xf32>, vector<8x768xf32>, vector<8x768xf32>, vector<8x768xf32>, vector<8x768xf32>, vector<8x768xf32>, vector<8x768xf32>, vector<8x768xf32>, vector<8x768xf32> -> vector<72x768xf32>
    %c0_76 = arith.constant 0 : index
    %c0_77 = arith.constant 0 : index
    %111 = vector.load %arg24[%c0_76, %c0_77] : memref<8x72xf32, #tpu.memory_space<vmem>>, vector<8x72xf32>
    %cst_78 = arith.constant dense<0.000000e+00> : vector<8x768xf32>
    %112 = tpu.matmul %111, %110, %cst_78 {dimension_numbers = #tpu.dot_dimension_numbers<[1], [0], [0], [1], [0, 0, 1, 1], [], []>} : vector<8x72xf32>, vector<72x768xf32>, vector<8x768xf32> -> vector<8x768xf32>
    %c0_79 = arith.constant 0 : index
    %c0_80 = arith.constant 0 : index
    %113 = vector.load %arg25[%c0_79, %c0_80] : memref<8x1xf32, #tpu.memory_space<vmem>>, vector<8x1xf32>
    %114 = vector.broadcast %113 : vector<8x1xf32> to vector<8x768xf32>
    %115 = arith.mulf %112, %114 : vector<8x768xf32>
    %c0_81 = arith.constant 0 : index
    %c0_82 = arith.constant 0 : index
    %116 = vector.load %arg26[%c0_81, %c0_82] : memref<8x1xf32, #tpu.memory_space<vmem>>, vector<8x1xf32>
    %117 = vector.broadcast %116 : vector<8x1xf32> to vector<8x768xf32>
    %118 = arith.addf %115, %117 : vector<8x768xf32>
    %119 = vector.broadcast %0 : vector<1x768xf32> to vector<8x768xf32>
    %120 = arith.mulf %118, %119 : vector<8x768xf32>
    %121 = arith.addf %99, %120 : vector<8x768xf32>
    %cst_83 = arith.constant 0.000000e+00 : f32
    %122 = vector.broadcast %cst_83 : f32 to vector<8x768xf32>
    %123 = arith.maximumf %121, %122 : vector<8x768xf32>
    %c19_i32_84 = arith.constant 19 : i32
    %124 = tpu.dynamic_rotate %123 by %c19_i32_84 dim 1 : vector<8x768xf32>, i32 -> vector<8x768xf32>
    %c18_i32_85 = arith.constant 18 : i32
    %125 = tpu.dynamic_rotate %123 by %c18_i32_85 dim 1 : vector<8x768xf32>, i32 -> vector<8x768xf32>
    %c17_i32_86 = arith.constant 17 : i32
    %126 = tpu.dynamic_rotate %123 by %c17_i32_86 dim 1 : vector<8x768xf32>, i32 -> vector<8x768xf32>
    %c1_i32_87 = arith.constant 1 : i32
    %127 = tpu.dynamic_rotate %123 by %c1_i32_87 dim 1 : vector<8x768xf32>, i32 -> vector<8x768xf32>
    %c767_i32_88 = arith.constant 767 : i32
    %128 = tpu.dynamic_rotate %123 by %c767_i32_88 dim 1 : vector<8x768xf32>, i32 -> vector<8x768xf32>
    %c751_i32_89 = arith.constant 751 : i32
    %129 = tpu.dynamic_rotate %123 by %c751_i32_89 dim 1 : vector<8x768xf32>, i32 -> vector<8x768xf32>
    %c750_i32_90 = arith.constant 750 : i32
    %130 = tpu.dynamic_rotate %123 by %c750_i32_90 dim 1 : vector<8x768xf32>, i32 -> vector<8x768xf32>
    %c749_i32_91 = arith.constant 749 : i32
    %131 = tpu.dynamic_rotate %123 by %c749_i32_91 dim 1 : vector<8x768xf32>, i32 -> vector<8x768xf32>
    %132 = tpu.concatenate %124, %125, %126, %127, %123, %128, %129, %130, %131 in 0 : vector<8x768xf32>, vector<8x768xf32>, vector<8x768xf32>, vector<8x768xf32>, vector<8x768xf32>, vector<8x768xf32>, vector<8x768xf32>, vector<8x768xf32>, vector<8x768xf32> -> vector<72x768xf32>
    %c0_92 = arith.constant 0 : index
    %c0_93 = arith.constant 0 : index
    %133 = vector.load %arg27[%c0_92, %c0_93] : memref<8x72xf32, #tpu.memory_space<vmem>>, vector<8x72xf32>
    %cst_94 = arith.constant dense<0.000000e+00> : vector<8x768xf32>
    %134 = tpu.matmul %133, %132, %cst_94 {dimension_numbers = #tpu.dot_dimension_numbers<[1], [0], [0], [1], [0, 0, 1, 1], [], []>} : vector<8x72xf32>, vector<72x768xf32>, vector<8x768xf32> -> vector<8x768xf32>
    %c0_95 = arith.constant 0 : index
    %c0_96 = arith.constant 0 : index
    %135 = vector.load %arg7[%c0_95, %c0_96] : memref<768x256xf32, #tpu.memory_space<vmem>>, vector<768x256xf32>
    %cst_97 = arith.constant dense<0.000000e+00> : vector<8x256xf32>
    %136 = tpu.matmul %134, %135, %cst_97 {dimension_numbers = #tpu.dot_dimension_numbers<[1], [0], [0], [1], [0, 0, 1, 1], [], []>} : vector<8x768xf32>, vector<768x256xf32>, vector<8x256xf32> -> vector<8x256xf32>
    %c0_98 = arith.constant 0 : index
    %c0_99 = arith.constant 0 : index
    %137 = vector.load %arg28[%c0_98, %c0_99] : memref<8x1xf32, #tpu.memory_space<vmem>>, vector<8x1xf32>
    %138 = vector.broadcast %137 : vector<8x1xf32> to vector<8x256xf32>
    %139 = arith.mulf %136, %138 : vector<8x256xf32>
    %c0_100 = arith.constant 0 : index
    %c0_101 = arith.constant 0 : index
    %140 = vector.load %arg29[%c0_100, %c0_101] : memref<8x1xf32, #tpu.memory_space<vmem>>, vector<8x1xf32>
    %141 = vector.broadcast %140 : vector<8x1xf32> to vector<8x256xf32>
    %142 = arith.addf %139, %141 : vector<8x256xf32>
    %143 = vector.broadcast %1 : vector<1x256xf32> to vector<8x256xf32>
    %144 = arith.mulf %142, %143 : vector<8x256xf32>
    %cst_102 = arith.constant 0.000000e+00 : f32
    %145 = vector.broadcast %cst_102 : f32 to vector<8x256xf32>
    %146 = arith.maximumf %144, %145 : vector<8x256xf32>
    %c11_i32 = arith.constant 11 : i32
    %147 = tpu.dynamic_rotate %146 by %c11_i32 dim 1 : vector<8x256xf32>, i32 -> vector<8x256xf32>
    %c10_i32 = arith.constant 10 : i32
    %148 = tpu.dynamic_rotate %146 by %c10_i32 dim 1 : vector<8x256xf32>, i32 -> vector<8x256xf32>
    %c9_i32 = arith.constant 9 : i32
    %149 = tpu.dynamic_rotate %146 by %c9_i32 dim 1 : vector<8x256xf32>, i32 -> vector<8x256xf32>
    %c1_i32_103 = arith.constant 1 : i32
    %150 = tpu.dynamic_rotate %146 by %c1_i32_103 dim 1 : vector<8x256xf32>, i32 -> vector<8x256xf32>
    %c255_i32 = arith.constant 255 : i32
    %151 = tpu.dynamic_rotate %146 by %c255_i32 dim 1 : vector<8x256xf32>, i32 -> vector<8x256xf32>
    %c247_i32 = arith.constant 247 : i32
    %152 = tpu.dynamic_rotate %146 by %c247_i32 dim 1 : vector<8x256xf32>, i32 -> vector<8x256xf32>
    %c246_i32 = arith.constant 246 : i32
    %153 = tpu.dynamic_rotate %146 by %c246_i32 dim 1 : vector<8x256xf32>, i32 -> vector<8x256xf32>
    %c245_i32 = arith.constant 245 : i32
    %154 = tpu.dynamic_rotate %146 by %c245_i32 dim 1 : vector<8x256xf32>, i32 -> vector<8x256xf32>
    %155 = tpu.concatenate %147, %148, %149, %150, %146, %151, %152, %153, %154 in 0 : vector<8x256xf32>, vector<8x256xf32>, vector<8x256xf32>, vector<8x256xf32>, vector<8x256xf32>, vector<8x256xf32>, vector<8x256xf32>, vector<8x256xf32>, vector<8x256xf32> -> vector<72x256xf32>
    %c0_104 = arith.constant 0 : index
    %c0_105 = arith.constant 0 : index
    %156 = vector.load %arg30[%c0_104, %c0_105] : memref<8x72xf32, #tpu.memory_space<vmem>>, vector<8x72xf32>
    %cst_106 = arith.constant dense<0.000000e+00> : vector<8x256xf32>
    %157 = tpu.matmul %156, %155, %cst_106 {dimension_numbers = #tpu.dot_dimension_numbers<[1], [0], [0], [1], [0, 0, 1, 1], [], []>} : vector<8x72xf32>, vector<72x256xf32>, vector<8x256xf32> -> vector<8x256xf32>
    %c0_107 = arith.constant 0 : index
    %c0_108 = arith.constant 0 : index
    %158 = vector.load %arg31[%c0_107, %c0_108] : memref<8x1xf32, #tpu.memory_space<vmem>>, vector<8x1xf32>
    %159 = vector.broadcast %158 : vector<8x1xf32> to vector<8x256xf32>
    %160 = arith.mulf %157, %159 : vector<8x256xf32>
    %c0_109 = arith.constant 0 : index
    %c0_110 = arith.constant 0 : index
    %161 = vector.load %arg32[%c0_109, %c0_110] : memref<8x1xf32, #tpu.memory_space<vmem>>, vector<8x1xf32>
    %162 = vector.broadcast %161 : vector<8x1xf32> to vector<8x256xf32>
    %163 = arith.addf %160, %162 : vector<8x256xf32>
    %164 = vector.broadcast %1 : vector<1x256xf32> to vector<8x256xf32>
    %165 = arith.mulf %163, %164 : vector<8x256xf32>
    %c0_111 = arith.constant 0 : index
    %c0_112 = arith.constant 0 : index
    %166 = vector.load %arg8[%c0_111, %c0_112] : memref<768x256xf32, #tpu.memory_space<vmem>>, vector<768x256xf32>
    %cst_113 = arith.constant dense<0.000000e+00> : vector<8x256xf32>
    %167 = tpu.matmul %121, %166, %cst_113 {dimension_numbers = #tpu.dot_dimension_numbers<[1], [0], [0], [1], [0, 0, 1, 1], [], []>} : vector<8x768xf32>, vector<768x256xf32>, vector<8x256xf32> -> vector<8x256xf32>
    %c0_114 = arith.constant 0 : index
    %c0_115 = arith.constant 0 : index
    %168 = vector.load %arg33[%c0_114, %c0_115] : memref<8x8xf32, #tpu.memory_space<vmem>>, vector<8x8xf32>
    %cst_116 = arith.constant dense<0.000000e+00> : vector<8x256xf32>
    %169 = tpu.matmul %168, %167, %cst_116 {dimension_numbers = #tpu.dot_dimension_numbers<[1], [0], [0], [1], [0, 0, 1, 1], [], []>} : vector<8x8xf32>, vector<8x256xf32>, vector<8x256xf32> -> vector<8x256xf32>
    %170 = arith.addf %165, %169 : vector<8x256xf32>
    %cst_117 = arith.constant 0.000000e+00 : f32
    %171 = vector.broadcast %cst_117 : f32 to vector<8x256xf32>
    %172 = arith.maximumf %170, %171 : vector<8x256xf32>
    %c11_i32_118 = arith.constant 11 : i32
    %173 = tpu.dynamic_rotate %172 by %c11_i32_118 dim 1 : vector<8x256xf32>, i32 -> vector<8x256xf32>
    %c10_i32_119 = arith.constant 10 : i32
    %174 = tpu.dynamic_rotate %172 by %c10_i32_119 dim 1 : vector<8x256xf32>, i32 -> vector<8x256xf32>
    %c9_i32_120 = arith.constant 9 : i32
    %175 = tpu.dynamic_rotate %172 by %c9_i32_120 dim 1 : vector<8x256xf32>, i32 -> vector<8x256xf32>
    %c1_i32_121 = arith.constant 1 : i32
    %176 = tpu.dynamic_rotate %172 by %c1_i32_121 dim 1 : vector<8x256xf32>, i32 -> vector<8x256xf32>
    %c255_i32_122 = arith.constant 255 : i32
    %177 = tpu.dynamic_rotate %172 by %c255_i32_122 dim 1 : vector<8x256xf32>, i32 -> vector<8x256xf32>
    %c247_i32_123 = arith.constant 247 : i32
    %178 = tpu.dynamic_rotate %172 by %c247_i32_123 dim 1 : vector<8x256xf32>, i32 -> vector<8x256xf32>
    %c246_i32_124 = arith.constant 246 : i32
    %179 = tpu.dynamic_rotate %172 by %c246_i32_124 dim 1 : vector<8x256xf32>, i32 -> vector<8x256xf32>
    %c245_i32_125 = arith.constant 245 : i32
    %180 = tpu.dynamic_rotate %172 by %c245_i32_125 dim 1 : vector<8x256xf32>, i32 -> vector<8x256xf32>
    %181 = tpu.concatenate %173, %174, %175, %176, %172, %177, %178, %179, %180 in 0 : vector<8x256xf32>, vector<8x256xf32>, vector<8x256xf32>, vector<8x256xf32>, vector<8x256xf32>, vector<8x256xf32>, vector<8x256xf32>, vector<8x256xf32>, vector<8x256xf32> -> vector<72x256xf32>
    %c0_126 = arith.constant 0 : index
    %c0_127 = arith.constant 0 : index
    %182 = vector.load %arg34[%c0_126, %c0_127] : memref<8x72xf32, #tpu.memory_space<vmem>>, vector<8x72xf32>
    %cst_128 = arith.constant dense<0.000000e+00> : vector<8x256xf32>
    %183 = tpu.matmul %182, %181, %cst_128 {dimension_numbers = #tpu.dot_dimension_numbers<[1], [0], [0], [1], [0, 0, 1, 1], [], []>} : vector<8x72xf32>, vector<72x256xf32>, vector<8x256xf32> -> vector<8x256xf32>
    %c0_129 = arith.constant 0 : index
    %c0_130 = arith.constant 0 : index
    %184 = vector.load %arg35[%c0_129, %c0_130] : memref<8x1xf32, #tpu.memory_space<vmem>>, vector<8x1xf32>
    %185 = vector.broadcast %184 : vector<8x1xf32> to vector<8x256xf32>
    %186 = arith.mulf %183, %185 : vector<8x256xf32>
    %c0_131 = arith.constant 0 : index
    %c0_132 = arith.constant 0 : index
    %187 = vector.load %arg36[%c0_131, %c0_132] : memref<8x1xf32, #tpu.memory_space<vmem>>, vector<8x1xf32>
    %188 = vector.broadcast %187 : vector<8x1xf32> to vector<8x256xf32>
    %189 = arith.addf %186, %188 : vector<8x256xf32>
    %190 = vector.broadcast %1 : vector<1x256xf32> to vector<8x256xf32>
    %191 = arith.mulf %189, %190 : vector<8x256xf32>
    %cst_133 = arith.constant 0.000000e+00 : f32
    %192 = vector.broadcast %cst_133 : f32 to vector<8x256xf32>
    %193 = arith.maximumf %170, %192 : vector<8x256xf32>
    %c0_134 = arith.constant 0 : index
    %c0_135 = arith.constant 0 : index
    %194 = vector.load %arg37[%c0_134, %c0_135] : memref<8x8xf32, #tpu.memory_space<vmem>>, vector<8x8xf32>
    %cst_136 = arith.constant dense<0.000000e+00> : vector<8x256xf32>
    %195 = tpu.matmul %194, %193, %cst_136 {dimension_numbers = #tpu.dot_dimension_numbers<[1], [0], [0], [1], [0, 0, 1, 1], [], []>} : vector<8x8xf32>, vector<8x256xf32>, vector<8x256xf32> -> vector<8x256xf32>
    %c0_137 = arith.constant 0 : index
    %c0_138 = arith.constant 0 : index
    %196 = vector.load %arg38[%c0_137, %c0_138] : memref<8x1xf32, #tpu.memory_space<vmem>>, vector<8x1xf32>
    %197 = vector.broadcast %196 : vector<8x1xf32> to vector<8x256xf32>
    %198 = arith.mulf %195, %197 : vector<8x256xf32>
    %c0_139 = arith.constant 0 : index
    %c0_140 = arith.constant 0 : index
    %199 = vector.load %arg39[%c0_139, %c0_140] : memref<8x1xf32, #tpu.memory_space<vmem>>, vector<8x1xf32>
    %200 = vector.broadcast %199 : vector<8x1xf32> to vector<8x256xf32>
    %201 = arith.addf %198, %200 : vector<8x256xf32>
    %202 = vector.broadcast %1 : vector<1x256xf32> to vector<8x256xf32>
    %203 = arith.mulf %201, %202 : vector<8x256xf32>
    %cst_141 = arith.constant 0.000000e+00 : f32
    %204 = vector.broadcast %cst_141 : f32 to vector<8x256xf32>
    %205 = arith.maximumf %191, %204 : vector<8x256xf32>
    %c11_i32_142 = arith.constant 11 : i32
    %206 = tpu.dynamic_rotate %205 by %c11_i32_142 dim 1 : vector<8x256xf32>, i32 -> vector<8x256xf32>
    %c10_i32_143 = arith.constant 10 : i32
    %207 = tpu.dynamic_rotate %205 by %c10_i32_143 dim 1 : vector<8x256xf32>, i32 -> vector<8x256xf32>
    %c9_i32_144 = arith.constant 9 : i32
    %208 = tpu.dynamic_rotate %205 by %c9_i32_144 dim 1 : vector<8x256xf32>, i32 -> vector<8x256xf32>
    %c1_i32_145 = arith.constant 1 : i32
    %209 = tpu.dynamic_rotate %205 by %c1_i32_145 dim 1 : vector<8x256xf32>, i32 -> vector<8x256xf32>
    %c255_i32_146 = arith.constant 255 : i32
    %210 = tpu.dynamic_rotate %205 by %c255_i32_146 dim 1 : vector<8x256xf32>, i32 -> vector<8x256xf32>
    %c247_i32_147 = arith.constant 247 : i32
    %211 = tpu.dynamic_rotate %205 by %c247_i32_147 dim 1 : vector<8x256xf32>, i32 -> vector<8x256xf32>
    %c246_i32_148 = arith.constant 246 : i32
    %212 = tpu.dynamic_rotate %205 by %c246_i32_148 dim 1 : vector<8x256xf32>, i32 -> vector<8x256xf32>
    %c245_i32_149 = arith.constant 245 : i32
    %213 = tpu.dynamic_rotate %205 by %c245_i32_149 dim 1 : vector<8x256xf32>, i32 -> vector<8x256xf32>
    %214 = tpu.concatenate %206, %207, %208, %209, %205, %210, %211, %212, %213 in 0 : vector<8x256xf32>, vector<8x256xf32>, vector<8x256xf32>, vector<8x256xf32>, vector<8x256xf32>, vector<8x256xf32>, vector<8x256xf32>, vector<8x256xf32>, vector<8x256xf32> -> vector<72x256xf32>
    %c0_150 = arith.constant 0 : index
    %c0_151 = arith.constant 0 : index
    %215 = vector.load %arg40[%c0_150, %c0_151] : memref<8x72xf32, #tpu.memory_space<vmem>>, vector<8x72xf32>
    %cst_152 = arith.constant dense<0.000000e+00> : vector<8x256xf32>
    %216 = tpu.matmul %215, %214, %cst_152 {dimension_numbers = #tpu.dot_dimension_numbers<[1], [0], [0], [1], [0, 0, 1, 1], [], []>} : vector<8x72xf32>, vector<72x256xf32>, vector<8x256xf32> -> vector<8x256xf32>
    %c0_153 = arith.constant 0 : index
    %c0_154 = arith.constant 0 : index
    %217 = vector.load %arg41[%c0_153, %c0_154] : memref<8x1xf32, #tpu.memory_space<vmem>>, vector<8x1xf32>
    %218 = vector.broadcast %217 : vector<8x1xf32> to vector<8x256xf32>
    %219 = arith.mulf %216, %218 : vector<8x256xf32>
    %c0_155 = arith.constant 0 : index
    %c0_156 = arith.constant 0 : index
    %220 = vector.load %arg42[%c0_155, %c0_156] : memref<8x1xf32, #tpu.memory_space<vmem>>, vector<8x1xf32>
    %221 = vector.broadcast %220 : vector<8x1xf32> to vector<8x256xf32>
    %222 = arith.addf %219, %221 : vector<8x256xf32>
    %223 = vector.broadcast %1 : vector<1x256xf32> to vector<8x256xf32>
    %224 = arith.mulf %222, %223 : vector<8x256xf32>
    %225 = arith.addf %203, %224 : vector<8x256xf32>
    %c11_i32_157 = arith.constant 11 : i32
    %226 = tpu.dynamic_rotate %191 by %c11_i32_157 dim 1 : vector<8x256xf32>, i32 -> vector<8x256xf32>
    %227 = arith.addf %191, %226 : vector<8x256xf32>
    %c10_i32_158 = arith.constant 10 : i32
    %228 = tpu.dynamic_rotate %191 by %c10_i32_158 dim 1 : vector<8x256xf32>, i32 -> vector<8x256xf32>
    %229 = arith.addf %227, %228 : vector<8x256xf32>
    %c9_i32_159 = arith.constant 9 : i32
    %230 = tpu.dynamic_rotate %191 by %c9_i32_159 dim 1 : vector<8x256xf32>, i32 -> vector<8x256xf32>
    %231 = arith.addf %229, %230 : vector<8x256xf32>
    %c1_i32_160 = arith.constant 1 : i32
    %232 = tpu.dynamic_rotate %191 by %c1_i32_160 dim 1 : vector<8x256xf32>, i32 -> vector<8x256xf32>
    %233 = arith.addf %231, %232 : vector<8x256xf32>
    %c255_i32_161 = arith.constant 255 : i32
    %234 = tpu.dynamic_rotate %191 by %c255_i32_161 dim 1 : vector<8x256xf32>, i32 -> vector<8x256xf32>
    %235 = arith.addf %233, %234 : vector<8x256xf32>
    %c247_i32_162 = arith.constant 247 : i32
    %236 = tpu.dynamic_rotate %191 by %c247_i32_162 dim 1 : vector<8x256xf32>, i32 -> vector<8x256xf32>
    %237 = arith.addf %235, %236 : vector<8x256xf32>
    %c246_i32_163 = arith.constant 246 : i32
    %238 = tpu.dynamic_rotate %191 by %c246_i32_163 dim 1 : vector<8x256xf32>, i32 -> vector<8x256xf32>
    %239 = arith.addf %237, %238 : vector<8x256xf32>
    %c245_i32_164 = arith.constant 245 : i32
    %240 = tpu.dynamic_rotate %191 by %c245_i32_164 dim 1 : vector<8x256xf32>, i32 -> vector<8x256xf32>
    %241 = arith.addf %239, %240 : vector<8x256xf32>
    %242 = vector.broadcast %4 : vector<1x256xf32> to vector<8x256xf32>
    %243 = arith.mulf %241, %242 : vector<8x256xf32>
    %244 = arith.addf %170, %243 : vector<8x256xf32>
    %cst_165 = arith.constant 0.000000e+00 : f32
    %245 = vector.broadcast %cst_165 : f32 to vector<8x256xf32>
    %246 = arith.maximumf %225, %245 : vector<8x256xf32>
    %c11_i32_166 = arith.constant 11 : i32
    %247 = tpu.dynamic_rotate %246 by %c11_i32_166 dim 1 : vector<8x256xf32>, i32 -> vector<8x256xf32>
    %c10_i32_167 = arith.constant 10 : i32
    %248 = tpu.dynamic_rotate %246 by %c10_i32_167 dim 1 : vector<8x256xf32>, i32 -> vector<8x256xf32>
    %c9_i32_168 = arith.constant 9 : i32
    %249 = tpu.dynamic_rotate %246 by %c9_i32_168 dim 1 : vector<8x256xf32>, i32 -> vector<8x256xf32>
    %c1_i32_169 = arith.constant 1 : i32
    %250 = tpu.dynamic_rotate %246 by %c1_i32_169 dim 1 : vector<8x256xf32>, i32 -> vector<8x256xf32>
    %c255_i32_170 = arith.constant 255 : i32
    %251 = tpu.dynamic_rotate %246 by %c255_i32_170 dim 1 : vector<8x256xf32>, i32 -> vector<8x256xf32>
    %c247_i32_171 = arith.constant 247 : i32
    %252 = tpu.dynamic_rotate %246 by %c247_i32_171 dim 1 : vector<8x256xf32>, i32 -> vector<8x256xf32>
    %c246_i32_172 = arith.constant 246 : i32
    %253 = tpu.dynamic_rotate %246 by %c246_i32_172 dim 1 : vector<8x256xf32>, i32 -> vector<8x256xf32>
    %c245_i32_173 = arith.constant 245 : i32
    %254 = tpu.dynamic_rotate %246 by %c245_i32_173 dim 1 : vector<8x256xf32>, i32 -> vector<8x256xf32>
    %255 = tpu.concatenate %247, %248, %249, %250, %246, %251, %252, %253, %254 in 0 : vector<8x256xf32>, vector<8x256xf32>, vector<8x256xf32>, vector<8x256xf32>, vector<8x256xf32>, vector<8x256xf32>, vector<8x256xf32>, vector<8x256xf32>, vector<8x256xf32> -> vector<72x256xf32>
    %c0_174 = arith.constant 0 : index
    %c0_175 = arith.constant 0 : index
    %256 = vector.load %arg43[%c0_174, %c0_175] : memref<8x72xf32, #tpu.memory_space<vmem>>, vector<8x72xf32>
    %cst_176 = arith.constant dense<0.000000e+00> : vector<8x256xf32>
    %257 = tpu.matmul %256, %255, %cst_176 {dimension_numbers = #tpu.dot_dimension_numbers<[1], [0], [0], [1], [0, 0, 1, 1], [], []>} : vector<8x72xf32>, vector<72x256xf32>, vector<8x256xf32> -> vector<8x256xf32>
    %c0_177 = arith.constant 0 : index
    %c0_178 = arith.constant 0 : index
    %258 = vector.load %arg44[%c0_177, %c0_178] : memref<8x1xf32, #tpu.memory_space<vmem>>, vector<8x1xf32>
    %259 = vector.broadcast %258 : vector<8x1xf32> to vector<8x256xf32>
    %260 = arith.mulf %257, %259 : vector<8x256xf32>
    %c0_179 = arith.constant 0 : index
    %c0_180 = arith.constant 0 : index
    %261 = vector.load %arg45[%c0_179, %c0_180] : memref<8x1xf32, #tpu.memory_space<vmem>>, vector<8x1xf32>
    %262 = vector.broadcast %261 : vector<8x1xf32> to vector<8x256xf32>
    %263 = arith.addf %260, %262 : vector<8x256xf32>
    %264 = vector.broadcast %1 : vector<1x256xf32> to vector<8x256xf32>
    %265 = arith.mulf %263, %264 : vector<8x256xf32>
    %266 = arith.addf %244, %265 : vector<8x256xf32>
    %cst_181 = arith.constant 0.000000e+00 : f32
    %267 = vector.broadcast %cst_181 : f32 to vector<8x256xf32>
    %268 = arith.maximumf %266, %267 : vector<8x256xf32>
    %c11_i32_182 = arith.constant 11 : i32
    %269 = tpu.dynamic_rotate %268 by %c11_i32_182 dim 1 : vector<8x256xf32>, i32 -> vector<8x256xf32>
    %c10_i32_183 = arith.constant 10 : i32
    %270 = tpu.dynamic_rotate %268 by %c10_i32_183 dim 1 : vector<8x256xf32>, i32 -> vector<8x256xf32>
    %c9_i32_184 = arith.constant 9 : i32
    %271 = tpu.dynamic_rotate %268 by %c9_i32_184 dim 1 : vector<8x256xf32>, i32 -> vector<8x256xf32>
    %c1_i32_185 = arith.constant 1 : i32
    %272 = tpu.dynamic_rotate %268 by %c1_i32_185 dim 1 : vector<8x256xf32>, i32 -> vector<8x256xf32>
    %c255_i32_186 = arith.constant 255 : i32
    %273 = tpu.dynamic_rotate %268 by %c255_i32_186 dim 1 : vector<8x256xf32>, i32 -> vector<8x256xf32>
    %c247_i32_187 = arith.constant 247 : i32
    %274 = tpu.dynamic_rotate %268 by %c247_i32_187 dim 1 : vector<8x256xf32>, i32 -> vector<8x256xf32>
    %c246_i32_188 = arith.constant 246 : i32
    %275 = tpu.dynamic_rotate %268 by %c246_i32_188 dim 1 : vector<8x256xf32>, i32 -> vector<8x256xf32>
    %c245_i32_189 = arith.constant 245 : i32
    %276 = tpu.dynamic_rotate %268 by %c245_i32_189 dim 1 : vector<8x256xf32>, i32 -> vector<8x256xf32>
    %277 = tpu.concatenate %269, %270, %271, %272, %268, %273, %274, %275, %276 in 0 : vector<8x256xf32>, vector<8x256xf32>, vector<8x256xf32>, vector<8x256xf32>, vector<8x256xf32>, vector<8x256xf32>, vector<8x256xf32>, vector<8x256xf32>, vector<8x256xf32> -> vector<72x256xf32>
    %c0_190 = arith.constant 0 : index
    %c0_191 = arith.constant 0 : index
    %278 = vector.load %arg46[%c0_190, %c0_191] : memref<16x72xf32, #tpu.memory_space<vmem>>, vector<16x72xf32>
    %cst_192 = arith.constant dense<0.000000e+00> : vector<16x256xf32>
    %279 = tpu.matmul %278, %277, %cst_192 {dimension_numbers = #tpu.dot_dimension_numbers<[1], [0], [0], [1], [0, 0, 1, 1], [], []>} : vector<16x72xf32>, vector<72x256xf32>, vector<16x256xf32> -> vector<16x256xf32>
    %c0_193 = arith.constant 0 : index
    %c0_194 = arith.constant 0 : index
    %280 = vector.load %arg9[%c0_193, %c0_194] : memref<256x128xf32, #tpu.memory_space<vmem>>, vector<256x128xf32>
    %cst_195 = arith.constant dense<0.000000e+00> : vector<16x128xf32>
    %281 = tpu.matmul %279, %280, %cst_195 {dimension_numbers = #tpu.dot_dimension_numbers<[1], [0], [0], [1], [0, 0, 1, 1], [], []>} : vector<16x256xf32>, vector<256x128xf32>, vector<16x128xf32> -> vector<16x128xf32>
    %c0_196 = arith.constant 0 : index
    %c0_197 = arith.constant 0 : index
    %282 = vector.load %arg47[%c0_196, %c0_197] : memref<16x1xf32, #tpu.memory_space<vmem>>, vector<16x1xf32>
    %283 = vector.broadcast %282 : vector<16x1xf32> to vector<16x128xf32>
    %284 = arith.mulf %281, %283 : vector<16x128xf32>
    %c0_198 = arith.constant 0 : index
    %c0_199 = arith.constant 0 : index
    %285 = vector.load %arg48[%c0_198, %c0_199] : memref<16x1xf32, #tpu.memory_space<vmem>>, vector<16x1xf32>
    %286 = vector.broadcast %285 : vector<16x1xf32> to vector<16x128xf32>
    %287 = arith.addf %284, %286 : vector<16x128xf32>
    %288 = vector.broadcast %2 : vector<1x128xf32> to vector<16x128xf32>
    %289 = arith.mulf %287, %288 : vector<16x128xf32>
    %cst_200 = arith.constant 0.000000e+00 : f32
    %290 = vector.broadcast %cst_200 : f32 to vector<16x128xf32>
    %291 = arith.maximumf %289, %290 : vector<16x128xf32>
    %c7_i32 = arith.constant 7 : i32
    %292 = tpu.dynamic_rotate %291 by %c7_i32 dim 1 : vector<16x128xf32>, i32 -> vector<16x128xf32>
    %c6_i32 = arith.constant 6 : i32
    %293 = tpu.dynamic_rotate %291 by %c6_i32 dim 1 : vector<16x128xf32>, i32 -> vector<16x128xf32>
    %c5_i32 = arith.constant 5 : i32
    %294 = tpu.dynamic_rotate %291 by %c5_i32 dim 1 : vector<16x128xf32>, i32 -> vector<16x128xf32>
    %c1_i32_201 = arith.constant 1 : i32
    %295 = tpu.dynamic_rotate %291 by %c1_i32_201 dim 1 : vector<16x128xf32>, i32 -> vector<16x128xf32>
    %c127_i32 = arith.constant 127 : i32
    %296 = tpu.dynamic_rotate %291 by %c127_i32 dim 1 : vector<16x128xf32>, i32 -> vector<16x128xf32>
    %c123_i32 = arith.constant 123 : i32
    %297 = tpu.dynamic_rotate %291 by %c123_i32 dim 1 : vector<16x128xf32>, i32 -> vector<16x128xf32>
    %c122_i32 = arith.constant 122 : i32
    %298 = tpu.dynamic_rotate %291 by %c122_i32 dim 1 : vector<16x128xf32>, i32 -> vector<16x128xf32>
    %c121_i32 = arith.constant 121 : i32
    %299 = tpu.dynamic_rotate %291 by %c121_i32 dim 1 : vector<16x128xf32>, i32 -> vector<16x128xf32>
    %300 = tpu.concatenate %292, %293, %294, %295, %291, %296, %297, %298, %299 in 0 : vector<16x128xf32>, vector<16x128xf32>, vector<16x128xf32>, vector<16x128xf32>, vector<16x128xf32>, vector<16x128xf32>, vector<16x128xf32>, vector<16x128xf32>, vector<16x128xf32> -> vector<144x128xf32>
    %c0_202 = arith.constant 0 : index
    %c0_203 = arith.constant 0 : index
    %301 = vector.load %arg49[%c0_202, %c0_203] : memref<16x144xf32, #tpu.memory_space<vmem>>, vector<16x144xf32>
    %cst_204 = arith.constant dense<0.000000e+00> : vector<16x128xf32>
    %302 = tpu.matmul %301, %300, %cst_204 {dimension_numbers = #tpu.dot_dimension_numbers<[1], [0], [0], [1], [0, 0, 1, 1], [], []>} : vector<16x144xf32>, vector<144x128xf32>, vector<16x128xf32> -> vector<16x128xf32>
    %c0_205 = arith.constant 0 : index
    %c0_206 = arith.constant 0 : index
    %303 = vector.load %arg50[%c0_205, %c0_206] : memref<16x1xf32, #tpu.memory_space<vmem>>, vector<16x1xf32>
    %304 = vector.broadcast %303 : vector<16x1xf32> to vector<16x128xf32>
    %305 = arith.mulf %302, %304 : vector<16x128xf32>
    %c0_207 = arith.constant 0 : index
    %c0_208 = arith.constant 0 : index
    %306 = vector.load %arg51[%c0_207, %c0_208] : memref<16x1xf32, #tpu.memory_space<vmem>>, vector<16x1xf32>
    %307 = vector.broadcast %306 : vector<16x1xf32> to vector<16x128xf32>
    %308 = arith.addf %305, %307 : vector<16x128xf32>
    %309 = vector.broadcast %2 : vector<1x128xf32> to vector<16x128xf32>
    %310 = arith.mulf %308, %309 : vector<16x128xf32>
    %c0_209 = arith.constant 0 : index
    %c0_210 = arith.constant 0 : index
    %311 = vector.load %arg10[%c0_209, %c0_210] : memref<256x128xf32, #tpu.memory_space<vmem>>, vector<256x128xf32>
    %cst_211 = arith.constant dense<0.000000e+00> : vector<8x128xf32>
    %312 = tpu.matmul %266, %311, %cst_211 {dimension_numbers = #tpu.dot_dimension_numbers<[1], [0], [0], [1], [0, 0, 1, 1], [], []>} : vector<8x256xf32>, vector<256x128xf32>, vector<8x128xf32> -> vector<8x128xf32>
    %c0_212 = arith.constant 0 : index
    %c0_213 = arith.constant 0 : index
    %313 = vector.load %arg52[%c0_212, %c0_213] : memref<16x8xf32, #tpu.memory_space<vmem>>, vector<16x8xf32>
    %cst_214 = arith.constant dense<0.000000e+00> : vector<16x128xf32>
    %314 = tpu.matmul %313, %312, %cst_214 {dimension_numbers = #tpu.dot_dimension_numbers<[1], [0], [0], [1], [0, 0, 1, 1], [], []>} : vector<16x8xf32>, vector<8x128xf32>, vector<16x128xf32> -> vector<16x128xf32>
    %315 = arith.addf %310, %314 : vector<16x128xf32>
    %cst_215 = arith.constant 0.000000e+00 : f32
    %316 = vector.broadcast %cst_215 : f32 to vector<16x128xf32>
    %317 = arith.maximumf %315, %316 : vector<16x128xf32>
    %c7_i32_216 = arith.constant 7 : i32
    %318 = tpu.dynamic_rotate %317 by %c7_i32_216 dim 1 : vector<16x128xf32>, i32 -> vector<16x128xf32>
    %c6_i32_217 = arith.constant 6 : i32
    %319 = tpu.dynamic_rotate %317 by %c6_i32_217 dim 1 : vector<16x128xf32>, i32 -> vector<16x128xf32>
    %c5_i32_218 = arith.constant 5 : i32
    %320 = tpu.dynamic_rotate %317 by %c5_i32_218 dim 1 : vector<16x128xf32>, i32 -> vector<16x128xf32>
    %c1_i32_219 = arith.constant 1 : i32
    %321 = tpu.dynamic_rotate %317 by %c1_i32_219 dim 1 : vector<16x128xf32>, i32 -> vector<16x128xf32>
    %c127_i32_220 = arith.constant 127 : i32
    %322 = tpu.dynamic_rotate %317 by %c127_i32_220 dim 1 : vector<16x128xf32>, i32 -> vector<16x128xf32>
    %c123_i32_221 = arith.constant 123 : i32
    %323 = tpu.dynamic_rotate %317 by %c123_i32_221 dim 1 : vector<16x128xf32>, i32 -> vector<16x128xf32>
    %c122_i32_222 = arith.constant 122 : i32
    %324 = tpu.dynamic_rotate %317 by %c122_i32_222 dim 1 : vector<16x128xf32>, i32 -> vector<16x128xf32>
    %c121_i32_223 = arith.constant 121 : i32
    %325 = tpu.dynamic_rotate %317 by %c121_i32_223 dim 1 : vector<16x128xf32>, i32 -> vector<16x128xf32>
    %326 = tpu.concatenate %318, %319, %320, %321, %317, %322, %323, %324, %325 in 0 : vector<16x128xf32>, vector<16x128xf32>, vector<16x128xf32>, vector<16x128xf32>, vector<16x128xf32>, vector<16x128xf32>, vector<16x128xf32>, vector<16x128xf32>, vector<16x128xf32> -> vector<144x128xf32>
    %c0_224 = arith.constant 0 : index
    %c0_225 = arith.constant 0 : index
    %327 = vector.load %arg53[%c0_224, %c0_225] : memref<16x144xf32, #tpu.memory_space<vmem>>, vector<16x144xf32>
    %cst_226 = arith.constant dense<0.000000e+00> : vector<16x128xf32>
    %328 = tpu.matmul %327, %326, %cst_226 {dimension_numbers = #tpu.dot_dimension_numbers<[1], [0], [0], [1], [0, 0, 1, 1], [], []>} : vector<16x144xf32>, vector<144x128xf32>, vector<16x128xf32> -> vector<16x128xf32>
    %c0_227 = arith.constant 0 : index
    %c0_228 = arith.constant 0 : index
    %329 = vector.load %arg54[%c0_227, %c0_228] : memref<16x1xf32, #tpu.memory_space<vmem>>, vector<16x1xf32>
    %330 = vector.broadcast %329 : vector<16x1xf32> to vector<16x128xf32>
    %331 = arith.mulf %328, %330 : vector<16x128xf32>
    %c0_229 = arith.constant 0 : index
    %c0_230 = arith.constant 0 : index
    %332 = vector.load %arg55[%c0_229, %c0_230] : memref<16x1xf32, #tpu.memory_space<vmem>>, vector<16x1xf32>
    %333 = vector.broadcast %332 : vector<16x1xf32> to vector<16x128xf32>
    %334 = arith.addf %331, %333 : vector<16x128xf32>
    %335 = vector.broadcast %2 : vector<1x128xf32> to vector<16x128xf32>
    %336 = arith.mulf %334, %335 : vector<16x128xf32>
    %cst_231 = arith.constant 0.000000e+00 : f32
    %337 = vector.broadcast %cst_231 : f32 to vector<16x128xf32>
    %338 = arith.maximumf %315, %337 : vector<16x128xf32>
    %c0_232 = arith.constant 0 : index
    %c0_233 = arith.constant 0 : index
    %339 = vector.load %arg56[%c0_232, %c0_233] : memref<16x16xf32, #tpu.memory_space<vmem>>, vector<16x16xf32>
    %cst_234 = arith.constant dense<0.000000e+00> : vector<16x128xf32>
    %340 = tpu.matmul %339, %338, %cst_234 {dimension_numbers = #tpu.dot_dimension_numbers<[1], [0], [0], [1], [0, 0, 1, 1], [], []>} : vector<16x16xf32>, vector<16x128xf32>, vector<16x128xf32> -> vector<16x128xf32>
    %c0_235 = arith.constant 0 : index
    %c0_236 = arith.constant 0 : index
    %341 = vector.load %arg57[%c0_235, %c0_236] : memref<16x1xf32, #tpu.memory_space<vmem>>, vector<16x1xf32>
    %342 = vector.broadcast %341 : vector<16x1xf32> to vector<16x128xf32>
    %343 = arith.mulf %340, %342 : vector<16x128xf32>
    %c0_237 = arith.constant 0 : index
    %c0_238 = arith.constant 0 : index
    %344 = vector.load %arg58[%c0_237, %c0_238] : memref<16x1xf32, #tpu.memory_space<vmem>>, vector<16x1xf32>
    %345 = vector.broadcast %344 : vector<16x1xf32> to vector<16x128xf32>
    %346 = arith.addf %343, %345 : vector<16x128xf32>
    %347 = vector.broadcast %2 : vector<1x128xf32> to vector<16x128xf32>
    %348 = arith.mulf %346, %347 : vector<16x128xf32>
    %cst_239 = arith.constant 0.000000e+00 : f32
    %349 = vector.broadcast %cst_239 : f32 to vector<16x128xf32>
    %350 = arith.maximumf %336, %349 : vector<16x128xf32>
    %c7_i32_240 = arith.constant 7 : i32
    %351 = tpu.dynamic_rotate %350 by %c7_i32_240 dim 1 : vector<16x128xf32>, i32 -> vector<16x128xf32>
    %c6_i32_241 = arith.constant 6 : i32
    %352 = tpu.dynamic_rotate %350 by %c6_i32_241 dim 1 : vector<16x128xf32>, i32 -> vector<16x128xf32>
    %c5_i32_242 = arith.constant 5 : i32
    %353 = tpu.dynamic_rotate %350 by %c5_i32_242 dim 1 : vector<16x128xf32>, i32 -> vector<16x128xf32>
    %c1_i32_243 = arith.constant 1 : i32
    %354 = tpu.dynamic_rotate %350 by %c1_i32_243 dim 1 : vector<16x128xf32>, i32 -> vector<16x128xf32>
    %c127_i32_244 = arith.constant 127 : i32
    %355 = tpu.dynamic_rotate %350 by %c127_i32_244 dim 1 : vector<16x128xf32>, i32 -> vector<16x128xf32>
    %c123_i32_245 = arith.constant 123 : i32
    %356 = tpu.dynamic_rotate %350 by %c123_i32_245 dim 1 : vector<16x128xf32>, i32 -> vector<16x128xf32>
    %c122_i32_246 = arith.constant 122 : i32
    %357 = tpu.dynamic_rotate %350 by %c122_i32_246 dim 1 : vector<16x128xf32>, i32 -> vector<16x128xf32>
    %c121_i32_247 = arith.constant 121 : i32
    %358 = tpu.dynamic_rotate %350 by %c121_i32_247 dim 1 : vector<16x128xf32>, i32 -> vector<16x128xf32>
    %359 = tpu.concatenate %351, %352, %353, %354, %350, %355, %356, %357, %358 in 0 : vector<16x128xf32>, vector<16x128xf32>, vector<16x128xf32>, vector<16x128xf32>, vector<16x128xf32>, vector<16x128xf32>, vector<16x128xf32>, vector<16x128xf32>, vector<16x128xf32> -> vector<144x128xf32>
    %c0_248 = arith.constant 0 : index
    %c0_249 = arith.constant 0 : index
    %360 = vector.load %arg59[%c0_248, %c0_249] : memref<16x144xf32, #tpu.memory_space<vmem>>, vector<16x144xf32>
    %cst_250 = arith.constant dense<0.000000e+00> : vector<16x128xf32>
    %361 = tpu.matmul %360, %359, %cst_250 {dimension_numbers = #tpu.dot_dimension_numbers<[1], [0], [0], [1], [0, 0, 1, 1], [], []>} : vector<16x144xf32>, vector<144x128xf32>, vector<16x128xf32> -> vector<16x128xf32>
    %c0_251 = arith.constant 0 : index
    %c0_252 = arith.constant 0 : index
    %362 = vector.load %arg60[%c0_251, %c0_252] : memref<16x1xf32, #tpu.memory_space<vmem>>, vector<16x1xf32>
    %363 = vector.broadcast %362 : vector<16x1xf32> to vector<16x128xf32>
    %364 = arith.mulf %361, %363 : vector<16x128xf32>
    %c0_253 = arith.constant 0 : index
    %c0_254 = arith.constant 0 : index
    %365 = vector.load %arg61[%c0_253, %c0_254] : memref<16x1xf32, #tpu.memory_space<vmem>>, vector<16x1xf32>
    %366 = vector.broadcast %365 : vector<16x1xf32> to vector<16x128xf32>
    %367 = arith.addf %364, %366 : vector<16x128xf32>
    %368 = vector.broadcast %2 : vector<1x128xf32> to vector<16x128xf32>
    %369 = arith.mulf %367, %368 : vector<16x128xf32>
    %370 = arith.addf %348, %369 : vector<16x128xf32>
    %c7_i32_255 = arith.constant 7 : i32
    %371 = tpu.dynamic_rotate %336 by %c7_i32_255 dim 1 : vector<16x128xf32>, i32 -> vector<16x128xf32>
    %372 = arith.addf %336, %371 : vector<16x128xf32>
    %c6_i32_256 = arith.constant 6 : i32
    %373 = tpu.dynamic_rotate %336 by %c6_i32_256 dim 1 : vector<16x128xf32>, i32 -> vector<16x128xf32>
    %374 = arith.addf %372, %373 : vector<16x128xf32>
    %c5_i32_257 = arith.constant 5 : i32
    %375 = tpu.dynamic_rotate %336 by %c5_i32_257 dim 1 : vector<16x128xf32>, i32 -> vector<16x128xf32>
    %376 = arith.addf %374, %375 : vector<16x128xf32>
    %c1_i32_258 = arith.constant 1 : i32
    %377 = tpu.dynamic_rotate %336 by %c1_i32_258 dim 1 : vector<16x128xf32>, i32 -> vector<16x128xf32>
    %378 = arith.addf %376, %377 : vector<16x128xf32>
    %c127_i32_259 = arith.constant 127 : i32
    %379 = tpu.dynamic_rotate %336 by %c127_i32_259 dim 1 : vector<16x128xf32>, i32 -> vector<16x128xf32>
    %380 = arith.addf %378, %379 : vector<16x128xf32>
    %c123_i32_260 = arith.constant 123 : i32
    %381 = tpu.dynamic_rotate %336 by %c123_i32_260 dim 1 : vector<16x128xf32>, i32 -> vector<16x128xf32>
    %382 = arith.addf %380, %381 : vector<16x128xf32>
    %c122_i32_261 = arith.constant 122 : i32
    %383 = tpu.dynamic_rotate %336 by %c122_i32_261 dim 1 : vector<16x128xf32>, i32 -> vector<16x128xf32>
    %384 = arith.addf %382, %383 : vector<16x128xf32>
    %c121_i32_262 = arith.constant 121 : i32
    %385 = tpu.dynamic_rotate %336 by %c121_i32_262 dim 1 : vector<16x128xf32>, i32 -> vector<16x128xf32>
    %386 = arith.addf %384, %385 : vector<16x128xf32>
    %387 = vector.broadcast %5 : vector<1x128xf32> to vector<16x128xf32>
    %388 = arith.mulf %386, %387 : vector<16x128xf32>
    %389 = arith.addf %315, %388 : vector<16x128xf32>
    %cst_263 = arith.constant 0.000000e+00 : f32
    %390 = vector.broadcast %cst_263 : f32 to vector<16x128xf32>
    %391 = arith.maximumf %370, %390 : vector<16x128xf32>
    %c7_i32_264 = arith.constant 7 : i32
    %392 = tpu.dynamic_rotate %391 by %c7_i32_264 dim 1 : vector<16x128xf32>, i32 -> vector<16x128xf32>
    %c6_i32_265 = arith.constant 6 : i32
    %393 = tpu.dynamic_rotate %391 by %c6_i32_265 dim 1 : vector<16x128xf32>, i32 -> vector<16x128xf32>
    %c5_i32_266 = arith.constant 5 : i32
    %394 = tpu.dynamic_rotate %391 by %c5_i32_266 dim 1 : vector<16x128xf32>, i32 -> vector<16x128xf32>
    %c1_i32_267 = arith.constant 1 : i32
    %395 = tpu.dynamic_rotate %391 by %c1_i32_267 dim 1 : vector<16x128xf32>, i32 -> vector<16x128xf32>
    %c127_i32_268 = arith.constant 127 : i32
    %396 = tpu.dynamic_rotate %391 by %c127_i32_268 dim 1 : vector<16x128xf32>, i32 -> vector<16x128xf32>
    %c123_i32_269 = arith.constant 123 : i32
    %397 = tpu.dynamic_rotate %391 by %c123_i32_269 dim 1 : vector<16x128xf32>, i32 -> vector<16x128xf32>
    %c122_i32_270 = arith.constant 122 : i32
    %398 = tpu.dynamic_rotate %391 by %c122_i32_270 dim 1 : vector<16x128xf32>, i32 -> vector<16x128xf32>
    %c121_i32_271 = arith.constant 121 : i32
    %399 = tpu.dynamic_rotate %391 by %c121_i32_271 dim 1 : vector<16x128xf32>, i32 -> vector<16x128xf32>
    %400 = tpu.concatenate %392, %393, %394, %395, %391, %396, %397, %398, %399 in 0 : vector<16x128xf32>, vector<16x128xf32>, vector<16x128xf32>, vector<16x128xf32>, vector<16x128xf32>, vector<16x128xf32>, vector<16x128xf32>, vector<16x128xf32>, vector<16x128xf32> -> vector<144x128xf32>
    %c0_272 = arith.constant 0 : index
    %c0_273 = arith.constant 0 : index
    %401 = vector.load %arg62[%c0_272, %c0_273] : memref<16x144xf32, #tpu.memory_space<vmem>>, vector<16x144xf32>
    %cst_274 = arith.constant dense<0.000000e+00> : vector<16x128xf32>
    %402 = tpu.matmul %401, %400, %cst_274 {dimension_numbers = #tpu.dot_dimension_numbers<[1], [0], [0], [1], [0, 0, 1, 1], [], []>} : vector<16x144xf32>, vector<144x128xf32>, vector<16x128xf32> -> vector<16x128xf32>
    %c0_275 = arith.constant 0 : index
    %c0_276 = arith.constant 0 : index
    %403 = vector.load %arg63[%c0_275, %c0_276] : memref<16x1xf32, #tpu.memory_space<vmem>>, vector<16x1xf32>
    %404 = vector.broadcast %403 : vector<16x1xf32> to vector<16x128xf32>
    %405 = arith.mulf %402, %404 : vector<16x128xf32>
    %c0_277 = arith.constant 0 : index
    %c0_278 = arith.constant 0 : index
    %406 = vector.load %arg64[%c0_277, %c0_278] : memref<16x1xf32, #tpu.memory_space<vmem>>, vector<16x1xf32>
    %407 = vector.broadcast %406 : vector<16x1xf32> to vector<16x128xf32>
    %408 = arith.addf %405, %407 : vector<16x128xf32>
    %409 = vector.broadcast %2 : vector<1x128xf32> to vector<16x128xf32>
    %410 = arith.mulf %408, %409 : vector<16x128xf32>
    %411 = arith.addf %389, %410 : vector<16x128xf32>
    %c0_279 = arith.constant 0 : index
    %c0_280 = arith.constant 0 : index
    %412 = vector.load %arg65[%c0_279, %c0_280] : memref<16x1xf32, #tpu.memory_space<vmem>>, vector<16x1xf32>
    %413 = vector.broadcast %412 : vector<16x1xf32> to vector<16x128xf32>
    %414 = arith.mulf %411, %413 : vector<16x128xf32>
    %c0_281 = arith.constant 0 : index
    %c0_282 = arith.constant 0 : index
    %415 = vector.load %arg66[%c0_281, %c0_282] : memref<16x1xf32, #tpu.memory_space<vmem>>, vector<16x1xf32>
    %416 = vector.broadcast %415 : vector<16x1xf32> to vector<16x128xf32>
    %417 = arith.addf %414, %416 : vector<16x128xf32>
    %cst_283 = arith.constant 0.000000e+00 : f32
    %418 = vector.broadcast %cst_283 : f32 to vector<16x128xf32>
    %419 = arith.maximumf %417, %418 : vector<16x128xf32>
    %c0_284 = arith.constant 0 : index
    %c0_285 = arith.constant 0 : index
    %420 = vector.load %arg11[%c0_284, %c0_285] : memref<128x2xf32, #tpu.memory_space<vmem>>, vector<128x2xf32>
    %cst_286 = arith.constant dense<0.000000e+00> : vector<16x2xf32>
    %421 = tpu.matmul %419, %420, %cst_286 {dimension_numbers = #tpu.dot_dimension_numbers<[1], [0], [0], [1], [0, 0, 1, 1], [], []>} : vector<16x128xf32>, vector<128x2xf32>, vector<16x2xf32> -> vector<16x2xf32>
    %c0_287 = arith.constant 0 : index
    %c0_288 = arith.constant 0 : index
    %422 = vector.load %arg67[%c0_287, %c0_288] : memref<10x16xf32, #tpu.memory_space<vmem>>, vector<10x16xf32>
    %cst_289 = arith.constant dense<0.000000e+00> : vector<10x2xf32>
    %423 = tpu.matmul %422, %421, %cst_289 {dimension_numbers = #tpu.dot_dimension_numbers<[1], [0], [0], [1], [0, 0, 1, 1], [], []>} : vector<10x16xf32>, vector<16x2xf32>, vector<10x2xf32> -> vector<10x2xf32>
    %c0_290 = arith.constant 0 : index
    %c0_291 = arith.constant 0 : index
    %424 = vector.load %arg68[%c0_290, %c0_291] : memref<10x1xf32, #tpu.memory_space<vmem>>, vector<10x1xf32>
    %425 = vector.broadcast %424 : vector<10x1xf32> to vector<10x2xf32>
    %426 = arith.addf %423, %425 : vector<10x2xf32>
    %c0_292 = arith.constant 0 : index
    %c0_293 = arith.constant 0 : index
    %427 = vector.load %arg69[%c0_292, %c0_293] : memref<10x2xf32, #tpu.memory_space<vmem>>, vector<10x2xf32>
    tpu.vector_store %arg69[%c0_292, %c0_293], %426 {strides = array<i32>} : memref<10x2xf32, #tpu.memory_space<vmem>>, vector<10x2xf32>,
    return
  }
}

</mosaic_0001>

<llo_original>
// kernel: forward.1
$region0: #{forward.1}
  #allocation0 [shape = 'u32[]', space=smem, size = 0x4, offset = 0x4, fixed_abs, tag = 'smem constant byte address 0x4 - core index']
  #allocation1 [shape = 'u32[144,128]{1,0:T(1,128)}', space=vmem, size = 0x12000, scoped, tag = 'internal scratch']
  %s0 = inlined_call_operand.smem [shape: u32[70], index: -1, kind: input, shape index: {}]
  %s1 = sld [smem:[%s0]]
  %s2 = scalar_lea.smem %s0, 1
  %s3 = sld [smem:[%s2]]
  %s4 = scalar_lea.smem %s0, 2
  %s5 = sld [smem:[%s4]]
  %s6 = scalar_lea.smem %s0, 3
  %s7 = sld [smem:[%s6]]
  %s8 = scalar_lea.smem %s0, 4
  %s9 = sld [smem:[%s8]]
  %s10 = scalar_lea.smem %s0, 5
  %s11 = sld [smem:[%s10]]
  %s12 = scalar_lea.smem %s0, 6
  %s13 = sld [smem:[%s12]]
  %s14 = scalar_lea.smem %s0, 7
  %s15 = sld [smem:[%s14]]
  %s16 = scalar_lea.smem %s0, 8
  %s17 = sld [smem:[%s16]]
  %s18 = scalar_lea.smem %s0, 9
  %s19 = sld [smem:[%s18]]
  %s20 = scalar_lea.smem %s0, 10
  %s21 = sld [smem:[%s20]]
  %s22 = scalar_lea.smem %s0, 11
  %s23 = sld [smem:[%s22]]
  %s24 = scalar_lea.smem %s0, 12
  %s25 = sld [smem:[%s24]]
  %s26 = scalar_lea.smem %s0, 13
  %s27 = sld [smem:[%s26]]
  %s28 = scalar_lea.smem %s0, 14
  %s29 = sld [smem:[%s28]]
  %s30 = scalar_lea.smem %s0, 15
  %s31 = sld [smem:[%s30]]
  %s32 = scalar_lea.smem %s0, 16
  %s33 = sld [smem:[%s32]]
  %s34 = scalar_lea.smem %s0, 17
  %s35 = sld [smem:[%s34]]
  %s36 = scalar_lea.smem %s0, 18
  %s37 = sld [smem:[%s36]]
  %s38 = scalar_lea.smem %s0, 19
  %s39 = sld [smem:[%s38]]
  %s40 = scalar_lea.smem %s0, 20
  %s41 = sld [smem:[%s40]]
  %s42 = scalar_lea.smem %s0, 21
  %s43 = sld [smem:[%s42]]
  %s44 = scalar_lea.smem %s0, 22
  %s45 = sld [smem:[%s44]]
  %s46 = scalar_lea.smem %s0, 23
  %s47 = sld [smem:[%s46]]
  %s48 = scalar_lea.smem %s0, 24
  %s49 = sld [smem:[%s48]]
  %s50 = scalar_lea.smem %s0, 25
  %s51 = sld [smem:[%s50]]
  %s52 = scalar_lea.smem %s0, 26
  %s53 = sld [smem:[%s52]]
  %s54 = scalar_lea.smem %s0, 27
  %s55 = sld [smem:[%s54]]
  %s56 = scalar_lea.smem %s0, 28
  %s57 = sld [smem:[%s56]]
  %s58 = scalar_lea.smem %s0, 29
  %s59 = sld [smem:[%s58]]
  %s60 = scalar_lea.smem %s0, 30
  %s61 = sld [smem:[%s60]]
  %s62 = scalar_lea.smem %s0, 31
  %s63 = sld [smem:[%s62]]
  %s64 = scalar_lea.smem %s0, 32
  %s65 = sld [smem:[%s64]]
  %s66 = scalar_lea.smem %s0, 33
  %s67 = sld [smem:[%s66]]
  %s68 = scalar_lea.smem %s0, 34
  %s69 = sld [smem:[%s68]]
  %s70 = scalar_lea.smem %s0, 35
  %s71 = sld [smem:[%s70]]
  %s72 = scalar_lea.smem %s0, 36
  %s73 = sld [smem:[%s72]]
  %s74 = scalar_lea.smem %s0, 37
  %s75 = sld [smem:[%s74]]
  %s76 = scalar_lea.smem %s0, 38
  %s77 = sld [smem:[%s76]]
  %s78 = scalar_lea.smem %s0, 39
  %s79 = sld [smem:[%s78]]
  %s80 = scalar_lea.smem %s0, 40
  %s81 = sld [smem:[%s80]]
  %s82 = scalar_lea.smem %s0, 41
  %s83 = sld [smem:[%s82]]
  %s84 = scalar_lea.smem %s0, 42
  %s85 = sld [smem:[%s84]]
  %s86 = scalar_lea.smem %s0, 43
  %s87 = sld [smem:[%s86]]
  %s88 = scalar_lea.smem %s0, 44
  %s89 = sld [smem:[%s88]]
  %s90 = scalar_lea.smem %s0, 45
  %s91 = sld [smem:[%s90]]
  %s92 = scalar_lea.smem %s0, 46
  %s93 = sld [smem:[%s92]]
  %s94 = scalar_lea.smem %s0, 47
  %s95 = sld [smem:[%s94]]
  %s96 = scalar_lea.smem %s0, 48
  %s97 = sld [smem:[%s96]]
  %s98 = scalar_lea.smem %s0, 49
  %s99 = sld [smem:[%s98]]
  %s100 = scalar_lea.smem %s0, 50
  %s101 = sld [smem:[%s100]]
  %s102 = scalar_lea.smem %s0, 51
  %s103 = sld [smem:[%s102]]
  %s104 = scalar_lea.smem %s0, 52
  %s105 = sld [smem:[%s104]]
  %s106 = scalar_lea.smem %s0, 53
  %s107 = sld [smem:[%s106]]
  %s108 = scalar_lea.smem %s0, 54
  %s109 = sld [smem:[%s108]]
  %s110 = scalar_lea.smem %s0, 55
  %s111 = sld [smem:[%s110]]
  %s112 = scalar_lea.smem %s0, 56
  %s113 = sld [smem:[%s112]]
  %s114 = scalar_lea.smem %s0, 57
  %s115 = sld [smem:[%s114]]
  %s116 = scalar_lea.smem %s0, 58
  %s117 = sld [smem:[%s116]]
  %s118 = scalar_lea.smem %s0, 59
  %s119 = sld [smem:[%s118]]
  %s120 = scalar_lea.smem %s0, 60
  %s121 = sld [smem:[%s120]]
  %s122 = scalar_lea.smem %s0, 61
  %s123 = sld [smem:[%s122]]
  %s124 = scalar_lea.smem %s0, 62
  %s125 = sld [smem:[%s124]]
  %s126 = scalar_lea.smem %s0, 63
  %s127 = sld [smem:[%s126]]
  %s128 = scalar_lea.smem %s0, 64
  %s129 = sld [smem:[%s128]]
  %s130 = scalar_lea.smem %s0, 65
  %s131 = sld [smem:[%s130]]
  %s132 = scalar_lea.smem %s0, 66
  %s133 = sld [smem:[%s132]]
  %s134 = scalar_lea.smem %s0, 67
  %s135 = sld [smem:[%s134]]
  %s136 = scalar_lea.smem %s0, 68
  %s137 = sld [smem:[%s136]]
  %s138 = scalar_lea.smem %s0, 69
  %s139 = sld [smem:[%s138]]
  %s140 = sld [smem:[#allocation0]]
  $region398: #{forward.1} parent=0
    _
  %s142 = ssub.s32 1, %s140
  %s143 = scalar_select 0, %s142, %s140
  $region1: #{forward.1} parent=0
    #allocation2 [shape = 'u8[3072]{0}', space=vmem, size = 0xc00, scoped, tag = 'input window, operand 1, single buffered']
    #allocation3 [shape = 's32[1]{0}', space=sflag, size = 0x4, scoped, tag = 'scoped memory for forward.1']
    #allocation4 [shape = 'u8[3072]{0}', space=vmem, size = 0xc00, scoped, tag = 'input window, operand 2, single buffered']
    #allocation5 [shape = 's32[1]{0}', space=sflag, size = 0x4, scoped, tag = 'scoped memory for forward.1']
    #allocation6 [shape = 'u8[1024]{0}', space=vmem, size = 0x400, scoped, tag = 'input window, operand 3, single buffered']
    #allocation7 [shape = 'u8[1024]{0}', space=vmem, size = 0x400, scoped, tag = 'input window, operand 4, single buffered']
    #allocation8 [shape = 's32[1]{0}', space=sflag, size = 0x4, scoped, tag = 'scoped memory for forward.1']
    #allocation9 [shape = 'u8[512]{0}', space=vmem, size = 0x400, scoped, tag = 'input window, operand 5, single buffered']
    #allocation10 [shape = 'u8[512]{0}', space=vmem, size = 0x400, scoped, tag = 'input window, operand 6, single buffered']
    #allocation11 [shape = 's32[1]{0}', space=sflag, size = 0x4, scoped, tag = 'scoped memory for forward.1']
    #allocation12 [shape = 'u8[786432]{0}', space=vmem, size = 0xc0000, scoped, tag = 'input window, operand 7, single buffered']
    #allocation13 [shape = 'u8[786432]{0}', space=vmem, size = 0xc0000, scoped, tag = 'input window, operand 8, single buffered']
    #allocation14 [shape = 's32[1]{0}', space=sflag, size = 0x4, scoped, tag = 'scoped memory for forward.1']
    #allocation15 [shape = 'u8[4096]{0}', space=vmem, size = 0x1000, scoped, tag = 'input window, operand 12, single buffered']
    #allocation16 [shape = 'u8[4096]{0}', space=vmem, size = 0x1000, scoped, tag = 'input window, operand 13, single buffered']
    #allocation17 [shape = 's32[1]{0}', space=sflag, size = 0x4, scoped, tag = 'scoped memory for forward.1']
    #allocation18 [shape = 'u8[4096]{0}', space=vmem, size = 0x1000, scoped, tag = 'input window, operand 14, single buffered']
    #allocation19 [shape = 'u8[4096]{0}', space=vmem, size = 0x1000, scoped, tag = 'input window, operand 15, single buffered']
    #allocation20 [shape = 's32[1]{0}', space=sflag, size = 0x4, scoped, tag = 'scoped memory for forward.1']
    #allocation21 [shape = 'u8[4096]{0}', space=vmem, size = 0x1000, scoped, tag = 'input window, operand 16, single buffered']
    #allocation22 [shape = 'u8[4096]{0}', space=vmem, size = 0x1000, scoped, tag = 'input window, operand 17, single buffered']
    #allocation23 [shape = 's32[1]{0}', space=sflag, size = 0x4, scoped, tag = 'scoped memory for forward.1']
    #allocation24 [shape = 'u8[4096]{0}', space=vmem, size = 0x1000, scoped, tag = 'input window, operand 18, single buffered']
    #allocation25 [shape = 'u8[4096]{0}', space=vmem, size = 0x1000, scoped, tag = 'input window, operand 19, single buffered']
    #allocation26 [shape = 's32[1]{0}', space=sflag, size = 0x4, scoped, tag = 'scoped memory for forward.1']
    #allocation27 [shape = 'u8[4096]{0}', space=vmem, size = 0x1000, scoped, tag = 'input window, operand 20, single buffered']
    #allocation28 [shape = 'u8[4096]{0}', space=vmem, size = 0x1000, scoped, tag = 'input window, operand 21, single buffered']
    #allocation29 [shape = 's32[1]{0}', space=sflag, size = 0x4, scoped, tag = 'scoped memory for forward.1']
    #allocation30 [shape = 'u8[4096]{0}', space=vmem, size = 0x1000, scoped, tag = 'input window, operand 22, single buffered']
    #allocation31 [shape = 'u8[4096]{0}', space=vmem, size = 0x1000, scoped, tag = 'input window, operand 23, single buffered']
    #allocation32 [shape = 's32[1]{0}', space=sflag, size = 0x4, scoped, tag = 'scoped memory for forward.1']
    #allocation33 [shape = 'u8[4096]{0}', space=vmem, size = 0x1000, scoped, tag = 'input window, operand 24, single buffered']
    #allocation34 [shape = 'u8[4096]{0}', space=vmem, size = 0x1000, scoped, tag = 'input window, operand 25, single buffered']
    #allocation35 [shape = 's32[1]{0}', space=sflag, size = 0x4, scoped, tag = 'scoped memory for forward.1']
    #allocation36 [shape = 'u8[4096]{0}', space=vmem, size = 0x1000, scoped, tag = 'input window, operand 26, single buffered']
    #allocation37 [shape = 'u8[4096]{0}', space=vmem, size = 0x1000, scoped, tag = 'input window, operand 27, single buffered']
    #allocation38 [shape = 's32[1]{0}', space=sflag, size = 0x4, scoped, tag = 'scoped memory for forward.1']
    #allocation39 [shape = 'u8[4096]{0}', space=vmem, size = 0x1000, scoped, tag = 'input window, operand 28, single buffered']
    #allocation40 [shape = 'u8[4096]{0}', space=vmem, size = 0x1000, scoped, tag = 'input window, operand 29, single buffered']
    #allocation41 [shape = 's32[1]{0}', space=sflag, size = 0x4, scoped, tag = 'scoped memory for forward.1']
    #allocation42 [shape = 'u8[4096]{0}', space=vmem, size = 0x1000, scoped, tag = 'input window, operand 30, single buffered']
    #allocation43 [shape = 'u8[4096]{0}', space=vmem, size = 0x1000, scoped, tag = 'input window, operand 31, single buffered']
    #allocation44 [shape = 's32[1]{0}', space=sflag, size = 0x4, scoped, tag = 'scoped memory for forward.1']
    %144 = vsyncpa [#allocation3], 0
    %145 = vsyncpa [#allocation5], 0
    %146 = vsyncpa [#allocation8], 0
    %147 = vsyncpa [#allocation11], 0
    %148 = vsyncpa [#allocation14], 0
    %149 = vsyncpa [#allocation17], 0
    %150 = vsyncpa [#allocation20], 0
    %151 = vsyncpa [#allocation23], 0
    %152 = vsyncpa [#allocation26], 0
    %153 = vsyncpa [#allocation29], 0
    %154 = vsyncpa [#allocation32], 0
    %155 = vsyncpa [#allocation35], 0
    %156 = vsyncpa [#allocation38], 0
    %157 = vsyncpa [#allocation41], 0
    %158 = vsyncpa [#allocation44], 0
    // Predicated region
    $region2: #{forward.1} parent=1 // pred_check
      _
    $region3: #{forward.1} parent=1 // pred_check_branch
      %160 = sbr.rel (0) target = $region5
    $region4: #{forward.1} parent=1 // pred_region
      _
    $region5: #{forward.1} parent=1 // pred_fallthru
      _
    // Predicated region
    $region6: #{forward.1} parent=1 // pred_check
      _
    $region7: #{forward.1} parent=1 // pred_check_branch
      %162 = sbr.rel (0) target = $region9
    $region8: #{forward.1} parent=1 // pred_region
      %s164 = ssub.s32 96, 96
      %165 = vsyncadd [#allocation3], %s164
      %s167 = sshll.u32 [#allocation2], 4
      %s168 = int_to_ptr.vmem [resolvable:$true] %s167
      %170 = dma.hbm_to_vmem [thread:$0]  %s3, 96, %s168, [#allocation3]
    $region9: #{forward.1} parent=1 // pred_fallthru
      _
    // Predicated region
    $region10: #{forward.1} parent=1 // pred_check
      _
    $region11: #{forward.1} parent=1 // pred_check_branch
      %172 = sbr.rel (0) target = $region13
    $region12: #{forward.1} parent=1 // pred_region
      %s174 = ssub.s32 96, 96
      %175 = vsyncadd [#allocation5], %s174
      %s177 = sshll.u32 [#allocation4], 4
      %s178 = int_to_ptr.vmem [resolvable:$true] %s177
      %180 = dma.hbm_to_vmem [thread:$0]  %s5, 96, %s178, [#allocation5]
    $region13: #{forward.1} parent=1 // pred_fallthru
      _
    // Predicated region
    $region14: #{forward.1} parent=1 // pred_check
      _
    $region15: #{forward.1} parent=1 // pred_check_branch
      %182 = sbr.rel (0) target = $region17
    $region16: #{forward.1} parent=1 // pred_region
      %s184 = ssub.s32 32, 32
      %185 = vsyncadd [#allocation5], %s184
      %s187 = sshll.u32 [#allocation6], 4
      %s188 = int_to_ptr.vmem [resolvable:$true] %s187
      %190 = dma.hbm_to_vmem [thread:$0]  %s7, 32, %s188, [#allocation5]
    $region17: #{forward.1} parent=1 // pred_fallthru
      _
    // Predicated region
    $region18: #{forward.1} parent=1 // pred_check
      _
    $region19: #{forward.1} parent=1 // pred_check_branch
      %192 = sbr.rel (0) target = $region21
    $region20: #{forward.1} parent=1 // pred_region
      %s194 = ssub.s32 32, 32
      %195 = vsyncadd [#allocation8], %s194
      %s197 = sshll.u32 [#allocation7], 4
      %s198 = int_to_ptr.vmem [resolvable:$true] %s197
      %200 = dma.hbm_to_vmem [thread:$0]  %s9, 32, %s198, [#allocation8]
    $region21: #{forward.1} parent=1 // pred_fallthru
      _
    // Predicated region
    $region22: #{forward.1} parent=1 // pred_check
      _
    $region23: #{forward.1} parent=1 // pred_check_branch
      %202 = sbr.rel (0) target = $region25
    $region24: #{forward.1} parent=1 // pred_region
      %s204 = ssub.s32 16, 16
      %205 = vsyncadd [#allocation8], %s204
      %s207 = sshll.u32 [#allocation9], 4
      %s208 = int_to_ptr.vmem [resolvable:$true] %s207
      %210 = dma.hbm_to_vmem [thread:$0]  %s11, 16, %s208, [#allocation8]
    $region25: #{forward.1} parent=1 // pred_fallthru
      _
    // Predicated region
    $region26: #{forward.1} parent=1 // pred_check
      _
    $region27: #{forward.1} parent=1 // pred_check_branch
      %212 = sbr.rel (0) target = $region29
    $region28: #{forward.1} parent=1 // pred_region
      %s214 = ssub.s32 16, 16
      %215 = vsyncadd [#allocation11], %s214
      %s217 = sshll.u32 [#allocation10], 4
      %s218 = int_to_ptr.vmem [resolvable:$true] %s217
      %220 = dma.hbm_to_vmem [thread:$0]  %s13, 16, %s218, [#allocation11]
    $region29: #{forward.1} parent=1 // pred_fallthru
      _
    // Predicated region
    $region30: #{forward.1} parent=1 // pred_check
      _
    $region31: #{forward.1} parent=1 // pred_check_branch
      %222 = sbr.rel (0) target = $region33
    $region32: #{forward.1} parent=1 // pred_region
      %s224 = ssub.s32 24576, 24576
      %225 = vsyncadd [#allocation11], %s224
      %s226 = sshll.u32 [#allocation12], 4
      %s227 = int_to_ptr.vmem [resolvable:$true] %s226
      %232 = dma.hbm_to_vmem [thread:$0]  %s15, 24576, %s227, [#allocation11], 256, 256, 16
    $region33: #{forward.1} parent=1 // pred_fallthru
      _
    // Predicated region
    $region34: #{forward.1} parent=1 // pred_check
      _
    $region35: #{forward.1} parent=1 // pred_check_branch
      %234 = sbr.rel (0) target = $region37
    $region36: #{forward.1} parent=1 // pred_region
      %s236 = ssub.s32 24576, 24576
      %237 = vsyncadd [#allocation14], %s236
      %s238 = sshll.u32 [#allocation13], 4
      %s239 = int_to_ptr.vmem [resolvable:$true] %s238
      %244 = dma.hbm_to_vmem [thread:$0]  %s17, 24576, %s239, [#allocation14], 256, 256, 16
    $region37: #{forward.1} parent=1 // pred_fallthru
      _
    // Predicated region
    $region38: #{forward.1} parent=1 // pred_check
      _
    $region39: #{forward.1} parent=1 // pred_check_branch
      %246 = sbr.rel (0) target = $region41
    $region40: #{forward.1} parent=1 // pred_region
      _
    $region41: #{forward.1} parent=1 // pred_fallthru
      _
    // Predicated region
    $region42: #{forward.1} parent=1 // pred_check
      _
    $region43: #{forward.1} parent=1 // pred_check_branch
      %248 = sbr.rel (0) target = $region45
    $region44: #{forward.1} parent=1 // pred_region
      _
    $region45: #{forward.1} parent=1 // pred_fallthru
      _
    // Predicated region
    $region46: #{forward.1} parent=1 // pred_check
      _
    $region47: #{forward.1} parent=1 // pred_check_branch
      %250 = sbr.rel (0) target = $region49
    $region48: #{forward.1} parent=1 // pred_region
      _
    $region49: #{forward.1} parent=1 // pred_fallthru
      _
    // Predicated region
    $region50: #{forward.1} parent=1 // pred_check
      _
    $region51: #{forward.1} parent=1 // pred_check_branch
      %252 = sbr.rel (0) target = $region53
    $region52: #{forward.1} parent=1 // pred_region
      %s254 = ssub.s32 128, 128
      %255 = vsyncadd [#allocation14], %s254
      %s257 = sshll.u32 [#allocation15], 4
      %s258 = int_to_ptr.vmem [resolvable:$true] %s257
      %260 = dma.hbm_to_vmem [thread:$0]  %s25, 128, %s258, [#allocation14]
    $region53: #{forward.1} parent=1 // pred_fallthru
      _
    // Predicated region
    $region54: #{forward.1} parent=1 // pred_check
      _
    $region55: #{forward.1} parent=1 // pred_check_branch
      %262 = sbr.rel (0) target = $region57
    $region56: #{forward.1} parent=1 // pred_region
      %s264 = ssub.s32 128, 128
      %265 = vsyncadd [#allocation17], %s264
      %s267 = sshll.u32 [#allocation16], 4
      %s268 = int_to_ptr.vmem [resolvable:$true] %s267
      %270 = dma.hbm_to_vmem [thread:$0]  %s27, 128, %s268, [#allocation17]
    $region57: #{forward.1} parent=1 // pred_fallthru
      _
    // Predicated region
    $region58: #{forward.1} parent=1 // pred_check
      _
    $region59: #{forward.1} parent=1 // pred_check_branch
      %272 = sbr.rel (0) target = $region61
    $region60: #{forward.1} parent=1 // pred_region
      %s274 = ssub.s32 128, 128
      %275 = vsyncadd [#allocation17], %s274
      %s277 = sshll.u32 [#allocation18], 4
      %s278 = int_to_ptr.vmem [resolvable:$true] %s277
      %280 = dma.hbm_to_vmem [thread:$0]  %s29, 128, %s278, [#allocation17]
    $region61: #{forward.1} parent=1 // pred_fallthru
      _
    // Predicated region
    $region62: #{forward.1} parent=1 // pred_check
      _
    $region63: #{forward.1} parent=1 // pred_check_branch
      %282 = sbr.rel (0) target = $region65
    $region64: #{forward.1} parent=1 // pred_region
      %s284 = ssub.s32 128, 128
      %285 = vsyncadd [#allocation20], %s284
      %s287 = sshll.u32 [#allocation19], 4
      %s288 = int_to_ptr.vmem [resolvable:$true] %s287
      %290 = dma.hbm_to_vmem [thread:$0]  %s31, 128, %s288, [#allocation20]
    $region65: #{forward.1} parent=1 // pred_fallthru
      _
    // Predicated region
    $region66: #{forward.1} parent=1 // pred_check
      _
    $region67: #{forward.1} parent=1 // pred_check_branch
      %292 = sbr.rel (0) target = $region69
    $region68: #{forward.1} parent=1 // pred_region
      %s294 = ssub.s32 128, 128
      %295 = vsyncadd [#allocation20], %s294
      %s297 = sshll.u32 [#allocation21], 4
      %s298 = int_to_ptr.vmem [resolvable:$true] %s297
      %300 = dma.hbm_to_vmem [thread:$0]  %s33, 128, %s298, [#allocation20]
    $region69: #{forward.1} parent=1 // pred_fallthru
      _
    // Predicated region
    $region70: #{forward.1} parent=1 // pred_check
      _
    $region71: #{forward.1} parent=1 // pred_check_branch
      %302 = sbr.rel (0) target = $region73
    $region72: #{forward.1} parent=1 // pred_region
      %s304 = ssub.s32 128, 128
      %305 = vsyncadd [#allocation23], %s304
      %s307 = sshll.u32 [#allocation22], 4
      %s308 = int_to_ptr.vmem [resolvable:$true] %s307
      %310 = dma.hbm_to_vmem [thread:$0]  %s35, 128, %s308, [#allocation23]
    $region73: #{forward.1} parent=1 // pred_fallthru
      _
    // Predicated region
    $region74: #{forward.1} parent=1 // pred_check
      _
    $region75: #{forward.1} parent=1 // pred_check_branch
      %312 = sbr.rel (0) target = $region77
    $region76: #{forward.1} parent=1 // pred_region
      %s314 = ssub.s32 128, 128
      %315 = vsyncadd [#allocation23], %s314
      %s317 = sshll.u32 [#allocation24], 4
      %s318 = int_to_ptr.vmem [resolvable:$true] %s317
      %320 = dma.hbm_to_vmem [thread:$0]  %s37, 128, %s318, [#allocation23]
    $region77: #{forward.1} parent=1 // pred_fallthru
      _
    // Predicated region
    $region78: #{forward.1} parent=1 // pred_check
      _
    $region79: #{forward.1} parent=1 // pred_check_branch
      %322 = sbr.rel (0) target = $region81
    $region80: #{forward.1} parent=1 // pred_region
      %s324 = ssub.s32 128, 128
      %325 = vsyncadd [#allocation26], %s324
      %s327 = sshll.u32 [#allocation25], 4
      %s328 = int_to_ptr.vmem [resolvable:$true] %s327
      %330 = dma.hbm_to_vmem [thread:$0]  %s39, 128, %s328, [#allocation26]
    $region81: #{forward.1} parent=1 // pred_fallthru
      _
    // Predicated region
    $region82: #{forward.1} parent=1 // pred_check
      _
    $region83: #{forward.1} parent=1 // pred_check_branch
      %332 = sbr.rel (0) target = $region85
    $region84: #{forward.1} parent=1 // pred_region
      %s334 = ssub.s32 128, 128
      %335 = vsyncadd [#allocation26], %s334
      %s337 = sshll.u32 [#allocation27], 4
      %s338 = int_to_ptr.vmem [resolvable:$true] %s337
      %340 = dma.hbm_to_vmem [thread:$0]  %s41, 128, %s338, [#allocation26]
    $region85: #{forward.1} parent=1 // pred_fallthru
      _
    // Predicated region
    $region86: #{forward.1} parent=1 // pred_check
      _
    $region87: #{forward.1} parent=1 // pred_check_branch
      %342 = sbr.rel (0) target = $region89
    $region88: #{forward.1} parent=1 // pred_region
      %s344 = ssub.s32 128, 128
      %345 = vsyncadd [#allocation29], %s344
      %s347 = sshll.u32 [#allocation28], 4
      %s348 = int_to_ptr.vmem [resolvable:$true] %s347
      %350 = dma.hbm_to_vmem [thread:$0]  %s43, 128, %s348, [#allocation29]
    $region89: #{forward.1} parent=1 // pred_fallthru
      _
    // Predicated region
    $region90: #{forward.1} parent=1 // pred_check
      _
    $region91: #{forward.1} parent=1 // pred_check_branch
      %352 = sbr.rel (0) target = $region93
    $region92: #{forward.1} parent=1 // pred_region
      %s354 = ssub.s32 128, 128
      %355 = vsyncadd [#allocation29], %s354
      %s357 = sshll.u32 [#allocation30], 4
      %s358 = int_to_ptr.vmem [resolvable:$true] %s357
      %360 = dma.hbm_to_vmem [thread:$0]  %s45, 128, %s358, [#allocation29]
    $region93: #{forward.1} parent=1 // pred_fallthru
      _
    // Predicated region
    $region94: #{forward.1} parent=1 // pred_check
      _
    $region95: #{forward.1} parent=1 // pred_check_branch
      %362 = sbr.rel (0) target = $region97
    $region96: #{forward.1} parent=1 // pred_region
      %s364 = ssub.s32 128, 128
      %365 = vsyncadd [#allocation32], %s364
      %s367 = sshll.u32 [#allocation31], 4
      %s368 = int_to_ptr.vmem [resolvable:$true] %s367
      %370 = dma.hbm_to_vmem [thread:$0]  %s47, 128, %s368, [#allocation32]
    $region97: #{forward.1} parent=1 // pred_fallthru
      _
    // Predicated region
    $region98: #{forward.1} parent=1 // pred_check
      _
    $region99: #{forward.1} parent=1 // pred_check_branch
      %372 = sbr.rel (0) target = $region101
    $region100: #{forward.1} parent=1 // pred_region
      %s374 = ssub.s32 128, 128
      %375 = vsyncadd [#allocation32], %s374
      %s377 = sshll.u32 [#allocation33], 4
      %s378 = int_to_ptr.vmem [resolvable:$true] %s377
      %380 = dma.hbm_to_vmem [thread:$0]  %s49, 128, %s378, [#allocation32]
    $region101: #{forward.1} parent=1 // pred_fallthru
      _
    // Predicated region
    $region102: #{forward.1} parent=1 // pred_check
      _
    $region103: #{forward.1} parent=1 // pred_check_branch
      %382 = sbr.rel (0) target = $region105
    $region104: #{forward.1} parent=1 // pred_region
      %s384 = ssub.s32 128, 128
      %385 = vsyncadd [#allocation35], %s384
      %s387 = sshll.u32 [#allocation34], 4
      %s388 = int_to_ptr.vmem [resolvable:$true] %s387
      %390 = dma.hbm_to_vmem [thread:$0]  %s51, 128, %s388, [#allocation35]
    $region105: #{forward.1} parent=1 // pred_fallthru
      _
    // Predicated region
    $region106: #{forward.1} parent=1 // pred_check
      _
    $region107: #{forward.1} parent=1 // pred_check_branch
      %392 = sbr.rel (0) target = $region109
    $region108: #{forward.1} parent=1 // pred_region
      %s394 = ssub.s32 128, 128
      %395 = vsyncadd [#allocation35], %s394
      %s397 = sshll.u32 [#allocation36], 4
      %s398 = int_to_ptr.vmem [resolvable:$true] %s397
      %400 = dma.hbm_to_vmem [thread:$0]  %s53, 128, %s398, [#allocation35]
    $region109: #{forward.1} parent=1 // pred_fallthru
      _
    // Predicated region
    $region110: #{forward.1} parent=1 // pred_check
      _
    $region111: #{forward.1} parent=1 // pred_check_branch
      %402 = sbr.rel (0) target = $region113
    $region112: #{forward.1} parent=1 // pred_region
      %s404 = ssub.s32 128, 128
      %405 = vsyncadd [#allocation38], %s404
      %s407 = sshll.u32 [#allocation37], 4
      %s408 = int_to_ptr.vmem [resolvable:$true] %s407
      %410 = dma.hbm_to_vmem [thread:$0]  %s55, 128, %s408, [#allocation38]
    $region113: #{forward.1} parent=1 // pred_fallthru
      _
    // Predicated region
    $region114: #{forward.1} parent=1 // pred_check
      _
    $region115: #{forward.1} parent=1 // pred_check_branch
      %412 = sbr.rel (0) target = $region117
    $region116: #{forward.1} parent=1 // pred_region
      %s414 = ssub.s32 128, 128
      %415 = vsyncadd [#allocation38], %s414
      %s417 = sshll.u32 [#allocation39], 4
      %s418 = int_to_ptr.vmem [resolvable:$true] %s417
      %420 = dma.hbm_to_vmem [thread:$0]  %s57, 128, %s418, [#allocation38]
    $region117: #{forward.1} parent=1 // pred_fallthru
      _
    // Predicated region
    $region118: #{forward.1} parent=1 // pred_check
      _
    $region119: #{forward.1} parent=1 // pred_check_branch
      %422 = sbr.rel (0) target = $region121
    $region120: #{forward.1} parent=1 // pred_region
      %s424 = ssub.s32 128, 128
      %425 = vsyncadd [#allocation41], %s424
      %s427 = sshll.u32 [#allocation40], 4
      %s428 = int_to_ptr.vmem [resolvable:$true] %s427
      %430 = dma.hbm_to_vmem [thread:$0]  %s59, 128, %s428, [#allocation41]
    $region121: #{forward.1} parent=1 // pred_fallthru
      _
    // Predicated region
    $region122: #{forward.1} parent=1 // pred_check
      _
    $region123: #{forward.1} parent=1 // pred_check_branch
      %432 = sbr.rel (0) target = $region125
    $region124: #{forward.1} parent=1 // pred_region
      %s434 = ssub.s32 128, 128
      %435 = vsyncadd [#allocation41], %s434
      %s437 = sshll.u32 [#allocation42], 4
      %s438 = int_to_ptr.vmem [resolvable:$true] %s437
      %440 = dma.hbm_to_vmem [thread:$0]  %s61, 128, %s438, [#allocation41]
    $region125: #{forward.1} parent=1 // pred_fallthru
      _
    // Predicated region
    $region126: #{forward.1} parent=1 // pred_check
      _
    $region127: #{forward.1} parent=1 // pred_check_branch
      %442 = sbr.rel (0) target = $region129
    $region128: #{forward.1} parent=1 // pred_region
      %s444 = ssub.s32 128, 128
      %445 = vsyncadd [#allocation44], %s444
      %s447 = sshll.u32 [#allocation43], 4
      %s448 = int_to_ptr.vmem [resolvable:$true] %s447
      %450 = dma.hbm_to_vmem [thread:$0]  %s63, 128, %s448, [#allocation44]
    $region129: #{forward.1} parent=1 // pred_fallthru
      _
    // Predicated region
    $region130: #{forward.1} parent=1 // pred_check
      _
    $region131: #{forward.1} parent=1 // pred_check_branch
      %452 = sbr.rel (0) target = $region133
    $region132: #{forward.1} parent=1 // pred_region
      _
    $region133: #{forward.1} parent=1 // pred_fallthru
      _
    // Predicated region
    $region134: #{forward.1} parent=1 // pred_check
      _
    $region135: #{forward.1} parent=1 // pred_check_branch
      %454 = sbr.rel (0) target = $region137
    $region136: #{forward.1} parent=1 // pred_region
      _
    $region137: #{forward.1} parent=1 // pred_fallthru
      _
    // Predicated region
    $region138: #{forward.1} parent=1 // pred_check
      _
    $region139: #{forward.1} parent=1 // pred_check_branch
      %456 = sbr.rel (0) target = $region141
    $region140: #{forward.1} parent=1 // pred_region
      _
    $region141: #{forward.1} parent=1 // pred_fallthru
      _
    // Predicated region
    $region142: #{forward.1} parent=1 // pred_check
      _
    $region143: #{forward.1} parent=1 // pred_check_branch
      %458 = sbr.rel (0) target = $region145
    $region144: #{forward.1} parent=1 // pred_region
      _
    $region145: #{forward.1} parent=1 // pred_fallthru
      _
    // Predicated region
    $region146: #{forward.1} parent=1 // pred_check
      _
    $region147: #{forward.1} parent=1 // pred_check_branch
      %460 = sbr.rel (0) target = $region149
    $region148: #{forward.1} parent=1 // pred_region
      _
    $region149: #{forward.1} parent=1 // pred_fallthru
      _
    // Predicated region
    $region150: #{forward.1} parent=1 // pred_check
      _
    $region151: #{forward.1} parent=1 // pred_check_branch
      %462 = sbr.rel (0) target = $region153
    $region152: #{forward.1} parent=1 // pred_region
      _
    $region153: #{forward.1} parent=1 // pred_fallthru
      _
    // Predicated region
    $region154: #{forward.1} parent=1 // pred_check
      _
    $region155: #{forward.1} parent=1 // pred_check_branch
      %464 = sbr.rel (0) target = $region157
    $region156: #{forward.1} parent=1 // pred_region
      _
    $region157: #{forward.1} parent=1 // pred_fallthru
      _
    // Predicated region
    $region158: #{forward.1} parent=1 // pred_check
      _
    $region159: #{forward.1} parent=1 // pred_check_branch
      %466 = sbr.rel (0) target = $region161
    $region160: #{forward.1} parent=1 // pred_region
      _
    $region161: #{forward.1} parent=1 // pred_fallthru
      _
    // Predicated region
    $region162: #{forward.1} parent=1 // pred_check
      _
    $region163: #{forward.1} parent=1 // pred_check_branch
      %468 = sbr.rel (0) target = $region165
    $region164: #{forward.1} parent=1 // pred_region
      _
    $region165: #{forward.1} parent=1 // pred_fallthru
      _
    // Predicated region
    $region166: #{forward.1} parent=1 // pred_check
      _
    $region167: #{forward.1} parent=1 // pred_check_branch
      %470 = sbr.rel (0) target = $region169
    $region168: #{forward.1} parent=1 // pred_region
      _
    $region169: #{forward.1} parent=1 // pred_fallthru
      _
    // Predicated region
    $region170: #{forward.1} parent=1 // pred_check
      _
    $region171: #{forward.1} parent=1 // pred_check_branch
      %472 = sbr.rel (0) target = $region173
    $region172: #{forward.1} parent=1 // pred_region
      _
    $region173: #{forward.1} parent=1 // pred_fallthru
      _
    // Predicated region
    $region174: #{forward.1} parent=1 // pred_check
      _
    $region175: #{forward.1} parent=1 // pred_check_branch
      %474 = sbr.rel (0) target = $region177
    $region176: #{forward.1} parent=1 // pred_region
      _
    $region177: #{forward.1} parent=1 // pred_fallthru
      _
    // Predicated region
    $region178: #{forward.1} parent=1 // pred_check
      _
    $region179: #{forward.1} parent=1 // pred_check_branch
      %476 = sbr.rel (0) target = $region181
    $region180: #{forward.1} parent=1 // pred_region
      _
    $region181: #{forward.1} parent=1 // pred_fallthru
      _
    // Predicated region
    $region182: #{forward.1} parent=1 // pred_check
      _
    $region183: #{forward.1} parent=1 // pred_check_branch
      %478 = sbr.rel (0) target = $region185
    $region184: #{forward.1} parent=1 // pred_region
      _
    $region185: #{forward.1} parent=1 // pred_fallthru
      _
    // Predicated region
    $region186: #{forward.1} parent=1 // pred_check
      _
    $region187: #{forward.1} parent=1 // pred_check_branch
      %480 = sbr.rel (0) target = $region189
    $region188: #{forward.1} parent=1 // pred_region
      _
    $region189: #{forward.1} parent=1 // pred_fallthru
      _
    // Predicated region
    $region190: #{forward.1} parent=1 // pred_check
      _
    $region191: #{forward.1} parent=1 // pred_check_branch
      %482 = sbr.rel (0) target = $region193
    $region192: #{forward.1} parent=1 // pred_region
      _
    $region193: #{forward.1} parent=1 // pred_fallthru
      _
    // Predicated region
    $region194: #{forward.1} parent=1 // pred_check
      _
    $region195: #{forward.1} parent=1 // pred_check_branch
      %484 = sbr.rel (0) target = $region197
    $region196: #{forward.1} parent=1 // pred_region
      _
    $region197: #{forward.1} parent=1 // pred_fallthru
      _
    // Predicated region
    $region198: #{forward.1} parent=1 // pred_check
      _
    $region199: #{forward.1} parent=1 // pred_check_branch
      %486 = sbr.rel (0) target = $region201
    $region200: #{forward.1} parent=1 // pred_region
      _
    $region201: #{forward.1} parent=1 // pred_fallthru
      _
    // Predicated region
    $region202: #{forward.1} parent=1 // pred_check
      _
    $region203: #{forward.1} parent=1 // pred_check_branch
      %488 = sbr.rel (0) target = $region205
    $region204: #{forward.1} parent=1 // pred_region
      _
    $region205: #{forward.1} parent=1 // pred_fallthru
      _
    // Predicated region
    $region206: #{forward.1} parent=1 // pred_check
      _
    $region207: #{forward.1} parent=1 // pred_check_branch
      %490 = sbr.rel (0) target = $region209
    $region208: #{forward.1} parent=1 // pred_region
      _
    $region209: #{forward.1} parent=1 // pred_fallthru
      _
    // Predicated region
    $region210: #{forward.1} parent=1 // pred_check
      _
    $region211: #{forward.1} parent=1 // pred_check_branch
      %492 = sbr.rel (0) target = $region213
    $region212: #{forward.1} parent=1 // pred_region
      _
    $region213: #{forward.1} parent=1 // pred_fallthru
      _
    // Predicated region
    $region214: #{forward.1} parent=1 // pred_check
      _
    $region215: #{forward.1} parent=1 // pred_check_branch
      %494 = sbr.rel (0) target = $region217
    $region216: #{forward.1} parent=1 // pred_region
      _
    $region217: #{forward.1} parent=1 // pred_fallthru
      _
    // Predicated region
    $region218: #{forward.1} parent=1 // pred_check
      _
    $region219: #{forward.1} parent=1 // pred_check_branch
      %496 = sbr.rel (0) target = $region221
    $region220: #{forward.1} parent=1 // pred_region
      _
    $region221: #{forward.1} parent=1 // pred_fallthru
      _
    // Predicated region
    $region222: #{forward.1} parent=1 // pred_check
      _
    $region223: #{forward.1} parent=1 // pred_check_branch
      %498 = sbr.rel (0) target = $region225
    $region224: #{forward.1} parent=1 // pred_region
      _
    $region225: #{forward.1} parent=1 // pred_fallthru
      _
    // Predicated region
    $region226: #{forward.1} parent=1 // pred_check
      _
    $region227: #{forward.1} parent=1 // pred_check_branch
      %500 = sbr.rel (0) target = $region229
    $region228: #{forward.1} parent=1 // pred_region
      _
    $region229: #{forward.1} parent=1 // pred_fallthru
      _
    // Predicated region
    $region230: #{forward.1} parent=1 // pred_check
      _
    $region231: #{forward.1} parent=1 // pred_check_branch
      %502 = sbr.rel (0) target = $region233
    $region232: #{forward.1} parent=1 // pred_region
      _
    $region233: #{forward.1} parent=1 // pred_fallthru
      _
    // Predicated region
    $region234: #{forward.1} parent=1 // pred_check
      _
    $region235: #{forward.1} parent=1 // pred_check_branch
      %504 = sbr.rel (0) target = $region237
    $region236: #{forward.1} parent=1 // pred_region
      _
    $region237: #{forward.1} parent=1 // pred_fallthru
      _
    // Predicated region
    $region238: #{forward.1} parent=1 // pred_check
      _
    $region239: #{forward.1} parent=1 // pred_check_branch
      %506 = sbr.rel (0) target = $region241
    $region240: #{forward.1} parent=1 // pred_region
      _
    $region241: #{forward.1} parent=1 // pred_fallthru
      _
    // Predicated region
    $region242: #{forward.1} parent=1 // pred_check
      _
    $region243: #{forward.1} parent=1 // pred_check_branch
      %508 = sbr.rel (0) target = $region245
    $region244: #{forward.1} parent=1 // pred_region
      _
    $region245: #{forward.1} parent=1 // pred_fallthru
      _
    // Predicated region
    $region246: #{forward.1} parent=1 // pred_check
      _
    $region247: #{forward.1} parent=1 // pred_check_branch
      %510 = sbr.rel (0) target = $region249
    $region248: #{forward.1} parent=1 // pred_region
      _
    $region249: #{forward.1} parent=1 // pred_fallthru
      _
    // Predicated region
    $region250: #{forward.1} parent=1 // pred_check
      _
    $region251: #{forward.1} parent=1 // pred_check_branch
      %512 = sbr.rel (0) target = $region253
    $region252: #{forward.1} parent=1 // pred_region
      _
    $region253: #{forward.1} parent=1 // pred_fallthru
      _
    // Predicated region
    $region254: #{forward.1} parent=1 // pred_check
      _
    $region255: #{forward.1} parent=1 // pred_check_branch
      %514 = sbr.rel (0) target = $region257
    $region256: #{forward.1} parent=1 // pred_region
      _
    $region257: #{forward.1} parent=1 // pred_fallthru
      _
    // Predicated region
    $region258: #{forward.1} parent=1 // pred_check
      _
    $region259: #{forward.1} parent=1 // pred_check_branch
      %516 = sbr.rel (0) target = $region261
    $region260: #{forward.1} parent=1 // pred_region
      _
    $region261: #{forward.1} parent=1 // pred_fallthru
      _
    // Predicated region
    $region262: #{forward.1} parent=1 // pred_check
      _
    $region263: #{forward.1} parent=1 // pred_check_branch
      %518 = sbr.rel (0) target = $region265
    $region264: #{forward.1} parent=1 // pred_region
      _
    $region265: #{forward.1} parent=1 // pred_fallthru
      _
    // Predicated region
    $region266: #{forward.1} parent=1 // pred_check
      _
    $region267: #{forward.1} parent=1 // pred_check_branch
      %520 = sbr.rel (0) target = $region269
    $region268: #{forward.1} parent=1 // pred_region
      _
    $region269: #{forward.1} parent=1 // pred_fallthru
      _
    // Predicated region
    $region270: #{forward.1} parent=1 // pred_check
      _
    $region271: #{forward.1} parent=1 // pred_check_branch
      %522 = sbr.rel (0) target = $region273
    $region272: #{forward.1} parent=1 // pred_region
      _
    $region273: #{forward.1} parent=1 // pred_fallthru
      _
    // Predicated region
    $region274: #{forward.1} parent=1 // pred_check
      _
    $region275: #{forward.1} parent=1 // pred_check_branch
      %524 = sbr.rel (0) target = $region277
    $region276: #{forward.1} parent=1 // pred_region
      _
    $region277: #{forward.1} parent=1 // pred_fallthru
      _
    // Predicated region
    $region278: #{forward.1} parent=1 // pred_check
      _
    $region279: #{forward.1} parent=1 // pred_check_branch
      %526 = sbr.rel (0) target = $region281
    $region280: #{forward.1} parent=1 // pred_region
      %527 = dma.done [#allocation3], 96
    $region281: #{forward.1} parent=1 // pred_fallthru
      _
    // Predicated region
    $region282: #{forward.1} parent=1 // pred_check
      _
    $region283: #{forward.1} parent=1 // pred_check_branch
      %529 = sbr.rel (0) target = $region285
    $region284: #{forward.1} parent=1 // pred_region
      %530 = dma.done [#allocation5], 96
    $region285: #{forward.1} parent=1 // pred_fallthru
      _
    // Predicated region
    $region286: #{forward.1} parent=1 // pred_check
      _
    $region287: #{forward.1} parent=1 // pred_check_branch
      %532 = sbr.rel (0) target = $region289
    $region288: #{forward.1} parent=1 // pred_region
      %533 = dma.done [#allocation5], 32
    $region289: #{forward.1} parent=1 // pred_fallthru
      _
    // Predicated region
    $region290: #{forward.1} parent=1 // pred_check
      _
    $region291: #{forward.1} parent=1 // pred_check_branch
      %535 = sbr.rel (0) target = $region293
    $region292: #{forward.1} parent=1 // pred_region
      %536 = dma.done [#allocation8], 32
    $region293: #{forward.1} parent=1 // pred_fallthru
      _
    // Predicated region
    $region294: #{forward.1} parent=1 // pred_check
      _
    $region295: #{forward.1} parent=1 // pred_check_branch
      %538 = sbr.rel (0) target = $region297
    $region296: #{forward.1} parent=1 // pred_region
      %539 = dma.done [#allocation8], 16
    $region297: #{forward.1} parent=1 // pred_fallthru
      _
    // Predicated region
    $region298: #{forward.1} parent=1 // pred_check
      _
    $region299: #{forward.1} parent=1 // pred_check_branch
      %541 = sbr.rel (0) target = $region301
    $region300: #{forward.1} parent=1 // pred_region
      %542 = dma.done [#allocation11], 16
    $region301: #{forward.1} parent=1 // pred_fallthru
      _
    // Predicated region
    $region302: #{forward.1} parent=1 // pred_check
      _
    $region303: #{forward.1} parent=1 // pred_check_branch
      %544 = sbr.rel (0) target = $region305
    $region304: #{forward.1} parent=1 // pred_region
      %545 = dma.done [#allocation11], 24576
    $region305: #{forward.1} parent=1 // pred_fallthru
      _
    // Predicated region
    $region306: #{forward.1} parent=1 // pred_check
      _
    $region307: #{forward.1} parent=1 // pred_check_branch
      %547 = sbr.rel (0) target = $region309
    $region308: #{forward.1} parent=1 // pred_region
      %548 = dma.done [#allocation14], 24576
    $region309: #{forward.1} parent=1 // pred_fallthru
      _
    // Predicated region
    $region310: #{forward.1} parent=1 // pred_check
      _
    $region311: #{forward.1} parent=1 // pred_check_branch
      %550 = sbr.rel (0) target = $region313
    $region312: #{forward.1} parent=1 // pred_region
      %551 = dma.done [#allocation14], 128
    $region313: #{forward.1} parent=1 // pred_fallthru
      _
    // Predicated region
    $region314: #{forward.1} parent=1 // pred_check
      _
    $region315: #{forward.1} parent=1 // pred_check_branch
      %553 = sbr.rel (0) target = $region317
    $region316: #{forward.1} parent=1 // pred_region
      %554 = dma.done [#allocation17], 128
    $region317: #{forward.1} parent=1 // pred_fallthru
      _
    // Predicated region
    $region318: #{forward.1} parent=1 // pred_check
      _
    $region319: #{forward.1} parent=1 // pred_check_branch
      %556 = sbr.rel (0) target = $region321
    $region320: #{forward.1} parent=1 // pred_region
      %557 = dma.done [#allocation17], 128
    $region321: #{forward.1} parent=1 // pred_fallthru
      _
    // Predicated region
    $region322: #{forward.1} parent=1 // pred_check
      _
    $region323: #{forward.1} parent=1 // pred_check_branch
      %559 = sbr.rel (0) target = $region325
    $region324: #{forward.1} parent=1 // pred_region
      %560 = dma.done [#allocation20], 128
    $region325: #{forward.1} parent=1 // pred_fallthru
      _
    // Predicated region
    $region326: #{forward.1} parent=1 // pred_check
      _
    $region327: #{forward.1} parent=1 // pred_check_branch
      %562 = sbr.rel (0) target = $region329
    $region328: #{forward.1} parent=1 // pred_region
      %563 = dma.done [#allocation20], 128
    $region329: #{forward.1} parent=1 // pred_fallthru
      _
    // Predicated region
    $region330: #{forward.1} parent=1 // pred_check
      _
    $region331: #{forward.1} parent=1 // pred_check_branch
      %565 = sbr.rel (0) target = $region333
    $region332: #{forward.1} parent=1 // pred_region
      %566 = dma.done [#allocation23], 128
    $region333: #{forward.1} parent=1 // pred_fallthru
      _
    // Predicated region
    $region334: #{forward.1} parent=1 // pred_check
      _
    $region335: #{forward.1} parent=1 // pred_check_branch
      %568 = sbr.rel (0) target = $region337
    $region336: #{forward.1} parent=1 // pred_region
      %569 = dma.done [#allocation23], 128
    $region337: #{forward.1} parent=1 // pred_fallthru
      _
    // Predicated region
    $region338: #{forward.1} parent=1 // pred_check
      _
    $region339: #{forward.1} parent=1 // pred_check_branch
      %571 = sbr.rel (0) target = $region341
    $region340: #{forward.1} parent=1 // pred_region
      %572 = dma.done [#allocation26], 128
    $region341: #{forward.1} parent=1 // pred_fallthru
      _
    // Predicated region
    $region342: #{forward.1} parent=1 // pred_check
      _
    $region343: #{forward.1} parent=1 // pred_check_branch
      %574 = sbr.rel (0) target = $region345
    $region344: #{forward.1} parent=1 // pred_region
      %575 = dma.done [#allocation26], 128
    $region345: #{forward.1} parent=1 // pred_fallthru
      _
    // Predicated region
    $region346: #{forward.1} parent=1 // pred_check
      _
    $region347: #{forward.1} parent=1 // pred_check_branch
      %577 = sbr.rel (0) target = $region349
    $region348: #{forward.1} parent=1 // pred_region
      %578 = dma.done [#allocation29], 128
    $region349: #{forward.1} parent=1 // pred_fallthru
      _
    // Predicated region
    $region350: #{forward.1} parent=1 // pred_check
      _
    $region351: #{forward.1} parent=1 // pred_check_branch
      %580 = sbr.rel (0) target = $region353
    $region352: #{forward.1} parent=1 // pred_region
      %581 = dma.done [#allocation29], 128
    $region353: #{forward.1} parent=1 // pred_fallthru
      _
    // Predicated region
    $region354: #{forward.1} parent=1 // pred_check
      _
    $region355: #{forward.1} parent=1 // pred_check_branch
      %583 = sbr.rel (0) target = $region357
    $region356: #{forward.1} parent=1 // pred_region
      %584 = dma.done [#allocation32], 128
    $region357: #{forward.1} parent=1 // pred_fallthru
      _
    // Predicated region
    $region358: #{forward.1} parent=1 // pred_check
      _
    $region359: #{forward.1} parent=1 // pred_check_branch
      %586 = sbr.rel (0) target = $region361
    $region360: #{forward.1} parent=1 // pred_region
      %587 = dma.done [#allocation32], 128
    $region361: #{forward.1} parent=1 // pred_fallthru
      _
    // Predicated region
    $region362: #{forward.1} parent=1 // pred_check
      _
    $region363: #{forward.1} parent=1 // pred_check_branch
      %589 = sbr.rel (0) target = $region365
    $region364: #{forward.1} parent=1 // pred_region
      %590 = dma.done [#allocation35], 128
    $region365: #{forward.1} parent=1 // pred_fallthru
      _
    // Predicated region
    $region366: #{forward.1} parent=1 // pred_check
      _
    $region367: #{forward.1} parent=1 // pred_check_branch
      %592 = sbr.rel (0) target = $region369
    $region368: #{forward.1} parent=1 // pred_region
      %593 = dma.done [#allocation35], 128
    $region369: #{forward.1} parent=1 // pred_fallthru
      _
    // Predicated region
    $region370: #{forward.1} parent=1 // pred_check
      _
    $region371: #{forward.1} parent=1 // pred_check_branch
      %595 = sbr.rel (0) target = $region373
    $region372: #{forward.1} parent=1 // pred_region
      %596 = dma.done [#allocation38], 128
    $region373: #{forward.1} parent=1 // pred_fallthru
      _
    // Predicated region
    $region374: #{forward.1} parent=1 // pred_check
      _
    $region375: #{forward.1} parent=1 // pred_check_branch
      %598 = sbr.rel (0) target = $region377
    $region376: #{forward.1} parent=1 // pred_region
      %599 = dma.done [#allocation38], 128
    $region377: #{forward.1} parent=1 // pred_fallthru
      _
    // Predicated region
    $region378: #{forward.1} parent=1 // pred_check
      _
    $region379: #{forward.1} parent=1 // pred_check_branch
      %601 = sbr.rel (0) target = $region381
    $region380: #{forward.1} parent=1 // pred_region
      %602 = dma.done [#allocation41], 128
    $region381: #{forward.1} parent=1 // pred_fallthru
      _
    // Predicated region
    $region382: #{forward.1} parent=1 // pred_check
      _
    $region383: #{forward.1} parent=1 // pred_check_branch
      %604 = sbr.rel (0) target = $region385
    $region384: #{forward.1} parent=1 // pred_region
      %605 = dma.done [#allocation41], 128
    $region385: #{forward.1} parent=1 // pred_fallthru
      _
    // Predicated region
    $region386: #{forward.1} parent=1 // pred_check
      _
    $region387: #{forward.1} parent=1 // pred_check_branch
      %607 = sbr.rel (0) target = $region389
    $region388: #{forward.1} parent=1 // pred_region
      %608 = dma.done [#allocation44], 128
    $region389: #{forward.1} parent=1 // pred_fallthru
      _
    %v609 = vld [vmem:[#allocation2] sm:$0x3f]
    %v610 = vld [vmem:[#allocation6] sm:$0x3]
    %v611 = vld [vmem:[#allocation9] sm:$0x1]
    %v612 = vld [vmem:[#allocation4] sm:$0x3f]
    %v613 = vld [vmem:[#allocation7] sm:$0x3]
    %v614 = vld [vmem:[#allocation10] sm:$0x1]
    %v615 = vld [vmem:[%s1] sm:$0xff]
    %v616 = vld [vmem:[%s1 + $0x8] sm:$0xff]
    %v617 = vld [vmem:[%s1 + $0x10] sm:$0xff]
    %v618 = vld [vmem:[%s1 + $0x18] sm:$0xff]
    %v619 = vld [vmem:[%s1 + $0x20] sm:$0xff]
    %v620 = vld [vmem:[%s1 + $0x28] sm:$0xff]
    %621 = vrot.lane.b32.xlu0 %v615, 19
    %v622 = vpop.permute.xlu0 %621
    %623 = vrot.lane.b32.xlu0 %v616, 19
    %v624 = vpop.permute.xlu0 %623
    %625 = vrot.lane.b32.xlu0 %v617, 19
    %v626 = vpop.permute.xlu0 %625
    %627 = vrot.lane.b32.xlu0 %v618, 19
    %v628 = vpop.permute.xlu0 %627
    %629 = vrot.lane.b32.xlu0 %v619, 19
    %v630 = vpop.permute.xlu0 %629
    %631 = vrot.lane.b32.xlu0 %v620, 19
    %v632 = vpop.permute.xlu0 %631
    %v633 = vlaneseq
    %v634 = vand.u32 %v633, 127
    %vm635 = vcmp.lt.s32.totalorder %v634, 19
    %v636 = vsel %vm635, %v630, %v632
    %v637 = vsel %vm635, %v628, %v630
    %v638 = vsel %vm635, %v626, %v628
    %v639 = vsel %vm635, %v624, %v626
    %v640 = vsel %vm635, %v622, %v624
    %v641 = vsel %vm635, %v632, %v622
    %642 = vrot.lane.b32.xlu0 %v615, 18
    %v643 = vpop.permute.xlu0 %642
    %644 = vrot.lane.b32.xlu0 %v616, 18
    %v645 = vpop.permute.xlu0 %644
    %646 = vrot.lane.b32.xlu0 %v617, 18
    %v647 = vpop.permute.xlu0 %646
    %648 = vrot.lane.b32.xlu0 %v618, 18
    %v649 = vpop.permute.xlu0 %648
    %650 = vrot.lane.b32.xlu0 %v619, 18
    %v651 = vpop.permute.xlu0 %650
    %652 = vrot.lane.b32.xlu0 %v620, 18
    %v653 = vpop.permute.xlu0 %652
    %vm654 = vcmp.lt.s32.totalorder %v634, 18
    %v655 = vsel %vm654, %v651, %v653
    %v656 = vsel %vm654, %v649, %v651
    %v657 = vsel %vm654, %v647, %v649
    %v658 = vsel %vm654, %v645, %v647
    %v659 = vsel %vm654, %v643, %v645
    %v660 = vsel %vm654, %v653, %v643
    %661 = vrot.lane.b32.xlu0 %v615, 17
    %v662 = vpop.permute.xlu0 %661
    %663 = vrot.lane.b32.xlu0 %v616, 17
    %v664 = vpop.permute.xlu0 %663
    %665 = vrot.lane.b32.xlu0 %v617, 17
    %v666 = vpop.permute.xlu0 %665
    %667 = vrot.lane.b32.xlu0 %v618, 17
    %v668 = vpop.permute.xlu0 %667
    %669 = vrot.lane.b32.xlu0 %v619, 17
    %v670 = vpop.permute.xlu0 %669
    %671 = vrot.lane.b32.xlu0 %v620, 17
    %v672 = vpop.permute.xlu0 %671
    %vm673 = vcmp.lt.s32.totalorder %v634, 17
    %v674 = vsel %vm673, %v670, %v672
    %v675 = vsel %vm673, %v668, %v670
    %v676 = vsel %vm673, %v666, %v668
    %v677 = vsel %vm673, %v664, %v666
    %v678 = vsel %vm673, %v662, %v664
    %v679 = vsel %vm673, %v672, %v662
    %680 = vrot.lane.b32.xlu0 %v615, 1
    %v681 = vpop.permute.xlu0 %680
    %682 = vrot.lane.b32.xlu0 %v616, 1
    %v683 = vpop.permute.xlu0 %682
    %684 = vrot.lane.b32.xlu0 %v617, 1
    %v685 = vpop.permute.xlu0 %684
    %686 = vrot.lane.b32.xlu0 %v618, 1
    %v687 = vpop.permute.xlu0 %686
    %688 = vrot.lane.b32.xlu0 %v619, 1
    %v689 = vpop.permute.xlu0 %688
    %690 = vrot.lane.b32.xlu0 %v620, 1
    %v691 = vpop.permute.xlu0 %690
    %vm692 = vcmp.lt.s32.totalorder %v634, 1
    %v693 = vsel %vm692, %v689, %v691
    %v694 = vsel %vm692, %v687, %v689
    %v695 = vsel %vm692, %v685, %v687
    %v696 = vsel %vm692, %v683, %v685
    %v697 = vsel %vm692, %v681, %v683
    %v698 = vsel %vm692, %v691, %v681
    %699 = vrot.lane.b32.xlu0 %v615, 127
    %v700 = vpop.permute.xlu0 %699
    %701 = vrot.lane.b32.xlu0 %v616, 127
    %v702 = vpop.permute.xlu0 %701
    %703 = vrot.lane.b32.xlu0 %v617, 127
    %v704 = vpop.permute.xlu0 %703
    %705 = vrot.lane.b32.xlu0 %v618, 127
    %v706 = vpop.permute.xlu0 %705
    %707 = vrot.lane.b32.xlu0 %v619, 127
    %v708 = vpop.permute.xlu0 %707
    %709 = vrot.lane.b32.xlu0 %v620, 127
    %v710 = vpop.permute.xlu0 %709
    %vm711 = vcmp.lt.s32.totalorder %v634, 127
    %v712 = vsel %vm711, %v708, %v710
    %v713 = vsel %vm711, %v706, %v708
    %v714 = vsel %vm711, %v704, %v706
    %v715 = vsel %vm711, %v702, %v704
    %v716 = vsel %vm711, %v700, %v702
    %v717 = vsel %vm711, %v710, %v700
    %718 = vrot.lane.b32.xlu0 %v615, 111
    %v719 = vpop.permute.xlu0 %718
    %720 = vrot.lane.b32.xlu0 %v616, 111
    %v721 = vpop.permute.xlu0 %720
    %722 = vrot.lane.b32.xlu0 %v617, 111
    %v723 = vpop.permute.xlu0 %722
    %724 = vrot.lane.b32.xlu0 %v618, 111
    %v725 = vpop.permute.xlu0 %724
    %726 = vrot.lane.b32.xlu0 %v619, 111
    %v727 = vpop.permute.xlu0 %726
    %728 = vrot.lane.b32.xlu0 %v620, 111
    %v729 = vpop.permute.xlu0 %728
    %vm730 = vcmp.lt.s32.totalorder %v634, 111
    %v731 = vsel %vm730, %v727, %v729
    %v732 = vsel %vm730, %v725, %v727
    %v733 = vsel %vm730, %v723, %v725
    %v734 = vsel %vm730, %v721, %v723
    %v735 = vsel %vm730, %v719, %v721
    %v736 = vsel %vm730, %v729, %v719
    %737 = vrot.lane.b32.xlu0 %v615, 110
    %v738 = vpop.permute.xlu0 %737
    %739 = vrot.lane.b32.xlu0 %v616, 110
    %v740 = vpop.permute.xlu0 %739
    %741 = vrot.lane.b32.xlu0 %v617, 110
    %v742 = vpop.permute.xlu0 %741
    %743 = vrot.lane.b32.xlu0 %v618, 110
    %v744 = vpop.permute.xlu0 %743
    %745 = vrot.lane.b32.xlu0 %v619, 110
    %v746 = vpop.permute.xlu0 %745
    %747 = vrot.lane.b32.xlu0 %v620, 110
    %v748 = vpop.permute.xlu0 %747
    %vm749 = vcmp.lt.s32.totalorder %v634, 110
    %v750 = vsel %vm749, %v746, %v748
    %v751 = vsel %vm749, %v744, %v746
    %v752 = vsel %vm749, %v742, %v744
    %v753 = vsel %vm749, %v740, %v742
    %v754 = vsel %vm749, %v738, %v740
    %v755 = vsel %vm749, %v748, %v738
    %756 = vrot.lane.b32.xlu0 %v615, 109
    %v757 = vpop.permute.xlu0 %756
    %758 = vrot.lane.b32.xlu0 %v616, 109
    %v759 = vpop.permute.xlu0 %758
    %760 = vrot.lane.b32.xlu0 %v617, 109
    %v761 = vpop.permute.xlu0 %760
    %762 = vrot.lane.b32.xlu0 %v618, 109
    %v763 = vpop.permute.xlu0 %762
    %764 = vrot.lane.b32.xlu0 %v619, 109
    %v765 = vpop.permute.xlu0 %764
    %766 = vrot.lane.b32.xlu0 %v620, 109
    %v767 = vpop.permute.xlu0 %766
    %vm768 = vcmp.lt.s32.totalorder %v634, 109
    %v769 = vsel %vm768, %v765, %v767
    %v770 = vsel %vm768, %v763, %v765
    %v771 = vsel %vm768, %v761, %v763
    %v772 = vsel %vm768, %v759, %v761
    %v773 = vsel %vm768, %v757, %v759
    %v774 = vsel %vm768, %v767, %v757
    %v775 = vld [vmem:[#allocation15] sm:$0xff]
    %vm776 = vcmask 588800
    %v778 = vsel %vm776, %v775, 0
    %780 = vmatprep.subr.mxu0 0.0
    %781 = vmatpush1.msra.mxu0 0.0
    %782 = vmatprep.subr.mxu0 0.0
    %783 = vmatpush1.msra.mxu0 0.0
    %784 = vmatprep.subr.mxu0 0.0
    %785 = vmatpush1.msra.mxu0 0.0
    %786 = vmatprep.subr.mxu0 0.0
    %787 = vmatpush1.msra.mxu0 0.0
    %788 = vmatprep.subr.mxu0 0.0
    %789 = vmatpush1.msra.mxu0 0.0
    %790 = vmatprep.subr.mxu0 0.0
    %791 = vmatpush1.msra.mxu0 0.0
    %792 = vmatprep.subr.mxu0 0.0
    %793 = vmatpush1.msra.mxu0 0.0
    %794 = vmatprep.subr.mxu0 %v772
    %795 = vmatpush1.msra.mxu0 %v773
    %796 = vmatprep.subr.mxu0 %v753
    %797 = vmatpush1.msra.mxu0 %v754
    %798 = vmatprep.subr.mxu0 %v734
    %799 = vmatpush1.msra.mxu0 %v735
    %800 = vmatprep.subr.mxu0 %v715
    %801 = vmatpush1.msra.mxu0 %v716
    %802 = vmatprep.subr.mxu0 %v616
    %803 = vmatpush1.msra.mxu0 %v615
    %804 = vmatprep.subr.mxu0 %v697
    %805 = vmatpush1.msra.mxu0 %v698
    %806 = vmatprep.subr.mxu0 %v678
    %807 = vmatpush1.msra.mxu0 %v679
    %808 = vmatprep.subr.mxu0 %v659
    %809 = vmatpush1.msra.mxu0 %v660
    %810 = vmatprep.subr.mxu0 %v640
    %811 = vmatpush1.msra.mxu0 %v641
    %812 = vmatprep.subr.mxu0 0.0
    %813 = vmatpush2.msra.mxu0 0.0
    %814 = vmatprep.subr.mxu0 0.0
    %815 = vmatpush2.msra.mxu0 0.0
    %816 = vmatprep.subr.mxu0 0.0
    %817 = vmatpush2.msra.mxu0 0.0
    %818 = vmatprep.subr.mxu0 0.0
    %819 = vmatpush2.msra.mxu0 0.0
    %820 = vmatprep.subr.mxu0 0.0
    %821 = vmatpush2.msra.mxu0 0.0
    %822 = vmatprep.subr.mxu0 0.0
    %823 = vmatpush2.msra.mxu0 0.0
    %824 = vmatprep.subr.mxu0 0.0
    %825 = vmatpush2.msra.mxu0 0.0
    %826 = vmatprep.subr.mxu0 0.0
    %827 = vmatpush2.msra.mxu0 0.0
    %828 = vmatprep.subr.mxu0 0.0
    %829 = vmatpush2.msra.mxu0 0.0
    %830 = vmatprep.subr.mxu0 0.0
    %831 = vmatpush2.msra.mxu0 0.0
    %832 = vmatprep.subr.mxu0 0.0
    %833 = vmatpush2.msra.mxu0 0.0
    %834 = vmatprep.subr.mxu0 0.0
    %835 = vmatpush2.msra.mxu0 0.0
    %836 = vmatprep.subr.mxu0 0.0
    %837 = vmatpush2.msra.mxu0 0.0
    %838 = vmatprep.subr.mxu0 0.0
    %839 = vmatpush2.msra.mxu0 0.0
    %840 = vmatprep.subr.mxu0 0.0
    %841 = vmatpush2.msra.mxu0 0.0
    %842 = vmatprep.subr.mxu0 0.0
    %843 = vmatpush2.msra.mxu0 0.0
    %844 = vmatprep.mubr.f32.mxu0 0.0
    %845 = vmatmul.mubr.f32.gmra.mxu0 %v778
    %v846 = vpop.f32.mrf.mxu0
    %v847 = vadd.f32 0.0, %v846
    %v848 = vpop.f32.mrf.mxu0
    %v849 = vadd.f32 0.0, %v848
    %850 = vdwg.mxu0
    %851 = vmatprep.subr.mxu0 0.0
    %852 = vmatpush1.msra.mxu0 0.0
    %853 = vmatprep.subr.mxu0 0.0
    %854 = vmatpush1.msra.mxu0 0.0
    %855 = vmatprep.subr.mxu0 0.0
    %856 = vmatpush1.msra.mxu0 0.0
    %857 = vmatprep.subr.mxu0 0.0
    %858 = vmatpush1.msra.mxu0 0.0
    %859 = vmatprep.subr.mxu0 0.0
    %860 = vmatpush1.msra.mxu0 0.0
    %861 = vmatprep.subr.mxu0 0.0
    %862 = vmatpush1.msra.mxu0 0.0
    %863 = vmatprep.subr.mxu0 0.0
    %864 = vmatpush1.msra.mxu0 0.0
    %865 = vmatprep.subr.mxu0 %v770
    %866 = vmatpush1.msra.mxu0 %v771
    %867 = vmatprep.subr.mxu0 %v751
    %868 = vmatpush1.msra.mxu0 %v752
    %869 = vmatprep.subr.mxu0 %v732
    %870 = vmatpush1.msra.mxu0 %v733
    %871 = vmatprep.subr.mxu0 %v713
    %872 = vmatpush1.msra.mxu0 %v714
    %873 = vmatprep.subr.mxu0 %v618
    %874 = vmatpush1.msra.mxu0 %v617
    %875 = vmatprep.subr.mxu0 %v695
    %876 = vmatpush1.msra.mxu0 %v696
    %877 = vmatprep.subr.mxu0 %v676
    %878 = vmatpush1.msra.mxu0 %v677
    %879 = vmatprep.subr.mxu0 %v657
    %880 = vmatpush1.msra.mxu0 %v658
    %881 = vmatprep.subr.mxu0 %v638
    %882 = vmatpush1.msra.mxu0 %v639
    %883 = vmatprep.subr.mxu0 0.0
    %884 = vmatpush2.msra.mxu0 0.0
    %885 = vmatprep.subr.mxu0 0.0
    %886 = vmatpush2.msra.mxu0 0.0
    %887 = vmatprep.subr.mxu0 0.0
    %888 = vmatpush2.msra.mxu0 0.0
    %889 = vmatprep.subr.mxu0 0.0
    %890 = vmatpush2.msra.mxu0 0.0
    %891 = vmatprep.subr.mxu0 0.0
    %892 = vmatpush2.msra.mxu0 0.0
    %893 = vmatprep.subr.mxu0 0.0
    %894 = vmatpush2.msra.mxu0 0.0
    %895 = vmatprep.subr.mxu0 0.0
    %896 = vmatpush2.msra.mxu0 0.0
    %897 = vmatprep.subr.mxu0 0.0
    %898 = vmatpush2.msra.mxu0 0.0
    %899 = vmatprep.subr.mxu0 0.0
    %900 = vmatpush2.msra.mxu0 0.0
    %901 = vmatprep.subr.mxu0 0.0
    %902 = vmatpush2.msra.mxu0 0.0
    %903 = vmatprep.subr.mxu0 0.0
    %904 = vmatpush2.msra.mxu0 0.0
    %905 = vmatprep.subr.mxu0 0.0
    %906 = vmatpush2.msra.mxu0 0.0
    %907 = vmatprep.subr.mxu0 0.0
    %908 = vmatpush2.msra.mxu0 0.0
    %909 = vmatprep.subr.mxu0 0.0
    %910 = vmatpush2.msra.mxu0 0.0
    %911 = vmatprep.subr.mxu0 0.0
    %912 = vmatpush2.msra.mxu0 0.0
    %913 = vmatprep.subr.mxu0 0.0
    %914 = vmatpush2.msra.mxu0 0.0
    %915 = vmatprep.mubr.f32.mxu0 0.0
    %916 = vmatmul.mubr.f32.gmra.mxu0 %v778
    %v917 = vpop.f32.mrf.mxu0
    %v918 = vadd.f32 0.0, %v917
    %v919 = vpop.f32.mrf.mxu0
    %v920 = vadd.f32 0.0, %v919
    %921 = vdwg.mxu0
    %922 = vmatprep.subr.mxu0 0.0
    %923 = vmatpush1.msra.mxu0 0.0
    %924 = vmatprep.subr.mxu0 0.0
    %925 = vmatpush1.msra.mxu0 0.0
    %926 = vmatprep.subr.mxu0 0.0
    %927 = vmatpush1.msra.mxu0 0.0
    %928 = vmatprep.subr.mxu0 0.0
    %929 = vmatpush1.msra.mxu0 0.0
    %930 = vmatprep.subr.mxu0 0.0
    %931 = vmatpush1.msra.mxu0 0.0
    %932 = vmatprep.subr.mxu0 0.0
    %933 = vmatpush1.msra.mxu0 0.0
    %934 = vmatprep.subr.mxu0 0.0
    %935 = vmatpush1.msra.mxu0 0.0
    %936 = vmatprep.subr.mxu0 %v774
    %937 = vmatpush1.msra.mxu0 %v769
    %938 = vmatprep.subr.mxu0 %v755
    %939 = vmatpush1.msra.mxu0 %v750
    %940 = vmatprep.subr.mxu0 %v736
    %941 = vmatpush1.msra.mxu0 %v731
    %942 = vmatprep.subr.mxu0 %v717
    %943 = vmatpush1.msra.mxu0 %v712
    %944 = vmatprep.subr.mxu0 %v620
    %945 = vmatpush1.msra.mxu0 %v619
    %946 = vmatprep.subr.mxu0 %v693
    %947 = vmatpush1.msra.mxu0 %v694
    %948 = vmatprep.subr.mxu0 %v674
    %949 = vmatpush1.msra.mxu0 %v675
    %950 = vmatprep.subr.mxu0 %v655
    %951 = vmatpush1.msra.mxu0 %v656
    %952 = vmatprep.subr.mxu0 %v636
    %953 = vmatpush1.msra.mxu0 %v637
    %954 = vmatprep.subr.mxu0 0.0
    %955 = vmatpush2.msra.mxu0 0.0
    %956 = vmatprep.subr.mxu0 0.0
    %957 = vmatpush2.msra.mxu0 0.0
    %958 = vmatprep.subr.mxu0 0.0
    %959 = vmatpush2.msra.mxu0 0.0
    %960 = vmatprep.subr.mxu0 0.0
    %961 = vmatpush2.msra.mxu0 0.0
    %962 = vmatprep.subr.mxu0 0.0
    %963 = vmatpush2.msra.mxu0 0.0
    %964 = vmatprep.subr.mxu0 0.0
    %965 = vmatpush2.msra.mxu0 0.0
    %966 = vmatprep.subr.mxu0 0.0
    %967 = vmatpush2.msra.mxu0 0.0
    %968 = vmatprep.subr.mxu0 0.0
    %969 = vmatpush2.msra.mxu0 0.0
    %970 = vmatprep.subr.mxu0 0.0
    %971 = vmatpush2.msra.mxu0 0.0
    %972 = vmatprep.subr.mxu0 0.0
    %973 = vmatpush2.msra.mxu0 0.0
    %974 = vmatprep.subr.mxu0 0.0
    %975 = vmatpush2.msra.mxu0 0.0
    %976 = vmatprep.subr.mxu0 0.0
    %977 = vmatpush2.msra.mxu0 0.0
    %978 = vmatprep.subr.mxu0 0.0
    %979 = vmatpush2.msra.mxu0 0.0
    %980 = vmatprep.subr.mxu0 0.0
    %981 = vmatpush2.msra.mxu0 0.0
    %982 = vmatprep.subr.mxu0 0.0
    %983 = vmatpush2.msra.mxu0 0.0
    %984 = vmatprep.subr.mxu0 0.0
    %985 = vmatpush2.msra.mxu0 0.0
    %986 = vmatprep.mubr.f32.mxu0 0.0
    %987 = vmatmul.mubr.f32.gmra.mxu0 %v778
    %v988 = vpop.f32.mrf.mxu0
    %v989 = vadd.f32 0.0, %v988
    %v990 = vpop.f32.mrf.mxu0
    %v991 = vadd.f32 0.0, %v990
    %992 = vdwg.mxu0
    %v993 = vld [vmem:[#allocation16] sm:$0xff]
    %995 = vset.pattern.permute.xlu0 0
    %996 = vperm.xlu0 %995, %v993
    %v997 = vpop.permute.xlu0 %996
    %v999 = vmul.f32 %v847, %v997
    %v1000 = vmul.f32 %v849, %v997
    %v1001 = vmul.f32 %v918, %v997
    %v1002 = vmul.f32 %v920, %v997
    %v1003 = vmul.f32 %v989, %v997
    %v1004 = vmul.f32 %v991, %v997
    %v1005 = vld [vmem:[#allocation18] sm:$0xff]
    %1007 = vset.pattern.permute.xlu0 0
    %1008 = vperm.xlu0 %1007, %v1005
    %v1009 = vpop.permute.xlu0 %1008
    %v1011 = vadd.f32 %v999, %v1009
    %v1012 = vadd.f32 %v1000, %v1009
    %v1013 = vadd.f32 %v1001, %v1009
    %v1014 = vadd.f32 %v1002, %v1009
    %v1015 = vadd.f32 %v1003, %v1009
    %v1016 = vadd.f32 %v1004, %v1009
    %v1018 = vlaneseq
    %v1019 = vshrl.u32 %v1018, 7
    %v1020 = vsub.s32 0, %v1019
    %v1021 = vrot.slane %v609, %v1020
    %v1022 = vlaneseq
    %v1023 = vshrl.u32 %v1022, 7
    %v1024 = vsub.s32 1, %v1023
    %v1025 = vrot.slane %v609, %v1024
    %v1026 = vlaneseq
    %v1027 = vshrl.u32 %v1026, 7
    %v1028 = vsub.s32 2, %v1027
    %v1029 = vrot.slane %v609, %v1028
    %v1030 = vlaneseq
    %v1031 = vshrl.u32 %v1030, 7
    %v1032 = vsub.s32 3, %v1031
    %v1033 = vrot.slane %v609, %v1032
    %v1034 = vlaneseq
    %v1035 = vshrl.u32 %v1034, 7
    %v1036 = vsub.s32 4, %v1035
    %v1037 = vrot.slane %v609, %v1036
    %v1038 = vlaneseq
    %v1039 = vshrl.u32 %v1038, 7
    %v1040 = vsub.s32 5, %v1039
    %v1041 = vrot.slane %v609, %v1040
    %v1048 = vmul.f32 %v1011, %v1021
    %v1049 = vmul.f32 %v1012, %v1025
    %v1050 = vmul.f32 %v1013, %v1029
    %v1051 = vmul.f32 %v1014, %v1033
    %v1052 = vmul.f32 %v1015, %v1037
    %v1053 = vmul.f32 %v1016, %v1041
    %v1054 = vmax.f32 %v1048, 0.0
    %v1055 = vmax.f32 %v1049, 0.0
    %v1056 = vmax.f32 %v1050, 0.0
    %v1057 = vmax.f32 %v1051, 0.0
    %v1058 = vmax.f32 %v1052, 0.0
    %v1059 = vmax.f32 %v1053, 0.0
    %1060 = vrot.lane.b32.xlu0 %v1054, 19
    %v1061 = vpop.permute.xlu0 %1060
    %1062 = vrot.lane.b32.xlu0 %v1055, 19
    %v1063 = vpop.permute.xlu0 %1062
    %1064 = vrot.lane.b32.xlu0 %v1056, 19
    %v1065 = vpop.permute.xlu0 %1064
    %1066 = vrot.lane.b32.xlu0 %v1057, 19
    %v1067 = vpop.permute.xlu0 %1066
    %1068 = vrot.lane.b32.xlu0 %v1058, 19
    %v1069 = vpop.permute.xlu0 %1068
    %1070 = vrot.lane.b32.xlu0 %v1059, 19
    %v1071 = vpop.permute.xlu0 %1070
    %v1072 = vsel %vm635, %v1069, %v1071
    %v1073 = vsel %vm635, %v1067, %v1069
    %v1074 = vsel %vm635, %v1065, %v1067
    %v1075 = vsel %vm635, %v1063, %v1065
    %v1076 = vsel %vm635, %v1061, %v1063
    %v1077 = vsel %vm635, %v1071, %v1061
    %1078 = vrot.lane.b32.xlu0 %v1054, 18
    %v1079 = vpop.permute.xlu0 %1078
    %1080 = vrot.lane.b32.xlu0 %v1055, 18
    %v1081 = vpop.permute.xlu0 %1080
    %1082 = vrot.lane.b32.xlu0 %v1056, 18
    %v1083 = vpop.permute.xlu0 %1082
    %1084 = vrot.lane.b32.xlu0 %v1057, 18
    %v1085 = vpop.permute.xlu0 %1084
    %1086 = vrot.lane.b32.xlu0 %v1058, 18
    %v1087 = vpop.permute.xlu0 %1086
    %1088 = vrot.lane.b32.xlu0 %v1059, 18
    %v1089 = vpop.permute.xlu0 %1088
    %v1090 = vsel %vm654, %v1087, %v1089
    %v1091 = vsel %vm654, %v1085, %v1087
    %v1092 = vsel %vm654, %v1083, %v1085
    %v1093 = vsel %vm654, %v1081, %v1083
    %v1094 = vsel %vm654, %v1079, %v1081
    %v1095 = vsel %vm654, %v1089, %v1079
    %1096 = vrot.lane.b32.xlu0 %v1054, 17
    %v1097 = vpop.permute.xlu0 %1096
    %1098 = vrot.lane.b32.xlu0 %v1055, 17
    %v1099 = vpop.permute.xlu0 %1098
    %1100 = vrot.lane.b32.xlu0 %v1056, 17
    %v1101 = vpop.permute.xlu0 %1100
    %1102 = vrot.lane.b32.xlu0 %v1057, 17
    %v1103 = vpop.permute.xlu0 %1102
    %1104 = vrot.lane.b32.xlu0 %v1058, 17
    %v1105 = vpop.permute.xlu0 %1104
    %1106 = vrot.lane.b32.xlu0 %v1059, 17
    %v1107 = vpop.permute.xlu0 %1106
    %v1108 = vsel %vm673, %v1105, %v1107
    %v1109 = vsel %vm673, %v1103, %v1105
    %v1110 = vsel %vm673, %v1101, %v1103
    %v1111 = vsel %vm673, %v1099, %v1101
    %v1112 = vsel %vm673, %v1097, %v1099
    %v1113 = vsel %vm673, %v1107, %v1097
    %1114 = vrot.lane.b32.xlu0 %v1054, 1
    %v1115 = vpop.permute.xlu0 %1114
    %1116 = vrot.lane.b32.xlu0 %v1055, 1
    %v1117 = vpop.permute.xlu0 %1116
    %1118 = vrot.lane.b32.xlu0 %v1056, 1
    %v1119 = vpop.permute.xlu0 %1118
    %1120 = vrot.lane.b32.xlu0 %v1057, 1
    %v1121 = vpop.permute.xlu0 %1120
    %1122 = vrot.lane.b32.xlu0 %v1058, 1
    %v1123 = vpop.permute.xlu0 %1122
    %1124 = vrot.lane.b32.xlu0 %v1059, 1
    %v1125 = vpop.permute.xlu0 %1124
    %v1126 = vsel %vm692, %v1123, %v1125
    %v1127 = vsel %vm692, %v1121, %v1123
    %v1128 = vsel %vm692, %v1119, %v1121
    %v1129 = vsel %vm692, %v1117, %v1119
    %v1130 = vsel %vm692, %v1115, %v1117
    %v1131 = vsel %vm692, %v1125, %v1115
    %1132 = vrot.lane.b32.xlu0 %v1054, 127
    %v1133 = vpop.permute.xlu0 %1132
    %1134 = vrot.lane.b32.xlu0 %v1055, 127
    %v1135 = vpop.permute.xlu0 %1134
    %1136 = vrot.lane.b32.xlu0 %v1056, 127
    %v1137 = vpop.permute.xlu0 %1136
    %1138 = vrot.lane.b32.xlu0 %v1057, 127
    %v1139 = vpop.permute.xlu0 %1138
    %1140 = vrot.lane.b32.xlu0 %v1058, 127
    %v1141 = vpop.permute.xlu0 %1140
    %1142 = vrot.lane.b32.xlu0 %v1059, 127
    %v1143 = vpop.permute.xlu0 %1142
    %v1144 = vsel %vm711, %v1141, %v1143
    %v1145 = vsel %vm711, %v1139, %v1141
    %v1146 = vsel %vm711, %v1137, %v1139
    %v1147 = vsel %vm711, %v1135, %v1137
    %v1148 = vsel %vm711, %v1133, %v1135
    %v1149 = vsel %vm711, %v1143, %v1133
    %1150 = vrot.lane.b32.xlu0 %v1054, 111
    %v1151 = vpop.permute.xlu0 %1150
    %1152 = vrot.lane.b32.xlu0 %v1055, 111
    %v1153 = vpop.permute.xlu0 %1152
    %1154 = vrot.lane.b32.xlu0 %v1056, 111
    %v1155 = vpop.permute.xlu0 %1154
    %1156 = vrot.lane.b32.xlu0 %v1057, 111
    %v1157 = vpop.permute.xlu0 %1156
    %1158 = vrot.lane.b32.xlu0 %v1058, 111
    %v1159 = vpop.permute.xlu0 %1158
    %1160 = vrot.lane.b32.xlu0 %v1059, 111
    %v1161 = vpop.permute.xlu0 %1160
    %v1162 = vsel %vm730, %v1159, %v1161
    %v1163 = vsel %vm730, %v1157, %v1159
    %v1164 = vsel %vm730, %v1155, %v1157
    %v1165 = vsel %vm730, %v1153, %v1155
    %v1166 = vsel %vm730, %v1151, %v1153
    %v1167 = vsel %vm730, %v1161, %v1151
    %1168 = vrot.lane.b32.xlu0 %v1054, 110
    %v1169 = vpop.permute.xlu0 %1168
    %1170 = vrot.lane.b32.xlu0 %v1055, 110
    %v1171 = vpop.permute.xlu0 %1170
    %1172 = vrot.lane.b32.xlu0 %v1056, 110
    %v1173 = vpop.permute.xlu0 %1172
    %1174 = vrot.lane.b32.xlu0 %v1057, 110
    %v1175 = vpop.permute.xlu0 %1174
    %1176 = vrot.lane.b32.xlu0 %v1058, 110
    %v1177 = vpop.permute.xlu0 %1176
    %1178 = vrot.lane.b32.xlu0 %v1059, 110
    %v1179 = vpop.permute.xlu0 %1178
    %v1180 = vsel %vm749, %v1177, %v1179
    %v1181 = vsel %vm749, %v1175, %v1177
    %v1182 = vsel %vm749, %v1173, %v1175
    %v1183 = vsel %vm749, %v1171, %v1173
    %v1184 = vsel %vm749, %v1169, %v1171
    %v1185 = vsel %vm749, %v1179, %v1169
    %1186 = vrot.lane.b32.xlu0 %v1054, 109
    %v1187 = vpop.permute.xlu0 %1186
    %1188 = vrot.lane.b32.xlu0 %v1055, 109
    %v1189 = vpop.permute.xlu0 %1188
    %1190 = vrot.lane.b32.xlu0 %v1056, 109
    %v1191 = vpop.permute.xlu0 %1190
    %1192 = vrot.lane.b32.xlu0 %v1057, 109
    %v1193 = vpop.permute.xlu0 %1192
    %1194 = vrot.lane.b32.xlu0 %v1058, 109
    %v1195 = vpop.permute.xlu0 %1194
    %1196 = vrot.lane.b32.xlu0 %v1059, 109
    %v1197 = vpop.permute.xlu0 %1196
    %v1198 = vsel %vm768, %v1195, %v1197
    %v1199 = vsel %vm768, %v1193, %v1195
    %v1200 = vsel %vm768, %v1191, %v1193
    %v1201 = vsel %vm768, %v1189, %v1191
    %v1202 = vsel %vm768, %v1187, %v1189
    %v1203 = vsel %vm768, %v1197, %v1187
    %v1204 = vld [vmem:[#allocation19] sm:$0xff]
    %v1206 = vsel %vm776, %v1204, 0
    %1208 = vmatprep.subr.mxu0 0.0
    %1209 = vmatpush1.msra.mxu0 0.0
    %1210 = vmatprep.subr.mxu0 0.0
    %1211 = vmatpush1.msra.mxu0 0.0
    %1212 = vmatprep.subr.mxu0 0.0
    %1213 = vmatpush1.msra.mxu0 0.0
    %1214 = vmatprep.subr.mxu0 0.0
    %1215 = vmatpush1.msra.mxu0 0.0
    %1216 = vmatprep.subr.mxu0 0.0
    %1217 = vmatpush1.msra.mxu0 0.0
    %1218 = vmatprep.subr.mxu0 0.0
    %1219 = vmatpush1.msra.mxu0 0.0
    %1220 = vmatprep.subr.mxu0 0.0
    %1221 = vmatpush1.msra.mxu0 0.0
    %1222 = vmatprep.subr.mxu0 %v1201
    %1223 = vmatpush1.msra.mxu0 %v1202
    %1224 = vmatprep.subr.mxu0 %v1183
    %1225 = vmatpush1.msra.mxu0 %v1184
    %1226 = vmatprep.subr.mxu0 %v1165
    %1227 = vmatpush1.msra.mxu0 %v1166
    %1228 = vmatprep.subr.mxu0 %v1147
    %1229 = vmatpush1.msra.mxu0 %v1148
    %1230 = vmatprep.subr.mxu0 %v1055
    %1231 = vmatpush1.msra.mxu0 %v1054
    %1232 = vmatprep.subr.mxu0 %v1130
    %1233 = vmatpush1.msra.mxu0 %v1131
    %1234 = vmatprep.subr.mxu0 %v1112
    %1235 = vmatpush1.msra.mxu0 %v1113
    %1236 = vmatprep.subr.mxu0 %v1094
    %1237 = vmatpush1.msra.mxu0 %v1095
    %1238 = vmatprep.subr.mxu0 %v1076
    %1239 = vmatpush1.msra.mxu0 %v1077
    %1240 = vmatprep.subr.mxu0 0.0
    %1241 = vmatpush2.msra.mxu0 0.0
    %1242 = vmatprep.subr.mxu0 0.0
    %1243 = vmatpush2.msra.mxu0 0.0
    %1244 = vmatprep.subr.mxu0 0.0
    %1245 = vmatpush2.msra.mxu0 0.0
    %1246 = vmatprep.subr.mxu0 0.0
    %1247 = vmatpush2.msra.mxu0 0.0
    %1248 = vmatprep.subr.mxu0 0.0
    %1249 = vmatpush2.msra.mxu0 0.0
    %1250 = vmatprep.subr.mxu0 0.0
    %1251 = vmatpush2.msra.mxu0 0.0
    %1252 = vmatprep.subr.mxu0 0.0
    %1253 = vmatpush2.msra.mxu0 0.0
    %1254 = vmatprep.subr.mxu0 0.0
    %1255 = vmatpush2.msra.mxu0 0.0
    %1256 = vmatprep.subr.mxu0 0.0
    %1257 = vmatpush2.msra.mxu0 0.0
    %1258 = vmatprep.subr.mxu0 0.0
    %1259 = vmatpush2.msra.mxu0 0.0
    %1260 = vmatprep.subr.mxu0 0.0
    %1261 = vmatpush2.msra.mxu0 0.0
    %1262 = vmatprep.subr.mxu0 0.0
    %1263 = vmatpush2.msra.mxu0 0.0
    %1264 = vmatprep.subr.mxu0 0.0
    %1265 = vmatpush2.msra.mxu0 0.0
    %1266 = vmatprep.subr.mxu0 0.0
    %1267 = vmatpush2.msra.mxu0 0.0
    %1268 = vmatprep.subr.mxu0 0.0
    %1269 = vmatpush2.msra.mxu0 0.0
    %1270 = vmatprep.subr.mxu0 0.0
    %1271 = vmatpush2.msra.mxu0 0.0
    %1272 = vmatprep.mubr.f32.mxu0 0.0
    %1273 = vmatmul.mubr.f32.gmra.mxu0 %v1206
    %v1274 = vpop.f32.mrf.mxu0
    %v1275 = vadd.f32 0.0, %v1274
    %v1276 = vpop.f32.mrf.mxu0
    %v1277 = vadd.f32 0.0, %v1276
    %1278 = vdwg.mxu0
    %1279 = vmatprep.subr.mxu0 0.0
    %1280 = vmatpush1.msra.mxu0 0.0
    %1281 = vmatprep.subr.mxu0 0.0
    %1282 = vmatpush1.msra.mxu0 0.0
    %1283 = vmatprep.subr.mxu0 0.0
    %1284 = vmatpush1.msra.mxu0 0.0
    %1285 = vmatprep.subr.mxu0 0.0
    %1286 = vmatpush1.msra.mxu0 0.0
    %1287 = vmatprep.subr.mxu0 0.0
    %1288 = vmatpush1.msra.mxu0 0.0
    %1289 = vmatprep.subr.mxu0 0.0
    %1290 = vmatpush1.msra.mxu0 0.0
    %1291 = vmatprep.subr.mxu0 0.0
    %1292 = vmatpush1.msra.mxu0 0.0
    %1293 = vmatprep.subr.mxu0 %v1199
    %1294 = vmatpush1.msra.mxu0 %v1200
    %1295 = vmatprep.subr.mxu0 %v1181
    %1296 = vmatpush1.msra.mxu0 %v1182
    %1297 = vmatprep.subr.mxu0 %v1163
    %1298 = vmatpush1.msra.mxu0 %v1164
    %1299 = vmatprep.subr.mxu0 %v1145
    %1300 = vmatpush1.msra.mxu0 %v1146
    %1301 = vmatprep.subr.mxu0 %v1057
    %1302 = vmatpush1.msra.mxu0 %v1056
    %1303 = vmatprep.subr.mxu0 %v1128
    %1304 = vmatpush1.msra.mxu0 %v1129
    %1305 = vmatprep.subr.mxu0 %v1110
    %1306 = vmatpush1.msra.mxu0 %v1111
    %1307 = vmatprep.subr.mxu0 %v1092
    %1308 = vmatpush1.msra.mxu0 %v1093
    %1309 = vmatprep.subr.mxu0 %v1074
    %1310 = vmatpush1.msra.mxu0 %v1075
    %1311 = vmatprep.subr.mxu0 0.0
    %1312 = vmatpush2.msra.mxu0 0.0
    %1313 = vmatprep.subr.mxu0 0.0
    %1314 = vmatpush2.msra.mxu0 0.0
    %1315 = vmatprep.subr.mxu0 0.0
    %1316 = vmatpush2.msra.mxu0 0.0
    %1317 = vmatprep.subr.mxu0 0.0
    %1318 = vmatpush2.msra.mxu0 0.0
    %1319 = vmatprep.subr.mxu0 0.0
    %1320 = vmatpush2.msra.mxu0 0.0
    %1321 = vmatprep.subr.mxu0 0.0
    %1322 = vmatpush2.msra.mxu0 0.0
    %1323 = vmatprep.subr.mxu0 0.0
    %1324 = vmatpush2.msra.mxu0 0.0
    %1325 = vmatprep.subr.mxu0 0.0
    %1326 = vmatpush2.msra.mxu0 0.0
    %1327 = vmatprep.subr.mxu0 0.0
    %1328 = vmatpush2.msra.mxu0 0.0
    %1329 = vmatprep.subr.mxu0 0.0
    %1330 = vmatpush2.msra.mxu0 0.0
    %1331 = vmatprep.subr.mxu0 0.0
    %1332 = vmatpush2.msra.mxu0 0.0
    %1333 = vmatprep.subr.mxu0 0.0
    %1334 = vmatpush2.msra.mxu0 0.0
    %1335 = vmatprep.subr.mxu0 0.0
    %1336 = vmatpush2.msra.mxu0 0.0
    %1337 = vmatprep.subr.mxu0 0.0
    %1338 = vmatpush2.msra.mxu0 0.0
    %1339 = vmatprep.subr.mxu0 0.0
    %1340 = vmatpush2.msra.mxu0 0.0
    %1341 = vmatprep.subr.mxu0 0.0
    %1342 = vmatpush2.msra.mxu0 0.0
    %1343 = vmatprep.mubr.f32.mxu0 0.0
    %1344 = vmatmul.mubr.f32.gmra.mxu0 %v1206
    %v1345 = vpop.f32.mrf.mxu0
    %v1346 = vadd.f32 0.0, %v1345
    %v1347 = vpop.f32.mrf.mxu0
    %v1348 = vadd.f32 0.0, %v1347
    %1349 = vdwg.mxu0
    %1350 = vmatprep.subr.mxu0 0.0
    %1351 = vmatpush1.msra.mxu0 0.0
    %1352 = vmatprep.subr.mxu0 0.0
    %1353 = vmatpush1.msra.mxu0 0.0
    %1354 = vmatprep.subr.mxu0 0.0
    %1355 = vmatpush1.msra.mxu0 0.0
    %1356 = vmatprep.subr.mxu0 0.0
    %1357 = vmatpush1.msra.mxu0 0.0
    %1358 = vmatprep.subr.mxu0 0.0
    %1359 = vmatpush1.msra.mxu0 0.0
    %1360 = vmatprep.subr.mxu0 0.0
    %1361 = vmatpush1.msra.mxu0 0.0
    %1362 = vmatprep.subr.mxu0 0.0
    %1363 = vmatpush1.msra.mxu0 0.0
    %1364 = vmatprep.subr.mxu0 %v1203
    %1365 = vmatpush1.msra.mxu0 %v1198
    %1366 = vmatprep.subr.mxu0 %v1185
    %1367 = vmatpush1.msra.mxu0 %v1180
    %1368 = vmatprep.subr.mxu0 %v1167
    %1369 = vmatpush1.msra.mxu0 %v1162
    %1370 = vmatprep.subr.mxu0 %v1149
    %1371 = vmatpush1.msra.mxu0 %v1144
    %1372 = vmatprep.subr.mxu0 %v1059
    %1373 = vmatpush1.msra.mxu0 %v1058
    %1374 = vmatprep.subr.mxu0 %v1126
    %1375 = vmatpush1.msra.mxu0 %v1127
    %1376 = vmatprep.subr.mxu0 %v1108
    %1377 = vmatpush1.msra.mxu0 %v1109
    %1378 = vmatprep.subr.mxu0 %v1090
    %1379 = vmatpush1.msra.mxu0 %v1091
    %1380 = vmatprep.subr.mxu0 %v1072
    %1381 = vmatpush1.msra.mxu0 %v1073
    %1382 = vmatprep.subr.mxu0 0.0
    %1383 = vmatpush2.msra.mxu0 0.0
    %1384 = vmatprep.subr.mxu0 0.0
    %1385 = vmatpush2.msra.mxu0 0.0
    %1386 = vmatprep.subr.mxu0 0.0
    %1387 = vmatpush2.msra.mxu0 0.0
    %1388 = vmatprep.subr.mxu0 0.0
    %1389 = vmatpush2.msra.mxu0 0.0
    %1390 = vmatprep.subr.mxu0 0.0
    %1391 = vmatpush2.msra.mxu0 0.0
    %1392 = vmatprep.subr.mxu0 0.0
    %1393 = vmatpush2.msra.mxu0 0.0
    %1394 = vmatprep.subr.mxu0 0.0
    %1395 = vmatpush2.msra.mxu0 0.0
    %1396 = vmatprep.subr.mxu0 0.0
    %1397 = vmatpush2.msra.mxu0 0.0
    %1398 = vmatprep.subr.mxu0 0.0
    %1399 = vmatpush2.msra.mxu0 0.0
    %1400 = vmatprep.subr.mxu0 0.0
    %1401 = vmatpush2.msra.mxu0 0.0
    %1402 = vmatprep.subr.mxu0 0.0
    %1403 = vmatpush2.msra.mxu0 0.0
    %1404 = vmatprep.subr.mxu0 0.0
    %1405 = vmatpush2.msra.mxu0 0.0
    %1406 = vmatprep.subr.mxu0 0.0
    %1407 = vmatpush2.msra.mxu0 0.0
    %1408 = vmatprep.subr.mxu0 0.0
    %1409 = vmatpush2.msra.mxu0 0.0
    %1410 = vmatprep.subr.mxu0 0.0
    %1411 = vmatpush2.msra.mxu0 0.0
    %1412 = vmatprep.subr.mxu0 0.0
    %1413 = vmatpush2.msra.mxu0 0.0
    %1414 = vmatprep.mubr.f32.mxu0 0.0
    %1415 = vmatmul.mubr.f32.gmra.mxu0 %v1206
    %v1416 = vpop.f32.mrf.mxu0
    %v1417 = vadd.f32 0.0, %v1416
    %v1418 = vpop.f32.mrf.mxu0
    %v1419 = vadd.f32 0.0, %v1418
    %1420 = vdwg.mxu0
    %v1421 = vld [vmem:[#allocation21] sm:$0xff]
    %1423 = vset.pattern.permute.xlu0 0
    %1424 = vperm.xlu0 %1423, %v1421
    %v1425 = vpop.permute.xlu0 %1424
    %v1427 = vmul.f32 %v1275, %v1425
    %v1428 = vmul.f32 %v1277, %v1425
    %v1429 = vmul.f32 %v1346, %v1425
    %v1430 = vmul.f32 %v1348, %v1425
    %v1431 = vmul.f32 %v1417, %v1425
    %v1432 = vmul.f32 %v1419, %v1425
    %v1433 = vld [vmem:[#allocation22] sm:$0xff]
    %1435 = vset.pattern.permute.xlu0 0
    %1436 = vperm.xlu0 %1435, %v1433
    %v1437 = vpop.permute.xlu0 %1436
    %v1439 = vadd.f32 %v1427, %v1437
    %v1440 = vadd.f32 %v1428, %v1437
    %v1441 = vadd.f32 %v1429, %v1437
    %v1442 = vadd.f32 %v1430, %v1437
    %v1443 = vadd.f32 %v1431, %v1437
    %v1444 = vadd.f32 %v1432, %v1437
    %v1445 = vmul.f32 %v1439, %v1021
    %v1446 = vmul.f32 %v1440, %v1025
    %v1447 = vmul.f32 %v1441, %v1029
    %v1448 = vmul.f32 %v1442, %v1033
    %v1449 = vmul.f32 %v1443, %v1037
    %v1450 = vmul.f32 %v1444, %v1041
    %v1451 = vld [vmem:[#allocation24] sm:$0xff]
    %vm1452 = vcmask 64512
    %v1454 = vsel %vm1452, %v1451, 0
    %1456 = vmatprep.subr.mxu0 0.0
    %1457 = vmatpush1.msra.mxu0 0.0
    %1458 = vmatprep.subr.mxu0 0.0
    %1459 = vmatpush1.msra.mxu0 0.0
    %1460 = vmatprep.subr.mxu0 0.0
    %1461 = vmatpush1.msra.mxu0 0.0
    %1462 = vmatprep.subr.mxu0 0.0
    %1463 = vmatpush1.msra.mxu0 0.0
    %1464 = vmatprep.subr.mxu0 0.0
    %1465 = vmatpush1.msra.mxu0 0.0
    %1466 = vmatprep.subr.mxu0 0.0
    %1467 = vmatpush1.msra.mxu0 0.0
    %1468 = vmatprep.subr.mxu0 0.0
    %1469 = vmatpush1.msra.mxu0 0.0
    %1470 = vmatprep.subr.mxu0 0.0
    %1471 = vmatpush1.msra.mxu0 0.0
    %1472 = vmatprep.subr.mxu0 0.0
    %1473 = vmatpush1.msra.mxu0 0.0
    %1474 = vmatprep.subr.mxu0 0.0
    %1475 = vmatpush1.msra.mxu0 0.0
    %1476 = vmatprep.subr.mxu0 0.0
    %1477 = vmatpush1.msra.mxu0 0.0
    %1478 = vmatprep.subr.mxu0 0.0
    %1479 = vmatpush1.msra.mxu0 0.0
    %1480 = vmatprep.subr.mxu0 0.0
    %1481 = vmatpush1.msra.mxu0 0.0
    %1482 = vmatprep.subr.mxu0 0.0
    %1483 = vmatpush1.msra.mxu0 0.0
    %1484 = vmatprep.subr.mxu0 0.0
    %1485 = vmatpush1.msra.mxu0 0.0
    %1486 = vmatprep.subr.mxu0 %v1055
    %1487 = vmatpush1.msra.mxu0 %v1054
    %1488 = vmatprep.subr.mxu0 0.0
    %1489 = vmatpush2.msra.mxu0 0.0
    %1490 = vmatprep.subr.mxu0 0.0
    %1491 = vmatpush2.msra.mxu0 0.0
    %1492 = vmatprep.subr.mxu0 0.0
    %1493 = vmatpush2.msra.mxu0 0.0
    %1494 = vmatprep.subr.mxu0 0.0
    %1495 = vmatpush2.msra.mxu0 0.0
    %1496 = vmatprep.subr.mxu0 0.0
    %1497 = vmatpush2.msra.mxu0 0.0
    %1498 = vmatprep.subr.mxu0 0.0
    %1499 = vmatpush2.msra.mxu0 0.0
    %1500 = vmatprep.subr.mxu0 0.0
    %1501 = vmatpush2.msra.mxu0 0.0
    %1502 = vmatprep.subr.mxu0 0.0
    %1503 = vmatpush2.msra.mxu0 0.0
    %1504 = vmatprep.subr.mxu0 0.0
    %1505 = vmatpush2.msra.mxu0 0.0
    %1506 = vmatprep.subr.mxu0 0.0
    %1507 = vmatpush2.msra.mxu0 0.0
    %1508 = vmatprep.subr.mxu0 0.0
    %1509 = vmatpush2.msra.mxu0 0.0
    %1510 = vmatprep.subr.mxu0 0.0
    %1511 = vmatpush2.msra.mxu0 0.0
    %1512 = vmatprep.subr.mxu0 0.0
    %1513 = vmatpush2.msra.mxu0 0.0
    %1514 = vmatprep.subr.mxu0 0.0
    %1515 = vmatpush2.msra.mxu0 0.0
    %1516 = vmatprep.subr.mxu0 0.0
    %1517 = vmatpush2.msra.mxu0 0.0
    %1518 = vmatprep.subr.mxu0 0.0
    %1519 = vmatpush2.msra.mxu0 0.0
    %1520 = vmatprep.mubr.f32.mxu0 0.0
    %1521 = vmatmul.mubr.f32.gmra.mxu0 %v1454
    %v1522 = vpop.f32.mrf.mxu0
    %v1523 = vadd.f32 0.0, %v1522
    %v1524 = vpop.f32.mrf.mxu0
    %v1525 = vadd.f32 0.0, %v1524
    %1526 = vdwg.mxu0
    %1527 = vmatprep.subr.mxu0 0.0
    %1528 = vmatpush1.msra.mxu0 0.0
    %1529 = vmatprep.subr.mxu0 0.0
    %1530 = vmatpush1.msra.mxu0 0.0
    %1531 = vmatprep.subr.mxu0 0.0
    %1532 = vmatpush1.msra.mxu0 0.0
    %1533 = vmatprep.subr.mxu0 0.0
    %1534 = vmatpush1.msra.mxu0 0.0
    %1535 = vmatprep.subr.mxu0 0.0
    %1536 = vmatpush1.msra.mxu0 0.0
    %1537 = vmatprep.subr.mxu0 0.0
    %1538 = vmatpush1.msra.mxu0 0.0
    %1539 = vmatprep.subr.mxu0 0.0
    %1540 = vmatpush1.msra.mxu0 0.0
    %1541 = vmatprep.subr.mxu0 0.0
    %1542 = vmatpush1.msra.mxu0 0.0
    %1543 = vmatprep.subr.mxu0 0.0
    %1544 = vmatpush1.msra.mxu0 0.0
    %1545 = vmatprep.subr.mxu0 0.0
    %1546 = vmatpush1.msra.mxu0 0.0
    %1547 = vmatprep.subr.mxu0 0.0
    %1548 = vmatpush1.msra.mxu0 0.0
    %1549 = vmatprep.subr.mxu0 0.0
    %1550 = vmatpush1.msra.mxu0 0.0
    %1551 = vmatprep.subr.mxu0 0.0
    %1552 = vmatpush1.msra.mxu0 0.0
    %1553 = vmatprep.subr.mxu0 0.0
    %1554 = vmatpush1.msra.mxu0 0.0
    %1555 = vmatprep.subr.mxu0 0.0
    %1556 = vmatpush1.msra.mxu0 0.0
    %1557 = vmatprep.subr.mxu0 %v1057
    %1558 = vmatpush1.msra.mxu0 %v1056
    %1559 = vmatprep.subr.mxu0 0.0
    %1560 = vmatpush2.msra.mxu0 0.0
    %1561 = vmatprep.subr.mxu0 0.0
    %1562 = vmatpush2.msra.mxu0 0.0
    %1563 = vmatprep.subr.mxu0 0.0
    %1564 = vmatpush2.msra.mxu0 0.0
    %1565 = vmatprep.subr.mxu0 0.0
    %1566 = vmatpush2.msra.mxu0 0.0
    %1567 = vmatprep.subr.mxu0 0.0
    %1568 = vmatpush2.msra.mxu0 0.0
    %1569 = vmatprep.subr.mxu0 0.0
    %1570 = vmatpush2.msra.mxu0 0.0
    %1571 = vmatprep.subr.mxu0 0.0
    %1572 = vmatpush2.msra.mxu0 0.0
    %1573 = vmatprep.subr.mxu0 0.0
    %1574 = vmatpush2.msra.mxu0 0.0
    %1575 = vmatprep.subr.mxu0 0.0
    %1576 = vmatpush2.msra.mxu0 0.0
    %1577 = vmatprep.subr.mxu0 0.0
    %1578 = vmatpush2.msra.mxu0 0.0
    %1579 = vmatprep.subr.mxu0 0.0
    %1580 = vmatpush2.msra.mxu0 0.0
    %1581 = vmatprep.subr.mxu0 0.0
    %1582 = vmatpush2.msra.mxu0 0.0
    %1583 = vmatprep.subr.mxu0 0.0
    %1584 = vmatpush2.msra.mxu0 0.0
    %1585 = vmatprep.subr.mxu0 0.0
    %1586 = vmatpush2.msra.mxu0 0.0
    %1587 = vmatprep.subr.mxu0 0.0
    %1588 = vmatpush2.msra.mxu0 0.0
    %1589 = vmatprep.subr.mxu0 0.0
    %1590 = vmatpush2.msra.mxu0 0.0
    %1591 = vmatprep.mubr.f32.mxu0 0.0
    %1592 = vmatmul.mubr.f32.gmra.mxu0 %v1454
    %v1593 = vpop.f32.mrf.mxu0
    %v1594 = vadd.f32 0.0, %v1593
    %v1595 = vpop.f32.mrf.mxu0
    %v1596 = vadd.f32 0.0, %v1595
    %1597 = vdwg.mxu0
    %1598 = vmatprep.subr.mxu0 0.0
    %1599 = vmatpush1.msra.mxu0 0.0
    %1600 = vmatprep.subr.mxu0 0.0
    %1601 = vmatpush1.msra.mxu0 0.0
    %1602 = vmatprep.subr.mxu0 0.0
    %1603 = vmatpush1.msra.mxu0 0.0
    %1604 = vmatprep.subr.mxu0 0.0
    %1605 = vmatpush1.msra.mxu0 0.0
    %1606 = vmatprep.subr.mxu0 0.0
    %1607 = vmatpush1.msra.mxu0 0.0
    %1608 = vmatprep.subr.mxu0 0.0
    %1609 = vmatpush1.msra.mxu0 0.0
    %1610 = vmatprep.subr.mxu0 0.0
    %1611 = vmatpush1.msra.mxu0 0.0
    %1612 = vmatprep.subr.mxu0 0.0
    %1613 = vmatpush1.msra.mxu0 0.0
    %1614 = vmatprep.subr.mxu0 0.0
    %1615 = vmatpush1.msra.mxu0 0.0
    %1616 = vmatprep.subr.mxu0 0.0
    %1617 = vmatpush1.msra.mxu0 0.0
    %1618 = vmatprep.subr.mxu0 0.0
    %1619 = vmatpush1.msra.mxu0 0.0
    %1620 = vmatprep.subr.mxu0 0.0
    %1621 = vmatpush1.msra.mxu0 0.0
    %1622 = vmatprep.subr.mxu0 0.0
    %1623 = vmatpush1.msra.mxu0 0.0
    %1624 = vmatprep.subr.mxu0 0.0
    %1625 = vmatpush1.msra.mxu0 0.0
    %1626 = vmatprep.subr.mxu0 0.0
    %1627 = vmatpush1.msra.mxu0 0.0
    %1628 = vmatprep.subr.mxu0 %v1059
    %1629 = vmatpush1.msra.mxu0 %v1058
    %1630 = vmatprep.subr.mxu0 0.0
    %1631 = vmatpush2.msra.mxu0 0.0
    %1632 = vmatprep.subr.mxu0 0.0
    %1633 = vmatpush2.msra.mxu0 0.0
    %1634 = vmatprep.subr.mxu0 0.0
    %1635 = vmatpush2.msra.mxu0 0.0
    %1636 = vmatprep.subr.mxu0 0.0
    %1637 = vmatpush2.msra.mxu0 0.0
    %1638 = vmatprep.subr.mxu0 0.0
    %1639 = vmatpush2.msra.mxu0 0.0
    %1640 = vmatprep.subr.mxu0 0.0
    %1641 = vmatpush2.msra.mxu0 0.0
    %1642 = vmatprep.subr.mxu0 0.0
    %1643 = vmatpush2.msra.mxu0 0.0
    %1644 = vmatprep.subr.mxu0 0.0
    %1645 = vmatpush2.msra.mxu0 0.0
    %1646 = vmatprep.subr.mxu0 0.0
    %1647 = vmatpush2.msra.mxu0 0.0
    %1648 = vmatprep.subr.mxu0 0.0
    %1649 = vmatpush2.msra.mxu0 0.0
    %1650 = vmatprep.subr.mxu0 0.0
    %1651 = vmatpush2.msra.mxu0 0.0
    %1652 = vmatprep.subr.mxu0 0.0
    %1653 = vmatpush2.msra.mxu0 0.0
    %1654 = vmatprep.subr.mxu0 0.0
    %1655 = vmatpush2.msra.mxu0 0.0
    %1656 = vmatprep.subr.mxu0 0.0
    %1657 = vmatpush2.msra.mxu0 0.0
    %1658 = vmatprep.subr.mxu0 0.0
    %1659 = vmatpush2.msra.mxu0 0.0
    %1660 = vmatprep.subr.mxu0 0.0
    %1661 = vmatpush2.msra.mxu0 0.0
    %1662 = vmatprep.mubr.f32.mxu0 0.0
    %1663 = vmatmul.mubr.f32.gmra.mxu0 %v1454
    %v1664 = vpop.f32.mrf.mxu0
    %v1665 = vadd.f32 0.0, %v1664
    %v1666 = vpop.f32.mrf.mxu0
    %v1667 = vadd.f32 0.0, %v1666
    %1668 = vdwg.mxu0
    %v1669 = vld [vmem:[#allocation25] sm:$0xff]
    %1671 = vset.pattern.permute.xlu0 0
    %1672 = vperm.xlu0 %1671, %v1669
    %v1673 = vpop.permute.xlu0 %1672
    %v1675 = vmul.f32 %v1523, %v1673
    %v1676 = vmul.f32 %v1525, %v1673
    %v1677 = vmul.f32 %v1594, %v1673
    %v1678 = vmul.f32 %v1596, %v1673
    %v1679 = vmul.f32 %v1665, %v1673
    %v1680 = vmul.f32 %v1667, %v1673
    %v1681 = vld [vmem:[#allocation27] sm:$0xff]
    %1683 = vset.pattern.permute.xlu0 0
    %1684 = vperm.xlu0 %1683, %v1681
    %v1685 = vpop.permute.xlu0 %1684
    %v1687 = vadd.f32 %v1675, %v1685
    %v1688 = vadd.f32 %v1676, %v1685
    %v1689 = vadd.f32 %v1677, %v1685
    %v1690 = vadd.f32 %v1678, %v1685
    %v1691 = vadd.f32 %v1679, %v1685
    %v1692 = vadd.f32 %v1680, %v1685
    %v1693 = vmul.f32 %v1687, %v1021
    %v1694 = vmul.f32 %v1688, %v1025
    %v1695 = vmul.f32 %v1689, %v1029
    %v1696 = vmul.f32 %v1690, %v1033
    %v1697 = vmul.f32 %v1691, %v1037
    %v1698 = vmul.f32 %v1692, %v1041
    %v1699 = vmax.f32 %v1445, 0.0
    %v1700 = vmax.f32 %v1446, 0.0
    %v1701 = vmax.f32 %v1447, 0.0
    %v1702 = vmax.f32 %v1448, 0.0
    %v1703 = vmax.f32 %v1449, 0.0
    %v1704 = vmax.f32 %v1450, 0.0
    %1705 = vrot.lane.b32.xlu0 %v1699, 19
    %v1706 = vpop.permute.xlu0 %1705
    %1707 = vrot.lane.b32.xlu0 %v1700, 19
    %v1708 = vpop.permute.xlu0 %1707
    %1709 = vrot.lane.b32.xlu0 %v1701, 19
    %v1710 = vpop.permute.xlu0 %1709
    %1711 = vrot.lane.b32.xlu0 %v1702, 19
    %v1712 = vpop.permute.xlu0 %1711
    %1713 = vrot.lane.b32.xlu0 %v1703, 19
    %v1714 = vpop.permute.xlu0 %1713
    %1715 = vrot.lane.b32.xlu0 %v1704, 19
    %v1716 = vpop.permute.xlu0 %1715
    %v1717 = vsel %vm635, %v1714, %v1716
    %v1718 = vsel %vm635, %v1712, %v1714
    %v1719 = vsel %vm635, %v1710, %v1712
    %v1720 = vsel %vm635, %v1708, %v1710
    %v1721 = vsel %vm635, %v1706, %v1708
    %v1722 = vsel %vm635, %v1716, %v1706
    %1723 = vrot.lane.b32.xlu0 %v1699, 18
    %v1724 = vpop.permute.xlu0 %1723
    %1725 = vrot.lane.b32.xlu0 %v1700, 18
    %v1726 = vpop.permute.xlu0 %1725
    %1727 = vrot.lane.b32.xlu0 %v1701, 18
    %v1728 = vpop.permute.xlu0 %1727
    %1729 = vrot.lane.b32.xlu0 %v1702, 18
    %v1730 = vpop.permute.xlu0 %1729
    %1731 = vrot.lane.b32.xlu0 %v1703, 18
    %v1732 = vpop.permute.xlu0 %1731
    %1733 = vrot.lane.b32.xlu0 %v1704, 18
    %v1734 = vpop.permute.xlu0 %1733
    %v1735 = vsel %vm654, %v1732, %v1734
    %v1736 = vsel %vm654, %v1730, %v1732
    %v1737 = vsel %vm654, %v1728, %v1730
    %v1738 = vsel %vm654, %v1726, %v1728
    %v1739 = vsel %vm654, %v1724, %v1726
    %v1740 = vsel %vm654, %v1734, %v1724
    %1741 = vrot.lane.b32.xlu0 %v1699, 17
    %v1742 = vpop.permute.xlu0 %1741
    %1743 = vrot.lane.b32.xlu0 %v1700, 17
    %v1744 = vpop.permute.xlu0 %1743
    %1745 = vrot.lane.b32.xlu0 %v1701, 17
    %v1746 = vpop.permute.xlu0 %1745
    %1747 = vrot.lane.b32.xlu0 %v1702, 17
    %v1748 = vpop.permute.xlu0 %1747
    %1749 = vrot.lane.b32.xlu0 %v1703, 17
    %v1750 = vpop.permute.xlu0 %1749
    %1751 = vrot.lane.b32.xlu0 %v1704, 17
    %v1752 = vpop.permute.xlu0 %1751
    %v1753 = vsel %vm673, %v1750, %v1752
    %v1754 = vsel %vm673, %v1748, %v1750
    %v1755 = vsel %vm673, %v1746, %v1748
    %v1756 = vsel %vm673, %v1744, %v1746
    %v1757 = vsel %vm673, %v1742, %v1744
    %v1758 = vsel %vm673, %v1752, %v1742
    %1759 = vrot.lane.b32.xlu0 %v1699, 1
    %v1760 = vpop.permute.xlu0 %1759
    %1761 = vrot.lane.b32.xlu0 %v1700, 1
    %v1762 = vpop.permute.xlu0 %1761
    %1763 = vrot.lane.b32.xlu0 %v1701, 1
    %v1764 = vpop.permute.xlu0 %1763
    %1765 = vrot.lane.b32.xlu0 %v1702, 1
    %v1766 = vpop.permute.xlu0 %1765
    %1767 = vrot.lane.b32.xlu0 %v1703, 1
    %v1768 = vpop.permute.xlu0 %1767
    %1769 = vrot.lane.b32.xlu0 %v1704, 1
    %v1770 = vpop.permute.xlu0 %1769
    %v1771 = vsel %vm692, %v1768, %v1770
    %v1772 = vsel %vm692, %v1766, %v1768
    %v1773 = vsel %vm692, %v1764, %v1766
    %v1774 = vsel %vm692, %v1762, %v1764
    %v1775 = vsel %vm692, %v1760, %v1762
    %v1776 = vsel %vm692, %v1770, %v1760
    %1777 = vrot.lane.b32.xlu0 %v1699, 127
    %v1778 = vpop.permute.xlu0 %1777
    %1779 = vrot.lane.b32.xlu0 %v1700, 127
    %v1780 = vpop.permute.xlu0 %1779
    %1781 = vrot.lane.b32.xlu0 %v1701, 127
    %v1782 = vpop.permute.xlu0 %1781
    %1783 = vrot.lane.b32.xlu0 %v1702, 127
    %v1784 = vpop.permute.xlu0 %1783
    %1785 = vrot.lane.b32.xlu0 %v1703, 127
    %v1786 = vpop.permute.xlu0 %1785
    %1787 = vrot.lane.b32.xlu0 %v1704, 127
    %v1788 = vpop.permute.xlu0 %1787
    %v1789 = vsel %vm711, %v1786, %v1788
    %v1790 = vsel %vm711, %v1784, %v1786
    %v1791 = vsel %vm711, %v1782, %v1784
    %v1792 = vsel %vm711, %v1780, %v1782
    %v1793 = vsel %vm711, %v1778, %v1780
    %v1794 = vsel %vm711, %v1788, %v1778
    %1795 = vrot.lane.b32.xlu0 %v1699, 111
    %v1796 = vpop.permute.xlu0 %1795
    %1797 = vrot.lane.b32.xlu0 %v1700, 111
    %v1798 = vpop.permute.xlu0 %1797
    %1799 = vrot.lane.b32.xlu0 %v1701, 111
    %v1800 = vpop.permute.xlu0 %1799
    %1801 = vrot.lane.b32.xlu0 %v1702, 111
    %v1802 = vpop.permute.xlu0 %1801
    %1803 = vrot.lane.b32.xlu0 %v1703, 111
    %v1804 = vpop.permute.xlu0 %1803
    %1805 = vrot.lane.b32.xlu0 %v1704, 111
    %v1806 = vpop.permute.xlu0 %1805
    %v1807 = vsel %vm730, %v1804, %v1806
    %v1808 = vsel %vm730, %v1802, %v1804
    %v1809 = vsel %vm730, %v1800, %v1802
    %v1810 = vsel %vm730, %v1798, %v1800
    %v1811 = vsel %vm730, %v1796, %v1798
    %v1812 = vsel %vm730, %v1806, %v1796
    %1813 = vrot.lane.b32.xlu0 %v1699, 110
    %v1814 = vpop.permute.xlu0 %1813
    %1815 = vrot.lane.b32.xlu0 %v1700, 110
    %v1816 = vpop.permute.xlu0 %1815
    %1817 = vrot.lane.b32.xlu0 %v1701, 110
    %v1818 = vpop.permute.xlu0 %1817
    %1819 = vrot.lane.b32.xlu0 %v1702, 110
    %v1820 = vpop.permute.xlu0 %1819
    %1821 = vrot.lane.b32.xlu0 %v1703, 110
    %v1822 = vpop.permute.xlu0 %1821
    %1823 = vrot.lane.b32.xlu0 %v1704, 110
    %v1824 = vpop.permute.xlu0 %1823
    %v1825 = vsel %vm749, %v1822, %v1824
    %v1826 = vsel %vm749, %v1820, %v1822
    %v1827 = vsel %vm749, %v1818, %v1820
    %v1828 = vsel %vm749, %v1816, %v1818
    %v1829 = vsel %vm749, %v1814, %v1816
    %v1830 = vsel %vm749, %v1824, %v1814
    %1831 = vrot.lane.b32.xlu0 %v1699, 109
    %v1832 = vpop.permute.xlu0 %1831
    %1833 = vrot.lane.b32.xlu0 %v1700, 109
    %v1834 = vpop.permute.xlu0 %1833
    %1835 = vrot.lane.b32.xlu0 %v1701, 109
    %v1836 = vpop.permute.xlu0 %1835
    %1837 = vrot.lane.b32.xlu0 %v1702, 109
    %v1838 = vpop.permute.xlu0 %1837
    %1839 = vrot.lane.b32.xlu0 %v1703, 109
    %v1840 = vpop.permute.xlu0 %1839
    %1841 = vrot.lane.b32.xlu0 %v1704, 109
    %v1842 = vpop.permute.xlu0 %1841
    %v1843 = vsel %vm768, %v1840, %v1842
    %v1844 = vsel %vm768, %v1838, %v1840
    %v1845 = vsel %vm768, %v1836, %v1838
    %v1846 = vsel %vm768, %v1834, %v1836
    %v1847 = vsel %vm768, %v1832, %v1834
    %v1848 = vsel %vm768, %v1842, %v1832
    %v1849 = vld [vmem:[#allocation28] sm:$0xff]
    %v1851 = vsel %vm776, %v1849, 0
    %1853 = vmatprep.subr.mxu0 0.0
    %1854 = vmatpush1.msra.mxu0 0.0
    %1855 = vmatprep.subr.mxu0 0.0
    %1856 = vmatpush1.msra.mxu0 0.0
    %1857 = vmatprep.subr.mxu0 0.0
    %1858 = vmatpush1.msra.mxu0 0.0
    %1859 = vmatprep.subr.mxu0 0.0
    %1860 = vmatpush1.msra.mxu0 0.0
    %1861 = vmatprep.subr.mxu0 0.0
    %1862 = vmatpush1.msra.mxu0 0.0
    %1863 = vmatprep.subr.mxu0 0.0
    %1864 = vmatpush1.msra.mxu0 0.0
    %1865 = vmatprep.subr.mxu0 0.0
    %1866 = vmatpush1.msra.mxu0 0.0
    %1867 = vmatprep.subr.mxu0 %v1846
    %1868 = vmatpush1.msra.mxu0 %v1847
    %1869 = vmatprep.subr.mxu0 %v1828
    %1870 = vmatpush1.msra.mxu0 %v1829
    %1871 = vmatprep.subr.mxu0 %v1810
    %1872 = vmatpush1.msra.mxu0 %v1811
    %1873 = vmatprep.subr.mxu0 %v1792
    %1874 = vmatpush1.msra.mxu0 %v1793
    %1875 = vmatprep.subr.mxu0 %v1700
    %1876 = vmatpush1.msra.mxu0 %v1699
    %1877 = vmatprep.subr.mxu0 %v1775
    %1878 = vmatpush1.msra.mxu0 %v1776
    %1879 = vmatprep.subr.mxu0 %v1757
    %1880 = vmatpush1.msra.mxu0 %v1758
    %1881 = vmatprep.subr.mxu0 %v1739
    %1882 = vmatpush1.msra.mxu0 %v1740
    %1883 = vmatprep.subr.mxu0 %v1721
    %1884 = vmatpush1.msra.mxu0 %v1722
    %1885 = vmatprep.subr.mxu0 0.0
    %1886 = vmatpush2.msra.mxu0 0.0
    %1887 = vmatprep.subr.mxu0 0.0
    %1888 = vmatpush2.msra.mxu0 0.0
    %1889 = vmatprep.subr.mxu0 0.0
    %1890 = vmatpush2.msra.mxu0 0.0
    %1891 = vmatprep.subr.mxu0 0.0
    %1892 = vmatpush2.msra.mxu0 0.0
    %1893 = vmatprep.subr.mxu0 0.0
    %1894 = vmatpush2.msra.mxu0 0.0
    %1895 = vmatprep.subr.mxu0 0.0
    %1896 = vmatpush2.msra.mxu0 0.0
    %1897 = vmatprep.subr.mxu0 0.0
    %1898 = vmatpush2.msra.mxu0 0.0
    %1899 = vmatprep.subr.mxu0 0.0
    %1900 = vmatpush2.msra.mxu0 0.0
    %1901 = vmatprep.subr.mxu0 0.0
    %1902 = vmatpush2.msra.mxu0 0.0
    %1903 = vmatprep.subr.mxu0 0.0
    %1904 = vmatpush2.msra.mxu0 0.0
    %1905 = vmatprep.subr.mxu0 0.0
    %1906 = vmatpush2.msra.mxu0 0.0
    %1907 = vmatprep.subr.mxu0 0.0
    %1908 = vmatpush2.msra.mxu0 0.0
    %1909 = vmatprep.subr.mxu0 0.0
    %1910 = vmatpush2.msra.mxu0 0.0
    %1911 = vmatprep.subr.mxu0 0.0
    %1912 = vmatpush2.msra.mxu0 0.0
    %1913 = vmatprep.subr.mxu0 0.0
    %1914 = vmatpush2.msra.mxu0 0.0
    %1915 = vmatprep.subr.mxu0 0.0
    %1916 = vmatpush2.msra.mxu0 0.0
    %1917 = vmatprep.mubr.f32.mxu0 0.0
    %1918 = vmatmul.mubr.f32.gmra.mxu0 %v1851
    %v1919 = vpop.f32.mrf.mxu0
    %v1920 = vadd.f32 0.0, %v1919
    %v1921 = vpop.f32.mrf.mxu0
    %v1922 = vadd.f32 0.0, %v1921
    %1923 = vdwg.mxu0
    %1924 = vmatprep.subr.mxu0 0.0
    %1925 = vmatpush1.msra.mxu0 0.0
    %1926 = vmatprep.subr.mxu0 0.0
    %1927 = vmatpush1.msra.mxu0 0.0
    %1928 = vmatprep.subr.mxu0 0.0
    %1929 = vmatpush1.msra.mxu0 0.0
    %1930 = vmatprep.subr.mxu0 0.0
    %1931 = vmatpush1.msra.mxu0 0.0
    %1932 = vmatprep.subr.mxu0 0.0
    %1933 = vmatpush1.msra.mxu0 0.0
    %1934 = vmatprep.subr.mxu0 0.0
    %1935 = vmatpush1.msra.mxu0 0.0
    %1936 = vmatprep.subr.mxu0 0.0
    %1937 = vmatpush1.msra.mxu0 0.0
    %1938 = vmatprep.subr.mxu0 %v1844
    %1939 = vmatpush1.msra.mxu0 %v1845
    %1940 = vmatprep.subr.mxu0 %v1826
    %1941 = vmatpush1.msra.mxu0 %v1827
    %1942 = vmatprep.subr.mxu0 %v1808
    %1943 = vmatpush1.msra.mxu0 %v1809
    %1944 = vmatprep.subr.mxu0 %v1790
    %1945 = vmatpush1.msra.mxu0 %v1791
    %1946 = vmatprep.subr.mxu0 %v1702
    %1947 = vmatpush1.msra.mxu0 %v1701
    %1948 = vmatprep.subr.mxu0 %v1773
    %1949 = vmatpush1.msra.mxu0 %v1774
    %1950 = vmatprep.subr.mxu0 %v1755
    %1951 = vmatpush1.msra.mxu0 %v1756
    %1952 = vmatprep.subr.mxu0 %v1737
    %1953 = vmatpush1.msra.mxu0 %v1738
    %1954 = vmatprep.subr.mxu0 %v1719
    %1955 = vmatpush1.msra.mxu0 %v1720
    %1956 = vmatprep.subr.mxu0 0.0
    %1957 = vmatpush2.msra.mxu0 0.0
    %1958 = vmatprep.subr.mxu0 0.0
    %1959 = vmatpush2.msra.mxu0 0.0
    %1960 = vmatprep.subr.mxu0 0.0
    %1961 = vmatpush2.msra.mxu0 0.0
    %1962 = vmatprep.subr.mxu0 0.0
    %1963 = vmatpush2.msra.mxu0 0.0
    %1964 = vmatprep.subr.mxu0 0.0
    %1965 = vmatpush2.msra.mxu0 0.0
    %1966 = vmatprep.subr.mxu0 0.0
    %1967 = vmatpush2.msra.mxu0 0.0
    %1968 = vmatprep.subr.mxu0 0.0
    %1969 = vmatpush2.msra.mxu0 0.0
    %1970 = vmatprep.subr.mxu0 0.0
    %1971 = vmatpush2.msra.mxu0 0.0
    %1972 = vmatprep.subr.mxu0 0.0
    %1973 = vmatpush2.msra.mxu0 0.0
    %1974 = vmatprep.subr.mxu0 0.0
    %1975 = vmatpush2.msra.mxu0 0.0
    %1976 = vmatprep.subr.mxu0 0.0
    %1977 = vmatpush2.msra.mxu0 0.0
    %1978 = vmatprep.subr.mxu0 0.0
    %1979 = vmatpush2.msra.mxu0 0.0
    %1980 = vmatprep.subr.mxu0 0.0
    %1981 = vmatpush2.msra.mxu0 0.0
    %1982 = vmatprep.subr.mxu0 0.0
    %1983 = vmatpush2.msra.mxu0 0.0
    %1984 = vmatprep.subr.mxu0 0.0
    %1985 = vmatpush2.msra.mxu0 0.0
    %1986 = vmatprep.subr.mxu0 0.0
    %1987 = vmatpush2.msra.mxu0 0.0
    %1988 = vmatprep.mubr.f32.mxu0 0.0
    %1989 = vmatmul.mubr.f32.gmra.mxu0 %v1851
    %v1990 = vpop.f32.mrf.mxu0
    %v1991 = vadd.f32 0.0, %v1990
    %v1992 = vpop.f32.mrf.mxu0
    %v1993 = vadd.f32 0.0, %v1992
    %1994 = vdwg.mxu0
    %1995 = vmatprep.subr.mxu0 0.0
    %1996 = vmatpush1.msra.mxu0 0.0
    %1997 = vmatprep.subr.mxu0 0.0
    %1998 = vmatpush1.msra.mxu0 0.0
    %1999 = vmatprep.subr.mxu0 0.0
    %2000 = vmatpush1.msra.mxu0 0.0
    %2001 = vmatprep.subr.mxu0 0.0
    %2002 = vmatpush1.msra.mxu0 0.0
    %2003 = vmatprep.subr.mxu0 0.0
    %2004 = vmatpush1.msra.mxu0 0.0
    %2005 = vmatprep.subr.mxu0 0.0
    %2006 = vmatpush1.msra.mxu0 0.0
    %2007 = vmatprep.subr.mxu0 0.0
    %2008 = vmatpush1.msra.mxu0 0.0
    %2009 = vmatprep.subr.mxu0 %v1848
    %2010 = vmatpush1.msra.mxu0 %v1843
    %2011 = vmatprep.subr.mxu0 %v1830
    %2012 = vmatpush1.msra.mxu0 %v1825
    %2013 = vmatprep.subr.mxu0 %v1812
    %2014 = vmatpush1.msra.mxu0 %v1807
    %2015 = vmatprep.subr.mxu0 %v1794
    %2016 = vmatpush1.msra.mxu0 %v1789
    %2017 = vmatprep.subr.mxu0 %v1704
    %2018 = vmatpush1.msra.mxu0 %v1703
    %2019 = vmatprep.subr.mxu0 %v1771
    %2020 = vmatpush1.msra.mxu0 %v1772
    %2021 = vmatprep.subr.mxu0 %v1753
    %2022 = vmatpush1.msra.mxu0 %v1754
    %2023 = vmatprep.subr.mxu0 %v1735
    %2024 = vmatpush1.msra.mxu0 %v1736
    %2025 = vmatprep.subr.mxu0 %v1717
    %2026 = vmatpush1.msra.mxu0 %v1718
    %2027 = vmatprep.subr.mxu0 0.0
    %2028 = vmatpush2.msra.mxu0 0.0
    %2029 = vmatprep.subr.mxu0 0.0
    %2030 = vmatpush2.msra.mxu0 0.0
    %2031 = vmatprep.subr.mxu0 0.0
    %2032 = vmatpush2.msra.mxu0 0.0
    %2033 = vmatprep.subr.mxu0 0.0
    %2034 = vmatpush2.msra.mxu0 0.0
    %2035 = vmatprep.subr.mxu0 0.0
    %2036 = vmatpush2.msra.mxu0 0.0
    %2037 = vmatprep.subr.mxu0 0.0
    %2038 = vmatpush2.msra.mxu0 0.0
    %2039 = vmatprep.subr.mxu0 0.0
    %2040 = vmatpush2.msra.mxu0 0.0
    %2041 = vmatprep.subr.mxu0 0.0
    %2042 = vmatpush2.msra.mxu0 0.0
    %2043 = vmatprep.subr.mxu0 0.0
    %2044 = vmatpush2.msra.mxu0 0.0
    %2045 = vmatprep.subr.mxu0 0.0
    %2046 = vmatpush2.msra.mxu0 0.0
    %2047 = vmatprep.subr.mxu0 0.0
    %2048 = vmatpush2.msra.mxu0 0.0
    %2049 = vmatprep.subr.mxu0 0.0
    %2050 = vmatpush2.msra.mxu0 0.0
    %2051 = vmatprep.subr.mxu0 0.0
    %2052 = vmatpush2.msra.mxu0 0.0
    %2053 = vmatprep.subr.mxu0 0.0
    %2054 = vmatpush2.msra.mxu0 0.0
    %2055 = vmatprep.subr.mxu0 0.0
    %2056 = vmatpush2.msra.mxu0 0.0
    %2057 = vmatprep.subr.mxu0 0.0
    %2058 = vmatpush2.msra.mxu0 0.0
    %2059 = vmatprep.mubr.f32.mxu0 0.0
    %2060 = vmatmul.mubr.f32.gmra.mxu0 %v1851
    %v2061 = vpop.f32.mrf.mxu0
    %v2062 = vadd.f32 0.0, %v2061
    %v2063 = vpop.f32.mrf.mxu0
    %v2064 = vadd.f32 0.0, %v2063
    %2065 = vdwg.mxu0
    %v2066 = vld [vmem:[#allocation30] sm:$0xff]
    %2068 = vset.pattern.permute.xlu0 0
    %2069 = vperm.xlu0 %2068, %v2066
    %v2070 = vpop.permute.xlu0 %2069
    %v2072 = vmul.f32 %v1920, %v2070
    %v2073 = vmul.f32 %v1922, %v2070
    %v2074 = vmul.f32 %v1991, %v2070
    %v2075 = vmul.f32 %v1993, %v2070
    %v2076 = vmul.f32 %v2062, %v2070
    %v2077 = vmul.f32 %v2064, %v2070
    %v2078 = vld [vmem:[#allocation31] sm:$0xff]
    %2080 = vset.pattern.permute.xlu0 0
    %2081 = vperm.xlu0 %2080, %v2078
    %v2082 = vpop.permute.xlu0 %2081
    %v2084 = vadd.f32 %v2072, %v2082
    %v2085 = vadd.f32 %v2073, %v2082
    %v2086 = vadd.f32 %v2074, %v2082
    %v2087 = vadd.f32 %v2075, %v2082
    %v2088 = vadd.f32 %v2076, %v2082
    %v2089 = vadd.f32 %v2077, %v2082
    %v2090 = vmul.f32 %v2084, %v1021
    %v2091 = vmul.f32 %v2085, %v1025
    %v2092 = vmul.f32 %v2086, %v1029
    %v2093 = vmul.f32 %v2087, %v1033
    %v2094 = vmul.f32 %v2088, %v1037
    %v2095 = vmul.f32 %v2089, %v1041
    %v2096 = vadd.f32 %v1693, %v2090
    %v2097 = vadd.f32 %v1694, %v2091
    %v2098 = vadd.f32 %v1695, %v2092
    %v2099 = vadd.f32 %v1696, %v2093
    %v2100 = vadd.f32 %v1697, %v2094
    %v2101 = vadd.f32 %v1698, %v2095
    %2102 = vrot.lane.b32.xlu0 %v1445, 19
    %v2103 = vpop.permute.xlu0 %2102
    %2104 = vrot.lane.b32.xlu0 %v1446, 19
    %v2105 = vpop.permute.xlu0 %2104
    %2106 = vrot.lane.b32.xlu0 %v1447, 19
    %v2107 = vpop.permute.xlu0 %2106
    %2108 = vrot.lane.b32.xlu0 %v1448, 19
    %v2109 = vpop.permute.xlu0 %2108
    %2110 = vrot.lane.b32.xlu0 %v1449, 19
    %v2111 = vpop.permute.xlu0 %2110
    %2112 = vrot.lane.b32.xlu0 %v1450, 19
    %v2113 = vpop.permute.xlu0 %2112
    %v2114 = vsel %vm635, %v2111, %v2113
    %v2115 = vsel %vm635, %v2109, %v2111
    %v2116 = vsel %vm635, %v2107, %v2109
    %v2117 = vsel %vm635, %v2105, %v2107
    %v2118 = vsel %vm635, %v2103, %v2105
    %v2119 = vsel %vm635, %v2113, %v2103
    %v2120 = vadd.f32 %v1445, %v2119
    %v2121 = vadd.f32 %v1446, %v2118
    %v2122 = vadd.f32 %v1447, %v2117
    %v2123 = vadd.f32 %v1448, %v2116
    %v2124 = vadd.f32 %v1449, %v2115
    %v2125 = vadd.f32 %v1450, %v2114
    %2126 = vrot.lane.b32.xlu0 %v1445, 18
    %v2127 = vpop.permute.xlu0 %2126
    %2128 = vrot.lane.b32.xlu0 %v1446, 18
    %v2129 = vpop.permute.xlu0 %2128
    %2130 = vrot.lane.b32.xlu0 %v1447, 18
    %v2131 = vpop.permute.xlu0 %2130
    %2132 = vrot.lane.b32.xlu0 %v1448, 18
    %v2133 = vpop.permute.xlu0 %2132
    %2134 = vrot.lane.b32.xlu0 %v1449, 18
    %v2135 = vpop.permute.xlu0 %2134
    %2136 = vrot.lane.b32.xlu0 %v1450, 18
    %v2137 = vpop.permute.xlu0 %2136
    %v2138 = vsel %vm654, %v2135, %v2137
    %v2139 = vsel %vm654, %v2133, %v2135
    %v2140 = vsel %vm654, %v2131, %v2133
    %v2141 = vsel %vm654, %v2129, %v2131
    %v2142 = vsel %vm654, %v2127, %v2129
    %v2143 = vsel %vm654, %v2137, %v2127
    %v2144 = vadd.f32 %v2120, %v2143
    %v2145 = vadd.f32 %v2121, %v2142
    %v2146 = vadd.f32 %v2122, %v2141
    %v2147 = vadd.f32 %v2123, %v2140
    %v2148 = vadd.f32 %v2124, %v2139
    %v2149 = vadd.f32 %v2125, %v2138
    %2150 = vrot.lane.b32.xlu0 %v1445, 17
    %v2151 = vpop.permute.xlu0 %2150
    %2152 = vrot.lane.b32.xlu0 %v1446, 17
    %v2153 = vpop.permute.xlu0 %2152
    %2154 = vrot.lane.b32.xlu0 %v1447, 17
    %v2155 = vpop.permute.xlu0 %2154
    %2156 = vrot.lane.b32.xlu0 %v1448, 17
    %v2157 = vpop.permute.xlu0 %2156
    %2158 = vrot.lane.b32.xlu0 %v1449, 17
    %v2159 = vpop.permute.xlu0 %2158
    %2160 = vrot.lane.b32.xlu0 %v1450, 17
    %v2161 = vpop.permute.xlu0 %2160
    %v2162 = vsel %vm673, %v2159, %v2161
    %v2163 = vsel %vm673, %v2157, %v2159
    %v2164 = vsel %vm673, %v2155, %v2157
    %v2165 = vsel %vm673, %v2153, %v2155
    %v2166 = vsel %vm673, %v2151, %v2153
    %v2167 = vsel %vm673, %v2161, %v2151
    %v2168 = vadd.f32 %v2144, %v2167
    %v2169 = vadd.f32 %v2145, %v2166
    %v2170 = vadd.f32 %v2146, %v2165
    %v2171 = vadd.f32 %v2147, %v2164
    %v2172 = vadd.f32 %v2148, %v2163
    %v2173 = vadd.f32 %v2149, %v2162
    %2174 = vrot.lane.b32.xlu0 %v1445, 1
    %v2175 = vpop.permute.xlu0 %2174
    %2176 = vrot.lane.b32.xlu0 %v1446, 1
    %v2177 = vpop.permute.xlu0 %2176
    %2178 = vrot.lane.b32.xlu0 %v1447, 1
    %v2179 = vpop.permute.xlu0 %2178
    %2180 = vrot.lane.b32.xlu0 %v1448, 1
    %v2181 = vpop.permute.xlu0 %2180
    %2182 = vrot.lane.b32.xlu0 %v1449, 1
    %v2183 = vpop.permute.xlu0 %2182
    %2184 = vrot.lane.b32.xlu0 %v1450, 1
    %v2185 = vpop.permute.xlu0 %2184
    %v2186 = vsel %vm692, %v2183, %v2185
    %v2187 = vsel %vm692, %v2181, %v2183
    %v2188 = vsel %vm692, %v2179, %v2181
    %v2189 = vsel %vm692, %v2177, %v2179
    %v2190 = vsel %vm692, %v2175, %v2177
    %v2191 = vsel %vm692, %v2185, %v2175
    %v2192 = vadd.f32 %v2168, %v2191
    %v2193 = vadd.f32 %v2169, %v2190
    %v2194 = vadd.f32 %v2170, %v2189
    %v2195 = vadd.f32 %v2171, %v2188
    %v2196 = vadd.f32 %v2172, %v2187
    %v2197 = vadd.f32 %v2173, %v2186
    %2198 = vrot.lane.b32.xlu0 %v1445, 127
    %v2199 = vpop.permute.xlu0 %2198
    %2200 = vrot.lane.b32.xlu0 %v1446, 127
    %v2201 = vpop.permute.xlu0 %2200
    %2202 = vrot.lane.b32.xlu0 %v1447, 127
    %v2203 = vpop.permute.xlu0 %2202
    %2204 = vrot.lane.b32.xlu0 %v1448, 127
    %v2205 = vpop.permute.xlu0 %2204
    %2206 = vrot.lane.b32.xlu0 %v1449, 127
    %v2207 = vpop.permute.xlu0 %2206
    %2208 = vrot.lane.b32.xlu0 %v1450, 127
    %v2209 = vpop.permute.xlu0 %2208
    %v2210 = vsel %vm711, %v2207, %v2209
    %v2211 = vsel %vm711, %v2205, %v2207
    %v2212 = vsel %vm711, %v2203, %v2205
    %v2213 = vsel %vm711, %v2201, %v2203
    %v2214 = vsel %vm711, %v2199, %v2201
    %v2215 = vsel %vm711, %v2209, %v2199
    %v2216 = vadd.f32 %v2192, %v2214
    %v2217 = vadd.f32 %v2193, %v2213
    %v2218 = vadd.f32 %v2194, %v2212
    %v2219 = vadd.f32 %v2195, %v2211
    %v2220 = vadd.f32 %v2196, %v2210
    %v2221 = vadd.f32 %v2197, %v2215
    %2222 = vrot.lane.b32.xlu0 %v1445, 111
    %v2223 = vpop.permute.xlu0 %2222
    %2224 = vrot.lane.b32.xlu0 %v1446, 111
    %v2225 = vpop.permute.xlu0 %2224
    %2226 = vrot.lane.b32.xlu0 %v1447, 111
    %v2227 = vpop.permute.xlu0 %2226
    %2228 = vrot.lane.b32.xlu0 %v1448, 111
    %v2229 = vpop.permute.xlu0 %2228
    %2230 = vrot.lane.b32.xlu0 %v1449, 111
    %v2231 = vpop.permute.xlu0 %2230
    %2232 = vrot.lane.b32.xlu0 %v1450, 111
    %v2233 = vpop.permute.xlu0 %2232
    %v2234 = vsel %vm730, %v2231, %v2233
    %v2235 = vsel %vm730, %v2229, %v2231
    %v2236 = vsel %vm730, %v2227, %v2229
    %v2237 = vsel %vm730, %v2225, %v2227
    %v2238 = vsel %vm730, %v2223, %v2225
    %v2239 = vsel %vm730, %v2233, %v2223
    %v2240 = vadd.f32 %v2216, %v2238
    %v2241 = vadd.f32 %v2217, %v2237
    %v2242 = vadd.f32 %v2218, %v2236
    %v2243 = vadd.f32 %v2219, %v2235
    %v2244 = vadd.f32 %v2220, %v2234
    %v2245 = vadd.f32 %v2221, %v2239
    %2246 = vrot.lane.b32.xlu0 %v1445, 110
    %v2247 = vpop.permute.xlu0 %2246
    %2248 = vrot.lane.b32.xlu0 %v1446, 110
    %v2249 = vpop.permute.xlu0 %2248
    %2250 = vrot.lane.b32.xlu0 %v1447, 110
    %v2251 = vpop.permute.xlu0 %2250
    %2252 = vrot.lane.b32.xlu0 %v1448, 110
    %v2253 = vpop.permute.xlu0 %2252
    %2254 = vrot.lane.b32.xlu0 %v1449, 110
    %v2255 = vpop.permute.xlu0 %2254
    %2256 = vrot.lane.b32.xlu0 %v1450, 110
    %v2257 = vpop.permute.xlu0 %2256
    %v2258 = vsel %vm749, %v2255, %v2257
    %v2259 = vsel %vm749, %v2253, %v2255
    %v2260 = vsel %vm749, %v2251, %v2253
    %v2261 = vsel %vm749, %v2249, %v2251
    %v2262 = vsel %vm749, %v2247, %v2249
    %v2263 = vsel %vm749, %v2257, %v2247
    %v2264 = vadd.f32 %v2240, %v2262
    %v2265 = vadd.f32 %v2241, %v2261
    %v2266 = vadd.f32 %v2242, %v2260
    %v2267 = vadd.f32 %v2243, %v2259
    %v2268 = vadd.f32 %v2244, %v2258
    %v2269 = vadd.f32 %v2245, %v2263
    %2270 = vrot.lane.b32.xlu0 %v1445, 109
    %v2271 = vpop.permute.xlu0 %2270
    %2272 = vrot.lane.b32.xlu0 %v1446, 109
    %v2273 = vpop.permute.xlu0 %2272
    %2274 = vrot.lane.b32.xlu0 %v1447, 109
    %v2275 = vpop.permute.xlu0 %2274
    %2276 = vrot.lane.b32.xlu0 %v1448, 109
    %v2277 = vpop.permute.xlu0 %2276
    %2278 = vrot.lane.b32.xlu0 %v1449, 109
    %v2279 = vpop.permute.xlu0 %2278
    %2280 = vrot.lane.b32.xlu0 %v1450, 109
    %v2281 = vpop.permute.xlu0 %2280
    %v2282 = vsel %vm768, %v2279, %v2281
    %v2283 = vsel %vm768, %v2277, %v2279
    %v2284 = vsel %vm768, %v2275, %v2277
    %v2285 = vsel %vm768, %v2273, %v2275
    %v2286 = vsel %vm768, %v2271, %v2273
    %v2287 = vsel %vm768, %v2281, %v2271
    %v2288 = vadd.f32 %v2264, %v2286
    %v2289 = vadd.f32 %v2265, %v2285
    %v2290 = vadd.f32 %v2266, %v2284
    %v2291 = vadd.f32 %v2267, %v2283
    %v2292 = vadd.f32 %v2268, %v2282
    %v2293 = vadd.f32 %v2269, %v2287
    %v2295 = vlaneseq
    %v2296 = vshrl.u32 %v2295, 7
    %v2297 = vsub.s32 0, %v2296
    %v2298 = vrot.slane %v612, %v2297
    %v2299 = vlaneseq
    %v2300 = vshrl.u32 %v2299, 7
    %v2301 = vsub.s32 1, %v2300
    %v2302 = vrot.slane %v612, %v2301
    %v2303 = vlaneseq
    %v2304 = vshrl.u32 %v2303, 7
    %v2305 = vsub.s32 2, %v2304
    %v2306 = vrot.slane %v612, %v2305
    %v2307 = vlaneseq
    %v2308 = vshrl.u32 %v2307, 7
    %v2309 = vsub.s32 3, %v2308
    %v2310 = vrot.slane %v612, %v2309
    %v2311 = vlaneseq
    %v2312 = vshrl.u32 %v2311, 7
    %v2313 = vsub.s32 4, %v2312
    %v2314 = vrot.slane %v612, %v2313
    %v2315 = vlaneseq
    %v2316 = vshrl.u32 %v2315, 7
    %v2317 = vsub.s32 5, %v2316
    %v2318 = vrot.slane %v612, %v2317
    %v2325 = vmul.f32 %v2288, %v2298
    %v2326 = vmul.f32 %v2289, %v2302
    %v2327 = vmul.f32 %v2290, %v2306
    %v2328 = vmul.f32 %v2291, %v2310
    %v2329 = vmul.f32 %v2292, %v2314
    %v2330 = vmul.f32 %v2293, %v2318
    %v2331 = vadd.f32 %v1048, %v2325
    %v2332 = vadd.f32 %v1049, %v2326
    %v2333 = vadd.f32 %v1050, %v2327
    %v2334 = vadd.f32 %v1051, %v2328
    %v2335 = vadd.f32 %v1052, %v2329
    %v2336 = vadd.f32 %v1053, %v2330
    %v2337 = vmax.f32 %v2096, 0.0
    %v2338 = vmax.f32 %v2097, 0.0
    %v2339 = vmax.f32 %v2098, 0.0
    %v2340 = vmax.f32 %v2099, 0.0
    %v2341 = vmax.f32 %v2100, 0.0
    %v2342 = vmax.f32 %v2101, 0.0
    %2343 = vrot.lane.b32.xlu0 %v2337, 19
    %v2344 = vpop.permute.xlu0 %2343
    %2345 = vrot.lane.b32.xlu0 %v2338, 19
    %v2346 = vpop.permute.xlu0 %2345
    %2347 = vrot.lane.b32.xlu0 %v2339, 19
    %v2348 = vpop.permute.xlu0 %2347
    %2349 = vrot.lane.b32.xlu0 %v2340, 19
    %v2350 = vpop.permute.xlu0 %2349
    %2351 = vrot.lane.b32.xlu0 %v2341, 19
    %v2352 = vpop.permute.xlu0 %2351
    %2353 = vrot.lane.b32.xlu0 %v2342, 19
    %v2354 = vpop.permute.xlu0 %2353
    %v2355 = vsel %vm635, %v2352, %v2354
    %v2356 = vsel %vm635, %v2350, %v2352
    %v2357 = vsel %vm635, %v2348, %v2350
    %v2358 = vsel %vm635, %v2346, %v2348
    %v2359 = vsel %vm635, %v2344, %v2346
    %v2360 = vsel %vm635, %v2354, %v2344
    %2361 = vrot.lane.b32.xlu0 %v2337, 18
    %v2362 = vpop.permute.xlu0 %2361
    %2363 = vrot.lane.b32.xlu0 %v2338, 18
    %v2364 = vpop.permute.xlu0 %2363
    %2365 = vrot.lane.b32.xlu0 %v2339, 18
    %v2366 = vpop.permute.xlu0 %2365
    %2367 = vrot.lane.b32.xlu0 %v2340, 18
    %v2368 = vpop.permute.xlu0 %2367
    %2369 = vrot.lane.b32.xlu0 %v2341, 18
    %v2370 = vpop.permute.xlu0 %2369
    %2371 = vrot.lane.b32.xlu0 %v2342, 18
    %v2372 = vpop.permute.xlu0 %2371
    %v2373 = vsel %vm654, %v2370, %v2372
    %v2374 = vsel %vm654, %v2368, %v2370
    %v2375 = vsel %vm654, %v2366, %v2368
    %v2376 = vsel %vm654, %v2364, %v2366
    %v2377 = vsel %vm654, %v2362, %v2364
    %v2378 = vsel %vm654, %v2372, %v2362
    %2379 = vrot.lane.b32.xlu0 %v2337, 17
    %v2380 = vpop.permute.xlu0 %2379
    %2381 = vrot.lane.b32.xlu0 %v2338, 17
    %v2382 = vpop.permute.xlu0 %2381
    %2383 = vrot.lane.b32.xlu0 %v2339, 17
    %v2384 = vpop.permute.xlu0 %2383
    %2385 = vrot.lane.b32.xlu0 %v2340, 17
    %v2386 = vpop.permute.xlu0 %2385
    %2387 = vrot.lane.b32.xlu0 %v2341, 17
    %v2388 = vpop.permute.xlu0 %2387
    %2389 = vrot.lane.b32.xlu0 %v2342, 17
    %v2390 = vpop.permute.xlu0 %2389
    %v2391 = vsel %vm673, %v2388, %v2390
    %v2392 = vsel %vm673, %v2386, %v2388
    %v2393 = vsel %vm673, %v2384, %v2386
    %v2394 = vsel %vm673, %v2382, %v2384
    %v2395 = vsel %vm673, %v2380, %v2382
    %v2396 = vsel %vm673, %v2390, %v2380
    %2397 = vrot.lane.b32.xlu0 %v2337, 1
    %v2398 = vpop.permute.xlu0 %2397
    %2399 = vrot.lane.b32.xlu0 %v2338, 1
    %v2400 = vpop.permute.xlu0 %2399
    %2401 = vrot.lane.b32.xlu0 %v2339, 1
    %v2402 = vpop.permute.xlu0 %2401
    %2403 = vrot.lane.b32.xlu0 %v2340, 1
    %v2404 = vpop.permute.xlu0 %2403
    %2405 = vrot.lane.b32.xlu0 %v2341, 1
    %v2406 = vpop.permute.xlu0 %2405
    %2407 = vrot.lane.b32.xlu0 %v2342, 1
    %v2408 = vpop.permute.xlu0 %2407
    %v2409 = vsel %vm692, %v2406, %v2408
    %v2410 = vsel %vm692, %v2404, %v2406
    %v2411 = vsel %vm692, %v2402, %v2404
    %v2412 = vsel %vm692, %v2400, %v2402
    %v2413 = vsel %vm692, %v2398, %v2400
    %v2414 = vsel %vm692, %v2408, %v2398
    %2415 = vrot.lane.b32.xlu0 %v2337, 127
    %v2416 = vpop.permute.xlu0 %2415
    %2417 = vrot.lane.b32.xlu0 %v2338, 127
    %v2418 = vpop.permute.xlu0 %2417
    %2419 = vrot.lane.b32.xlu0 %v2339, 127
    %v2420 = vpop.permute.xlu0 %2419
    %2421 = vrot.lane.b32.xlu0 %v2340, 127
    %v2422 = vpop.permute.xlu0 %2421
    %2423 = vrot.lane.b32.xlu0 %v2341, 127
    %v2424 = vpop.permute.xlu0 %2423
    %2425 = vrot.lane.b32.xlu0 %v2342, 127
    %v2426 = vpop.permute.xlu0 %2425
    %v2427 = vsel %vm711, %v2424, %v2426
    %v2428 = vsel %vm711, %v2422, %v2424
    %v2429 = vsel %vm711, %v2420, %v2422
    %v2430 = vsel %vm711, %v2418, %v2420
    %v2431 = vsel %vm711, %v2416, %v2418
    %v2432 = vsel %vm711, %v2426, %v2416
    %2433 = vrot.lane.b32.xlu0 %v2337, 111
    %v2434 = vpop.permute.xlu0 %2433
    %2435 = vrot.lane.b32.xlu0 %v2338, 111
    %v2436 = vpop.permute.xlu0 %2435
    %2437 = vrot.lane.b32.xlu0 %v2339, 111
    %v2438 = vpop.permute.xlu0 %2437
    %2439 = vrot.lane.b32.xlu0 %v2340, 111
    %v2440 = vpop.permute.xlu0 %2439
    %2441 = vrot.lane.b32.xlu0 %v2341, 111
    %v2442 = vpop.permute.xlu0 %2441
    %2443 = vrot.lane.b32.xlu0 %v2342, 111
    %v2444 = vpop.permute.xlu0 %2443
    %v2445 = vsel %vm730, %v2442, %v2444
    %v2446 = vsel %vm730, %v2440, %v2442
    %v2447 = vsel %vm730, %v2438, %v2440
    %v2448 = vsel %vm730, %v2436, %v2438
    %v2449 = vsel %vm730, %v2434, %v2436
    %v2450 = vsel %vm730, %v2444, %v2434
    %2451 = vrot.lane.b32.xlu0 %v2337, 110
    %v2452 = vpop.permute.xlu0 %2451
    %2453 = vrot.lane.b32.xlu0 %v2338, 110
    %v2454 = vpop.permute.xlu0 %2453
    %2455 = vrot.lane.b32.xlu0 %v2339, 110
    %v2456 = vpop.permute.xlu0 %2455
    %2457 = vrot.lane.b32.xlu0 %v2340, 110
    %v2458 = vpop.permute.xlu0 %2457
    %2459 = vrot.lane.b32.xlu0 %v2341, 110
    %v2460 = vpop.permute.xlu0 %2459
    %2461 = vrot.lane.b32.xlu0 %v2342, 110
    %v2462 = vpop.permute.xlu0 %2461
    %v2463 = vsel %vm749, %v2460, %v2462
    %v2464 = vsel %vm749, %v2458, %v2460
    %v2465 = vsel %vm749, %v2456, %v2458
    %v2466 = vsel %vm749, %v2454, %v2456
    %v2467 = vsel %vm749, %v2452, %v2454
    %v2468 = vsel %vm749, %v2462, %v2452
    %2469 = vrot.lane.b32.xlu0 %v2337, 109
    %v2470 = vpop.permute.xlu0 %2469
    %2471 = vrot.lane.b32.xlu0 %v2338, 109
    %v2472 = vpop.permute.xlu0 %2471
    %2473 = vrot.lane.b32.xlu0 %v2339, 109
    %v2474 = vpop.permute.xlu0 %2473
    %2475 = vrot.lane.b32.xlu0 %v2340, 109
    %v2476 = vpop.permute.xlu0 %2475
    %2477 = vrot.lane.b32.xlu0 %v2341, 109
    %v2478 = vpop.permute.xlu0 %2477
    %2479 = vrot.lane.b32.xlu0 %v2342, 109
    %v2480 = vpop.permute.xlu0 %2479
    %v2481 = vsel %vm768, %v2478, %v2480
    %v2482 = vsel %vm768, %v2476, %v2478
    %v2483 = vsel %vm768, %v2474, %v2476
    %v2484 = vsel %vm768, %v2472, %v2474
    %v2485 = vsel %vm768, %v2470, %v2472
    %v2486 = vsel %vm768, %v2480, %v2470
    %v2487 = vld [vmem:[#allocation33] sm:$0xff]
    %v2489 = vsel %vm776, %v2487, 0
    %2491 = vmatprep.subr.mxu0 0.0
    %2492 = vmatpush1.msra.mxu0 0.0
    %2493 = vmatprep.subr.mxu0 0.0
    %2494 = vmatpush1.msra.mxu0 0.0
    %2495 = vmatprep.subr.mxu0 0.0
    %2496 = vmatpush1.msra.mxu0 0.0
    %2497 = vmatprep.subr.mxu0 0.0
    %2498 = vmatpush1.msra.mxu0 0.0
    %2499 = vmatprep.subr.mxu0 0.0
    %2500 = vmatpush1.msra.mxu0 0.0
    %2501 = vmatprep.subr.mxu0 0.0
    %2502 = vmatpush1.msra.mxu0 0.0
    %2503 = vmatprep.subr.mxu0 0.0
    %2504 = vmatpush1.msra.mxu0 0.0
    %2505 = vmatprep.subr.mxu0 %v2484
    %2506 = vmatpush1.msra.mxu0 %v2485
    %2507 = vmatprep.subr.mxu0 %v2466
    %2508 = vmatpush1.msra.mxu0 %v2467
    %2509 = vmatprep.subr.mxu0 %v2448
    %2510 = vmatpush1.msra.mxu0 %v2449
    %2511 = vmatprep.subr.mxu0 %v2430
    %2512 = vmatpush1.msra.mxu0 %v2431
    %2513 = vmatprep.subr.mxu0 %v2338
    %2514 = vmatpush1.msra.mxu0 %v2337
    %2515 = vmatprep.subr.mxu0 %v2413
    %2516 = vmatpush1.msra.mxu0 %v2414
    %2517 = vmatprep.subr.mxu0 %v2395
    %2518 = vmatpush1.msra.mxu0 %v2396
    %2519 = vmatprep.subr.mxu0 %v2377
    %2520 = vmatpush1.msra.mxu0 %v2378
    %2521 = vmatprep.subr.mxu0 %v2359
    %2522 = vmatpush1.msra.mxu0 %v2360
    %2523 = vmatprep.subr.mxu0 0.0
    %2524 = vmatpush2.msra.mxu0 0.0
    %2525 = vmatprep.subr.mxu0 0.0
    %2526 = vmatpush2.msra.mxu0 0.0
    %2527 = vmatprep.subr.mxu0 0.0
    %2528 = vmatpush2.msra.mxu0 0.0
    %2529 = vmatprep.subr.mxu0 0.0
    %2530 = vmatpush2.msra.mxu0 0.0
    %2531 = vmatprep.subr.mxu0 0.0
    %2532 = vmatpush2.msra.mxu0 0.0
    %2533 = vmatprep.subr.mxu0 0.0
    %2534 = vmatpush2.msra.mxu0 0.0
    %2535 = vmatprep.subr.mxu0 0.0
    %2536 = vmatpush2.msra.mxu0 0.0
    %2537 = vmatprep.subr.mxu0 0.0
    %2538 = vmatpush2.msra.mxu0 0.0
    %2539 = vmatprep.subr.mxu0 0.0
    %2540 = vmatpush2.msra.mxu0 0.0
    %2541 = vmatprep.subr.mxu0 0.0
    %2542 = vmatpush2.msra.mxu0 0.0
    %2543 = vmatprep.subr.mxu0 0.0
    %2544 = vmatpush2.msra.mxu0 0.0
    %2545 = vmatprep.subr.mxu0 0.0
    %2546 = vmatpush2.msra.mxu0 0.0
    %2547 = vmatprep.subr.mxu0 0.0
    %2548 = vmatpush2.msra.mxu0 0.0
    %2549 = vmatprep.subr.mxu0 0.0
    %2550 = vmatpush2.msra.mxu0 0.0
    %2551 = vmatprep.subr.mxu0 0.0
    %2552 = vmatpush2.msra.mxu0 0.0
    %2553 = vmatprep.subr.mxu0 0.0
    %2554 = vmatpush2.msra.mxu0 0.0
    %2555 = vmatprep.mubr.f32.mxu0 0.0
    %2556 = vmatmul.mubr.f32.gmra.mxu0 %v2489
    %v2557 = vpop.f32.mrf.mxu0
    %v2558 = vadd.f32 0.0, %v2557
    %v2559 = vpop.f32.mrf.mxu0
    %v2560 = vadd.f32 0.0, %v2559
    %2561 = vdwg.mxu0
    %2562 = vmatprep.subr.mxu0 0.0
    %2563 = vmatpush1.msra.mxu0 0.0
    %2564 = vmatprep.subr.mxu0 0.0
    %2565 = vmatpush1.msra.mxu0 0.0
    %2566 = vmatprep.subr.mxu0 0.0
    %2567 = vmatpush1.msra.mxu0 0.0
    %2568 = vmatprep.subr.mxu0 0.0
    %2569 = vmatpush1.msra.mxu0 0.0
    %2570 = vmatprep.subr.mxu0 0.0
    %2571 = vmatpush1.msra.mxu0 0.0
    %2572 = vmatprep.subr.mxu0 0.0
    %2573 = vmatpush1.msra.mxu0 0.0
    %2574 = vmatprep.subr.mxu0 0.0
    %2575 = vmatpush1.msra.mxu0 0.0
    %2576 = vmatprep.subr.mxu0 %v2482
    %2577 = vmatpush1.msra.mxu0 %v2483
    %2578 = vmatprep.subr.mxu0 %v2464
    %2579 = vmatpush1.msra.mxu0 %v2465
    %2580 = vmatprep.subr.mxu0 %v2446
    %2581 = vmatpush1.msra.mxu0 %v2447
    %2582 = vmatprep.subr.mxu0 %v2428
    %2583 = vmatpush1.msra.mxu0 %v2429
    %2584 = vmatprep.subr.mxu0 %v2340
    %2585 = vmatpush1.msra.mxu0 %v2339
    %2586 = vmatprep.subr.mxu0 %v2411
    %2587 = vmatpush1.msra.mxu0 %v2412
    %2588 = vmatprep.subr.mxu0 %v2393
    %2589 = vmatpush1.msra.mxu0 %v2394
    %2590 = vmatprep.subr.mxu0 %v2375
    %2591 = vmatpush1.msra.mxu0 %v2376
    %2592 = vmatprep.subr.mxu0 %v2357
    %2593 = vmatpush1.msra.mxu0 %v2358
    %2594 = vmatprep.subr.mxu0 0.0
    %2595 = vmatpush2.msra.mxu0 0.0
    %2596 = vmatprep.subr.mxu0 0.0
    %2597 = vmatpush2.msra.mxu0 0.0
    %2598 = vmatprep.subr.mxu0 0.0
    %2599 = vmatpush2.msra.mxu0 0.0
    %2600 = vmatprep.subr.mxu0 0.0
    %2601 = vmatpush2.msra.mxu0 0.0
    %2602 = vmatprep.subr.mxu0 0.0
    %2603 = vmatpush2.msra.mxu0 0.0
    %2604 = vmatprep.subr.mxu0 0.0
    %2605 = vmatpush2.msra.mxu0 0.0
    %2606 = vmatprep.subr.mxu0 0.0
    %2607 = vmatpush2.msra.mxu0 0.0
    %2608 = vmatprep.subr.mxu0 0.0
    %2609 = vmatpush2.msra.mxu0 0.0
    %2610 = vmatprep.subr.mxu0 0.0
    %2611 = vmatpush2.msra.mxu0 0.0
    %2612 = vmatprep.subr.mxu0 0.0
    %2613 = vmatpush2.msra.mxu0 0.0
    %2614 = vmatprep.subr.mxu0 0.0
    %2615 = vmatpush2.msra.mxu0 0.0
    %2616 = vmatprep.subr.mxu0 0.0
    %2617 = vmatpush2.msra.mxu0 0.0
    %2618 = vmatprep.subr.mxu0 0.0
    %2619 = vmatpush2.msra.mxu0 0.0
    %2620 = vmatprep.subr.mxu0 0.0
    %2621 = vmatpush2.msra.mxu0 0.0
    %2622 = vmatprep.subr.mxu0 0.0
    %2623 = vmatpush2.msra.mxu0 0.0
    %2624 = vmatprep.subr.mxu0 0.0
    %2625 = vmatpush2.msra.mxu0 0.0
    %2626 = vmatprep.mubr.f32.mxu0 0.0
    %2627 = vmatmul.mubr.f32.gmra.mxu0 %v2489
    %v2628 = vpop.f32.mrf.mxu0
    %v2629 = vadd.f32 0.0, %v2628
    %v2630 = vpop.f32.mrf.mxu0
    %v2631 = vadd.f32 0.0, %v2630
    %2632 = vdwg.mxu0
    %2633 = vmatprep.subr.mxu0 0.0
    %2634 = vmatpush1.msra.mxu0 0.0
    %2635 = vmatprep.subr.mxu0 0.0
    %2636 = vmatpush1.msra.mxu0 0.0
    %2637 = vmatprep.subr.mxu0 0.0
    %2638 = vmatpush1.msra.mxu0 0.0
    %2639 = vmatprep.subr.mxu0 0.0
    %2640 = vmatpush1.msra.mxu0 0.0
    %2641 = vmatprep.subr.mxu0 0.0
    %2642 = vmatpush1.msra.mxu0 0.0
    %2643 = vmatprep.subr.mxu0 0.0
    %2644 = vmatpush1.msra.mxu0 0.0
    %2645 = vmatprep.subr.mxu0 0.0
    %2646 = vmatpush1.msra.mxu0 0.0
    %2647 = vmatprep.subr.mxu0 %v2486
    %2648 = vmatpush1.msra.mxu0 %v2481
    %2649 = vmatprep.subr.mxu0 %v2468
    %2650 = vmatpush1.msra.mxu0 %v2463
    %2651 = vmatprep.subr.mxu0 %v2450
    %2652 = vmatpush1.msra.mxu0 %v2445
    %2653 = vmatprep.subr.mxu0 %v2432
    %2654 = vmatpush1.msra.mxu0 %v2427
    %2655 = vmatprep.subr.mxu0 %v2342
    %2656 = vmatpush1.msra.mxu0 %v2341
    %2657 = vmatprep.subr.mxu0 %v2409
    %2658 = vmatpush1.msra.mxu0 %v2410
    %2659 = vmatprep.subr.mxu0 %v2391
    %2660 = vmatpush1.msra.mxu0 %v2392
    %2661 = vmatprep.subr.mxu0 %v2373
    %2662 = vmatpush1.msra.mxu0 %v2374
    %2663 = vmatprep.subr.mxu0 %v2355
    %2664 = vmatpush1.msra.mxu0 %v2356
    %2665 = vmatprep.subr.mxu0 0.0
    %2666 = vmatpush2.msra.mxu0 0.0
    %2667 = vmatprep.subr.mxu0 0.0
    %2668 = vmatpush2.msra.mxu0 0.0
    %2669 = vmatprep.subr.mxu0 0.0
    %2670 = vmatpush2.msra.mxu0 0.0
    %2671 = vmatprep.subr.mxu0 0.0
    %2672 = vmatpush2.msra.mxu0 0.0
    %2673 = vmatprep.subr.mxu0 0.0
    %2674 = vmatpush2.msra.mxu0 0.0
    %2675 = vmatprep.subr.mxu0 0.0
    %2676 = vmatpush2.msra.mxu0 0.0
    %2677 = vmatprep.subr.mxu0 0.0
    %2678 = vmatpush2.msra.mxu0 0.0
    %2679 = vmatprep.subr.mxu0 0.0
    %2680 = vmatpush2.msra.mxu0 0.0
    %2681 = vmatprep.subr.mxu0 0.0
    %2682 = vmatpush2.msra.mxu0 0.0
    %2683 = vmatprep.subr.mxu0 0.0
    %2684 = vmatpush2.msra.mxu0 0.0
    %2685 = vmatprep.subr.mxu0 0.0
    %2686 = vmatpush2.msra.mxu0 0.0
    %2687 = vmatprep.subr.mxu0 0.0
    %2688 = vmatpush2.msra.mxu0 0.0
    %2689 = vmatprep.subr.mxu0 0.0
    %2690 = vmatpush2.msra.mxu0 0.0
    %2691 = vmatprep.subr.mxu0 0.0
    %2692 = vmatpush2.msra.mxu0 0.0
    %2693 = vmatprep.subr.mxu0 0.0
    %2694 = vmatpush2.msra.mxu0 0.0
    %2695 = vmatprep.subr.mxu0 0.0
    %2696 = vmatpush2.msra.mxu0 0.0
    %2697 = vmatprep.mubr.f32.mxu0 0.0
    %2698 = vmatmul.mubr.f32.gmra.mxu0 %v2489
    %v2699 = vpop.f32.mrf.mxu0
    %v2700 = vadd.f32 0.0, %v2699
    %v2701 = vpop.f32.mrf.mxu0
    %v2702 = vadd.f32 0.0, %v2701
    %2703 = vdwg.mxu0
    %v2704 = vld [vmem:[#allocation34] sm:$0xff]
    %2706 = vset.pattern.permute.xlu0 0
    %2707 = vperm.xlu0 %2706, %v2704
    %v2708 = vpop.permute.xlu0 %2707
    %v2710 = vmul.f32 %v2558, %v2708
    %v2711 = vmul.f32 %v2560, %v2708
    %v2712 = vmul.f32 %v2629, %v2708
    %v2713 = vmul.f32 %v2631, %v2708
    %v2714 = vmul.f32 %v2700, %v2708
    %v2715 = vmul.f32 %v2702, %v2708
    %v2716 = vld [vmem:[#allocation36] sm:$0xff]
    %2718 = vset.pattern.permute.xlu0 0
    %2719 = vperm.xlu0 %2718, %v2716
    %v2720 = vpop.permute.xlu0 %2719
    %v2722 = vadd.f32 %v2710, %v2720
    %v2723 = vadd.f32 %v2711, %v2720
    %v2724 = vadd.f32 %v2712, %v2720
    %v2725 = vadd.f32 %v2713, %v2720
    %v2726 = vadd.f32 %v2714, %v2720
    %v2727 = vadd.f32 %v2715, %v2720
    %v2728 = vmul.f32 %v2722, %v1021
    %v2729 = vmul.f32 %v2723, %v1025
    %v2730 = vmul.f32 %v2724, %v1029
    %v2731 = vmul.f32 %v2725, %v1033
    %v2732 = vmul.f32 %v2726, %v1037
    %v2733 = vmul.f32 %v2727, %v1041
    %v2734 = vadd.f32 %v2331, %v2728
    %v2735 = vadd.f32 %v2332, %v2729
    %v2736 = vadd.f32 %v2333, %v2730
    %v2737 = vadd.f32 %v2334, %v2731
    %v2738 = vadd.f32 %v2335, %v2732
    %v2739 = vadd.f32 %v2336, %v2733
    %v2740 = vmax.f32 %v2734, 0.0
    %v2741 = vmax.f32 %v2735, 0.0
    %v2742 = vmax.f32 %v2736, 0.0
    %v2743 = vmax.f32 %v2737, 0.0
    %v2744 = vmax.f32 %v2738, 0.0
    %v2745 = vmax.f32 %v2739, 0.0
    %2746 = vrot.lane.b32.xlu0 %v2740, 19
    %v2747 = vpop.permute.xlu0 %2746
    %2748 = vrot.lane.b32.xlu0 %v2741, 19
    %v2749 = vpop.permute.xlu0 %2748
    %2750 = vrot.lane.b32.xlu0 %v2742, 19
    %v2751 = vpop.permute.xlu0 %2750
    %2752 = vrot.lane.b32.xlu0 %v2743, 19
    %v2753 = vpop.permute.xlu0 %2752
    %2754 = vrot.lane.b32.xlu0 %v2744, 19
    %v2755 = vpop.permute.xlu0 %2754
    %2756 = vrot.lane.b32.xlu0 %v2745, 19
    %v2757 = vpop.permute.xlu0 %2756
    %v2758 = vsel %vm635, %v2755, %v2757
    %v2759 = vsel %vm635, %v2753, %v2755
    %v2760 = vsel %vm635, %v2751, %v2753
    %v2761 = vsel %vm635, %v2749, %v2751
    %v2762 = vsel %vm635, %v2747, %v2749
    %v2763 = vsel %vm635, %v2757, %v2747
    %2764 = vrot.lane.b32.xlu0 %v2740, 18
    %v2765 = vpop.permute.xlu0 %2764
    %2766 = vrot.lane.b32.xlu0 %v2741, 18
    %v2767 = vpop.permute.xlu0 %2766
    %2768 = vrot.lane.b32.xlu0 %v2742, 18
    %v2769 = vpop.permute.xlu0 %2768
    %2770 = vrot.lane.b32.xlu0 %v2743, 18
    %v2771 = vpop.permute.xlu0 %2770
    %2772 = vrot.lane.b32.xlu0 %v2744, 18
    %v2773 = vpop.permute.xlu0 %2772
    %2774 = vrot.lane.b32.xlu0 %v2745, 18
    %v2775 = vpop.permute.xlu0 %2774
    %v2776 = vsel %vm654, %v2773, %v2775
    %v2777 = vsel %vm654, %v2771, %v2773
    %v2778 = vsel %vm654, %v2769, %v2771
    %v2779 = vsel %vm654, %v2767, %v2769
    %v2780 = vsel %vm654, %v2765, %v2767
    %v2781 = vsel %vm654, %v2775, %v2765
    %2782 = vrot.lane.b32.xlu0 %v2740, 17
    %v2783 = vpop.permute.xlu0 %2782
    %2784 = vrot.lane.b32.xlu0 %v2741, 17
    %v2785 = vpop.permute.xlu0 %2784
    %2786 = vrot.lane.b32.xlu0 %v2742, 17
    %v2787 = vpop.permute.xlu0 %2786
    %2788 = vrot.lane.b32.xlu0 %v2743, 17
    %v2789 = vpop.permute.xlu0 %2788
    %2790 = vrot.lane.b32.xlu0 %v2744, 17
    %v2791 = vpop.permute.xlu0 %2790
    %2792 = vrot.lane.b32.xlu0 %v2745, 17
    %v2793 = vpop.permute.xlu0 %2792
    %v2794 = vsel %vm673, %v2791, %v2793
    %v2795 = vsel %vm673, %v2789, %v2791
    %v2796 = vsel %vm673, %v2787, %v2789
    %v2797 = vsel %vm673, %v2785, %v2787
    %v2798 = vsel %vm673, %v2783, %v2785
    %v2799 = vsel %vm673, %v2793, %v2783
    %2800 = vrot.lane.b32.xlu0 %v2740, 1
    %v2801 = vpop.permute.xlu0 %2800
    %2802 = vrot.lane.b32.xlu0 %v2741, 1
    %v2803 = vpop.permute.xlu0 %2802
    %2804 = vrot.lane.b32.xlu0 %v2742, 1
    %v2805 = vpop.permute.xlu0 %2804
    %2806 = vrot.lane.b32.xlu0 %v2743, 1
    %v2807 = vpop.permute.xlu0 %2806
    %2808 = vrot.lane.b32.xlu0 %v2744, 1
    %v2809 = vpop.permute.xlu0 %2808
    %2810 = vrot.lane.b32.xlu0 %v2745, 1
    %v2811 = vpop.permute.xlu0 %2810
    %v2812 = vsel %vm692, %v2809, %v2811
    %v2813 = vsel %vm692, %v2807, %v2809
    %v2814 = vsel %vm692, %v2805, %v2807
    %v2815 = vsel %vm692, %v2803, %v2805
    %v2816 = vsel %vm692, %v2801, %v2803
    %v2817 = vsel %vm692, %v2811, %v2801
    %2818 = vrot.lane.b32.xlu0 %v2740, 127
    %v2819 = vpop.permute.xlu0 %2818
    %2820 = vrot.lane.b32.xlu0 %v2741, 127
    %v2821 = vpop.permute.xlu0 %2820
    %2822 = vrot.lane.b32.xlu0 %v2742, 127
    %v2823 = vpop.permute.xlu0 %2822
    %2824 = vrot.lane.b32.xlu0 %v2743, 127
    %v2825 = vpop.permute.xlu0 %2824
    %2826 = vrot.lane.b32.xlu0 %v2744, 127
    %v2827 = vpop.permute.xlu0 %2826
    %2828 = vrot.lane.b32.xlu0 %v2745, 127
    %v2829 = vpop.permute.xlu0 %2828
    %v2830 = vsel %vm711, %v2827, %v2829
    %v2831 = vsel %vm711, %v2825, %v2827
    %v2832 = vsel %vm711, %v2823, %v2825
    %v2833 = vsel %vm711, %v2821, %v2823
    %v2834 = vsel %vm711, %v2819, %v2821
    %v2835 = vsel %vm711, %v2829, %v2819
    %2836 = vrot.lane.b32.xlu0 %v2740, 111
    %v2837 = vpop.permute.xlu0 %2836
    %2838 = vrot.lane.b32.xlu0 %v2741, 111
    %v2839 = vpop.permute.xlu0 %2838
    %2840 = vrot.lane.b32.xlu0 %v2742, 111
    %v2841 = vpop.permute.xlu0 %2840
    %2842 = vrot.lane.b32.xlu0 %v2743, 111
    %v2843 = vpop.permute.xlu0 %2842
    %2844 = vrot.lane.b32.xlu0 %v2744, 111
    %v2845 = vpop.permute.xlu0 %2844
    %2846 = vrot.lane.b32.xlu0 %v2745, 111
    %v2847 = vpop.permute.xlu0 %2846
    %v2848 = vsel %vm730, %v2845, %v2847
    %v2849 = vsel %vm730, %v2843, %v2845
    %v2850 = vsel %vm730, %v2841, %v2843
    %v2851 = vsel %vm730, %v2839, %v2841
    %v2852 = vsel %vm730, %v2837, %v2839
    %v2853 = vsel %vm730, %v2847, %v2837
    %2854 = vrot.lane.b32.xlu0 %v2740, 110
    %v2855 = vpop.permute.xlu0 %2854
    %2856 = vrot.lane.b32.xlu0 %v2741, 110
    %v2857 = vpop.permute.xlu0 %2856
    %2858 = vrot.lane.b32.xlu0 %v2742, 110
    %v2859 = vpop.permute.xlu0 %2858
    %2860 = vrot.lane.b32.xlu0 %v2743, 110
    %v2861 = vpop.permute.xlu0 %2860
    %2862 = vrot.lane.b32.xlu0 %v2744, 110
    %v2863 = vpop.permute.xlu0 %2862
    %2864 = vrot.lane.b32.xlu0 %v2745, 110
    %v2865 = vpop.permute.xlu0 %2864
    %v2866 = vsel %vm749, %v2863, %v2865
    %v2867 = vsel %vm749, %v2861, %v2863
    %v2868 = vsel %vm749, %v2859, %v2861
    %v2869 = vsel %vm749, %v2857, %v2859
    %v2870 = vsel %vm749, %v2855, %v2857
    %v2871 = vsel %vm749, %v2865, %v2855
    %2872 = vrot.lane.b32.xlu0 %v2740, 109
    %v2873 = vpop.permute.xlu0 %2872
    %2874 = vrot.lane.b32.xlu0 %v2741, 109
    %v2875 = vpop.permute.xlu0 %2874
    %2876 = vrot.lane.b32.xlu0 %v2742, 109
    %v2877 = vpop.permute.xlu0 %2876
    %2878 = vrot.lane.b32.xlu0 %v2743, 109
    %v2879 = vpop.permute.xlu0 %2878
    %2880 = vrot.lane.b32.xlu0 %v2744, 109
    %v2881 = vpop.permute.xlu0 %2880
    %2882 = vrot.lane.b32.xlu0 %v2745, 109
    %v2883 = vpop.permute.xlu0 %2882
    %v2884 = vsel %vm768, %v2881, %v2883
    %v2885 = vsel %vm768, %v2879, %v2881
    %v2886 = vsel %vm768, %v2877, %v2879
    %v2887 = vsel %vm768, %v2875, %v2877
    %v2888 = vsel %vm768, %v2873, %v2875
    %v2889 = vsel %vm768, %v2883, %v2873
    %v2890 = vld [vmem:[#allocation37] sm:$0xff]
    %v2892 = vsel %vm776, %v2890, 0
    %2894 = vmatprep.subr.mxu0 0.0
    %2895 = vmatpush1.msra.mxu0 0.0
    %2896 = vmatprep.subr.mxu0 0.0
    %2897 = vmatpush1.msra.mxu0 0.0
    %2898 = vmatprep.subr.mxu0 0.0
    %2899 = vmatpush1.msra.mxu0 0.0
    %2900 = vmatprep.subr.mxu0 0.0
    %2901 = vmatpush1.msra.mxu0 0.0
    %2902 = vmatprep.subr.mxu0 0.0
    %2903 = vmatpush1.msra.mxu0 0.0
    %2904 = vmatprep.subr.mxu0 0.0
    %2905 = vmatpush1.msra.mxu0 0.0
    %2906 = vmatprep.subr.mxu0 0.0
    %2907 = vmatpush1.msra.mxu0 0.0
    %2908 = vmatprep.subr.mxu0 %v2887
    %2909 = vmatpush1.msra.mxu0 %v2888
    %2910 = vmatprep.subr.mxu0 %v2869
    %2911 = vmatpush1.msra.mxu0 %v2870
    %2912 = vmatprep.subr.mxu0 %v2851
    %2913 = vmatpush1.msra.mxu0 %v2852
    %2914 = vmatprep.subr.mxu0 %v2833
    %2915 = vmatpush1.msra.mxu0 %v2834
    %2916 = vmatprep.subr.mxu0 %v2741
    %2917 = vmatpush1.msra.mxu0 %v2740
    %2918 = vmatprep.subr.mxu0 %v2816
    %2919 = vmatpush1.msra.mxu0 %v2817
    %2920 = vmatprep.subr.mxu0 %v2798
    %2921 = vmatpush1.msra.mxu0 %v2799
    %2922 = vmatprep.subr.mxu0 %v2780
    %2923 = vmatpush1.msra.mxu0 %v2781
    %2924 = vmatprep.subr.mxu0 %v2762
    %2925 = vmatpush1.msra.mxu0 %v2763
    %2926 = vmatprep.subr.mxu0 0.0
    %2927 = vmatpush2.msra.mxu0 0.0
    %2928 = vmatprep.subr.mxu0 0.0
    %2929 = vmatpush2.msra.mxu0 0.0
    %2930 = vmatprep.subr.mxu0 0.0
    %2931 = vmatpush2.msra.mxu0 0.0
    %2932 = vmatprep.subr.mxu0 0.0
    %2933 = vmatpush2.msra.mxu0 0.0
    %2934 = vmatprep.subr.mxu0 0.0
    %2935 = vmatpush2.msra.mxu0 0.0
    %2936 = vmatprep.subr.mxu0 0.0
    %2937 = vmatpush2.msra.mxu0 0.0
    %2938 = vmatprep.subr.mxu0 0.0
    %2939 = vmatpush2.msra.mxu0 0.0
    %2940 = vmatprep.subr.mxu0 0.0
    %2941 = vmatpush2.msra.mxu0 0.0
    %2942 = vmatprep.subr.mxu0 0.0
    %2943 = vmatpush2.msra.mxu0 0.0
    %2944 = vmatprep.subr.mxu0 0.0
    %2945 = vmatpush2.msra.mxu0 0.0
    %2946 = vmatprep.subr.mxu0 0.0
    %2947 = vmatpush2.msra.mxu0 0.0
    %2948 = vmatprep.subr.mxu0 0.0
    %2949 = vmatpush2.msra.mxu0 0.0
    %2950 = vmatprep.subr.mxu0 0.0
    %2951 = vmatpush2.msra.mxu0 0.0
    %2952 = vmatprep.subr.mxu0 0.0
    %2953 = vmatpush2.msra.mxu0 0.0
    %2954 = vmatprep.subr.mxu0 0.0
    %2955 = vmatpush2.msra.mxu0 0.0
    %2956 = vmatprep.subr.mxu0 0.0
    %2957 = vmatpush2.msra.mxu0 0.0
    %2958 = vmatprep.mubr.f32.mxu0 0.0
    %2959 = vmatmul.mubr.f32.gmra.mxu0 %v2892
    %v2960 = vpop.f32.mrf.mxu0
    %v2961 = vadd.f32 0.0, %v2960
    %v2962 = vpop.f32.mrf.mxu0
    %v2963 = vadd.f32 0.0, %v2962
    %2964 = vdwg.mxu0
    %2965 = vmatprep.subr.mxu0 0.0
    %2966 = vmatpush1.msra.mxu0 0.0
    %2967 = vmatprep.subr.mxu0 0.0
    %2968 = vmatpush1.msra.mxu0 0.0
    %2969 = vmatprep.subr.mxu0 0.0
    %2970 = vmatpush1.msra.mxu0 0.0
    %2971 = vmatprep.subr.mxu0 0.0
    %2972 = vmatpush1.msra.mxu0 0.0
    %2973 = vmatprep.subr.mxu0 0.0
    %2974 = vmatpush1.msra.mxu0 0.0
    %2975 = vmatprep.subr.mxu0 0.0
    %2976 = vmatpush1.msra.mxu0 0.0
    %2977 = vmatprep.subr.mxu0 0.0
    %2978 = vmatpush1.msra.mxu0 0.0
    %2979 = vmatprep.subr.mxu0 %v2885
    %2980 = vmatpush1.msra.mxu0 %v2886
    %2981 = vmatprep.subr.mxu0 %v2867
    %2982 = vmatpush1.msra.mxu0 %v2868
    %2983 = vmatprep.subr.mxu0 %v2849
    %2984 = vmatpush1.msra.mxu0 %v2850
    %2985 = vmatprep.subr.mxu0 %v2831
    %2986 = vmatpush1.msra.mxu0 %v2832
    %2987 = vmatprep.subr.mxu0 %v2743
    %2988 = vmatpush1.msra.mxu0 %v2742
    %2989 = vmatprep.subr.mxu0 %v2814
    %2990 = vmatpush1.msra.mxu0 %v2815
    %2991 = vmatprep.subr.mxu0 %v2796
    %2992 = vmatpush1.msra.mxu0 %v2797
    %2993 = vmatprep.subr.mxu0 %v2778
    %2994 = vmatpush1.msra.mxu0 %v2779
    %2995 = vmatprep.subr.mxu0 %v2760
    %2996 = vmatpush1.msra.mxu0 %v2761
    %2997 = vmatprep.subr.mxu0 0.0
    %2998 = vmatpush2.msra.mxu0 0.0
    %2999 = vmatprep.subr.mxu0 0.0
    %3000 = vmatpush2.msra.mxu0 0.0
    %3001 = vmatprep.subr.mxu0 0.0
    %3002 = vmatpush2.msra.mxu0 0.0
    %3003 = vmatprep.subr.mxu0 0.0
    %3004 = vmatpush2.msra.mxu0 0.0
    %3005 = vmatprep.subr.mxu0 0.0
    %3006 = vmatpush2.msra.mxu0 0.0
    %3007 = vmatprep.subr.mxu0 0.0
    %3008 = vmatpush2.msra.mxu0 0.0
    %3009 = vmatprep.subr.mxu0 0.0
    %3010 = vmatpush2.msra.mxu0 0.0
    %3011 = vmatprep.subr.mxu0 0.0
    %3012 = vmatpush2.msra.mxu0 0.0
    %3013 = vmatprep.subr.mxu0 0.0
    %3014 = vmatpush2.msra.mxu0 0.0
    %3015 = vmatprep.subr.mxu0 0.0
    %3016 = vmatpush2.msra.mxu0 0.0
    %3017 = vmatprep.subr.mxu0 0.0
    %3018 = vmatpush2.msra.mxu0 0.0
    %3019 = vmatprep.subr.mxu0 0.0
    %3020 = vmatpush2.msra.mxu0 0.0
    %3021 = vmatprep.subr.mxu0 0.0
    %3022 = vmatpush2.msra.mxu0 0.0
    %3023 = vmatprep.subr.mxu0 0.0
    %3024 = vmatpush2.msra.mxu0 0.0
    %3025 = vmatprep.subr.mxu0 0.0
    %3026 = vmatpush2.msra.mxu0 0.0
    %3027 = vmatprep.subr.mxu0 0.0
    %3028 = vmatpush2.msra.mxu0 0.0
    %3029 = vmatprep.mubr.f32.mxu0 0.0
    %3030 = vmatmul.mubr.f32.gmra.mxu0 %v2892
    %v3031 = vpop.f32.mrf.mxu0
    %v3032 = vadd.f32 0.0, %v3031
    %v3033 = vpop.f32.mrf.mxu0
    %v3034 = vadd.f32 0.0, %v3033
    %3035 = vdwg.mxu0
    %3036 = vmatprep.subr.mxu0 0.0
    %3037 = vmatpush1.msra.mxu0 0.0
    %3038 = vmatprep.subr.mxu0 0.0
    %3039 = vmatpush1.msra.mxu0 0.0
    %3040 = vmatprep.subr.mxu0 0.0
    %3041 = vmatpush1.msra.mxu0 0.0
    %3042 = vmatprep.subr.mxu0 0.0
    %3043 = vmatpush1.msra.mxu0 0.0
    %3044 = vmatprep.subr.mxu0 0.0
    %3045 = vmatpush1.msra.mxu0 0.0
    %3046 = vmatprep.subr.mxu0 0.0
    %3047 = vmatpush1.msra.mxu0 0.0
    %3048 = vmatprep.subr.mxu0 0.0
    %3049 = vmatpush1.msra.mxu0 0.0
    %3050 = vmatprep.subr.mxu0 %v2889
    %3051 = vmatpush1.msra.mxu0 %v2884
    %3052 = vmatprep.subr.mxu0 %v2871
    %3053 = vmatpush1.msra.mxu0 %v2866
    %3054 = vmatprep.subr.mxu0 %v2853
    %3055 = vmatpush1.msra.mxu0 %v2848
    %3056 = vmatprep.subr.mxu0 %v2835
    %3057 = vmatpush1.msra.mxu0 %v2830
    %3058 = vmatprep.subr.mxu0 %v2745
    %3059 = vmatpush1.msra.mxu0 %v2744
    %3060 = vmatprep.subr.mxu0 %v2812
    %3061 = vmatpush1.msra.mxu0 %v2813
    %3062 = vmatprep.subr.mxu0 %v2794
    %3063 = vmatpush1.msra.mxu0 %v2795
    %3064 = vmatprep.subr.mxu0 %v2776
    %3065 = vmatpush1.msra.mxu0 %v2777
    %3066 = vmatprep.subr.mxu0 %v2758
    %3067 = vmatpush1.msra.mxu0 %v2759
    %3068 = vmatprep.subr.mxu0 0.0
    %3069 = vmatpush2.msra.mxu0 0.0
    %3070 = vmatprep.subr.mxu0 0.0
    %3071 = vmatpush2.msra.mxu0 0.0
    %3072 = vmatprep.subr.mxu0 0.0
    %3073 = vmatpush2.msra.mxu0 0.0
    %3074 = vmatprep.subr.mxu0 0.0
    %3075 = vmatpush2.msra.mxu0 0.0
    %3076 = vmatprep.subr.mxu0 0.0
    %3077 = vmatpush2.msra.mxu0 0.0
    %3078 = vmatprep.subr.mxu0 0.0
    %3079 = vmatpush2.msra.mxu0 0.0
    %3080 = vmatprep.subr.mxu0 0.0
    %3081 = vmatpush2.msra.mxu0 0.0
    %3082 = vmatprep.subr.mxu0 0.0
    %3083 = vmatpush2.msra.mxu0 0.0
    %3084 = vmatprep.subr.mxu0 0.0
    %3085 = vmatpush2.msra.mxu0 0.0
    %3086 = vmatprep.subr.mxu0 0.0
    %3087 = vmatpush2.msra.mxu0 0.0
    %3088 = vmatprep.subr.mxu0 0.0
    %3089 = vmatpush2.msra.mxu0 0.0
    %3090 = vmatprep.subr.mxu0 0.0
    %3091 = vmatpush2.msra.mxu0 0.0
    %3092 = vmatprep.subr.mxu0 0.0
    %3093 = vmatpush2.msra.mxu0 0.0
    %3094 = vmatprep.subr.mxu0 0.0
    %3095 = vmatpush2.msra.mxu0 0.0
    %3096 = vmatprep.subr.mxu0 0.0
    %3097 = vmatpush2.msra.mxu0 0.0
    %3098 = vmatprep.subr.mxu0 0.0
    %3099 = vmatpush2.msra.mxu0 0.0
    %3100 = vmatprep.mubr.f32.mxu0 0.0
    %3101 = vmatmul.mubr.f32.gmra.mxu0 %v2892
    %v3102 = vpop.f32.mrf.mxu0
    %v3103 = vadd.f32 0.0, %v3102
    %v3104 = vpop.f32.mrf.mxu0
    %v3105 = vadd.f32 0.0, %v3104
    %3106 = vdwg.mxu0
    %v3107 = vld [vmem:[#allocation12] sm:$0xff]
    %v3108 = vld [vmem:[#allocation12 + $0x8] sm:$0xff]
    %v3109 = vld [vmem:[#allocation12 + $0x10] sm:$0xff]
    %v3110 = vld [vmem:[#allocation12 + $0x18] sm:$0xff]
    %v3111 = vld [vmem:[#allocation12 + $0x20] sm:$0xff]
    %v3112 = vld [vmem:[#allocation12 + $0x28] sm:$0xff]
    %v3113 = vld [vmem:[#allocation12 + $0x30] sm:$0xff]
    %v3114 = vld [vmem:[#allocation12 + $0x38] sm:$0xff]
    %v3115 = vld [vmem:[#allocation12 + $0x40] sm:$0xff]
    %v3116 = vld [vmem:[#allocation12 + $0x48] sm:$0xff]
    %v3117 = vld [vmem:[#allocation12 + $0x50] sm:$0xff]
    %v3118 = vld [vmem:[#allocation12 + $0x58] sm:$0xff]
    %v3119 = vld [vmem:[#allocation12 + $0x60] sm:$0xff]
    %v3120 = vld [vmem:[#allocation12 + $0x68] sm:$0xff]
    %v3121 = vld [vmem:[#allocation12 + $0x70] sm:$0xff]
    %v3122 = vld [vmem:[#allocation12 + $0x78] sm:$0xff]
    %v3123 = vld [vmem:[#allocation12 + $0x80] sm:$0xff]
    %v3124 = vld [vmem:[#allocation12 + $0x88] sm:$0xff]
    %v3125 = vld [vmem:[#allocation12 + $0x90] sm:$0xff]
    %v3126 = vld [vmem:[#allocation12 + $0x98] sm:$0xff]
    %v3127 = vld [vmem:[#allocation12 + $0xa0] sm:$0xff]
    %v3128 = vld [vmem:[#allocation12 + $0xa8] sm:$0xff]
    %v3129 = vld [vmem:[#allocation12 + $0xb0] sm:$0xff]
    %v3130 = vld [vmem:[#allocation12 + $0xb8] sm:$0xff]
    %v3131 = vld [vmem:[#allocation12 + $0xc0] sm:$0xff]
    %v3132 = vld [vmem:[#allocation12 + $0xc8] sm:$0xff]
    %v3133 = vld [vmem:[#allocation12 + $0xd0] sm:$0xff]
    %v3134 = vld [vmem:[#allocation12 + $0xd8] sm:$0xff]
    %v3135 = vld [vmem:[#allocation12 + $0xe0] sm:$0xff]
    %v3136 = vld [vmem:[#allocation12 + $0xe8] sm:$0xff]
    %v3137 = vld [vmem:[#allocation12 + $0xf0] sm:$0xff]
    %v3138 = vld [vmem:[#allocation12 + $0xf8] sm:$0xff]
    %v3139 = vld [vmem:[#allocation12 + $0x100] sm:$0xff]
    %v3140 = vld [vmem:[#allocation12 + $0x108] sm:$0xff]
    %v3141 = vld [vmem:[#allocation12 + $0x110] sm:$0xff]
    %v3142 = vld [vmem:[#allocation12 + $0x118] sm:$0xff]
    %v3143 = vld [vmem:[#allocation12 + $0x120] sm:$0xff]
    %v3144 = vld [vmem:[#allocation12 + $0x128] sm:$0xff]
    %v3145 = vld [vmem:[#allocation12 + $0x130] sm:$0xff]
    %v3146 = vld [vmem:[#allocation12 + $0x138] sm:$0xff]
    %v3147 = vld [vmem:[#allocation12 + $0x140] sm:$0xff]
    %v3148 = vld [vmem:[#allocation12 + $0x148] sm:$0xff]
    %v3149 = vld [vmem:[#allocation12 + $0x150] sm:$0xff]
    %v3150 = vld [vmem:[#allocation12 + $0x158] sm:$0xff]
    %v3151 = vld [vmem:[#allocation12 + $0x160] sm:$0xff]
    %v3152 = vld [vmem:[#allocation12 + $0x168] sm:$0xff]
    %v3153 = vld [vmem:[#allocation12 + $0x170] sm:$0xff]
    %v3154 = vld [vmem:[#allocation12 + $0x178] sm:$0xff]
    %v3155 = vld [vmem:[#allocation12 + $0x180] sm:$0xff]
    %v3156 = vld [vmem:[#allocation12 + $0x188] sm:$0xff]
    %v3157 = vld [vmem:[#allocation12 + $0x190] sm:$0xff]
    %v3158 = vld [vmem:[#allocation12 + $0x198] sm:$0xff]
    %v3159 = vld [vmem:[#allocation12 + $0x1a0] sm:$0xff]
    %v3160 = vld [vmem:[#allocation12 + $0x1a8] sm:$0xff]
    %v3161 = vld [vmem:[#allocation12 + $0x1b0] sm:$0xff]
    %v3162 = vld [vmem:[#allocation12 + $0x1b8] sm:$0xff]
    %v3163 = vld [vmem:[#allocation12 + $0x1c0] sm:$0xff]
    %v3164 = vld [vmem:[#allocation12 + $0x1c8] sm:$0xff]
    %v3165 = vld [vmem:[#allocation12 + $0x1d0] sm:$0xff]
    %v3166 = vld [vmem:[#allocation12 + $0x1d8] sm:$0xff]
    %v3167 = vld [vmem:[#allocation12 + $0x1e0] sm:$0xff]
    %v3168 = vld [vmem:[#allocation12 + $0x1e8] sm:$0xff]
    %v3169 = vld [vmem:[#allocation12 + $0x1f0] sm:$0xff]
    %v3170 = vld [vmem:[#allocation12 + $0x1f8] sm:$0xff]
    %v3171 = vld [vmem:[#allocation12 + $0x200] sm:$0xff]
    %v3172 = vld [vmem:[#allocation12 + $0x208] sm:$0xff]
    %v3173 = vld [vmem:[#allocation12 + $0x210] sm:$0xff]
    %v3174 = vld [vmem:[#allocation12 + $0x218] sm:$0xff]
    %v3175 = vld [vmem:[#allocation12 + $0x220] sm:$0xff]
    %v3176 = vld [vmem:[#allocation12 + $0x228] sm:$0xff]
    %v3177 = vld [vmem:[#allocation12 + $0x230] sm:$0xff]
    %v3178 = vld [vmem:[#allocation12 + $0x238] sm:$0xff]
    %v3179 = vld [vmem:[#allocation12 + $0x240] sm:$0xff]
    %v3180 = vld [vmem:[#allocation12 + $0x248] sm:$0xff]
    %v3181 = vld [vmem:[#allocation12 + $0x250] sm:$0xff]
    %v3182 = vld [vmem:[#allocation12 + $0x258] sm:$0xff]
    %v3183 = vld [vmem:[#allocation12 + $0x260] sm:$0xff]
    %v3184 = vld [vmem:[#allocation12 + $0x268] sm:$0xff]
    %v3185 = vld [vmem:[#allocation12 + $0x270] sm:$0xff]
    %v3186 = vld [vmem:[#allocation12 + $0x278] sm:$0xff]
    %v3187 = vld [vmem:[#allocation12 + $0x280] sm:$0xff]
    %v3188 = vld [vmem:[#allocation12 + $0x288] sm:$0xff]
    %v3189 = vld [vmem:[#allocation12 + $0x290] sm:$0xff]
    %v3190 = vld [vmem:[#allocation12 + $0x298] sm:$0xff]
    %v3191 = vld [vmem:[#allocation12 + $0x2a0] sm:$0xff]
    %v3192 = vld [vmem:[#allocation12 + $0x2a8] sm:$0xff]
    %v3193 = vld [vmem:[#allocation12 + $0x2b0] sm:$0xff]
    %v3194 = vld [vmem:[#allocation12 + $0x2b8] sm:$0xff]
    %v3195 = vld [vmem:[#allocation12 + $0x2c0] sm:$0xff]
    %v3196 = vld [vmem:[#allocation12 + $0x2c8] sm:$0xff]
    %v3197 = vld [vmem:[#allocation12 + $0x2d0] sm:$0xff]
    %v3198 = vld [vmem:[#allocation12 + $0x2d8] sm:$0xff]
    %v3199 = vld [vmem:[#allocation12 + $0x2e0] sm:$0xff]
    %v3200 = vld [vmem:[#allocation12 + $0x2e8] sm:$0xff]
    %v3201 = vld [vmem:[#allocation12 + $0x2f0] sm:$0xff]
    %v3202 = vld [vmem:[#allocation12 + $0x2f8] sm:$0xff]
    %v3203 = vld [vmem:[#allocation12 + $0x300] sm:$0xff]
    %v3204 = vld [vmem:[#allocation12 + $0x308] sm:$0xff]
    %v3205 = vld [vmem:[#allocation12 + $0x310] sm:$0xff]
    %v3206 = vld [vmem:[#allocation12 + $0x318] sm:$0xff]
    %v3207 = vld [vmem:[#allocation12 + $0x320] sm:$0xff]
    %v3208 = vld [vmem:[#allocation12 + $0x328] sm:$0xff]
    %v3209 = vld [vmem:[#allocation12 + $0x330] sm:$0xff]
    %v3210 = vld [vmem:[#allocation12 + $0x338] sm:$0xff]
    %v3211 = vld [vmem:[#allocation12 + $0x340] sm:$0xff]
    %v3212 = vld [vmem:[#allocation12 + $0x348] sm:$0xff]
    %v3213 = vld [vmem:[#allocation12 + $0x350] sm:$0xff]
    %v3214 = vld [vmem:[#allocation12 + $0x358] sm:$0xff]
    %v3215 = vld [vmem:[#allocation12 + $0x360] sm:$0xff]
    %v3216 = vld [vmem:[#allocation12 + $0x368] sm:$0xff]
    %v3217 = vld [vmem:[#allocation12 + $0x370] sm:$0xff]
    %v3218 = vld [vmem:[#allocation12 + $0x378] sm:$0xff]
    %v3219 = vld [vmem:[#allocation12 + $0x380] sm:$0xff]
    %v3220 = vld [vmem:[#allocation12 + $0x388] sm:$0xff]
    %v3221 = vld [vmem:[#allocation12 + $0x390] sm:$0xff]
    %v3222 = vld [vmem:[#allocation12 + $0x398] sm:$0xff]
    %v3223 = vld [vmem:[#allocation12 + $0x3a0] sm:$0xff]
    %v3224 = vld [vmem:[#allocation12 + $0x3a8] sm:$0xff]
    %v3225 = vld [vmem:[#allocation12 + $0x3b0] sm:$0xff]
    %v3226 = vld [vmem:[#allocation12 + $0x3b8] sm:$0xff]
    %v3227 = vld [vmem:[#allocation12 + $0x3c0] sm:$0xff]
    %v3228 = vld [vmem:[#allocation12 + $0x3c8] sm:$0xff]
    %v3229 = vld [vmem:[#allocation12 + $0x3d0] sm:$0xff]
    %v3230 = vld [vmem:[#allocation12 + $0x3d8] sm:$0xff]
    %v3231 = vld [vmem:[#allocation12 + $0x3e0] sm:$0xff]
    %v3232 = vld [vmem:[#allocation12 + $0x3e8] sm:$0xff]
    %v3233 = vld [vmem:[#allocation12 + $0x3f0] sm:$0xff]
    %v3234 = vld [vmem:[#allocation12 + $0x3f8] sm:$0xff]
    %v3235 = vld [vmem:[#allocation12 + $0x400] sm:$0xff]
    %v3236 = vld [vmem:[#allocation12 + $0x408] sm:$0xff]
    %v3237 = vld [vmem:[#allocation12 + $0x410] sm:$0xff]
    %v3238 = vld [vmem:[#allocation12 + $0x418] sm:$0xff]
    %v3239 = vld [vmem:[#allocation12 + $0x420] sm:$0xff]
    %v3240 = vld [vmem:[#allocation12 + $0x428] sm:$0xff]
    %v3241 = vld [vmem:[#allocation12 + $0x430] sm:$0xff]
    %v3242 = vld [vmem:[#allocation12 + $0x438] sm:$0xff]
    %v3243 = vld [vmem:[#allocation12 + $0x440] sm:$0xff]
    %v3244 = vld [vmem:[#allocation12 + $0x448] sm:$0xff]
    %v3245 = vld [vmem:[#allocation12 + $0x450] sm:$0xff]
    %v3246 = vld [vmem:[#allocation12 + $0x458] sm:$0xff]
    %v3247 = vld [vmem:[#allocation12 + $0x460] sm:$0xff]
    %v3248 = vld [vmem:[#allocation12 + $0x468] sm:$0xff]
    %v3249 = vld [vmem:[#allocation12 + $0x470] sm:$0xff]
    %v3250 = vld [vmem:[#allocation12 + $0x478] sm:$0xff]
    %v3251 = vld [vmem:[#allocation12 + $0x480] sm:$0xff]
    %v3252 = vld [vmem:[#allocation12 + $0x488] sm:$0xff]
    %v3253 = vld [vmem:[#allocation12 + $0x490] sm:$0xff]
    %v3254 = vld [vmem:[#allocation12 + $0x498] sm:$0xff]
    %v3255 = vld [vmem:[#allocation12 + $0x4a0] sm:$0xff]
    %v3256 = vld [vmem:[#allocation12 + $0x4a8] sm:$0xff]
    %v3257 = vld [vmem:[#allocation12 + $0x4b0] sm:$0xff]
    %v3258 = vld [vmem:[#allocation12 + $0x4b8] sm:$0xff]
    %v3259 = vld [vmem:[#allocation12 + $0x4c0] sm:$0xff]
    %v3260 = vld [vmem:[#allocation12 + $0x4c8] sm:$0xff]
    %v3261 = vld [vmem:[#allocation12 + $0x4d0] sm:$0xff]
    %v3262 = vld [vmem:[#allocation12 + $0x4d8] sm:$0xff]
    %v3263 = vld [vmem:[#allocation12 + $0x4e0] sm:$0xff]
    %v3264 = vld [vmem:[#allocation12 + $0x4e8] sm:$0xff]
    %v3265 = vld [vmem:[#allocation12 + $0x4f0] sm:$0xff]
    %v3266 = vld [vmem:[#allocation12 + $0x4f8] sm:$0xff]
    %v3267 = vld [vmem:[#allocation12 + $0x500] sm:$0xff]
    %v3268 = vld [vmem:[#allocation12 + $0x508] sm:$0xff]
    %v3269 = vld [vmem:[#allocation12 + $0x510] sm:$0xff]
    %v3270 = vld [vmem:[#allocation12 + $0x518] sm:$0xff]
    %v3271 = vld [vmem:[#allocation12 + $0x520] sm:$0xff]
    %v3272 = vld [vmem:[#allocation12 + $0x528] sm:$0xff]
    %v3273 = vld [vmem:[#allocation12 + $0x530] sm:$0xff]
    %v3274 = vld [vmem:[#allocation12 + $0x538] sm:$0xff]
    %v3275 = vld [vmem:[#allocation12 + $0x540] sm:$0xff]
    %v3276 = vld [vmem:[#allocation12 + $0x548] sm:$0xff]
    %v3277 = vld [vmem:[#allocation12 + $0x550] sm:$0xff]
    %v3278 = vld [vmem:[#allocation12 + $0x558] sm:$0xff]
    %v3279 = vld [vmem:[#allocation12 + $0x560] sm:$0xff]
    %v3280 = vld [vmem:[#allocation12 + $0x568] sm:$0xff]
    %v3281 = vld [vmem:[#allocation12 + $0x570] sm:$0xff]
    %v3282 = vld [vmem:[#allocation12 + $0x578] sm:$0xff]
    %v3283 = vld [vmem:[#allocation12 + $0x580] sm:$0xff]
    %v3284 = vld [vmem:[#allocation12 + $0x588] sm:$0xff]
    %v3285 = vld [vmem:[#allocation12 + $0x590] sm:$0xff]
    %v3286 = vld [vmem:[#allocation12 + $0x598] sm:$0xff]
    %v3287 = vld [vmem:[#allocation12 + $0x5a0] sm:$0xff]
    %v3288 = vld [vmem:[#allocation12 + $0x5a8] sm:$0xff]
    %v3289 = vld [vmem:[#allocation12 + $0x5b0] sm:$0xff]
    %v3290 = vld [vmem:[#allocation12 + $0x5b8] sm:$0xff]
    %v3291 = vld [vmem:[#allocation12 + $0x5c0] sm:$0xff]
    %v3292 = vld [vmem:[#allocation12 + $0x5c8] sm:$0xff]
    %v3293 = vld [vmem:[#allocation12 + $0x5d0] sm:$0xff]
    %v3294 = vld [vmem:[#allocation12 + $0x5d8] sm:$0xff]
    %v3295 = vld [vmem:[#allocation12 + $0x5e0] sm:$0xff]
    %v3296 = vld [vmem:[#allocation12 + $0x5e8] sm:$0xff]
    %v3297 = vld [vmem:[#allocation12 + $0x5f0] sm:$0xff]
    %v3298 = vld [vmem:[#allocation12 + $0x5f8] sm:$0xff]
    %3299 = vmatprep.subr.mxu0 %v3138
    %3300 = vmatpush1.msra.mxu0 %v3137
    %3301 = vmatprep.subr.mxu0 %v3136
    %3302 = vmatpush1.msra.mxu0 %v3135
    %3303 = vmatprep.subr.mxu0 %v3134
    %3304 = vmatpush1.msra.mxu0 %v3133
    %3305 = vmatprep.subr.mxu0 %v3132
    %3306 = vmatpush1.msra.mxu0 %v3131
    %3307 = vmatprep.subr.mxu0 %v3130
    %3308 = vmatpush1.msra.mxu0 %v3129
    %3309 = vmatprep.subr.mxu0 %v3128
    %3310 = vmatpush1.msra.mxu0 %v3127
    %3311 = vmatprep.subr.mxu0 %v3126
    %3312 = vmatpush1.msra.mxu0 %v3125
    %3313 = vmatprep.subr.mxu0 %v3124
    %3314 = vmatpush1.msra.mxu0 %v3123
    %3315 = vmatprep.subr.mxu0 %v3122
    %3316 = vmatpush1.msra.mxu0 %v3121
    %3317 = vmatprep.subr.mxu0 %v3120
    %3318 = vmatpush1.msra.mxu0 %v3119
    %3319 = vmatprep.subr.mxu0 %v3118
    %3320 = vmatpush1.msra.mxu0 %v3117
    %3321 = vmatprep.subr.mxu0 %v3116
    %3322 = vmatpush1.msra.mxu0 %v3115
    %3323 = vmatprep.subr.mxu0 %v3114
    %3324 = vmatpush1.msra.mxu0 %v3113
    %3325 = vmatprep.subr.mxu0 %v3112
    %3326 = vmatpush1.msra.mxu0 %v3111
    %3327 = vmatprep.subr.mxu0 %v3110
    %3328 = vmatpush1.msra.mxu0 %v3109
    %3329 = vmatprep.subr.mxu0 %v3108
    %3330 = vmatpush1.msra.mxu0 %v3107
    %3331 = vmatprep.subr.mxu0 %v3170
    %3332 = vmatpush2.msra.mxu0 %v3169
    %3333 = vmatprep.subr.mxu0 %v3168
    %3334 = vmatpush2.msra.mxu0 %v3167
    %3335 = vmatprep.subr.mxu0 %v3166
    %3336 = vmatpush2.msra.mxu0 %v3165
    %3337 = vmatprep.subr.mxu0 %v3164
    %3338 = vmatpush2.msra.mxu0 %v3163
    %3339 = vmatprep.subr.mxu0 %v3162
    %3340 = vmatpush2.msra.mxu0 %v3161
    %3341 = vmatprep.subr.mxu0 %v3160
    %3342 = vmatpush2.msra.mxu0 %v3159
    %3343 = vmatprep.subr.mxu0 %v3158
    %3344 = vmatpush2.msra.mxu0 %v3157
    %3345 = vmatprep.subr.mxu0 %v3156
    %3346 = vmatpush2.msra.mxu0 %v3155
    %3347 = vmatprep.subr.mxu0 %v3154
    %3348 = vmatpush2.msra.mxu0 %v3153
    %3349 = vmatprep.subr.mxu0 %v3152
    %3350 = vmatpush2.msra.mxu0 %v3151
    %3351 = vmatprep.subr.mxu0 %v3150
    %3352 = vmatpush2.msra.mxu0 %v3149
    %3353 = vmatprep.subr.mxu0 %v3148
    %3354 = vmatpush2.msra.mxu0 %v3147
    %3355 = vmatprep.subr.mxu0 %v3146
    %3356 = vmatpush2.msra.mxu0 %v3145
    %3357 = vmatprep.subr.mxu0 %v3144
    %3358 = vmatpush2.msra.mxu0 %v3143
    %3359 = vmatprep.subr.mxu0 %v3142
    %3360 = vmatpush2.msra.mxu0 %v3141
    %3361 = vmatprep.subr.mxu0 %v3140
    %3362 = vmatpush2.msra.mxu0 %v3139
    %3363 = vmatprep.mubr.f32.mxu0 %v2963
    %3364 = vmatmul.mubr.f32.gmra.mxu0 %v2961
    %v3365 = vpop.f32.mrf.mxu0
    %v3366 = vadd.f32 0.0, %v3365
    %v3367 = vpop.f32.mrf.mxu0
    %v3368 = vadd.f32 0.0, %v3367
    %3369 = vdwg.mxu0
    %3370 = vmatprep.subr.mxu0 %v3202
    %3371 = vmatpush1.msra.mxu0 %v3201
    %3372 = vmatprep.subr.mxu0 %v3200
    %3373 = vmatpush1.msra.mxu0 %v3199
    %3374 = vmatprep.subr.mxu0 %v3198
    %3375 = vmatpush1.msra.mxu0 %v3197
    %3376 = vmatprep.subr.mxu0 %v3196
    %3377 = vmatpush1.msra.mxu0 %v3195
    %3378 = vmatprep.subr.mxu0 %v3194
    %3379 = vmatpush1.msra.mxu0 %v3193
    %3380 = vmatprep.subr.mxu0 %v3192
    %3381 = vmatpush1.msra.mxu0 %v3191
    %3382 = vmatprep.subr.mxu0 %v3190
    %3383 = vmatpush1.msra.mxu0 %v3189
    %3384 = vmatprep.subr.mxu0 %v3188
    %3385 = vmatpush1.msra.mxu0 %v3187
    %3386 = vmatprep.subr.mxu0 %v3186
    %3387 = vmatpush1.msra.mxu0 %v3185
    %3388 = vmatprep.subr.mxu0 %v3184
    %3389 = vmatpush1.msra.mxu0 %v3183
    %3390 = vmatprep.subr.mxu0 %v3182
    %3391 = vmatpush1.msra.mxu0 %v3181
    %3392 = vmatprep.subr.mxu0 %v3180
    %3393 = vmatpush1.msra.mxu0 %v3179
    %3394 = vmatprep.subr.mxu0 %v3178
    %3395 = vmatpush1.msra.mxu0 %v3177
    %3396 = vmatprep.subr.mxu0 %v3176
    %3397 = vmatpush1.msra.mxu0 %v3175
    %3398 = vmatprep.subr.mxu0 %v3174
    %3399 = vmatpush1.msra.mxu0 %v3173
    %3400 = vmatprep.subr.mxu0 %v3172
    %3401 = vmatpush1.msra.mxu0 %v3171
    %3402 = vmatprep.subr.mxu0 %v3234
    %3403 = vmatpush2.msra.mxu0 %v3233
    %3404 = vmatprep.subr.mxu0 %v3232
    %3405 = vmatpush2.msra.mxu0 %v3231
    %3406 = vmatprep.subr.mxu0 %v3230
    %3407 = vmatpush2.msra.mxu0 %v3229
    %3408 = vmatprep.subr.mxu0 %v3228
    %3409 = vmatpush2.msra.mxu0 %v3227
    %3410 = vmatprep.subr.mxu0 %v3226
    %3411 = vmatpush2.msra.mxu0 %v3225
    %3412 = vmatprep.subr.mxu0 %v3224
    %3413 = vmatpush2.msra.mxu0 %v3223
    %3414 = vmatprep.subr.mxu0 %v3222
    %3415 = vmatpush2.msra.mxu0 %v3221
    %3416 = vmatprep.subr.mxu0 %v3220
    %3417 = vmatpush2.msra.mxu0 %v3219
    %3418 = vmatprep.subr.mxu0 %v3218
    %3419 = vmatpush2.msra.mxu0 %v3217
    %3420 = vmatprep.subr.mxu0 %v3216
    %3421 = vmatpush2.msra.mxu0 %v3215
    %3422 = vmatprep.subr.mxu0 %v3214
    %3423 = vmatpush2.msra.mxu0 %v3213
    %3424 = vmatprep.subr.mxu0 %v3212
    %3425 = vmatpush2.msra.mxu0 %v3211
    %3426 = vmatprep.subr.mxu0 %v3210
    %3427 = vmatpush2.msra.mxu0 %v3209
    %3428 = vmatprep.subr.mxu0 %v3208
    %3429 = vmatpush2.msra.mxu0 %v3207
    %3430 = vmatprep.subr.mxu0 %v3206
    %3431 = vmatpush2.msra.mxu0 %v3205
    %3432 = vmatprep.subr.mxu0 %v3204
    %3433 = vmatpush2.msra.mxu0 %v3203
    %3434 = vmatprep.mubr.f32.mxu0 %v3034
    %3435 = vmatmul.mubr.f32.gmra.mxu0 %v3032
    %v3436 = vpop.f32.mrf.mxu0
    %v3437 = vadd.f32 %v3366, %v3436
    %v3438 = vpop.f32.mrf.mxu0
    %v3439 = vadd.f32 %v3368, %v3438
    %3440 = vdwg.mxu0
    %3441 = vmatprep.subr.mxu0 %v3266
    %3442 = vmatpush1.msra.mxu0 %v3265
    %3443 = vmatprep.subr.mxu0 %v3264
    %3444 = vmatpush1.msra.mxu0 %v3263
    %3445 = vmatprep.subr.mxu0 %v3262
    %3446 = vmatpush1.msra.mxu0 %v3261
    %3447 = vmatprep.subr.mxu0 %v3260
    %3448 = vmatpush1.msra.mxu0 %v3259
    %3449 = vmatprep.subr.mxu0 %v3258
    %3450 = vmatpush1.msra.mxu0 %v3257
    %3451 = vmatprep.subr.mxu0 %v3256
    %3452 = vmatpush1.msra.mxu0 %v3255
    %3453 = vmatprep.subr.mxu0 %v3254
    %3454 = vmatpush1.msra.mxu0 %v3253
    %3455 = vmatprep.subr.mxu0 %v3252
    %3456 = vmatpush1.msra.mxu0 %v3251
    %3457 = vmatprep.subr.mxu0 %v3250
    %3458 = vmatpush1.msra.mxu0 %v3249
    %3459 = vmatprep.subr.mxu0 %v3248
    %3460 = vmatpush1.msra.mxu0 %v3247
    %3461 = vmatprep.subr.mxu0 %v3246
    %3462 = vmatpush1.msra.mxu0 %v3245
    %3463 = vmatprep.subr.mxu0 %v3244
    %3464 = vmatpush1.msra.mxu0 %v3243
    %3465 = vmatprep.subr.mxu0 %v3242
    %3466 = vmatpush1.msra.mxu0 %v3241
    %3467 = vmatprep.subr.mxu0 %v3240
    %3468 = vmatpush1.msra.mxu0 %v3239
    %3469 = vmatprep.subr.mxu0 %v3238
    %3470 = vmatpush1.msra.mxu0 %v3237
    %3471 = vmatprep.subr.mxu0 %v3236
    %3472 = vmatpush1.msra.mxu0 %v3235
    %3473 = vmatprep.subr.mxu0 %v3298
    %3474 = vmatpush2.msra.mxu0 %v3297
    %3475 = vmatprep.subr.mxu0 %v3296
    %3476 = vmatpush2.msra.mxu0 %v3295
    %3477 = vmatprep.subr.mxu0 %v3294
    %3478 = vmatpush2.msra.mxu0 %v3293
    %3479 = vmatprep.subr.mxu0 %v3292
    %3480 = vmatpush2.msra.mxu0 %v3291
    %3481 = vmatprep.subr.mxu0 %v3290
    %3482 = vmatpush2.msra.mxu0 %v3289
    %3483 = vmatprep.subr.mxu0 %v3288
    %3484 = vmatpush2.msra.mxu0 %v3287
    %3485 = vmatprep.subr.mxu0 %v3286
    %3486 = vmatpush2.msra.mxu0 %v3285
    %3487 = vmatprep.subr.mxu0 %v3284
    %3488 = vmatpush2.msra.mxu0 %v3283
    %3489 = vmatprep.subr.mxu0 %v3282
    %3490 = vmatpush2.msra.mxu0 %v3281
    %3491 = vmatprep.subr.mxu0 %v3280
    %3492 = vmatpush2.msra.mxu0 %v3279
    %3493 = vmatprep.subr.mxu0 %v3278
    %3494 = vmatpush2.msra.mxu0 %v3277
    %3495 = vmatprep.subr.mxu0 %v3276
    %3496 = vmatpush2.msra.mxu0 %v3275
    %3497 = vmatprep.subr.mxu0 %v3274
    %3498 = vmatpush2.msra.mxu0 %v3273
    %3499 = vmatprep.subr.mxu0 %v3272
    %3500 = vmatpush2.msra.mxu0 %v3271
    %3501 = vmatprep.subr.mxu0 %v3270
    %3502 = vmatpush2.msra.mxu0 %v3269
    %3503 = vmatprep.subr.mxu0 %v3268
    %3504 = vmatpush2.msra.mxu0 %v3267
    %3505 = vmatprep.mubr.f32.mxu0 %v3105
    %3506 = vmatmul.mubr.f32.gmra.mxu0 %v3103
    %v3507 = vpop.f32.mrf.mxu0
    %v3508 = vadd.f32 %v3437, %v3507
    %v3509 = vpop.f32.mrf.mxu0
    %v3510 = vadd.f32 %v3439, %v3509
    %3511 = vdwg.mxu0
    %v3512 = vld [vmem:[#allocation39] sm:$0xff]
    %3514 = vset.pattern.permute.xlu0 0
    %3515 = vperm.xlu0 %3514, %v3512
    %v3516 = vpop.permute.xlu0 %3515
    %v3518 = vmul.f32 %v3508, %v3516
    %v3519 = vmul.f32 %v3510, %v3516
    %v3520 = vld [vmem:[#allocation40] sm:$0xff]
    %3522 = vset.pattern.permute.xlu0 0
    %3523 = vperm.xlu0 %3522, %v3520
    %v3524 = vpop.permute.xlu0 %3523
    %v3526 = vadd.f32 %v3518, %v3524
    %v3527 = vadd.f32 %v3519, %v3524
    %v3529 = vlaneseq
    %v3530 = vshrl.u32 %v3529, 7
    %v3531 = vsub.s32 0, %v3530
    %v3532 = vrot.slane %v610, %v3531
    %v3533 = vlaneseq
    %v3534 = vshrl.u32 %v3533, 7
    %v3535 = vsub.s32 1, %v3534
    %v3536 = vrot.slane %v610, %v3535
    %v3539 = vmul.f32 %v3526, %v3532
    %v3540 = vmul.f32 %v3527, %v3536
    %v3541 = vmax.f32 %v3539, 0.0
    %v3542 = vmax.f32 %v3540, 0.0
    %3543 = vrot.lane.b32.xlu0 %v3541, 11
    %v3544 = vpop.permute.xlu0 %3543
    %3545 = vrot.lane.b32.xlu0 %v3542, 11
    %v3546 = vpop.permute.xlu0 %3545
    %vm3547 = vcmp.lt.s32.totalorder %v634, 11
    %v3548 = vsel %vm3547, %v3544, %v3546
    %v3549 = vsel %vm3547, %v3546, %v3544
    %3550 = vrot.lane.b32.xlu0 %v3541, 10
    %v3551 = vpop.permute.xlu0 %3550
    %3552 = vrot.lane.b32.xlu0 %v3542, 10
    %v3553 = vpop.permute.xlu0 %3552
    %vm3554 = vcmp.lt.s32.totalorder %v634, 10
    %v3555 = vsel %vm3554, %v3551, %v3553
    %v3556 = vsel %vm3554, %v3553, %v3551
    %3557 = vrot.lane.b32.xlu0 %v3541, 9
    %v3558 = vpop.permute.xlu0 %3557
    %3559 = vrot.lane.b32.xlu0 %v3542, 9
    %v3560 = vpop.permute.xlu0 %3559
    %vm3561 = vcmp.lt.s32.totalorder %v634, 9
    %v3562 = vsel %vm3561, %v3558, %v3560
    %v3563 = vsel %vm3561, %v3560, %v3558
    %3564 = vrot.lane.b32.xlu0 %v3541, 1
    %v3565 = vpop.permute.xlu0 %3564
    %3566 = vrot.lane.b32.xlu0 %v3542, 1
    %v3567 = vpop.permute.xlu0 %3566
    %v3568 = vsel %vm692, %v3565, %v3567
    %v3569 = vsel %vm692, %v3567, %v3565
    %3570 = vrot.lane.b32.xlu0 %v3541, 127
    %v3571 = vpop.permute.xlu0 %3570
    %3572 = vrot.lane.b32.xlu0 %v3542, 127
    %v3573 = vpop.permute.xlu0 %3572
    %v3574 = vsel %vm711, %v3571, %v3573
    %v3575 = vsel %vm711, %v3573, %v3571
    %3576 = vrot.lane.b32.xlu0 %v3541, 119
    %v3577 = vpop.permute.xlu0 %3576
    %3578 = vrot.lane.b32.xlu0 %v3542, 119
    %v3579 = vpop.permute.xlu0 %3578
    %vm3580 = vcmp.lt.s32.totalorder %v634, 119
    %v3581 = vsel %vm3580, %v3577, %v3579
    %v3582 = vsel %vm3580, %v3579, %v3577
    %3583 = vrot.lane.b32.xlu0 %v3541, 118
    %v3584 = vpop.permute.xlu0 %3583
    %3585 = vrot.lane.b32.xlu0 %v3542, 118
    %v3586 = vpop.permute.xlu0 %3585
    %vm3587 = vcmp.lt.s32.totalorder %v634, 118
    %v3588 = vsel %vm3587, %v3584, %v3586
    %v3589 = vsel %vm3587, %v3586, %v3584
    %3590 = vrot.lane.b32.xlu0 %v3541, 117
    %v3591 = vpop.permute.xlu0 %3590
    %3592 = vrot.lane.b32.xlu0 %v3542, 117
    %v3593 = vpop.permute.xlu0 %3592
    %vm3594 = vcmp.lt.s32.totalorder %v634, 117
    %v3595 = vsel %vm3594, %v3591, %v3593
    %v3596 = vsel %vm3594, %v3593, %v3591
    %v3597 = vld [vmem:[#allocation42] sm:$0xff]
    %v3599 = vsel %vm776, %v3597, 0
    %3601 = vmatprep.subr.mxu0 0.0
    %3602 = vmatpush1.msra.mxu0 0.0
    %3603 = vmatprep.subr.mxu0 0.0
    %3604 = vmatpush1.msra.mxu0 0.0
    %3605 = vmatprep.subr.mxu0 0.0
    %3606 = vmatpush1.msra.mxu0 0.0
    %3607 = vmatprep.subr.mxu0 0.0
    %3608 = vmatpush1.msra.mxu0 0.0
    %3609 = vmatprep.subr.mxu0 0.0
    %3610 = vmatpush1.msra.mxu0 0.0
    %3611 = vmatprep.subr.mxu0 0.0
    %3612 = vmatpush1.msra.mxu0 0.0
    %3613 = vmatprep.subr.mxu0 0.0
    %3614 = vmatpush1.msra.mxu0 0.0
    %3615 = vmatprep.subr.mxu0 %v3596
    %3616 = vmatpush1.msra.mxu0 %v3595
    %3617 = vmatprep.subr.mxu0 %v3589
    %3618 = vmatpush1.msra.mxu0 %v3588
    %3619 = vmatprep.subr.mxu0 %v3582
    %3620 = vmatpush1.msra.mxu0 %v3581
    %3621 = vmatprep.subr.mxu0 %v3575
    %3622 = vmatpush1.msra.mxu0 %v3574
    %3623 = vmatprep.subr.mxu0 %v3542
    %3624 = vmatpush1.msra.mxu0 %v3541
    %3625 = vmatprep.subr.mxu0 %v3568
    %3626 = vmatpush1.msra.mxu0 %v3569
    %3627 = vmatprep.subr.mxu0 %v3562
    %3628 = vmatpush1.msra.mxu0 %v3563
    %3629 = vmatprep.subr.mxu0 %v3555
    %3630 = vmatpush1.msra.mxu0 %v3556
    %3631 = vmatprep.subr.mxu0 %v3548
    %3632 = vmatpush1.msra.mxu0 %v3549
    %3633 = vmatprep.subr.mxu0 0.0
    %3634 = vmatpush2.msra.mxu0 0.0
    %3635 = vmatprep.subr.mxu0 0.0
    %3636 = vmatpush2.msra.mxu0 0.0
    %3637 = vmatprep.subr.mxu0 0.0
    %3638 = vmatpush2.msra.mxu0 0.0
    %3639 = vmatprep.subr.mxu0 0.0
    %3640 = vmatpush2.msra.mxu0 0.0
    %3641 = vmatprep.subr.mxu0 0.0
    %3642 = vmatpush2.msra.mxu0 0.0
    %3643 = vmatprep.subr.mxu0 0.0
    %3644 = vmatpush2.msra.mxu0 0.0
    %3645 = vmatprep.subr.mxu0 0.0
    %3646 = vmatpush2.msra.mxu0 0.0
    %3647 = vmatprep.subr.mxu0 0.0
    %3648 = vmatpush2.msra.mxu0 0.0
    %3649 = vmatprep.subr.mxu0 0.0
    %3650 = vmatpush2.msra.mxu0 0.0
    %3651 = vmatprep.subr.mxu0 0.0
    %3652 = vmatpush2.msra.mxu0 0.0
    %3653 = vmatprep.subr.mxu0 0.0
    %3654 = vmatpush2.msra.mxu0 0.0
    %3655 = vmatprep.subr.mxu0 0.0
    %3656 = vmatpush2.msra.mxu0 0.0
    %3657 = vmatprep.subr.mxu0 0.0
    %3658 = vmatpush2.msra.mxu0 0.0
    %3659 = vmatprep.subr.mxu0 0.0
    %3660 = vmatpush2.msra.mxu0 0.0
    %3661 = vmatprep.subr.mxu0 0.0
    %3662 = vmatpush2.msra.mxu0 0.0
    %3663 = vmatprep.subr.mxu0 0.0
    %3664 = vmatpush2.msra.mxu0 0.0
    %3665 = vmatprep.mubr.f32.mxu0 0.0
    %3666 = vmatmul.mubr.f32.gmra.mxu0 %v3599
    %v3667 = vpop.f32.mrf.mxu0
    %v3668 = vadd.f32 0.0, %v3667
    %v3669 = vpop.f32.mrf.mxu0
    %v3670 = vadd.f32 0.0, %v3669
    %3671 = vdwg.mxu0
    %v3672 = vld [vmem:[#allocation43] sm:$0xff]
    %3674 = vset.pattern.permute.xlu0 0
    %3675 = vperm.xlu0 %3674, %v3672
    %v3676 = vpop.permute.xlu0 %3675
    %v3678 = vmul.f32 %v3668, %v3676
    %v3679 = vmul.f32 %v3670, %v3676
    %v3680 = vld [vmem:[%s65] sm:$0xff]
    %3682 = vset.pattern.permute.xlu0 0
    %3683 = vperm.xlu0 %3682, %v3680
    %v3684 = vpop.permute.xlu0 %3683
    %v3686 = vadd.f32 %v3678, %v3684
    %v3687 = vadd.f32 %v3679, %v3684
    %v3688 = vmul.f32 %v3686, %v3532
    %v3689 = vmul.f32 %v3687, %v3536
    %v3690 = vld [vmem:[#allocation13] sm:$0xff]
    %v3691 = vld [vmem:[#allocation13 + $0x8] sm:$0xff]
    %v3692 = vld [vmem:[#allocation13 + $0x10] sm:$0xff]
    %v3693 = vld [vmem:[#allocation13 + $0x18] sm:$0xff]
    %v3694 = vld [vmem:[#allocation13 + $0x20] sm:$0xff]
    %v3695 = vld [vmem:[#allocation13 + $0x28] sm:$0xff]
    %v3696 = vld [vmem:[#allocation13 + $0x30] sm:$0xff]
    %v3697 = vld [vmem:[#allocation13 + $0x38] sm:$0xff]
    %v3698 = vld [vmem:[#allocation13 + $0x40] sm:$0xff]
    %v3699 = vld [vmem:[#allocation13 + $0x48] sm:$0xff]
    %v3700 = vld [vmem:[#allocation13 + $0x50] sm:$0xff]
    %v3701 = vld [vmem:[#allocation13 + $0x58] sm:$0xff]
    %v3702 = vld [vmem:[#allocation13 + $0x60] sm:$0xff]
    %v3703 = vld [vmem:[#allocation13 + $0x68] sm:$0xff]
    %v3704 = vld [vmem:[#allocation13 + $0x70] sm:$0xff]
    %v3705 = vld [vmem:[#allocation13 + $0x78] sm:$0xff]
    %v3706 = vld [vmem:[#allocation13 + $0x80] sm:$0xff]
    %v3707 = vld [vmem:[#allocation13 + $0x88] sm:$0xff]
    %v3708 = vld [vmem:[#allocation13 + $0x90] sm:$0xff]
    %v3709 = vld [vmem:[#allocation13 + $0x98] sm:$0xff]
    %v3710 = vld [vmem:[#allocation13 + $0xa0] sm:$0xff]
    %v3711 = vld [vmem:[#allocation13 + $0xa8] sm:$0xff]
    %v3712 = vld [vmem:[#allocation13 + $0xb0] sm:$0xff]
    %v3713 = vld [vmem:[#allocation13 + $0xb8] sm:$0xff]
    %v3714 = vld [vmem:[#allocation13 + $0xc0] sm:$0xff]
    %v3715 = vld [vmem:[#allocation13 + $0xc8] sm:$0xff]
    %v3716 = vld [vmem:[#allocation13 + $0xd0] sm:$0xff]
    %v3717 = vld [vmem:[#allocation13 + $0xd8] sm:$0xff]
    %v3718 = vld [vmem:[#allocation13 + $0xe0] sm:$0xff]
    %v3719 = vld [vmem:[#allocation13 + $0xe8] sm:$0xff]
    %v3720 = vld [vmem:[#allocation13 + $0xf0] sm:$0xff]
    %v3721 = vld [vmem:[#allocation13 + $0xf8] sm:$0xff]
    %v3722 = vld [vmem:[#allocation13 + $0x100] sm:$0xff]
    %v3723 = vld [vmem:[#allocation13 + $0x108] sm:$0xff]
    %v3724 = vld [vmem:[#allocation13 + $0x110] sm:$0xff]
    %v3725 = vld [vmem:[#allocation13 + $0x118] sm:$0xff]
    %v3726 = vld [vmem:[#allocation13 + $0x120] sm:$0xff]
    %v3727 = vld [vmem:[#allocation13 + $0x128] sm:$0xff]
    %v3728 = vld [vmem:[#allocation13 + $0x130] sm:$0xff]
    %v3729 = vld [vmem:[#allocation13 + $0x138] sm:$0xff]
    %v3730 = vld [vmem:[#allocation13 + $0x140] sm:$0xff]
    %v3731 = vld [vmem:[#allocation13 + $0x148] sm:$0xff]
    %v3732 = vld [vmem:[#allocation13 + $0x150] sm:$0xff]
    %v3733 = vld [vmem:[#allocation13 + $0x158] sm:$0xff]
    %v3734 = vld [vmem:[#allocation13 + $0x160] sm:$0xff]
    %v3735 = vld [vmem:[#allocation13 + $0x168] sm:$0xff]
    %v3736 = vld [vmem:[#allocation13 + $0x170] sm:$0xff]
    %v3737 = vld [vmem:[#allocation13 + $0x178] sm:$0xff]
    %v3738 = vld [vmem:[#allocation13 + $0x180] sm:$0xff]
    %v3739 = vld [vmem:[#allocation13 + $0x188] sm:$0xff]
    %v3740 = vld [vmem:[#allocation13 + $0x190] sm:$0xff]
    %v3741 = vld [vmem:[#allocation13 + $0x198] sm:$0xff]
    %v3742 = vld [vmem:[#allocation13 + $0x1a0] sm:$0xff]
    %v3743 = vld [vmem:[#allocation13 + $0x1a8] sm:$0xff]
    %v3744 = vld [vmem:[#allocation13 + $0x1b0] sm:$0xff]
    %v3745 = vld [vmem:[#allocation13 + $0x1b8] sm:$0xff]
    %v3746 = vld [vmem:[#allocation13 + $0x1c0] sm:$0xff]
    %v3747 = vld [vmem:[#allocation13 + $0x1c8] sm:$0xff]
    %v3748 = vld [vmem:[#allocation13 + $0x1d0] sm:$0xff]
    %v3749 = vld [vmem:[#allocation13 + $0x1d8] sm:$0xff]
    %v3750 = vld [vmem:[#allocation13 + $0x1e0] sm:$0xff]
    %v3751 = vld [vmem:[#allocation13 + $0x1e8] sm:$0xff]
    %v3752 = vld [vmem:[#allocation13 + $0x1f0] sm:$0xff]
    %v3753 = vld [vmem:[#allocation13 + $0x1f8] sm:$0xff]
    %v3754 = vld [vmem:[#allocation13 + $0x200] sm:$0xff]
    %v3755 = vld [vmem:[#allocation13 + $0x208] sm:$0xff]
    %v3756 = vld [vmem:[#allocation13 + $0x210] sm:$0xff]
    %v3757 = vld [vmem:[#allocation13 + $0x218] sm:$0xff]
    %v3758 = vld [vmem:[#allocation13 + $0x220] sm:$0xff]
    %v3759 = vld [vmem:[#allocation13 + $0x228] sm:$0xff]
    %v3760 = vld [vmem:[#allocation13 + $0x230] sm:$0xff]
    %v3761 = vld [vmem:[#allocation13 + $0x238] sm:$0xff]
    %v3762 = vld [vmem:[#allocation13 + $0x240] sm:$0xff]
    %v3763 = vld [vmem:[#allocation13 + $0x248] sm:$0xff]
    %v3764 = vld [vmem:[#allocation13 + $0x250] sm:$0xff]
    %v3765 = vld [vmem:[#allocation13 + $0x258] sm:$0xff]
    %v3766 = vld [vmem:[#allocation13 + $0x260] sm:$0xff]
    %v3767 = vld [vmem:[#allocation13 + $0x268] sm:$0xff]
    %v3768 = vld [vmem:[#allocation13 + $0x270] sm:$0xff]
    %v3769 = vld [vmem:[#allocation13 + $0x278] sm:$0xff]
    %v3770 = vld [vmem:[#allocation13 + $0x280] sm:$0xff]
    %v3771 = vld [vmem:[#allocation13 + $0x288] sm:$0xff]
    %v3772 = vld [vmem:[#allocation13 + $0x290] sm:$0xff]
    %v3773 = vld [vmem:[#allocation13 + $0x298] sm:$0xff]
    %v3774 = vld [vmem:[#allocation13 + $0x2a0] sm:$0xff]
    %v3775 = vld [vmem:[#allocation13 + $0x2a8] sm:$0xff]
    %v3776 = vld [vmem:[#allocation13 + $0x2b0] sm:$0xff]
    %v3777 = vld [vmem:[#allocation13 + $0x2b8] sm:$0xff]
    %v3778 = vld [vmem:[#allocation13 + $0x2c0] sm:$0xff]
    %v3779 = vld [vmem:[#allocation13 + $0x2c8] sm:$0xff]
    %v3780 = vld [vmem:[#allocation13 + $0x2d0] sm:$0xff]
    %v3781 = vld [vmem:[#allocation13 + $0x2d8] sm:$0xff]
    %v3782 = vld [vmem:[#allocation13 + $0x2e0] sm:$0xff]
    %v3783 = vld [vmem:[#allocation13 + $0x2e8] sm:$0xff]
    %v3784 = vld [vmem:[#allocation13 + $0x2f0] sm:$0xff]
    %v3785 = vld [vmem:[#allocation13 + $0x2f8] sm:$0xff]
    %v3786 = vld [vmem:[#allocation13 + $0x300] sm:$0xff]
    %v3787 = vld [vmem:[#allocation13 + $0x308] sm:$0xff]
    %v3788 = vld [vmem:[#allocation13 + $0x310] sm:$0xff]
    %v3789 = vld [vmem:[#allocation13 + $0x318] sm:$0xff]
    %v3790 = vld [vmem:[#allocation13 + $0x320] sm:$0xff]
    %v3791 = vld [vmem:[#allocation13 + $0x328] sm:$0xff]
    %v3792 = vld [vmem:[#allocation13 + $0x330] sm:$0xff]
    %v3793 = vld [vmem:[#allocation13 + $0x338] sm:$0xff]
    %v3794 = vld [vmem:[#allocation13 + $0x340] sm:$0xff]
    %v3795 = vld [vmem:[#allocation13 + $0x348] sm:$0xff]
    %v3796 = vld [vmem:[#allocation13 + $0x350] sm:$0xff]
    %v3797 = vld [vmem:[#allocation13 + $0x358] sm:$0xff]
    %v3798 = vld [vmem:[#allocation13 + $0x360] sm:$0xff]
    %v3799 = vld [vmem:[#allocation13 + $0x368] sm:$0xff]
    %v3800 = vld [vmem:[#allocation13 + $0x370] sm:$0xff]
    %v3801 = vld [vmem:[#allocation13 + $0x378] sm:$0xff]
    %v3802 = vld [vmem:[#allocation13 + $0x380] sm:$0xff]
    %v3803 = vld [vmem:[#allocation13 + $0x388] sm:$0xff]
    %v3804 = vld [vmem:[#allocation13 + $0x390] sm:$0xff]
    %v3805 = vld [vmem:[#allocation13 + $0x398] sm:$0xff]
    %v3806 = vld [vmem:[#allocation13 + $0x3a0] sm:$0xff]
    %v3807 = vld [vmem:[#allocation13 + $0x3a8] sm:$0xff]
    %v3808 = vld [vmem:[#allocation13 + $0x3b0] sm:$0xff]
    %v3809 = vld [vmem:[#allocation13 + $0x3b8] sm:$0xff]
    %v3810 = vld [vmem:[#allocation13 + $0x3c0] sm:$0xff]
    %v3811 = vld [vmem:[#allocation13 + $0x3c8] sm:$0xff]
    %v3812 = vld [vmem:[#allocation13 + $0x3d0] sm:$0xff]
    %v3813 = vld [vmem:[#allocation13 + $0x3d8] sm:$0xff]
    %v3814 = vld [vmem:[#allocation13 + $0x3e0] sm:$0xff]
    %v3815 = vld [vmem:[#allocation13 + $0x3e8] sm:$0xff]
    %v3816 = vld [vmem:[#allocation13 + $0x3f0] sm:$0xff]
    %v3817 = vld [vmem:[#allocation13 + $0x3f8] sm:$0xff]
    %v3818 = vld [vmem:[#allocation13 + $0x400] sm:$0xff]
    %v3819 = vld [vmem:[#allocation13 + $0x408] sm:$0xff]
    %v3820 = vld [vmem:[#allocation13 + $0x410] sm:$0xff]
    %v3821 = vld [vmem:[#allocation13 + $0x418] sm:$0xff]
    %v3822 = vld [vmem:[#allocation13 + $0x420] sm:$0xff]
    %v3823 = vld [vmem:[#allocation13 + $0x428] sm:$0xff]
    %v3824 = vld [vmem:[#allocation13 + $0x430] sm:$0xff]
    %v3825 = vld [vmem:[#allocation13 + $0x438] sm:$0xff]
    %v3826 = vld [vmem:[#allocation13 + $0x440] sm:$0xff]
    %v3827 = vld [vmem:[#allocation13 + $0x448] sm:$0xff]
    %v3828 = vld [vmem:[#allocation13 + $0x450] sm:$0xff]
    %v3829 = vld [vmem:[#allocation13 + $0x458] sm:$0xff]
    %v3830 = vld [vmem:[#allocation13 + $0x460] sm:$0xff]
    %v3831 = vld [vmem:[#allocation13 + $0x468] sm:$0xff]
    %v3832 = vld [vmem:[#allocation13 + $0x470] sm:$0xff]
    %v3833 = vld [vmem:[#allocation13 + $0x478] sm:$0xff]
    %v3834 = vld [vmem:[#allocation13 + $0x480] sm:$0xff]
    %v3835 = vld [vmem:[#allocation13 + $0x488] sm:$0xff]
    %v3836 = vld [vmem:[#allocation13 + $0x490] sm:$0xff]
    %v3837 = vld [vmem:[#allocation13 + $0x498] sm:$0xff]
    %v3838 = vld [vmem:[#allocation13 + $0x4a0] sm:$0xff]
    %v3839 = vld [vmem:[#allocation13 + $0x4a8] sm:$0xff]
    %v3840 = vld [vmem:[#allocation13 + $0x4b0] sm:$0xff]
    %v3841 = vld [vmem:[#allocation13 + $0x4b8] sm:$0xff]
    %v3842 = vld [vmem:[#allocation13 + $0x4c0] sm:$0xff]
    %v3843 = vld [vmem:[#allocation13 + $0x4c8] sm:$0xff]
    %v3844 = vld [vmem:[#allocation13 + $0x4d0] sm:$0xff]
    %v3845 = vld [vmem:[#allocation13 + $0x4d8] sm:$0xff]
    %v3846 = vld [vmem:[#allocation13 + $0x4e0] sm:$0xff]
    %v3847 = vld [vmem:[#allocation13 + $0x4e8] sm:$0xff]
    %v3848 = vld [vmem:[#allocation13 + $0x4f0] sm:$0xff]
    %v3849 = vld [vmem:[#allocation13 + $0x4f8] sm:$0xff]
    %v3850 = vld [vmem:[#allocation13 + $0x500] sm:$0xff]
    %v3851 = vld [vmem:[#allocation13 + $0x508] sm:$0xff]
    %v3852 = vld [vmem:[#allocation13 + $0x510] sm:$0xff]
    %v3853 = vld [vmem:[#allocation13 + $0x518] sm:$0xff]
    %v3854 = vld [vmem:[#allocation13 + $0x520] sm:$0xff]
    %v3855 = vld [vmem:[#allocation13 + $0x528] sm:$0xff]
    %v3856 = vld [vmem:[#allocation13 + $0x530] sm:$0xff]
    %v3857 = vld [vmem:[#allocation13 + $0x538] sm:$0xff]
    %v3858 = vld [vmem:[#allocation13 + $0x540] sm:$0xff]
    %v3859 = vld [vmem:[#allocation13 + $0x548] sm:$0xff]
    %v3860 = vld [vmem:[#allocation13 + $0x550] sm:$0xff]
    %v3861 = vld [vmem:[#allocation13 + $0x558] sm:$0xff]
    %v3862 = vld [vmem:[#allocation13 + $0x560] sm:$0xff]
    %v3863 = vld [vmem:[#allocation13 + $0x568] sm:$0xff]
    %v3864 = vld [vmem:[#allocation13 + $0x570] sm:$0xff]
    %v3865 = vld [vmem:[#allocation13 + $0x578] sm:$0xff]
    %v3866 = vld [vmem:[#allocation13 + $0x580] sm:$0xff]
    %v3867 = vld [vmem:[#allocation13 + $0x588] sm:$0xff]
    %v3868 = vld [vmem:[#allocation13 + $0x590] sm:$0xff]
    %v3869 = vld [vmem:[#allocation13 + $0x598] sm:$0xff]
    %v3870 = vld [vmem:[#allocation13 + $0x5a0] sm:$0xff]
    %v3871 = vld [vmem:[#allocation13 + $0x5a8] sm:$0xff]
    %v3872 = vld [vmem:[#allocation13 + $0x5b0] sm:$0xff]
    %v3873 = vld [vmem:[#allocation13 + $0x5b8] sm:$0xff]
    %v3874 = vld [vmem:[#allocation13 + $0x5c0] sm:$0xff]
    %v3875 = vld [vmem:[#allocation13 + $0x5c8] sm:$0xff]
    %v3876 = vld [vmem:[#allocation13 + $0x5d0] sm:$0xff]
    %v3877 = vld [vmem:[#allocation13 + $0x5d8] sm:$0xff]
    %v3878 = vld [vmem:[#allocation13 + $0x5e0] sm:$0xff]
    %v3879 = vld [vmem:[#allocation13 + $0x5e8] sm:$0xff]
    %v3880 = vld [vmem:[#allocation13 + $0x5f0] sm:$0xff]
    %v3881 = vld [vmem:[#allocation13 + $0x5f8] sm:$0xff]
    %3882 = vmatprep.subr.mxu0 %v3721
    %3883 = vmatpush1.msra.mxu0 %v3720
    %3884 = vmatprep.subr.mxu0 %v3719
    %3885 = vmatpush1.msra.mxu0 %v3718
    %3886 = vmatprep.subr.mxu0 %v3717
    %3887 = vmatpush1.msra.mxu0 %v3716
    %3888 = vmatprep.subr.mxu0 %v3715
    %3889 = vmatpush1.msra.mxu0 %v3714
    %3890 = vmatprep.subr.mxu0 %v3713
    %3891 = vmatpush1.msra.mxu0 %v3712
    %3892 = vmatprep.subr.mxu0 %v3711
    %3893 = vmatpush1.msra.mxu0 %v3710
    %3894 = vmatprep.subr.mxu0 %v3709
    %3895 = vmatpush1.msra.mxu0 %v3708
    %3896 = vmatprep.subr.mxu0 %v3707
    %3897 = vmatpush1.msra.mxu0 %v3706
    %3898 = vmatprep.subr.mxu0 %v3705
    %3899 = vmatpush1.msra.mxu0 %v3704
    %3900 = vmatprep.subr.mxu0 %v3703
    %3901 = vmatpush1.msra.mxu0 %v3702
    %3902 = vmatprep.subr.mxu0 %v3701
    %3903 = vmatpush1.msra.mxu0 %v3700
    %3904 = vmatprep.subr.mxu0 %v3699
    %3905 = vmatpush1.msra.mxu0 %v3698
    %3906 = vmatprep.subr.mxu0 %v3697
    %3907 = vmatpush1.msra.mxu0 %v3696
    %3908 = vmatprep.subr.mxu0 %v3695
    %3909 = vmatpush1.msra.mxu0 %v3694
    %3910 = vmatprep.subr.mxu0 %v3693
    %3911 = vmatpush1.msra.mxu0 %v3692
    %3912 = vmatprep.subr.mxu0 %v3691
    %3913 = vmatpush1.msra.mxu0 %v3690
    %3914 = vmatprep.subr.mxu0 %v3753
    %3915 = vmatpush2.msra.mxu0 %v3752
    %3916 = vmatprep.subr.mxu0 %v3751
    %3917 = vmatpush2.msra.mxu0 %v3750
    %3918 = vmatprep.subr.mxu0 %v3749
    %3919 = vmatpush2.msra.mxu0 %v3748
    %3920 = vmatprep.subr.mxu0 %v3747
    %3921 = vmatpush2.msra.mxu0 %v3746
    %3922 = vmatprep.subr.mxu0 %v3745
    %3923 = vmatpush2.msra.mxu0 %v3744
    %3924 = vmatprep.subr.mxu0 %v3743
    %3925 = vmatpush2.msra.mxu0 %v3742
    %3926 = vmatprep.subr.mxu0 %v3741
    %3927 = vmatpush2.msra.mxu0 %v3740
    %3928 = vmatprep.subr.mxu0 %v3739
    %3929 = vmatpush2.msra.mxu0 %v3738
    %3930 = vmatprep.subr.mxu0 %v3737
    %3931 = vmatpush2.msra.mxu0 %v3736
    %3932 = vmatprep.subr.mxu0 %v3735
    %3933 = vmatpush2.msra.mxu0 %v3734
    %3934 = vmatprep.subr.mxu0 %v3733
    %3935 = vmatpush2.msra.mxu0 %v3732
    %3936 = vmatprep.subr.mxu0 %v3731
    %3937 = vmatpush2.msra.mxu0 %v3730
    %3938 = vmatprep.subr.mxu0 %v3729
    %3939 = vmatpush2.msra.mxu0 %v3728
    %3940 = vmatprep.subr.mxu0 %v3727
    %3941 = vmatpush2.msra.mxu0 %v3726
    %3942 = vmatprep.subr.mxu0 %v3725
    %3943 = vmatpush2.msra.mxu0 %v3724
    %3944 = vmatprep.subr.mxu0 %v3723
    %3945 = vmatpush2.msra.mxu0 %v3722
    %3946 = vmatprep.mubr.f32.mxu0 %v2735
    %3947 = vmatmul.mubr.f32.gmra.mxu0 %v2734
    %v3948 = vpop.f32.mrf.mxu0
    %v3949 = vadd.f32 0.0, %v3948
    %v3950 = vpop.f32.mrf.mxu0
    %v3951 = vadd.f32 0.0, %v3950
    %3952 = vdwg.mxu0
    %3953 = vmatprep.subr.mxu0 %v3785
    %3954 = vmatpush1.msra.mxu0 %v3784
    %3955 = vmatprep.subr.mxu0 %v3783
    %3956 = vmatpush1.msra.mxu0 %v3782
    %3957 = vmatprep.subr.mxu0 %v3781
    %3958 = vmatpush1.msra.mxu0 %v3780
    %3959 = vmatprep.subr.mxu0 %v3779
    %3960 = vmatpush1.msra.mxu0 %v3778
    %3961 = vmatprep.subr.mxu0 %v3777
    %3962 = vmatpush1.msra.mxu0 %v3776
    %3963 = vmatprep.subr.mxu0 %v3775
    %3964 = vmatpush1.msra.mxu0 %v3774
    %3965 = vmatprep.subr.mxu0 %v3773
    %3966 = vmatpush1.msra.mxu0 %v3772
    %3967 = vmatprep.subr.mxu0 %v3771
    %3968 = vmatpush1.msra.mxu0 %v3770
    %3969 = vmatprep.subr.mxu0 %v3769
    %3970 = vmatpush1.msra.mxu0 %v3768
    %3971 = vmatprep.subr.mxu0 %v3767
    %3972 = vmatpush1.msra.mxu0 %v3766
    %3973 = vmatprep.subr.mxu0 %v3765
    %3974 = vmatpush1.msra.mxu0 %v3764
    %3975 = vmatprep.subr.mxu0 %v3763
    %3976 = vmatpush1.msra.mxu0 %v3762
    %3977 = vmatprep.subr.mxu0 %v3761
    %3978 = vmatpush1.msra.mxu0 %v3760
    %3979 = vmatprep.subr.mxu0 %v3759
    %3980 = vmatpush1.msra.mxu0 %v3758
    %3981 = vmatprep.subr.mxu0 %v3757
    %3982 = vmatpush1.msra.mxu0 %v3756
    %3983 = vmatprep.subr.mxu0 %v3755
    %3984 = vmatpush1.msra.mxu0 %v3754
    %3985 = vmatprep.subr.mxu0 %v3817
    %3986 = vmatpush2.msra.mxu0 %v3816
    %3987 = vmatprep.subr.mxu0 %v3815
    %3988 = vmatpush2.msra.mxu0 %v3814
    %3989 = vmatprep.subr.mxu0 %v3813
    %3990 = vmatpush2.msra.mxu0 %v3812
    %3991 = vmatprep.subr.mxu0 %v3811
    %3992 = vmatpush2.msra.mxu0 %v3810
    %3993 = vmatprep.subr.mxu0 %v3809
    %3994 = vmatpush2.msra.mxu0 %v3808
    %3995 = vmatprep.subr.mxu0 %v3807
    %3996 = vmatpush2.msra.mxu0 %v3806
    %3997 = vmatprep.subr.mxu0 %v3805
    %3998 = vmatpush2.msra.mxu0 %v3804
    %3999 = vmatprep.subr.mxu0 %v3803
    %4000 = vmatpush2.msra.mxu0 %v3802
    %4001 = vmatprep.subr.mxu0 %v3801
    %4002 = vmatpush2.msra.mxu0 %v3800
    %4003 = vmatprep.subr.mxu0 %v3799
    %4004 = vmatpush2.msra.mxu0 %v3798
    %4005 = vmatprep.subr.mxu0 %v3797
    %4006 = vmatpush2.msra.mxu0 %v3796
    %4007 = vmatprep.subr.mxu0 %v3795
    %4008 = vmatpush2.msra.mxu0 %v3794
    %4009 = vmatprep.subr.mxu0 %v3793
    %4010 = vmatpush2.msra.mxu0 %v3792
    %4011 = vmatprep.subr.mxu0 %v3791
    %4012 = vmatpush2.msra.mxu0 %v3790
    %4013 = vmatprep.subr.mxu0 %v3789
    %4014 = vmatpush2.msra.mxu0 %v3788
    %4015 = vmatprep.subr.mxu0 %v3787
    %4016 = vmatpush2.msra.mxu0 %v3786
    %4017 = vmatprep.mubr.f32.mxu0 %v2737
    %4018 = vmatmul.mubr.f32.gmra.mxu0 %v2736
    %v4019 = vpop.f32.mrf.mxu0
    %v4020 = vadd.f32 %v3949, %v4019
    %v4021 = vpop.f32.mrf.mxu0
    %v4022 = vadd.f32 %v3951, %v4021
    %4023 = vdwg.mxu0
    %4024 = vmatprep.subr.mxu0 %v3849
    %4025 = vmatpush1.msra.mxu0 %v3848
    %4026 = vmatprep.subr.mxu0 %v3847
    %4027 = vmatpush1.msra.mxu0 %v3846
    %4028 = vmatprep.subr.mxu0 %v3845
    %4029 = vmatpush1.msra.mxu0 %v3844
    %4030 = vmatprep.subr.mxu0 %v3843
    %4031 = vmatpush1.msra.mxu0 %v3842
    %4032 = vmatprep.subr.mxu0 %v3841
    %4033 = vmatpush1.msra.mxu0 %v3840
    %4034 = vmatprep.subr.mxu0 %v3839
    %4035 = vmatpush1.msra.mxu0 %v3838
    %4036 = vmatprep.subr.mxu0 %v3837
    %4037 = vmatpush1.msra.mxu0 %v3836
    %4038 = vmatprep.subr.mxu0 %v3835
    %4039 = vmatpush1.msra.mxu0 %v3834
    %4040 = vmatprep.subr.mxu0 %v3833
    %4041 = vmatpush1.msra.mxu0 %v3832
    %4042 = vmatprep.subr.mxu0 %v3831
    %4043 = vmatpush1.msra.mxu0 %v3830
    %4044 = vmatprep.subr.mxu0 %v3829
    %4045 = vmatpush1.msra.mxu0 %v3828
    %4046 = vmatprep.subr.mxu0 %v3827
    %4047 = vmatpush1.msra.mxu0 %v3826
    %4048 = vmatprep.subr.mxu0 %v3825
    %4049 = vmatpush1.msra.mxu0 %v3824
    %4050 = vmatprep.subr.mxu0 %v3823
    %4051 = vmatpush1.msra.mxu0 %v3822
    %4052 = vmatprep.subr.mxu0 %v3821
    %4053 = vmatpush1.msra.mxu0 %v3820
    %4054 = vmatprep.subr.mxu0 %v3819
    %4055 = vmatpush1.msra.mxu0 %v3818
    %4056 = vmatprep.subr.mxu0 %v3881
    %4057 = vmatpush2.msra.mxu0 %v3880
    %4058 = vmatprep.subr.mxu0 %v3879
    %4059 = vmatpush2.msra.mxu0 %v3878
    %4060 = vmatprep.subr.mxu0 %v3877
    %4061 = vmatpush2.msra.mxu0 %v3876
    %4062 = vmatprep.subr.mxu0 %v3875
    %4063 = vmatpush2.msra.mxu0 %v3874
    %4064 = vmatprep.subr.mxu0 %v3873
    %4065 = vmatpush2.msra.mxu0 %v3872
    %4066 = vmatprep.subr.mxu0 %v3871
    %4067 = vmatpush2.msra.mxu0 %v3870
    %4068 = vmatprep.subr.mxu0 %v3869
    %4069 = vmatpush2.msra.mxu0 %v3868
    %4070 = vmatprep.subr.mxu0 %v3867
    %4071 = vmatpush2.msra.mxu0 %v3866
    %4072 = vmatprep.subr.mxu0 %v3865
    %4073 = vmatpush2.msra.mxu0 %v3864
    %4074 = vmatprep.subr.mxu0 %v3863
    %4075 = vmatpush2.msra.mxu0 %v3862
    %4076 = vmatprep.subr.mxu0 %v3861
    %4077 = vmatpush2.msra.mxu0 %v3860
    %4078 = vmatprep.subr.mxu0 %v3859
    %4079 = vmatpush2.msra.mxu0 %v3858
    %4080 = vmatprep.subr.mxu0 %v3857
    %4081 = vmatpush2.msra.mxu0 %v3856
    %4082 = vmatprep.subr.mxu0 %v3855
    %4083 = vmatpush2.msra.mxu0 %v3854
    %4084 = vmatprep.subr.mxu0 %v3853
    %4085 = vmatpush2.msra.mxu0 %v3852
    %4086 = vmatprep.subr.mxu0 %v3851
    %4087 = vmatpush2.msra.mxu0 %v3850
    %4088 = vmatprep.mubr.f32.mxu0 %v2739
    %4089 = vmatmul.mubr.f32.gmra.mxu0 %v2738
    %v4090 = vpop.f32.mrf.mxu0
    %v4091 = vadd.f32 %v4020, %v4090
    %v4092 = vpop.f32.mrf.mxu0
    %v4093 = vadd.f32 %v4022, %v4092
    %4094 = vdwg.mxu0
    %v4095 = vld [vmem:[%s67] sm:$0xff]
    %v4097 = vsel %vm1452, %v4095, 0
    %4099 = vmatprep.subr.mxu0 0.0
    %4100 = vmatpush1.msra.mxu0 0.0
    %4101 = vmatprep.subr.mxu0 0.0
    %4102 = vmatpush1.msra.mxu0 0.0
    %4103 = vmatprep.subr.mxu0 0.0
    %4104 = vmatpush1.msra.mxu0 0.0
    %4105 = vmatprep.subr.mxu0 0.0
    %4106 = vmatpush1.msra.mxu0 0.0
    %4107 = vmatprep.subr.mxu0 0.0
    %4108 = vmatpush1.msra.mxu0 0.0
    %4109 = vmatprep.subr.mxu0 0.0
    %4110 = vmatpush1.msra.mxu0 0.0
    %4111 = vmatprep.subr.mxu0 0.0
    %4112 = vmatpush1.msra.mxu0 0.0
    %4113 = vmatprep.subr.mxu0 0.0
    %4114 = vmatpush1.msra.mxu0 0.0
    %4115 = vmatprep.subr.mxu0 0.0
    %4116 = vmatpush1.msra.mxu0 0.0
    %4117 = vmatprep.subr.mxu0 0.0
    %4118 = vmatpush1.msra.mxu0 0.0
    %4119 = vmatprep.subr.mxu0 0.0
    %4120 = vmatpush1.msra.mxu0 0.0
    %4121 = vmatprep.subr.mxu0 0.0
    %4122 = vmatpush1.msra.mxu0 0.0
    %4123 = vmatprep.subr.mxu0 0.0
    %4124 = vmatpush1.msra.mxu0 0.0
    %4125 = vmatprep.subr.mxu0 0.0
    %4126 = vmatpush1.msra.mxu0 0.0
    %4127 = vmatprep.subr.mxu0 0.0
    %4128 = vmatpush1.msra.mxu0 0.0
    %4129 = vmatprep.subr.mxu0 %v4093
    %4130 = vmatpush1.msra.mxu0 %v4091
    %4131 = vmatprep.subr.mxu0 0.0
    %4132 = vmatpush2.msra.mxu0 0.0
    %4133 = vmatprep.subr.mxu0 0.0
    %4134 = vmatpush2.msra.mxu0 0.0
    %4135 = vmatprep.subr.mxu0 0.0
    %4136 = vmatpush2.msra.mxu0 0.0
    %4137 = vmatprep.subr.mxu0 0.0
    %4138 = vmatpush2.msra.mxu0 0.0
    %4139 = vmatprep.subr.mxu0 0.0
    %4140 = vmatpush2.msra.mxu0 0.0
    %4141 = vmatprep.subr.mxu0 0.0
    %4142 = vmatpush2.msra.mxu0 0.0
    %4143 = vmatprep.subr.mxu0 0.0
    %4144 = vmatpush2.msra.mxu0 0.0
    %4145 = vmatprep.subr.mxu0 0.0
    %4146 = vmatpush2.msra.mxu0 0.0
    %4147 = vmatprep.subr.mxu0 0.0
    %4148 = vmatpush2.msra.mxu0 0.0
    %4149 = vmatprep.subr.mxu0 0.0
    %4150 = vmatpush2.msra.mxu0 0.0
    %4151 = vmatprep.subr.mxu0 0.0
    %4152 = vmatpush2.msra.mxu0 0.0
    %4153 = vmatprep.subr.mxu0 0.0
    %4154 = vmatpush2.msra.mxu0 0.0
    %4155 = vmatprep.subr.mxu0 0.0
    %4156 = vmatpush2.msra.mxu0 0.0
    %4157 = vmatprep.subr.mxu0 0.0
    %4158 = vmatpush2.msra.mxu0 0.0
    %4159 = vmatprep.subr.mxu0 0.0
    %4160 = vmatpush2.msra.mxu0 0.0
    %4161 = vmatprep.subr.mxu0 0.0
    %4162 = vmatpush2.msra.mxu0 0.0
    %4163 = vmatprep.mubr.f32.mxu0 0.0
    %4164 = vmatmul.mubr.f32.gmra.mxu0 %v4097
    %v4165 = vpop.f32.mrf.mxu0
    %v4166 = vadd.f32 0.0, %v4165
    %v4167 = vpop.f32.mrf.mxu0
    %v4168 = vadd.f32 0.0, %v4167
    %4169 = vdwg.mxu0
    %v4170 = vadd.f32 %v3688, %v4166
    %v4171 = vadd.f32 %v3689, %v4168
    %v4172 = vmax.f32 %v4170, 0.0
    %v4173 = vmax.f32 %v4171, 0.0
    %4174 = vrot.lane.b32.xlu0 %v4172, 11
    %v4175 = vpop.permute.xlu0 %4174
    %4176 = vrot.lane.b32.xlu0 %v4173, 11
    %v4177 = vpop.permute.xlu0 %4176
    %v4178 = vsel %vm3547, %v4175, %v4177
    %v4179 = vsel %vm3547, %v4177, %v4175
    %4180 = vrot.lane.b32.xlu0 %v4172, 10
    %v4181 = vpop.permute.xlu0 %4180
    %4182 = vrot.lane.b32.xlu0 %v4173, 10
    %v4183 = vpop.permute.xlu0 %4182
    %v4184 = vsel %vm3554, %v4181, %v4183
    %v4185 = vsel %vm3554, %v4183, %v4181
    %4186 = vrot.lane.b32.xlu0 %v4172, 9
    %v4187 = vpop.permute.xlu0 %4186
    %4188 = vrot.lane.b32.xlu0 %v4173, 9
    %v4189 = vpop.permute.xlu0 %4188
    %v4190 = vsel %vm3561, %v4187, %v4189
    %v4191 = vsel %vm3561, %v4189, %v4187
    %4192 = vrot.lane.b32.xlu0 %v4172, 1
    %v4193 = vpop.permute.xlu0 %4192
    %4194 = vrot.lane.b32.xlu0 %v4173, 1
    %v4195 = vpop.permute.xlu0 %4194
    %v4196 = vsel %vm692, %v4193, %v4195
    %v4197 = vsel %vm692, %v4195, %v4193
    %4198 = vrot.lane.b32.xlu0 %v4172, 127
    %v4199 = vpop.permute.xlu0 %4198
    %4200 = vrot.lane.b32.xlu0 %v4173, 127
    %v4201 = vpop.permute.xlu0 %4200
    %v4202 = vsel %vm711, %v4199, %v4201
    %v4203 = vsel %vm711, %v4201, %v4199
    %4204 = vrot.lane.b32.xlu0 %v4172, 119
    %v4205 = vpop.permute.xlu0 %4204
    %4206 = vrot.lane.b32.xlu0 %v4173, 119
    %v4207 = vpop.permute.xlu0 %4206
    %v4208 = vsel %vm3580, %v4205, %v4207
    %v4209 = vsel %vm3580, %v4207, %v4205
    %4210 = vrot.lane.b32.xlu0 %v4172, 118
    %v4211 = vpop.permute.xlu0 %4210
    %4212 = vrot.lane.b32.xlu0 %v4173, 118
    %v4213 = vpop.permute.xlu0 %4212
    %v4214 = vsel %vm3587, %v4211, %v4213
    %v4215 = vsel %vm3587, %v4213, %v4211
    %4216 = vrot.lane.b32.xlu0 %v4172, 117
    %v4217 = vpop.permute.xlu0 %4216
    %4218 = vrot.lane.b32.xlu0 %v4173, 117
    %v4219 = vpop.permute.xlu0 %4218
    %v4220 = vsel %vm3594, %v4217, %v4219
    %v4221 = vsel %vm3594, %v4219, %v4217
    %v4222 = vld [vmem:[%s69] sm:$0xff]
    %v4224 = vsel %vm776, %v4222, 0
    %4226 = vmatprep.subr.mxu0 0.0
    %4227 = vmatpush1.msra.mxu0 0.0
    %4228 = vmatprep.subr.mxu0 0.0
    %4229 = vmatpush1.msra.mxu0 0.0
    %4230 = vmatprep.subr.mxu0 0.0
    %4231 = vmatpush1.msra.mxu0 0.0
    %4232 = vmatprep.subr.mxu0 0.0
    %4233 = vmatpush1.msra.mxu0 0.0
    %4234 = vmatprep.subr.mxu0 0.0
    %4235 = vmatpush1.msra.mxu0 0.0
    %4236 = vmatprep.subr.mxu0 0.0
    %4237 = vmatpush1.msra.mxu0 0.0
    %4238 = vmatprep.subr.mxu0 0.0
    %4239 = vmatpush1.msra.mxu0 0.0
    %4240 = vmatprep.subr.mxu0 %v4221
    %4241 = vmatpush1.msra.mxu0 %v4220
    %4242 = vmatprep.subr.mxu0 %v4215
    %4243 = vmatpush1.msra.mxu0 %v4214
    %4244 = vmatprep.subr.mxu0 %v4209
    %4245 = vmatpush1.msra.mxu0 %v4208
    %4246 = vmatprep.subr.mxu0 %v4203
    %4247 = vmatpush1.msra.mxu0 %v4202
    %4248 = vmatprep.subr.mxu0 %v4173
    %4249 = vmatpush1.msra.mxu0 %v4172
    %4250 = vmatprep.subr.mxu0 %v4196
    %4251 = vmatpush1.msra.mxu0 %v4197
    %4252 = vmatprep.subr.mxu0 %v4190
    %4253 = vmatpush1.msra.mxu0 %v4191
    %4254 = vmatprep.subr.mxu0 %v4184
    %4255 = vmatpush1.msra.mxu0 %v4185
    %4256 = vmatprep.subr.mxu0 %v4178
    %4257 = vmatpush1.msra.mxu0 %v4179
    %4258 = vmatprep.subr.mxu0 0.0
    %4259 = vmatpush2.msra.mxu0 0.0
    %4260 = vmatprep.subr.mxu0 0.0
    %4261 = vmatpush2.msra.mxu0 0.0
    %4262 = vmatprep.subr.mxu0 0.0
    %4263 = vmatpush2.msra.mxu0 0.0
    %4264 = vmatprep.subr.mxu0 0.0
    %4265 = vmatpush2.msra.mxu0 0.0
    %4266 = vmatprep.subr.mxu0 0.0
    %4267 = vmatpush2.msra.mxu0 0.0
    %4268 = vmatprep.subr.mxu0 0.0
    %4269 = vmatpush2.msra.mxu0 0.0
    %4270 = vmatprep.subr.mxu0 0.0
    %4271 = vmatpush2.msra.mxu0 0.0
    %4272 = vmatprep.subr.mxu0 0.0
    %4273 = vmatpush2.msra.mxu0 0.0
    %4274 = vmatprep.subr.mxu0 0.0
    %4275 = vmatpush2.msra.mxu0 0.0
    %4276 = vmatprep.subr.mxu0 0.0
    %4277 = vmatpush2.msra.mxu0 0.0
    %4278 = vmatprep.subr.mxu0 0.0
    %4279 = vmatpush2.msra.mxu0 0.0
    %4280 = vmatprep.subr.mxu0 0.0
    %4281 = vmatpush2.msra.mxu0 0.0
    %4282 = vmatprep.subr.mxu0 0.0
    %4283 = vmatpush2.msra.mxu0 0.0
    %4284 = vmatprep.subr.mxu0 0.0
    %4285 = vmatpush2.msra.mxu0 0.0
    %4286 = vmatprep.subr.mxu0 0.0
    %4287 = vmatpush2.msra.mxu0 0.0
    %4288 = vmatprep.subr.mxu0 0.0
    %4289 = vmatpush2.msra.mxu0 0.0
    %4290 = vmatprep.mubr.f32.mxu0 0.0
    %4291 = vmatmul.mubr.f32.gmra.mxu0 %v4224
    %v4292 = vpop.f32.mrf.mxu0
    %v4293 = vadd.f32 0.0, %v4292
    %v4294 = vpop.f32.mrf.mxu0
    %v4295 = vadd.f32 0.0, %v4294
    %4296 = vdwg.mxu0
    %v4297 = vld [vmem:[%s71] sm:$0xff]
    %4299 = vset.pattern.permute.xlu0 0
    %4300 = vperm.xlu0 %4299, %v4297
    %v4301 = vpop.permute.xlu0 %4300
    %v4303 = vmul.f32 %v4293, %v4301
    %v4304 = vmul.f32 %v4295, %v4301
    %v4305 = vld [vmem:[%s73] sm:$0xff]
    %4307 = vset.pattern.permute.xlu0 0
    %4308 = vperm.xlu0 %4307, %v4305
    %v4309 = vpop.permute.xlu0 %4308
    %v4311 = vadd.f32 %v4303, %v4309
    %v4312 = vadd.f32 %v4304, %v4309
    %v4313 = vmul.f32 %v4311, %v3532
    %v4314 = vmul.f32 %v4312, %v3536
    %v4315 = vld [vmem:[%s75] sm:$0xff]
    %v4317 = vsel %vm1452, %v4315, 0
    %4319 = vmatprep.subr.mxu0 0.0
    %4320 = vmatpush1.msra.mxu0 0.0
    %4321 = vmatprep.subr.mxu0 0.0
    %4322 = vmatpush1.msra.mxu0 0.0
    %4323 = vmatprep.subr.mxu0 0.0
    %4324 = vmatpush1.msra.mxu0 0.0
    %4325 = vmatprep.subr.mxu0 0.0
    %4326 = vmatpush1.msra.mxu0 0.0
    %4327 = vmatprep.subr.mxu0 0.0
    %4328 = vmatpush1.msra.mxu0 0.0
    %4329 = vmatprep.subr.mxu0 0.0
    %4330 = vmatpush1.msra.mxu0 0.0
    %4331 = vmatprep.subr.mxu0 0.0
    %4332 = vmatpush1.msra.mxu0 0.0
    %4333 = vmatprep.subr.mxu0 0.0
    %4334 = vmatpush1.msra.mxu0 0.0
    %4335 = vmatprep.subr.mxu0 0.0
    %4336 = vmatpush1.msra.mxu0 0.0
    %4337 = vmatprep.subr.mxu0 0.0
    %4338 = vmatpush1.msra.mxu0 0.0
    %4339 = vmatprep.subr.mxu0 0.0
    %4340 = vmatpush1.msra.mxu0 0.0
    %4341 = vmatprep.subr.mxu0 0.0
    %4342 = vmatpush1.msra.mxu0 0.0
    %4343 = vmatprep.subr.mxu0 0.0
    %4344 = vmatpush1.msra.mxu0 0.0
    %4345 = vmatprep.subr.mxu0 0.0
    %4346 = vmatpush1.msra.mxu0 0.0
    %4347 = vmatprep.subr.mxu0 0.0
    %4348 = vmatpush1.msra.mxu0 0.0
    %4349 = vmatprep.subr.mxu0 %v4173
    %4350 = vmatpush1.msra.mxu0 %v4172
    %4351 = vmatprep.subr.mxu0 0.0
    %4352 = vmatpush2.msra.mxu0 0.0
    %4353 = vmatprep.subr.mxu0 0.0
    %4354 = vmatpush2.msra.mxu0 0.0
    %4355 = vmatprep.subr.mxu0 0.0
    %4356 = vmatpush2.msra.mxu0 0.0
    %4357 = vmatprep.subr.mxu0 0.0
    %4358 = vmatpush2.msra.mxu0 0.0
    %4359 = vmatprep.subr.mxu0 0.0
    %4360 = vmatpush2.msra.mxu0 0.0
    %4361 = vmatprep.subr.mxu0 0.0
    %4362 = vmatpush2.msra.mxu0 0.0
    %4363 = vmatprep.subr.mxu0 0.0
    %4364 = vmatpush2.msra.mxu0 0.0
    %4365 = vmatprep.subr.mxu0 0.0
    %4366 = vmatpush2.msra.mxu0 0.0
    %4367 = vmatprep.subr.mxu0 0.0
    %4368 = vmatpush2.msra.mxu0 0.0
    %4369 = vmatprep.subr.mxu0 0.0
    %4370 = vmatpush2.msra.mxu0 0.0
    %4371 = vmatprep.subr.mxu0 0.0
    %4372 = vmatpush2.msra.mxu0 0.0
    %4373 = vmatprep.subr.mxu0 0.0
    %4374 = vmatpush2.msra.mxu0 0.0
    %4375 = vmatprep.subr.mxu0 0.0
    %4376 = vmatpush2.msra.mxu0 0.0
    %4377 = vmatprep.subr.mxu0 0.0
    %4378 = vmatpush2.msra.mxu0 0.0
    %4379 = vmatprep.subr.mxu0 0.0
    %4380 = vmatpush2.msra.mxu0 0.0
    %4381 = vmatprep.subr.mxu0 0.0
    %4382 = vmatpush2.msra.mxu0 0.0
    %4383 = vmatprep.mubr.f32.mxu0 0.0
    %4384 = vmatmul.mubr.f32.gmra.mxu0 %v4317
    %v4385 = vpop.f32.mrf.mxu0
    %v4386 = vadd.f32 0.0, %v4385
    %v4387 = vpop.f32.mrf.mxu0
    %v4388 = vadd.f32 0.0, %v4387
    %4389 = vdwg.mxu0
    %v4390 = vld [vmem:[%s77] sm:$0xff]
    %4392 = vset.pattern.permute.xlu0 0
    %4393 = vperm.xlu0 %4392, %v4390
    %v4394 = vpop.permute.xlu0 %4393
    %v4396 = vmul.f32 %v4386, %v4394
    %v4397 = vmul.f32 %v4388, %v4394
    %v4398 = vld [vmem:[%s79] sm:$0xff]
    %4400 = vset.pattern.permute.xlu0 0
    %4401 = vperm.xlu0 %4400, %v4398
    %v4402 = vpop.permute.xlu0 %4401
    %v4404 = vadd.f32 %v4396, %v4402
    %v4405 = vadd.f32 %v4397, %v4402
    %v4406 = vmul.f32 %v4404, %v3532
    %v4407 = vmul.f32 %v4405, %v3536
    %v4408 = vmax.f32 %v4313, 0.0
    %v4409 = vmax.f32 %v4314, 0.0
    %4410 = vrot.lane.b32.xlu0 %v4408, 11
    %v4411 = vpop.permute.xlu0 %4410
    %4412 = vrot.lane.b32.xlu0 %v4409, 11
    %v4413 = vpop.permute.xlu0 %4412
    %v4414 = vsel %vm3547, %v4411, %v4413
    %v4415 = vsel %vm3547, %v4413, %v4411
    %4416 = vrot.lane.b32.xlu0 %v4408, 10
    %v4417 = vpop.permute.xlu0 %4416
    %4418 = vrot.lane.b32.xlu0 %v4409, 10
    %v4419 = vpop.permute.xlu0 %4418
    %v4420 = vsel %vm3554, %v4417, %v4419
    %v4421 = vsel %vm3554, %v4419, %v4417
    %4422 = vrot.lane.b32.xlu0 %v4408, 9
    %v4423 = vpop.permute.xlu0 %4422
    %4424 = vrot.lane.b32.xlu0 %v4409, 9
    %v4425 = vpop.permute.xlu0 %4424
    %v4426 = vsel %vm3561, %v4423, %v4425
    %v4427 = vsel %vm3561, %v4425, %v4423
    %4428 = vrot.lane.b32.xlu0 %v4408, 1
    %v4429 = vpop.permute.xlu0 %4428
    %4430 = vrot.lane.b32.xlu0 %v4409, 1
    %v4431 = vpop.permute.xlu0 %4430
    %v4432 = vsel %vm692, %v4429, %v4431
    %v4433 = vsel %vm692, %v4431, %v4429
    %4434 = vrot.lane.b32.xlu0 %v4408, 127
    %v4435 = vpop.permute.xlu0 %4434
    %4436 = vrot.lane.b32.xlu0 %v4409, 127
    %v4437 = vpop.permute.xlu0 %4436
    %v4438 = vsel %vm711, %v4435, %v4437
    %v4439 = vsel %vm711, %v4437, %v4435
    %4440 = vrot.lane.b32.xlu0 %v4408, 119
    %v4441 = vpop.permute.xlu0 %4440
    %4442 = vrot.lane.b32.xlu0 %v4409, 119
    %v4443 = vpop.permute.xlu0 %4442
    %v4444 = vsel %vm3580, %v4441, %v4443
    %v4445 = vsel %vm3580, %v4443, %v4441
    %4446 = vrot.lane.b32.xlu0 %v4408, 118
    %v4447 = vpop.permute.xlu0 %4446
    %4448 = vrot.lane.b32.xlu0 %v4409, 118
    %v4449 = vpop.permute.xlu0 %4448
    %v4450 = vsel %vm3587, %v4447, %v4449
    %v4451 = vsel %vm3587, %v4449, %v4447
    %4452 = vrot.lane.b32.xlu0 %v4408, 117
    %v4453 = vpop.permute.xlu0 %4452
    %4454 = vrot.lane.b32.xlu0 %v4409, 117
    %v4455 = vpop.permute.xlu0 %4454
    %v4456 = vsel %vm3594, %v4453, %v4455
    %v4457 = vsel %vm3594, %v4455, %v4453
    %v4458 = vld [vmem:[%s81] sm:$0xff]
    %v4460 = vsel %vm776, %v4458, 0
    %4462 = vmatprep.subr.mxu0 0.0
    %4463 = vmatpush1.msra.mxu0 0.0
    %4464 = vmatprep.subr.mxu0 0.0
    %4465 = vmatpush1.msra.mxu0 0.0
    %4466 = vmatprep.subr.mxu0 0.0
    %4467 = vmatpush1.msra.mxu0 0.0
    %4468 = vmatprep.subr.mxu0 0.0
    %4469 = vmatpush1.msra.mxu0 0.0
    %4470 = vmatprep.subr.mxu0 0.0
    %4471 = vmatpush1.msra.mxu0 0.0
    %4472 = vmatprep.subr.mxu0 0.0
    %4473 = vmatpush1.msra.mxu0 0.0
    %4474 = vmatprep.subr.mxu0 0.0
    %4475 = vmatpush1.msra.mxu0 0.0
    %4476 = vmatprep.subr.mxu0 %v4457
    %4477 = vmatpush1.msra.mxu0 %v4456
    %4478 = vmatprep.subr.mxu0 %v4451
    %4479 = vmatpush1.msra.mxu0 %v4450
    %4480 = vmatprep.subr.mxu0 %v4445
    %4481 = vmatpush1.msra.mxu0 %v4444
    %4482 = vmatprep.subr.mxu0 %v4439
    %4483 = vmatpush1.msra.mxu0 %v4438
    %4484 = vmatprep.subr.mxu0 %v4409
    %4485 = vmatpush1.msra.mxu0 %v4408
    %4486 = vmatprep.subr.mxu0 %v4432
    %4487 = vmatpush1.msra.mxu0 %v4433
    %4488 = vmatprep.subr.mxu0 %v4426
    %4489 = vmatpush1.msra.mxu0 %v4427
    %4490 = vmatprep.subr.mxu0 %v4420
    %4491 = vmatpush1.msra.mxu0 %v4421
    %4492 = vmatprep.subr.mxu0 %v4414
    %4493 = vmatpush1.msra.mxu0 %v4415
    %4494 = vmatprep.subr.mxu0 0.0
    %4495 = vmatpush2.msra.mxu0 0.0
    %4496 = vmatprep.subr.mxu0 0.0
    %4497 = vmatpush2.msra.mxu0 0.0
    %4498 = vmatprep.subr.mxu0 0.0
    %4499 = vmatpush2.msra.mxu0 0.0
    %4500 = vmatprep.subr.mxu0 0.0
    %4501 = vmatpush2.msra.mxu0 0.0
    %4502 = vmatprep.subr.mxu0 0.0
    %4503 = vmatpush2.msra.mxu0 0.0
    %4504 = vmatprep.subr.mxu0 0.0
    %4505 = vmatpush2.msra.mxu0 0.0
    %4506 = vmatprep.subr.mxu0 0.0
    %4507 = vmatpush2.msra.mxu0 0.0
    %4508 = vmatprep.subr.mxu0 0.0
    %4509 = vmatpush2.msra.mxu0 0.0
    %4510 = vmatprep.subr.mxu0 0.0
    %4511 = vmatpush2.msra.mxu0 0.0
    %4512 = vmatprep.subr.mxu0 0.0
    %4513 = vmatpush2.msra.mxu0 0.0
    %4514 = vmatprep.subr.mxu0 0.0
    %4515 = vmatpush2.msra.mxu0 0.0
    %4516 = vmatprep.subr.mxu0 0.0
    %4517 = vmatpush2.msra.mxu0 0.0
    %4518 = vmatprep.subr.mxu0 0.0
    %4519 = vmatpush2.msra.mxu0 0.0
    %4520 = vmatprep.subr.mxu0 0.0
    %4521 = vmatpush2.msra.mxu0 0.0
    %4522 = vmatprep.subr.mxu0 0.0
    %4523 = vmatpush2.msra.mxu0 0.0
    %4524 = vmatprep.subr.mxu0 0.0
    %4525 = vmatpush2.msra.mxu0 0.0
    %4526 = vmatprep.mubr.f32.mxu0 0.0
    %4527 = vmatmul.mubr.f32.gmra.mxu0 %v4460
    %v4528 = vpop.f32.mrf.mxu0
    %v4529 = vadd.f32 0.0, %v4528
    %v4530 = vpop.f32.mrf.mxu0
    %v4531 = vadd.f32 0.0, %v4530
    %4532 = vdwg.mxu0
    %v4533 = vld [vmem:[%s83] sm:$0xff]
    %4535 = vset.pattern.permute.xlu0 0
    %4536 = vperm.xlu0 %4535, %v4533
    %v4537 = vpop.permute.xlu0 %4536
    %v4539 = vmul.f32 %v4529, %v4537
    %v4540 = vmul.f32 %v4531, %v4537
    %v4541 = vld [vmem:[%s85] sm:$0xff]
    %4543 = vset.pattern.permute.xlu0 0
    %4544 = vperm.xlu0 %4543, %v4541
    %v4545 = vpop.permute.xlu0 %4544
    %v4547 = vadd.f32 %v4539, %v4545
    %v4548 = vadd.f32 %v4540, %v4545
    %v4549 = vmul.f32 %v4547, %v3532
    %v4550 = vmul.f32 %v4548, %v3536
    %v4551 = vadd.f32 %v4406, %v4549
    %v4552 = vadd.f32 %v4407, %v4550
    %4553 = vrot.lane.b32.xlu0 %v4313, 11
    %v4554 = vpop.permute.xlu0 %4553
    %4555 = vrot.lane.b32.xlu0 %v4314, 11
    %v4556 = vpop.permute.xlu0 %4555
    %v4557 = vsel %vm3547, %v4554, %v4556
    %v4558 = vsel %vm3547, %v4556, %v4554
    %v4559 = vadd.f32 %v4313, %v4558
    %v4560 = vadd.f32 %v4314, %v4557
    %4561 = vrot.lane.b32.xlu0 %v4313, 10
    %v4562 = vpop.permute.xlu0 %4561
    %4563 = vrot.lane.b32.xlu0 %v4314, 10
    %v4564 = vpop.permute.xlu0 %4563
    %v4565 = vsel %vm3554, %v4562, %v4564
    %v4566 = vsel %vm3554, %v4564, %v4562
    %v4567 = vadd.f32 %v4559, %v4566
    %v4568 = vadd.f32 %v4560, %v4565
    %4569 = vrot.lane.b32.xlu0 %v4313, 9
    %v4570 = vpop.permute.xlu0 %4569
    %4571 = vrot.lane.b32.xlu0 %v4314, 9
    %v4572 = vpop.permute.xlu0 %4571
    %v4573 = vsel %vm3561, %v4570, %v4572
    %v4574 = vsel %vm3561, %v4572, %v4570
    %v4575 = vadd.f32 %v4567, %v4574
    %v4576 = vadd.f32 %v4568, %v4573
    %4577 = vrot.lane.b32.xlu0 %v4313, 1
    %v4578 = vpop.permute.xlu0 %4577
    %4579 = vrot.lane.b32.xlu0 %v4314, 1
    %v4580 = vpop.permute.xlu0 %4579
    %v4581 = vsel %vm692, %v4578, %v4580
    %v4582 = vsel %vm692, %v4580, %v4578
    %v4583 = vadd.f32 %v4575, %v4582
    %v4584 = vadd.f32 %v4576, %v4581
    %4585 = vrot.lane.b32.xlu0 %v4313, 127
    %v4586 = vpop.permute.xlu0 %4585
    %4587 = vrot.lane.b32.xlu0 %v4314, 127
    %v4588 = vpop.permute.xlu0 %4587
    %v4589 = vsel %vm711, %v4586, %v4588
    %v4590 = vsel %vm711, %v4588, %v4586
    %v4591 = vadd.f32 %v4583, %v4589
    %v4592 = vadd.f32 %v4584, %v4590
    %4593 = vrot.lane.b32.xlu0 %v4313, 119
    %v4594 = vpop.permute.xlu0 %4593
    %4595 = vrot.lane.b32.xlu0 %v4314, 119
    %v4596 = vpop.permute.xlu0 %4595
    %v4597 = vsel %vm3580, %v4594, %v4596
    %v4598 = vsel %vm3580, %v4596, %v4594
    %v4599 = vadd.f32 %v4591, %v4597
    %v4600 = vadd.f32 %v4592, %v4598
    %4601 = vrot.lane.b32.xlu0 %v4313, 118
    %v4602 = vpop.permute.xlu0 %4601
    %4603 = vrot.lane.b32.xlu0 %v4314, 118
    %v4604 = vpop.permute.xlu0 %4603
    %v4605 = vsel %vm3587, %v4602, %v4604
    %v4606 = vsel %vm3587, %v4604, %v4602
    %v4607 = vadd.f32 %v4599, %v4605
    %v4608 = vadd.f32 %v4600, %v4606
    %4609 = vrot.lane.b32.xlu0 %v4313, 117
    %v4610 = vpop.permute.xlu0 %4609
    %4611 = vrot.lane.b32.xlu0 %v4314, 117
    %v4612 = vpop.permute.xlu0 %4611
    %v4613 = vsel %vm3594, %v4610, %v4612
    %v4614 = vsel %vm3594, %v4612, %v4610
    %v4615 = vadd.f32 %v4607, %v4613
    %v4616 = vadd.f32 %v4608, %v4614
    %v4618 = vlaneseq
    %v4619 = vshrl.u32 %v4618, 7
    %v4620 = vsub.s32 0, %v4619
    %v4621 = vrot.slane %v613, %v4620
    %v4622 = vlaneseq
    %v4623 = vshrl.u32 %v4622, 7
    %v4624 = vsub.s32 1, %v4623
    %v4625 = vrot.slane %v613, %v4624
    %v4628 = vmul.f32 %v4615, %v4621
    %v4629 = vmul.f32 %v4616, %v4625
    %v4630 = vadd.f32 %v4170, %v4628
    %v4631 = vadd.f32 %v4171, %v4629
    %v4632 = vmax.f32 %v4551, 0.0
    %v4633 = vmax.f32 %v4552, 0.0
    %4634 = vrot.lane.b32.xlu0 %v4632, 11
    %v4635 = vpop.permute.xlu0 %4634
    %4636 = vrot.lane.b32.xlu0 %v4633, 11
    %v4637 = vpop.permute.xlu0 %4636
    %v4638 = vsel %vm3547, %v4635, %v4637
    %v4639 = vsel %vm3547, %v4637, %v4635
    %4640 = vrot.lane.b32.xlu0 %v4632, 10
    %v4641 = vpop.permute.xlu0 %4640
    %4642 = vrot.lane.b32.xlu0 %v4633, 10
    %v4643 = vpop.permute.xlu0 %4642
    %v4644 = vsel %vm3554, %v4641, %v4643
    %v4645 = vsel %vm3554, %v4643, %v4641
    %4646 = vrot.lane.b32.xlu0 %v4632, 9
    %v4647 = vpop.permute.xlu0 %4646
    %4648 = vrot.lane.b32.xlu0 %v4633, 9
    %v4649 = vpop.permute.xlu0 %4648
    %v4650 = vsel %vm3561, %v4647, %v4649
    %v4651 = vsel %vm3561, %v4649, %v4647
    %4652 = vrot.lane.b32.xlu0 %v4632, 1
    %v4653 = vpop.permute.xlu0 %4652
    %4654 = vrot.lane.b32.xlu0 %v4633, 1
    %v4655 = vpop.permute.xlu0 %4654
    %v4656 = vsel %vm692, %v4653, %v4655
    %v4657 = vsel %vm692, %v4655, %v4653
    %4658 = vrot.lane.b32.xlu0 %v4632, 127
    %v4659 = vpop.permute.xlu0 %4658
    %4660 = vrot.lane.b32.xlu0 %v4633, 127
    %v4661 = vpop.permute.xlu0 %4660
    %v4662 = vsel %vm711, %v4659, %v4661
    %v4663 = vsel %vm711, %v4661, %v4659
    %4664 = vrot.lane.b32.xlu0 %v4632, 119
    %v4665 = vpop.permute.xlu0 %4664
    %4666 = vrot.lane.b32.xlu0 %v4633, 119
    %v4667 = vpop.permute.xlu0 %4666
    %v4668 = vsel %vm3580, %v4665, %v4667
    %v4669 = vsel %vm3580, %v4667, %v4665
    %4670 = vrot.lane.b32.xlu0 %v4632, 118
    %v4671 = vpop.permute.xlu0 %4670
    %4672 = vrot.lane.b32.xlu0 %v4633, 118
    %v4673 = vpop.permute.xlu0 %4672
    %v4674 = vsel %vm3587, %v4671, %v4673
    %v4675 = vsel %vm3587, %v4673, %v4671
    %4676 = vrot.lane.b32.xlu0 %v4632, 117
    %v4677 = vpop.permute.xlu0 %4676
    %4678 = vrot.lane.b32.xlu0 %v4633, 117
    %v4679 = vpop.permute.xlu0 %4678
    %v4680 = vsel %vm3594, %v4677, %v4679
    %v4681 = vsel %vm3594, %v4679, %v4677
    %v4682 = vld [vmem:[%s87] sm:$0xff]
    %v4684 = vsel %vm776, %v4682, 0
    %4686 = vmatprep.subr.mxu0 0.0
    %4687 = vmatpush1.msra.mxu0 0.0
    %4688 = vmatprep.subr.mxu0 0.0
    %4689 = vmatpush1.msra.mxu0 0.0
    %4690 = vmatprep.subr.mxu0 0.0
    %4691 = vmatpush1.msra.mxu0 0.0
    %4692 = vmatprep.subr.mxu0 0.0
    %4693 = vmatpush1.msra.mxu0 0.0
    %4694 = vmatprep.subr.mxu0 0.0
    %4695 = vmatpush1.msra.mxu0 0.0
    %4696 = vmatprep.subr.mxu0 0.0
    %4697 = vmatpush1.msra.mxu0 0.0
    %4698 = vmatprep.subr.mxu0 0.0
    %4699 = vmatpush1.msra.mxu0 0.0
    %4700 = vmatprep.subr.mxu0 %v4681
    %4701 = vmatpush1.msra.mxu0 %v4680
    %4702 = vmatprep.subr.mxu0 %v4675
    %4703 = vmatpush1.msra.mxu0 %v4674
    %4704 = vmatprep.subr.mxu0 %v4669
    %4705 = vmatpush1.msra.mxu0 %v4668
    %4706 = vmatprep.subr.mxu0 %v4663
    %4707 = vmatpush1.msra.mxu0 %v4662
    %4708 = vmatprep.subr.mxu0 %v4633
    %4709 = vmatpush1.msra.mxu0 %v4632
    %4710 = vmatprep.subr.mxu0 %v4656
    %4711 = vmatpush1.msra.mxu0 %v4657
    %4712 = vmatprep.subr.mxu0 %v4650
    %4713 = vmatpush1.msra.mxu0 %v4651
    %4714 = vmatprep.subr.mxu0 %v4644
    %4715 = vmatpush1.msra.mxu0 %v4645
    %4716 = vmatprep.subr.mxu0 %v4638
    %4717 = vmatpush1.msra.mxu0 %v4639
    %4718 = vmatprep.subr.mxu0 0.0
    %4719 = vmatpush2.msra.mxu0 0.0
    %4720 = vmatprep.subr.mxu0 0.0
    %4721 = vmatpush2.msra.mxu0 0.0
    %4722 = vmatprep.subr.mxu0 0.0
    %4723 = vmatpush2.msra.mxu0 0.0
    %4724 = vmatprep.subr.mxu0 0.0
    %4725 = vmatpush2.msra.mxu0 0.0
    %4726 = vmatprep.subr.mxu0 0.0
    %4727 = vmatpush2.msra.mxu0 0.0
    %4728 = vmatprep.subr.mxu0 0.0
    %4729 = vmatpush2.msra.mxu0 0.0
    %4730 = vmatprep.subr.mxu0 0.0
    %4731 = vmatpush2.msra.mxu0 0.0
    %4732 = vmatprep.subr.mxu0 0.0
    %4733 = vmatpush2.msra.mxu0 0.0
    %4734 = vmatprep.subr.mxu0 0.0
    %4735 = vmatpush2.msra.mxu0 0.0
    %4736 = vmatprep.subr.mxu0 0.0
    %4737 = vmatpush2.msra.mxu0 0.0
    %4738 = vmatprep.subr.mxu0 0.0
    %4739 = vmatpush2.msra.mxu0 0.0
    %4740 = vmatprep.subr.mxu0 0.0
    %4741 = vmatpush2.msra.mxu0 0.0
    %4742 = vmatprep.subr.mxu0 0.0
    %4743 = vmatpush2.msra.mxu0 0.0
    %4744 = vmatprep.subr.mxu0 0.0
    %4745 = vmatpush2.msra.mxu0 0.0
    %4746 = vmatprep.subr.mxu0 0.0
    %4747 = vmatpush2.msra.mxu0 0.0
    %4748 = vmatprep.subr.mxu0 0.0
    %4749 = vmatpush2.msra.mxu0 0.0
    %4750 = vmatprep.mubr.f32.mxu0 0.0
    %4751 = vmatmul.mubr.f32.gmra.mxu0 %v4684
    %v4752 = vpop.f32.mrf.mxu0
    %v4753 = vadd.f32 0.0, %v4752
    %v4754 = vpop.f32.mrf.mxu0
    %v4755 = vadd.f32 0.0, %v4754
    %4756 = vdwg.mxu0
    %v4757 = vld [vmem:[%s89] sm:$0xff]
    %4759 = vset.pattern.permute.xlu0 0
    %4760 = vperm.xlu0 %4759, %v4757
    %v4761 = vpop.permute.xlu0 %4760
    %v4763 = vmul.f32 %v4753, %v4761
    %v4764 = vmul.f32 %v4755, %v4761
    %v4765 = vld [vmem:[%s91] sm:$0xff]
    %4767 = vset.pattern.permute.xlu0 0
    %4768 = vperm.xlu0 %4767, %v4765
    %v4769 = vpop.permute.xlu0 %4768
    %v4771 = vadd.f32 %v4763, %v4769
    %v4772 = vadd.f32 %v4764, %v4769
    %v4773 = vmul.f32 %v4771, %v3532
    %v4774 = vmul.f32 %v4772, %v3536
    %v4775 = vadd.f32 %v4630, %v4773
    %v4776 = vadd.f32 %v4631, %v4774
    %v4777 = vmax.f32 %v4775, 0.0
    %v4778 = vmax.f32 %v4776, 0.0
    %4779 = vrot.lane.b32.xlu0 %v4777, 11
    %v4780 = vpop.permute.xlu0 %4779
    %4781 = vrot.lane.b32.xlu0 %v4778, 11
    %v4782 = vpop.permute.xlu0 %4781
    %v4783 = vsel %vm3547, %v4780, %v4782
    %v4784 = vsel %vm3547, %v4782, %v4780
    %4785 = vrot.lane.b32.xlu0 %v4777, 10
    %v4786 = vpop.permute.xlu0 %4785
    %4787 = vrot.lane.b32.xlu0 %v4778, 10
    %v4788 = vpop.permute.xlu0 %4787
    %v4789 = vsel %vm3554, %v4786, %v4788
    %v4790 = vsel %vm3554, %v4788, %v4786
    %4791 = vrot.lane.b32.xlu0 %v4777, 9
    %v4792 = vpop.permute.xlu0 %4791
    %4793 = vrot.lane.b32.xlu0 %v4778, 9
    %v4794 = vpop.permute.xlu0 %4793
    %v4795 = vsel %vm3561, %v4792, %v4794
    %v4796 = vsel %vm3561, %v4794, %v4792
    %4797 = vrot.lane.b32.xlu0 %v4777, 1
    %v4798 = vpop.permute.xlu0 %4797
    %4799 = vrot.lane.b32.xlu0 %v4778, 1
    %v4800 = vpop.permute.xlu0 %4799
    %v4801 = vsel %vm692, %v4798, %v4800
    %v4802 = vsel %vm692, %v4800, %v4798
    %4803 = vrot.lane.b32.xlu0 %v4777, 127
    %v4804 = vpop.permute.xlu0 %4803
    %4805 = vrot.lane.b32.xlu0 %v4778, 127
    %v4806 = vpop.permute.xlu0 %4805
    %v4807 = vsel %vm711, %v4804, %v4806
    %v4808 = vsel %vm711, %v4806, %v4804
    %4809 = vrot.lane.b32.xlu0 %v4777, 119
    %v4810 = vpop.permute.xlu0 %4809
    %4811 = vrot.lane.b32.xlu0 %v4778, 119
    %v4812 = vpop.permute.xlu0 %4811
    %v4813 = vsel %vm3580, %v4810, %v4812
    %v4814 = vsel %vm3580, %v4812, %v4810
    %4815 = vrot.lane.b32.xlu0 %v4777, 118
    %v4816 = vpop.permute.xlu0 %4815
    %4817 = vrot.lane.b32.xlu0 %v4778, 118
    %v4818 = vpop.permute.xlu0 %4817
    %v4819 = vsel %vm3587, %v4816, %v4818
    %v4820 = vsel %vm3587, %v4818, %v4816
    %4821 = vrot.lane.b32.xlu0 %v4777, 117
    %v4822 = vpop.permute.xlu0 %4821
    %4823 = vrot.lane.b32.xlu0 %v4778, 117
    %v4824 = vpop.permute.xlu0 %4823
    %v4825 = vsel %vm3594, %v4822, %v4824
    %v4826 = vsel %vm3594, %v4824, %v4822
    %v4827 = vld [vmem:[%s93] sm:$0xff]
    %v4828 = vld [vmem:[%s93 + $0x8] sm:$0xff]
    %v4830 = vsel %vm776, %v4827, 0
    %v4833 = vsel %vm776, %v4828, 0
    %4835 = vmatprep.subr.mxu0 0.0
    %4836 = vmatpush1.msra.mxu0 0.0
    %4837 = vmatprep.subr.mxu0 0.0
    %4838 = vmatpush1.msra.mxu0 0.0
    %4839 = vmatprep.subr.mxu0 0.0
    %4840 = vmatpush1.msra.mxu0 0.0
    %4841 = vmatprep.subr.mxu0 0.0
    %4842 = vmatpush1.msra.mxu0 0.0
    %4843 = vmatprep.subr.mxu0 0.0
    %4844 = vmatpush1.msra.mxu0 0.0
    %4845 = vmatprep.subr.mxu0 0.0
    %4846 = vmatpush1.msra.mxu0 0.0
    %4847 = vmatprep.subr.mxu0 0.0
    %4848 = vmatpush1.msra.mxu0 0.0
    %4849 = vmatprep.subr.mxu0 %v4826
    %4850 = vmatpush1.msra.mxu0 %v4825
    %4851 = vmatprep.subr.mxu0 %v4820
    %4852 = vmatpush1.msra.mxu0 %v4819
    %4853 = vmatprep.subr.mxu0 %v4814
    %4854 = vmatpush1.msra.mxu0 %v4813
    %4855 = vmatprep.subr.mxu0 %v4808
    %4856 = vmatpush1.msra.mxu0 %v4807
    %4857 = vmatprep.subr.mxu0 %v4778
    %4858 = vmatpush1.msra.mxu0 %v4777
    %4859 = vmatprep.subr.mxu0 %v4801
    %4860 = vmatpush1.msra.mxu0 %v4802
    %4861 = vmatprep.subr.mxu0 %v4795
    %4862 = vmatpush1.msra.mxu0 %v4796
    %4863 = vmatprep.subr.mxu0 %v4789
    %4864 = vmatpush1.msra.mxu0 %v4790
    %4865 = vmatprep.subr.mxu0 %v4783
    %4866 = vmatpush1.msra.mxu0 %v4784
    %4867 = vmatprep.subr.mxu0 0.0
    %4868 = vmatpush2.msra.mxu0 0.0
    %4869 = vmatprep.subr.mxu0 0.0
    %4870 = vmatpush2.msra.mxu0 0.0
    %4871 = vmatprep.subr.mxu0 0.0
    %4872 = vmatpush2.msra.mxu0 0.0
    %4873 = vmatprep.subr.mxu0 0.0
    %4874 = vmatpush2.msra.mxu0 0.0
    %4875 = vmatprep.subr.mxu0 0.0
    %4876 = vmatpush2.msra.mxu0 0.0
    %4877 = vmatprep.subr.mxu0 0.0
    %4878 = vmatpush2.msra.mxu0 0.0
    %4879 = vmatprep.subr.mxu0 0.0
    %4880 = vmatpush2.msra.mxu0 0.0
    %4881 = vmatprep.subr.mxu0 0.0
    %4882 = vmatpush2.msra.mxu0 0.0
    %4883 = vmatprep.subr.mxu0 0.0
    %4884 = vmatpush2.msra.mxu0 0.0
    %4885 = vmatprep.subr.mxu0 0.0
    %4886 = vmatpush2.msra.mxu0 0.0
    %4887 = vmatprep.subr.mxu0 0.0
    %4888 = vmatpush2.msra.mxu0 0.0
    %4889 = vmatprep.subr.mxu0 0.0
    %4890 = vmatpush2.msra.mxu0 0.0
    %4891 = vmatprep.subr.mxu0 0.0
    %4892 = vmatpush2.msra.mxu0 0.0
    %4893 = vmatprep.subr.mxu0 0.0
    %4894 = vmatpush2.msra.mxu0 0.0
    %4895 = vmatprep.subr.mxu0 0.0
    %4896 = vmatpush2.msra.mxu0 0.0
    %4897 = vmatprep.subr.mxu0 0.0
    %4898 = vmatpush2.msra.mxu0 0.0
    %4899 = vmatprep.mubr.f32.mxu0 0.0
    %4900 = vmatmul.mubr.f32.gmra.mxu0 %v4830
    %v4901 = vpop.f32.mrf.mxu0
    %v4902 = vadd.f32 0.0, %v4901
    %v4903 = vpop.f32.mrf.mxu0
    %v4904 = vadd.f32 0.0, %v4903
    %4905 = vmatprep.mubr.f32.mxu0 0.0
    %4906 = vmatmul.mubr.f32.gmra.mxu0 %v4833
    %v4907 = vpop.f32.mrf.mxu0
    %v4908 = vadd.f32 0.0, %v4907
    %v4909 = vpop.f32.mrf.mxu0
    %v4910 = vadd.f32 0.0, %v4909
    %4911 = vdwg.mxu0
    %v4912 = vld [vmem:[%s19] sm:$0xff]
    %v4913 = vld [vmem:[%s19 + $0x8] sm:$0xff]
    %v4914 = vld [vmem:[%s19 + $0x10] sm:$0xff]
    %v4915 = vld [vmem:[%s19 + $0x18] sm:$0xff]
    %v4916 = vld [vmem:[%s19 + $0x20] sm:$0xff]
    %v4917 = vld [vmem:[%s19 + $0x28] sm:$0xff]
    %v4918 = vld [vmem:[%s19 + $0x30] sm:$0xff]
    %v4919 = vld [vmem:[%s19 + $0x38] sm:$0xff]
    %v4920 = vld [vmem:[%s19 + $0x40] sm:$0xff]
    %v4921 = vld [vmem:[%s19 + $0x48] sm:$0xff]
    %v4922 = vld [vmem:[%s19 + $0x50] sm:$0xff]
    %v4923 = vld [vmem:[%s19 + $0x58] sm:$0xff]
    %v4924 = vld [vmem:[%s19 + $0x60] sm:$0xff]
    %v4925 = vld [vmem:[%s19 + $0x68] sm:$0xff]
    %v4926 = vld [vmem:[%s19 + $0x70] sm:$0xff]
    %v4927 = vld [vmem:[%s19 + $0x78] sm:$0xff]
    %v4928 = vld [vmem:[%s19 + $0x80] sm:$0xff]
    %v4929 = vld [vmem:[%s19 + $0x88] sm:$0xff]
    %v4930 = vld [vmem:[%s19 + $0x90] sm:$0xff]
    %v4931 = vld [vmem:[%s19 + $0x98] sm:$0xff]
    %v4932 = vld [vmem:[%s19 + $0xa0] sm:$0xff]
    %v4933 = vld [vmem:[%s19 + $0xa8] sm:$0xff]
    %v4934 = vld [vmem:[%s19 + $0xb0] sm:$0xff]
    %v4935 = vld [vmem:[%s19 + $0xb8] sm:$0xff]
    %v4936 = vld [vmem:[%s19 + $0xc0] sm:$0xff]
    %v4937 = vld [vmem:[%s19 + $0xc8] sm:$0xff]
    %v4938 = vld [vmem:[%s19 + $0xd0] sm:$0xff]
    %v4939 = vld [vmem:[%s19 + $0xd8] sm:$0xff]
    %v4940 = vld [vmem:[%s19 + $0xe0] sm:$0xff]
    %v4941 = vld [vmem:[%s19 + $0xe8] sm:$0xff]
    %v4942 = vld [vmem:[%s19 + $0xf0] sm:$0xff]
    %v4943 = vld [vmem:[%s19 + $0xf8] sm:$0xff]
    %4944 = vmatprep.subr.mxu0 0.0
    %4945 = vmatpush1.msra.mxu0 %v4927
    %4946 = vmatprep.subr.mxu0 0.0
    %4947 = vmatpush1.msra.mxu0 %v4926
    %4948 = vmatprep.subr.mxu0 0.0
    %4949 = vmatpush1.msra.mxu0 %v4925
    %4950 = vmatprep.subr.mxu0 0.0
    %4951 = vmatpush1.msra.mxu0 %v4924
    %4952 = vmatprep.subr.mxu0 0.0
    %4953 = vmatpush1.msra.mxu0 %v4923
    %4954 = vmatprep.subr.mxu0 0.0
    %4955 = vmatpush1.msra.mxu0 %v4922
    %4956 = vmatprep.subr.mxu0 0.0
    %4957 = vmatpush1.msra.mxu0 %v4921
    %4958 = vmatprep.subr.mxu0 0.0
    %4959 = vmatpush1.msra.mxu0 %v4920
    %4960 = vmatprep.subr.mxu0 0.0
    %4961 = vmatpush1.msra.mxu0 %v4919
    %4962 = vmatprep.subr.mxu0 0.0
    %4963 = vmatpush1.msra.mxu0 %v4918
    %4964 = vmatprep.subr.mxu0 0.0
    %4965 = vmatpush1.msra.mxu0 %v4917
    %4966 = vmatprep.subr.mxu0 0.0
    %4967 = vmatpush1.msra.mxu0 %v4916
    %4968 = vmatprep.subr.mxu0 0.0
    %4969 = vmatpush1.msra.mxu0 %v4915
    %4970 = vmatprep.subr.mxu0 0.0
    %4971 = vmatpush1.msra.mxu0 %v4914
    %4972 = vmatprep.subr.mxu0 0.0
    %4973 = vmatpush1.msra.mxu0 %v4913
    %4974 = vmatprep.subr.mxu0 0.0
    %4975 = vmatpush1.msra.mxu0 %v4912
    %4976 = vmatprep.subr.mxu0 0.0
    %4977 = vmatpush2.msra.mxu0 %v4943
    %4978 = vmatprep.subr.mxu0 0.0
    %4979 = vmatpush2.msra.mxu0 %v4942
    %4980 = vmatprep.subr.mxu0 0.0
    %4981 = vmatpush2.msra.mxu0 %v4941
    %4982 = vmatprep.subr.mxu0 0.0
    %4983 = vmatpush2.msra.mxu0 %v4940
    %4984 = vmatprep.subr.mxu0 0.0
    %4985 = vmatpush2.msra.mxu0 %v4939
    %4986 = vmatprep.subr.mxu0 0.0
    %4987 = vmatpush2.msra.mxu0 %v4938
    %4988 = vmatprep.subr.mxu0 0.0
    %4989 = vmatpush2.msra.mxu0 %v4937
    %4990 = vmatprep.subr.mxu0 0.0
    %4991 = vmatpush2.msra.mxu0 %v4936
    %4992 = vmatprep.subr.mxu0 0.0
    %4993 = vmatpush2.msra.mxu0 %v4935
    %4994 = vmatprep.subr.mxu0 0.0
    %4995 = vmatpush2.msra.mxu0 %v4934
    %4996 = vmatprep.subr.mxu0 0.0
    %4997 = vmatpush2.msra.mxu0 %v4933
    %4998 = vmatprep.subr.mxu0 0.0
    %4999 = vmatpush2.msra.mxu0 %v4932
    %5000 = vmatprep.subr.mxu0 0.0
    %5001 = vmatpush2.msra.mxu0 %v4931
    %5002 = vmatprep.subr.mxu0 0.0
    %5003 = vmatpush2.msra.mxu0 %v4930
    %5004 = vmatprep.subr.mxu0 0.0
    %5005 = vmatpush2.msra.mxu0 %v4929
    %5006 = vmatprep.subr.mxu0 0.0
    %5007 = vmatpush2.msra.mxu0 %v4928
    %5008 = vmatprep.mubr.f32.mxu0 %v4904
    %5009 = vmatmul.mubr.f32.gmra.mxu0 %v4902
    %v5010 = vpop.f32.mrf.mxu0
    %v5011 = vadd.f32 0.0, %v5010
    %v5012 = vpop.f32.mrf.mxu0
    %5013 = vmatprep.mubr.f32.mxu0 %v4910
    %5014 = vmatmul.mubr.f32.gmra.mxu0 %v4908
    %v5015 = vpop.f32.mrf.mxu0
    %v5016 = vadd.f32 0.0, %v5015
    %v5017 = vpop.f32.mrf.mxu0
    %5018 = vdwg.mxu0
    %v5019 = vld [vmem:[%s95] sm:$0xff]
    %v5020 = vld [vmem:[%s95 + $0x8] sm:$0xff]
    %5022 = vset.pattern.permute.xlu0 0
    %5023 = vperm.xlu0 %5022, %v5019
    %v5024 = vpop.permute.xlu0 %5023
    %5027 = vset.pattern.permute.xlu0 0
    %5028 = vperm.xlu0 %5027, %v5020
    %v5029 = vpop.permute.xlu0 %5028
    %v5031 = vmul.f32 %v5011, %v5024
    %v5032 = vmul.f32 %v5016, %v5029
    %v5033 = vld [vmem:[%s97] sm:$0xff]
    %v5034 = vld [vmem:[%s97 + $0x8] sm:$0xff]
    %5036 = vset.pattern.permute.xlu0 0
    %5037 = vperm.xlu0 %5036, %v5033
    %v5038 = vpop.permute.xlu0 %5037
    %5041 = vset.pattern.permute.xlu0 0
    %5042 = vperm.xlu0 %5041, %v5034
    %v5043 = vpop.permute.xlu0 %5042
    %v5045 = vadd.f32 %v5031, %v5038
    %v5046 = vadd.f32 %v5032, %v5043
    %v5048 = vlaneseq
    %v5049 = vshrl.u32 %v5048, 7
    %v5050 = vsub.s32 0, %v5049
    %v5051 = vrot.slane %v611, %v5050
    %v5053 = vmul.f32 %v5045, %v5051
    %v5054 = vmul.f32 %v5046, %v5051
    %v5055 = vmax.f32 %v5053, 0.0
    %v5056 = vmax.f32 %v5054, 0.0
    %5057 = vrot.lane.b32.xlu0 %v5055, 7
    %v5058 = vpop.permute.xlu0 %5057
    %5059 = vrot.lane.b32.xlu0 %v5056, 7
    %v5060 = vpop.permute.xlu0 %5059
    %5061 = vrot.lane.b32.xlu0 %v5055, 6
    %v5062 = vpop.permute.xlu0 %5061
    %5063 = vrot.lane.b32.xlu0 %v5056, 6
    %v5064 = vpop.permute.xlu0 %5063
    %5065 = vrot.lane.b32.xlu0 %v5055, 5
    %v5066 = vpop.permute.xlu0 %5065
    %5067 = vrot.lane.b32.xlu0 %v5056, 5
    %v5068 = vpop.permute.xlu0 %5067
    %5069 = vrot.lane.b32.xlu0 %v5055, 1
    %v5070 = vpop.permute.xlu0 %5069
    %5071 = vrot.lane.b32.xlu0 %v5056, 1
    %v5072 = vpop.permute.xlu0 %5071
    %5073 = vrot.lane.b32.xlu0 %v5055, 127
    %v5074 = vpop.permute.xlu0 %5073
    %5075 = vrot.lane.b32.xlu0 %v5056, 127
    %v5076 = vpop.permute.xlu0 %5075
    %5077 = vrot.lane.b32.xlu0 %v5055, 123
    %v5078 = vpop.permute.xlu0 %5077
    %5079 = vrot.lane.b32.xlu0 %v5056, 123
    %v5080 = vpop.permute.xlu0 %5079
    %5081 = vrot.lane.b32.xlu0 %v5055, 122
    %v5082 = vpop.permute.xlu0 %5081
    %5083 = vrot.lane.b32.xlu0 %v5056, 122
    %v5084 = vpop.permute.xlu0 %5083
    %5085 = vrot.lane.b32.xlu0 %v5055, 121
    %v5086 = vpop.permute.xlu0 %5085
    %5087 = vrot.lane.b32.xlu0 %v5056, 121
    %v5088 = vpop.permute.xlu0 %5087
    %v5089 = vld [vmem:[%s99] sm:$0xff]
    %v5090 = vld [vmem:[%s99 + $0x8] sm:$0xff]
    %v5091 = vld [vmem:[%s99 + $0x10] sm:$0xff]
    %v5092 = vld [vmem:[%s99 + $0x18] sm:$0xff]
    %vm5093 = vcmask 130048
    %v5095 = vsel %vm5093, %v5090, 0
    %v5098 = vsel %vm5093, %v5092, 0
    %5100 = vmatprep.subr.mxu0 0.0
    %5101 = vmatpush1.msra.mxu0 %v5084
    %5102 = vmatprep.subr.mxu0 0.0
    %5103 = vmatpush1.msra.mxu0 %v5082
    %5104 = vmatprep.subr.mxu0 0.0
    %5105 = vmatpush1.msra.mxu0 %v5080
    %5106 = vmatprep.subr.mxu0 0.0
    %5107 = vmatpush1.msra.mxu0 %v5078
    %5108 = vmatprep.subr.mxu0 0.0
    %5109 = vmatpush1.msra.mxu0 %v5076
    %5110 = vmatprep.subr.mxu0 0.0
    %5111 = vmatpush1.msra.mxu0 %v5074
    %5112 = vmatprep.subr.mxu0 0.0
    %5113 = vmatpush1.msra.mxu0 %v5056
    %5114 = vmatprep.subr.mxu0 0.0
    %5115 = vmatpush1.msra.mxu0 %v5055
    %5116 = vmatprep.subr.mxu0 0.0
    %5117 = vmatpush1.msra.mxu0 %v5072
    %5118 = vmatprep.subr.mxu0 0.0
    %5119 = vmatpush1.msra.mxu0 %v5070
    %5120 = vmatprep.subr.mxu0 0.0
    %5121 = vmatpush1.msra.mxu0 %v5068
    %5122 = vmatprep.subr.mxu0 0.0
    %5123 = vmatpush1.msra.mxu0 %v5066
    %5124 = vmatprep.subr.mxu0 0.0
    %5125 = vmatpush1.msra.mxu0 %v5064
    %5126 = vmatprep.subr.mxu0 0.0
    %5127 = vmatpush1.msra.mxu0 %v5062
    %5128 = vmatprep.subr.mxu0 0.0
    %5129 = vmatpush1.msra.mxu0 %v5060
    %5130 = vmatprep.subr.mxu0 0.0
    %5131 = vmatpush1.msra.mxu0 %v5058
    %5132 = vmatprep.subr.mxu0 0.0
    %5133 = vmatpush2.msra.mxu0 0.0
    %5134 = vmatprep.subr.mxu0 0.0
    %5135 = vmatpush2.msra.mxu0 0.0
    %5136 = vmatprep.subr.mxu0 0.0
    %5137 = vmatpush2.msra.mxu0 0.0
    %5138 = vmatprep.subr.mxu0 0.0
    %5139 = vmatpush2.msra.mxu0 0.0
    %5140 = vmatprep.subr.mxu0 0.0
    %5141 = vmatpush2.msra.mxu0 0.0
    %5142 = vmatprep.subr.mxu0 0.0
    %5143 = vmatpush2.msra.mxu0 0.0
    %5144 = vmatprep.subr.mxu0 0.0
    %5145 = vmatpush2.msra.mxu0 0.0
    %5146 = vmatprep.subr.mxu0 0.0
    %5147 = vmatpush2.msra.mxu0 0.0
    %5148 = vmatprep.subr.mxu0 0.0
    %5149 = vmatpush2.msra.mxu0 0.0
    %5150 = vmatprep.subr.mxu0 0.0
    %5151 = vmatpush2.msra.mxu0 0.0
    %5152 = vmatprep.subr.mxu0 0.0
    %5153 = vmatpush2.msra.mxu0 0.0
    %5154 = vmatprep.subr.mxu0 0.0
    %5155 = vmatpush2.msra.mxu0 0.0
    %5156 = vmatprep.subr.mxu0 0.0
    %5157 = vmatpush2.msra.mxu0 0.0
    %5158 = vmatprep.subr.mxu0 0.0
    %5159 = vmatpush2.msra.mxu0 0.0
    %5160 = vmatprep.subr.mxu0 0.0
    %5161 = vmatpush2.msra.mxu0 %v5088
    %5162 = vmatprep.subr.mxu0 0.0
    %5163 = vmatpush2.msra.mxu0 %v5086
    %5164 = vmatprep.mubr.f32.mxu0 %v5095
    %5165 = vmatmul.mubr.f32.gmra.mxu0 %v5089
    %v5166 = vpop.f32.mrf.mxu0
    %v5167 = vadd.f32 0.0, %v5166
    %v5168 = vpop.f32.mrf.mxu0
    %5169 = vmatprep.mubr.f32.mxu0 %v5098
    %5170 = vmatmul.mubr.f32.gmra.mxu0 %v5091
    %v5171 = vpop.f32.mrf.mxu0
    %v5172 = vadd.f32 0.0, %v5171
    %v5173 = vpop.f32.mrf.mxu0
    %5174 = vdwg.mxu0
    %v5175 = vld [vmem:[%s101] sm:$0xff]
    %v5176 = vld [vmem:[%s101 + $0x8] sm:$0xff]
    %5178 = vset.pattern.permute.xlu0 0
    %5179 = vperm.xlu0 %5178, %v5175
    %v5180 = vpop.permute.xlu0 %5179
    %5183 = vset.pattern.permute.xlu0 0
    %5184 = vperm.xlu0 %5183, %v5176
    %v5185 = vpop.permute.xlu0 %5184
    %v5187 = vmul.f32 %v5167, %v5180
    %v5188 = vmul.f32 %v5172, %v5185
    %v5189 = vld [vmem:[%s103] sm:$0xff]
    %v5190 = vld [vmem:[%s103 + $0x8] sm:$0xff]
    %5192 = vset.pattern.permute.xlu0 0
    %5193 = vperm.xlu0 %5192, %v5189
    %v5194 = vpop.permute.xlu0 %5193
    %5197 = vset.pattern.permute.xlu0 0
    %5198 = vperm.xlu0 %5197, %v5190
    %v5199 = vpop.permute.xlu0 %5198
    %v5201 = vadd.f32 %v5187, %v5194
    %v5202 = vadd.f32 %v5188, %v5199
    %v5203 = vmul.f32 %v5201, %v5051
    %v5204 = vmul.f32 %v5202, %v5051
    %v5205 = vld [vmem:[%s21] sm:$0xff]
    %v5206 = vld [vmem:[%s21 + $0x8] sm:$0xff]
    %v5207 = vld [vmem:[%s21 + $0x10] sm:$0xff]
    %v5208 = vld [vmem:[%s21 + $0x18] sm:$0xff]
    %v5209 = vld [vmem:[%s21 + $0x20] sm:$0xff]
    %v5210 = vld [vmem:[%s21 + $0x28] sm:$0xff]
    %v5211 = vld [vmem:[%s21 + $0x30] sm:$0xff]
    %v5212 = vld [vmem:[%s21 + $0x38] sm:$0xff]
    %v5213 = vld [vmem:[%s21 + $0x40] sm:$0xff]
    %v5214 = vld [vmem:[%s21 + $0x48] sm:$0xff]
    %v5215 = vld [vmem:[%s21 + $0x50] sm:$0xff]
    %v5216 = vld [vmem:[%s21 + $0x58] sm:$0xff]
    %v5217 = vld [vmem:[%s21 + $0x60] sm:$0xff]
    %v5218 = vld [vmem:[%s21 + $0x68] sm:$0xff]
    %v5219 = vld [vmem:[%s21 + $0x70] sm:$0xff]
    %v5220 = vld [vmem:[%s21 + $0x78] sm:$0xff]
    %v5221 = vld [vmem:[%s21 + $0x80] sm:$0xff]
    %v5222 = vld [vmem:[%s21 + $0x88] sm:$0xff]
    %v5223 = vld [vmem:[%s21 + $0x90] sm:$0xff]
    %v5224 = vld [vmem:[%s21 + $0x98] sm:$0xff]
    %v5225 = vld [vmem:[%s21 + $0xa0] sm:$0xff]
    %v5226 = vld [vmem:[%s21 + $0xa8] sm:$0xff]
    %v5227 = vld [vmem:[%s21 + $0xb0] sm:$0xff]
    %v5228 = vld [vmem:[%s21 + $0xb8] sm:$0xff]
    %v5229 = vld [vmem:[%s21 + $0xc0] sm:$0xff]
    %v5230 = vld [vmem:[%s21 + $0xc8] sm:$0xff]
    %v5231 = vld [vmem:[%s21 + $0xd0] sm:$0xff]
    %v5232 = vld [vmem:[%s21 + $0xd8] sm:$0xff]
    %v5233 = vld [vmem:[%s21 + $0xe0] sm:$0xff]
    %v5234 = vld [vmem:[%s21 + $0xe8] sm:$0xff]
    %v5235 = vld [vmem:[%s21 + $0xf0] sm:$0xff]
    %v5236 = vld [vmem:[%s21 + $0xf8] sm:$0xff]
    %5237 = vmatprep.subr.mxu0 0.0
    %5238 = vmatpush1.msra.mxu0 %v5220
    %5239 = vmatprep.subr.mxu0 0.0
    %5240 = vmatpush1.msra.mxu0 %v5219
    %5241 = vmatprep.subr.mxu0 0.0
    %5242 = vmatpush1.msra.mxu0 %v5218
    %5243 = vmatprep.subr.mxu0 0.0
    %5244 = vmatpush1.msra.mxu0 %v5217
    %5245 = vmatprep.subr.mxu0 0.0
    %5246 = vmatpush1.msra.mxu0 %v5216
    %5247 = vmatprep.subr.mxu0 0.0
    %5248 = vmatpush1.msra.mxu0 %v5215
    %5249 = vmatprep.subr.mxu0 0.0
    %5250 = vmatpush1.msra.mxu0 %v5214
    %5251 = vmatprep.subr.mxu0 0.0
    %5252 = vmatpush1.msra.mxu0 %v5213
    %5253 = vmatprep.subr.mxu0 0.0
    %5254 = vmatpush1.msra.mxu0 %v5212
    %5255 = vmatprep.subr.mxu0 0.0
    %5256 = vmatpush1.msra.mxu0 %v5211
    %5257 = vmatprep.subr.mxu0 0.0
    %5258 = vmatpush1.msra.mxu0 %v5210
    %5259 = vmatprep.subr.mxu0 0.0
    %5260 = vmatpush1.msra.mxu0 %v5209
    %5261 = vmatprep.subr.mxu0 0.0
    %5262 = vmatpush1.msra.mxu0 %v5208
    %5263 = vmatprep.subr.mxu0 0.0
    %5264 = vmatpush1.msra.mxu0 %v5207
    %5265 = vmatprep.subr.mxu0 0.0
    %5266 = vmatpush1.msra.mxu0 %v5206
    %5267 = vmatprep.subr.mxu0 0.0
    %5268 = vmatpush1.msra.mxu0 %v5205
    %5269 = vmatprep.subr.mxu0 0.0
    %5270 = vmatpush2.msra.mxu0 %v5236
    %5271 = vmatprep.subr.mxu0 0.0
    %5272 = vmatpush2.msra.mxu0 %v5235
    %5273 = vmatprep.subr.mxu0 0.0
    %5274 = vmatpush2.msra.mxu0 %v5234
    %5275 = vmatprep.subr.mxu0 0.0
    %5276 = vmatpush2.msra.mxu0 %v5233
    %5277 = vmatprep.subr.mxu0 0.0
    %5278 = vmatpush2.msra.mxu0 %v5232
    %5279 = vmatprep.subr.mxu0 0.0
    %5280 = vmatpush2.msra.mxu0 %v5231
    %5281 = vmatprep.subr.mxu0 0.0
    %5282 = vmatpush2.msra.mxu0 %v5230
    %5283 = vmatprep.subr.mxu0 0.0
    %5284 = vmatpush2.msra.mxu0 %v5229
    %5285 = vmatprep.subr.mxu0 0.0
    %5286 = vmatpush2.msra.mxu0 %v5228
    %5287 = vmatprep.subr.mxu0 0.0
    %5288 = vmatpush2.msra.mxu0 %v5227
    %5289 = vmatprep.subr.mxu0 0.0
    %5290 = vmatpush2.msra.mxu0 %v5226
    %5291 = vmatprep.subr.mxu0 0.0
    %5292 = vmatpush2.msra.mxu0 %v5225
    %5293 = vmatprep.subr.mxu0 0.0
    %5294 = vmatpush2.msra.mxu0 %v5224
    %5295 = vmatprep.subr.mxu0 0.0
    %5296 = vmatpush2.msra.mxu0 %v5223
    %5297 = vmatprep.subr.mxu0 0.0
    %5298 = vmatpush2.msra.mxu0 %v5222
    %5299 = vmatprep.subr.mxu0 0.0
    %5300 = vmatpush2.msra.mxu0 %v5221
    %5301 = vmatprep.mubr.f32.mxu0 %v4776
    %5302 = vmatmul.mubr.f32.gmra.mxu0 %v4775
    %v5303 = vpop.f32.mrf.mxu0
    %v5304 = vadd.f32 0.0, %v5303
    %v5305 = vpop.f32.mrf.mxu0
    %5306 = vdwg.mxu0
    %v5307 = vld [vmem:[%s105] sm:$0xff]
    %v5308 = vld [vmem:[%s105 + $0x8] sm:$0xff]
    %v5310 = vsel %vm1452, %v5307, 0
    %v5313 = vsel %vm1452, %v5308, 0
    %5315 = vmatprep.subr.mxu0 0.0
    %5316 = vmatpush1.msra.mxu0 0.0
    %5317 = vmatprep.subr.mxu0 0.0
    %5318 = vmatpush1.msra.mxu0 0.0
    %5319 = vmatprep.subr.mxu0 0.0
    %5320 = vmatpush1.msra.mxu0 0.0
    %5321 = vmatprep.subr.mxu0 0.0
    %5322 = vmatpush1.msra.mxu0 0.0
    %5323 = vmatprep.subr.mxu0 0.0
    %5324 = vmatpush1.msra.mxu0 0.0
    %5325 = vmatprep.subr.mxu0 0.0
    %5326 = vmatpush1.msra.mxu0 0.0
    %5327 = vmatprep.subr.mxu0 0.0
    %5328 = vmatpush1.msra.mxu0 0.0
    %5329 = vmatprep.subr.mxu0 0.0
    %5330 = vmatpush1.msra.mxu0 0.0
    %5331 = vmatprep.subr.mxu0 0.0
    %5332 = vmatpush1.msra.mxu0 0.0
    %5333 = vmatprep.subr.mxu0 0.0
    %5334 = vmatpush1.msra.mxu0 0.0
    %5335 = vmatprep.subr.mxu0 0.0
    %5336 = vmatpush1.msra.mxu0 0.0
    %5337 = vmatprep.subr.mxu0 0.0
    %5338 = vmatpush1.msra.mxu0 0.0
    %5339 = vmatprep.subr.mxu0 0.0
    %5340 = vmatpush1.msra.mxu0 0.0
    %5341 = vmatprep.subr.mxu0 0.0
    %5342 = vmatpush1.msra.mxu0 0.0
    %5343 = vmatprep.subr.mxu0 0.0
    %5344 = vmatpush1.msra.mxu0 0.0
    %5345 = vmatprep.subr.mxu0 0.0
    %5346 = vmatpush1.msra.mxu0 %v5304
    %5347 = vmatprep.subr.mxu0 0.0
    %5348 = vmatpush2.msra.mxu0 0.0
    %5349 = vmatprep.subr.mxu0 0.0
    %5350 = vmatpush2.msra.mxu0 0.0
    %5351 = vmatprep.subr.mxu0 0.0
    %5352 = vmatpush2.msra.mxu0 0.0
    %5353 = vmatprep.subr.mxu0 0.0
    %5354 = vmatpush2.msra.mxu0 0.0
    %5355 = vmatprep.subr.mxu0 0.0
    %5356 = vmatpush2.msra.mxu0 0.0
    %5357 = vmatprep.subr.mxu0 0.0
    %5358 = vmatpush2.msra.mxu0 0.0
    %5359 = vmatprep.subr.mxu0 0.0
    %5360 = vmatpush2.msra.mxu0 0.0
    %5361 = vmatprep.subr.mxu0 0.0
    %5362 = vmatpush2.msra.mxu0 0.0
    %5363 = vmatprep.subr.mxu0 0.0
    %5364 = vmatpush2.msra.mxu0 0.0
    %5365 = vmatprep.subr.mxu0 0.0
    %5366 = vmatpush2.msra.mxu0 0.0
    %5367 = vmatprep.subr.mxu0 0.0
    %5368 = vmatpush2.msra.mxu0 0.0
    %5369 = vmatprep.subr.mxu0 0.0
    %5370 = vmatpush2.msra.mxu0 0.0
    %5371 = vmatprep.subr.mxu0 0.0
    %5372 = vmatpush2.msra.mxu0 0.0
    %5373 = vmatprep.subr.mxu0 0.0
    %5374 = vmatpush2.msra.mxu0 0.0
    %5375 = vmatprep.subr.mxu0 0.0
    %5376 = vmatpush2.msra.mxu0 0.0
    %5377 = vmatprep.subr.mxu0 0.0
    %5378 = vmatpush2.msra.mxu0 0.0
    %5379 = vmatprep.mubr.f32.mxu0 0.0
    %5380 = vmatmul.mubr.f32.gmra.mxu0 %v5310
    %v5381 = vpop.f32.mrf.mxu0
    %v5382 = vadd.f32 0.0, %v5381
    %v5383 = vpop.f32.mrf.mxu0
    %5384 = vmatprep.mubr.f32.mxu0 0.0
    %5385 = vmatmul.mubr.f32.gmra.mxu0 %v5313
    %v5386 = vpop.f32.mrf.mxu0
    %v5387 = vadd.f32 0.0, %v5386
    %v5388 = vpop.f32.mrf.mxu0
    %5389 = vdwg.mxu0
    %v5390 = vadd.f32 %v5203, %v5382
    %v5391 = vadd.f32 %v5204, %v5387
    %v5392 = vmax.f32 %v5390, 0.0
    %v5393 = vmax.f32 %v5391, 0.0
    %5394 = vrot.lane.b32.xlu0 %v5392, 7
    %v5395 = vpop.permute.xlu0 %5394
    %5396 = vrot.lane.b32.xlu0 %v5393, 7
    %v5397 = vpop.permute.xlu0 %5396
    %5398 = vrot.lane.b32.xlu0 %v5392, 6
    %v5399 = vpop.permute.xlu0 %5398
    %5400 = vrot.lane.b32.xlu0 %v5393, 6
    %v5401 = vpop.permute.xlu0 %5400
    %5402 = vrot.lane.b32.xlu0 %v5392, 5
    %v5403 = vpop.permute.xlu0 %5402
    %5404 = vrot.lane.b32.xlu0 %v5393, 5
    %v5405 = vpop.permute.xlu0 %5404
    %5406 = vrot.lane.b32.xlu0 %v5392, 1
    %v5407 = vpop.permute.xlu0 %5406
    %5408 = vrot.lane.b32.xlu0 %v5393, 1
    %v5409 = vpop.permute.xlu0 %5408
    %5410 = vrot.lane.b32.xlu0 %v5392, 127
    %v5411 = vpop.permute.xlu0 %5410
    %5412 = vrot.lane.b32.xlu0 %v5393, 127
    %v5413 = vpop.permute.xlu0 %5412
    %5414 = vrot.lane.b32.xlu0 %v5392, 123
    %v5415 = vpop.permute.xlu0 %5414
    %5416 = vrot.lane.b32.xlu0 %v5393, 123
    %v5417 = vpop.permute.xlu0 %5416
    %5418 = vrot.lane.b32.xlu0 %v5392, 122
    %v5419 = vpop.permute.xlu0 %5418
    %5420 = vrot.lane.b32.xlu0 %v5393, 122
    %v5421 = vpop.permute.xlu0 %5420
    %5422 = vrot.lane.b32.xlu0 %v5392, 121
    %v5423 = vpop.permute.xlu0 %5422
    %5424 = vrot.lane.b32.xlu0 %v5393, 121
    %v5425 = vpop.permute.xlu0 %5424
    %v5426 = vld [vmem:[%s107] sm:$0xff]
    %v5427 = vld [vmem:[%s107 + $0x8] sm:$0xff]
    %v5428 = vld [vmem:[%s107 + $0x10] sm:$0xff]
    %v5429 = vld [vmem:[%s107 + $0x18] sm:$0xff]
    %v5431 = vsel %vm5093, %v5427, 0
    %v5434 = vsel %vm5093, %v5429, 0
    %5436 = vmatprep.subr.mxu0 0.0
    %5437 = vmatpush1.msra.mxu0 %v5421
    %5438 = vmatprep.subr.mxu0 0.0
    %5439 = vmatpush1.msra.mxu0 %v5419
    %5440 = vmatprep.subr.mxu0 0.0
    %5441 = vmatpush1.msra.mxu0 %v5417
    %5442 = vmatprep.subr.mxu0 0.0
    %5443 = vmatpush1.msra.mxu0 %v5415
    %5444 = vmatprep.subr.mxu0 0.0
    %5445 = vmatpush1.msra.mxu0 %v5413
    %5446 = vmatprep.subr.mxu0 0.0
    %5447 = vmatpush1.msra.mxu0 %v5411
    %5448 = vmatprep.subr.mxu0 0.0
    %5449 = vmatpush1.msra.mxu0 %v5393
    %5450 = vmatprep.subr.mxu0 0.0
    %5451 = vmatpush1.msra.mxu0 %v5392
    %5452 = vmatprep.subr.mxu0 0.0
    %5453 = vmatpush1.msra.mxu0 %v5409
    %5454 = vmatprep.subr.mxu0 0.0
    %5455 = vmatpush1.msra.mxu0 %v5407
    %5456 = vmatprep.subr.mxu0 0.0
    %5457 = vmatpush1.msra.mxu0 %v5405
    %5458 = vmatprep.subr.mxu0 0.0
    %5459 = vmatpush1.msra.mxu0 %v5403
    %5460 = vmatprep.subr.mxu0 0.0
    %5461 = vmatpush1.msra.mxu0 %v5401
    %5462 = vmatprep.subr.mxu0 0.0
    %5463 = vmatpush1.msra.mxu0 %v5399
    %5464 = vmatprep.subr.mxu0 0.0
    %5465 = vmatpush1.msra.mxu0 %v5397
    %5466 = vmatprep.subr.mxu0 0.0
    %5467 = vmatpush1.msra.mxu0 %v5395
    %5468 = vmatprep.subr.mxu0 0.0
    %5469 = vmatpush2.msra.mxu0 0.0
    %5470 = vmatprep.subr.mxu0 0.0
    %5471 = vmatpush2.msra.mxu0 0.0
    %5472 = vmatprep.subr.mxu0 0.0
    %5473 = vmatpush2.msra.mxu0 0.0
    %5474 = vmatprep.subr.mxu0 0.0
    %5475 = vmatpush2.msra.mxu0 0.0
    %5476 = vmatprep.subr.mxu0 0.0
    %5477 = vmatpush2.msra.mxu0 0.0
    %5478 = vmatprep.subr.mxu0 0.0
    %5479 = vmatpush2.msra.mxu0 0.0
    %5480 = vmatprep.subr.mxu0 0.0
    %5481 = vmatpush2.msra.mxu0 0.0
    %5482 = vmatprep.subr.mxu0 0.0
    %5483 = vmatpush2.msra.mxu0 0.0
    %5484 = vmatprep.subr.mxu0 0.0
    %5485 = vmatpush2.msra.mxu0 0.0
    %5486 = vmatprep.subr.mxu0 0.0
    %5487 = vmatpush2.msra.mxu0 0.0
    %5488 = vmatprep.subr.mxu0 0.0
    %5489 = vmatpush2.msra.mxu0 0.0
    %5490 = vmatprep.subr.mxu0 0.0
    %5491 = vmatpush2.msra.mxu0 0.0
    %5492 = vmatprep.subr.mxu0 0.0
    %5493 = vmatpush2.msra.mxu0 0.0
    %5494 = vmatprep.subr.mxu0 0.0
    %5495 = vmatpush2.msra.mxu0 0.0
    %5496 = vmatprep.subr.mxu0 0.0
    %5497 = vmatpush2.msra.mxu0 %v5425
    %5498 = vmatprep.subr.mxu0 0.0
    %5499 = vmatpush2.msra.mxu0 %v5423
    %5500 = vmatprep.mubr.f32.mxu0 %v5431
    %5501 = vmatmul.mubr.f32.gmra.mxu0 %v5426
    %v5502 = vpop.f32.mrf.mxu0
    %v5503 = vadd.f32 0.0, %v5502
    %v5504 = vpop.f32.mrf.mxu0
    %5505 = vmatprep.mubr.f32.mxu0 %v5434
    %5506 = vmatmul.mubr.f32.gmra.mxu0 %v5428
    %v5507 = vpop.f32.mrf.mxu0
    %v5508 = vadd.f32 0.0, %v5507
    %v5509 = vpop.f32.mrf.mxu0
    %5510 = vdwg.mxu0
    %v5511 = vld [vmem:[%s109] sm:$0xff]
    %v5512 = vld [vmem:[%s109 + $0x8] sm:$0xff]
    %5514 = vset.pattern.permute.xlu0 0
    %5515 = vperm.xlu0 %5514, %v5511
    %v5516 = vpop.permute.xlu0 %5515
    %5519 = vset.pattern.permute.xlu0 0
    %5520 = vperm.xlu0 %5519, %v5512
    %v5521 = vpop.permute.xlu0 %5520
    %v5523 = vmul.f32 %v5503, %v5516
    %v5524 = vmul.f32 %v5508, %v5521
    %v5525 = vld [vmem:[%s111] sm:$0xff]
    %v5526 = vld [vmem:[%s111 + $0x8] sm:$0xff]
    %5528 = vset.pattern.permute.xlu0 0
    %5529 = vperm.xlu0 %5528, %v5525
    %v5530 = vpop.permute.xlu0 %5529
    %5533 = vset.pattern.permute.xlu0 0
    %5534 = vperm.xlu0 %5533, %v5526
    %v5535 = vpop.permute.xlu0 %5534
    %v5537 = vadd.f32 %v5523, %v5530
    %v5538 = vadd.f32 %v5524, %v5535
    %v5539 = vmul.f32 %v5537, %v5051
    %v5540 = vmul.f32 %v5538, %v5051
    %v5541 = vld [vmem:[%s113] sm:$0xff]
    %v5542 = vld [vmem:[%s113 + $0x8] sm:$0xff]
    %v5544 = vsel %vm5093, %v5541, 0
    %v5547 = vsel %vm5093, %v5542, 0
    %5549 = vmatprep.subr.mxu0 0.0
    %5550 = vmatpush1.msra.mxu0 0.0
    %5551 = vmatprep.subr.mxu0 0.0
    %5552 = vmatpush1.msra.mxu0 0.0
    %5553 = vmatprep.subr.mxu0 0.0
    %5554 = vmatpush1.msra.mxu0 0.0
    %5555 = vmatprep.subr.mxu0 0.0
    %5556 = vmatpush1.msra.mxu0 0.0
    %5557 = vmatprep.subr.mxu0 0.0
    %5558 = vmatpush1.msra.mxu0 0.0
    %5559 = vmatprep.subr.mxu0 0.0
    %5560 = vmatpush1.msra.mxu0 0.0
    %5561 = vmatprep.subr.mxu0 0.0
    %5562 = vmatpush1.msra.mxu0 0.0
    %5563 = vmatprep.subr.mxu0 0.0
    %5564 = vmatpush1.msra.mxu0 0.0
    %5565 = vmatprep.subr.mxu0 0.0
    %5566 = vmatpush1.msra.mxu0 0.0
    %5567 = vmatprep.subr.mxu0 0.0
    %5568 = vmatpush1.msra.mxu0 0.0
    %5569 = vmatprep.subr.mxu0 0.0
    %5570 = vmatpush1.msra.mxu0 0.0
    %5571 = vmatprep.subr.mxu0 0.0
    %5572 = vmatpush1.msra.mxu0 0.0
    %5573 = vmatprep.subr.mxu0 0.0
    %5574 = vmatpush1.msra.mxu0 0.0
    %5575 = vmatprep.subr.mxu0 0.0
    %5576 = vmatpush1.msra.mxu0 0.0
    %5577 = vmatprep.subr.mxu0 0.0
    %5578 = vmatpush1.msra.mxu0 %v5393
    %5579 = vmatprep.subr.mxu0 0.0
    %5580 = vmatpush1.msra.mxu0 %v5392
    %5581 = vmatprep.subr.mxu0 0.0
    %5582 = vmatpush2.msra.mxu0 0.0
    %5583 = vmatprep.subr.mxu0 0.0
    %5584 = vmatpush2.msra.mxu0 0.0
    %5585 = vmatprep.subr.mxu0 0.0
    %5586 = vmatpush2.msra.mxu0 0.0
    %5587 = vmatprep.subr.mxu0 0.0
    %5588 = vmatpush2.msra.mxu0 0.0
    %5589 = vmatprep.subr.mxu0 0.0
    %5590 = vmatpush2.msra.mxu0 0.0
    %5591 = vmatprep.subr.mxu0 0.0
    %5592 = vmatpush2.msra.mxu0 0.0
    %5593 = vmatprep.subr.mxu0 0.0
    %5594 = vmatpush2.msra.mxu0 0.0
    %5595 = vmatprep.subr.mxu0 0.0
    %5596 = vmatpush2.msra.mxu0 0.0
    %5597 = vmatprep.subr.mxu0 0.0
    %5598 = vmatpush2.msra.mxu0 0.0
    %5599 = vmatprep.subr.mxu0 0.0
    %5600 = vmatpush2.msra.mxu0 0.0
    %5601 = vmatprep.subr.mxu0 0.0
    %5602 = vmatpush2.msra.mxu0 0.0
    %5603 = vmatprep.subr.mxu0 0.0
    %5604 = vmatpush2.msra.mxu0 0.0
    %5605 = vmatprep.subr.mxu0 0.0
    %5606 = vmatpush2.msra.mxu0 0.0
    %5607 = vmatprep.subr.mxu0 0.0
    %5608 = vmatpush2.msra.mxu0 0.0
    %5609 = vmatprep.subr.mxu0 0.0
    %5610 = vmatpush2.msra.mxu0 0.0
    %5611 = vmatprep.subr.mxu0 0.0
    %5612 = vmatpush2.msra.mxu0 0.0
    %5613 = vmatprep.mubr.f32.mxu0 0.0
    %5614 = vmatmul.mubr.f32.gmra.mxu0 %v5544
    %v5615 = vpop.f32.mrf.mxu0
    %v5616 = vadd.f32 0.0, %v5615
    %v5617 = vpop.f32.mrf.mxu0
    %5618 = vmatprep.mubr.f32.mxu0 0.0
    %5619 = vmatmul.mubr.f32.gmra.mxu0 %v5547
    %v5620 = vpop.f32.mrf.mxu0
    %v5621 = vadd.f32 0.0, %v5620
    %v5622 = vpop.f32.mrf.mxu0
    %5623 = vdwg.mxu0
    %v5624 = vld [vmem:[%s115] sm:$0xff]
    %v5625 = vld [vmem:[%s115 + $0x8] sm:$0xff]
    %5627 = vset.pattern.permute.xlu0 0
    %5628 = vperm.xlu0 %5627, %v5624
    %v5629 = vpop.permute.xlu0 %5628
    %5632 = vset.pattern.permute.xlu0 0
    %5633 = vperm.xlu0 %5632, %v5625
    %v5634 = vpop.permute.xlu0 %5633
    %v5636 = vmul.f32 %v5616, %v5629
    %v5637 = vmul.f32 %v5621, %v5634
    %v5638 = vld [vmem:[%s117] sm:$0xff]
    %v5639 = vld [vmem:[%s117 + $0x8] sm:$0xff]
    %5641 = vset.pattern.permute.xlu0 0
    %5642 = vperm.xlu0 %5641, %v5638
    %v5643 = vpop.permute.xlu0 %5642
    %5646 = vset.pattern.permute.xlu0 0
    %5647 = vperm.xlu0 %5646, %v5639
    %v5648 = vpop.permute.xlu0 %5647
    %v5650 = vadd.f32 %v5636, %v5643
    %v5651 = vadd.f32 %v5637, %v5648
    %v5652 = vmul.f32 %v5650, %v5051
    %v5653 = vmul.f32 %v5651, %v5051
    %v5654 = vmax.f32 %v5539, 0.0
    %v5655 = vmax.f32 %v5540, 0.0
    %5656 = vrot.lane.b32.xlu0 %v5654, 7
    %v5657 = vpop.permute.xlu0 %5656
    %5658 = vrot.lane.b32.xlu0 %v5655, 7
    %v5659 = vpop.permute.xlu0 %5658
    %5660 = vrot.lane.b32.xlu0 %v5654, 6
    %v5661 = vpop.permute.xlu0 %5660
    %5662 = vrot.lane.b32.xlu0 %v5655, 6
    %v5663 = vpop.permute.xlu0 %5662
    %5664 = vrot.lane.b32.xlu0 %v5654, 5
    %v5665 = vpop.permute.xlu0 %5664
    %5666 = vrot.lane.b32.xlu0 %v5655, 5
    %v5667 = vpop.permute.xlu0 %5666
    %5668 = vrot.lane.b32.xlu0 %v5654, 1
    %v5669 = vpop.permute.xlu0 %5668
    %5670 = vrot.lane.b32.xlu0 %v5655, 1
    %v5671 = vpop.permute.xlu0 %5670
    %5672 = vrot.lane.b32.xlu0 %v5654, 127
    %v5673 = vpop.permute.xlu0 %5672
    %5674 = vrot.lane.b32.xlu0 %v5655, 127
    %v5675 = vpop.permute.xlu0 %5674
    %5676 = vrot.lane.b32.xlu0 %v5654, 123
    %v5677 = vpop.permute.xlu0 %5676
    %5678 = vrot.lane.b32.xlu0 %v5655, 123
    %v5679 = vpop.permute.xlu0 %5678
    %5680 = vrot.lane.b32.xlu0 %v5654, 122
    %v5681 = vpop.permute.xlu0 %5680
    %5682 = vrot.lane.b32.xlu0 %v5655, 122
    %v5683 = vpop.permute.xlu0 %5682
    %5684 = vrot.lane.b32.xlu0 %v5654, 121
    %v5685 = vpop.permute.xlu0 %5684
    %5686 = vrot.lane.b32.xlu0 %v5655, 121
    %v5687 = vpop.permute.xlu0 %5686
    %v5688 = vld [vmem:[%s119] sm:$0xff]
    %v5689 = vld [vmem:[%s119 + $0x8] sm:$0xff]
    %v5690 = vld [vmem:[%s119 + $0x10] sm:$0xff]
    %v5691 = vld [vmem:[%s119 + $0x18] sm:$0xff]
    %v5693 = vsel %vm5093, %v5689, 0
    %v5696 = vsel %vm5093, %v5691, 0
    %5698 = vmatprep.subr.mxu0 0.0
    %5699 = vmatpush1.msra.mxu0 %v5683
    %5700 = vmatprep.subr.mxu0 0.0
    %5701 = vmatpush1.msra.mxu0 %v5681
    %5702 = vmatprep.subr.mxu0 0.0
    %5703 = vmatpush1.msra.mxu0 %v5679
    %5704 = vmatprep.subr.mxu0 0.0
    %5705 = vmatpush1.msra.mxu0 %v5677
    %5706 = vmatprep.subr.mxu0 0.0
    %5707 = vmatpush1.msra.mxu0 %v5675
    %5708 = vmatprep.subr.mxu0 0.0
    %5709 = vmatpush1.msra.mxu0 %v5673
    %5710 = vmatprep.subr.mxu0 0.0
    %5711 = vmatpush1.msra.mxu0 %v5655
    %5712 = vmatprep.subr.mxu0 0.0
    %5713 = vmatpush1.msra.mxu0 %v5654
    %5714 = vmatprep.subr.mxu0 0.0
    %5715 = vmatpush1.msra.mxu0 %v5671
    %5716 = vmatprep.subr.mxu0 0.0
    %5717 = vmatpush1.msra.mxu0 %v5669
    %5718 = vmatprep.subr.mxu0 0.0
    %5719 = vmatpush1.msra.mxu0 %v5667
    %5720 = vmatprep.subr.mxu0 0.0
    %5721 = vmatpush1.msra.mxu0 %v5665
    %5722 = vmatprep.subr.mxu0 0.0
    %5723 = vmatpush1.msra.mxu0 %v5663
    %5724 = vmatprep.subr.mxu0 0.0
    %5725 = vmatpush1.msra.mxu0 %v5661
    %5726 = vmatprep.subr.mxu0 0.0
    %5727 = vmatpush1.msra.mxu0 %v5659
    %5728 = vmatprep.subr.mxu0 0.0
    %5729 = vmatpush1.msra.mxu0 %v5657
    %5730 = vmatprep.subr.mxu0 0.0
    %5731 = vmatpush2.msra.mxu0 0.0
    %5732 = vmatprep.subr.mxu0 0.0
    %5733 = vmatpush2.msra.mxu0 0.0
    %5734 = vmatprep.subr.mxu0 0.0
    %5735 = vmatpush2.msra.mxu0 0.0
    %5736 = vmatprep.subr.mxu0 0.0
    %5737 = vmatpush2.msra.mxu0 0.0
    %5738 = vmatprep.subr.mxu0 0.0
    %5739 = vmatpush2.msra.mxu0 0.0
    %5740 = vmatprep.subr.mxu0 0.0
    %5741 = vmatpush2.msra.mxu0 0.0
    %5742 = vmatprep.subr.mxu0 0.0
    %5743 = vmatpush2.msra.mxu0 0.0
    %5744 = vmatprep.subr.mxu0 0.0
    %5745 = vmatpush2.msra.mxu0 0.0
    %5746 = vmatprep.subr.mxu0 0.0
    %5747 = vmatpush2.msra.mxu0 0.0
    %5748 = vmatprep.subr.mxu0 0.0
    %5749 = vmatpush2.msra.mxu0 0.0
    %5750 = vmatprep.subr.mxu0 0.0
    %5751 = vmatpush2.msra.mxu0 0.0
    %5752 = vmatprep.subr.mxu0 0.0
    %5753 = vmatpush2.msra.mxu0 0.0
    %5754 = vmatprep.subr.mxu0 0.0
    %5755 = vmatpush2.msra.mxu0 0.0
    %5756 = vmatprep.subr.mxu0 0.0
    %5757 = vmatpush2.msra.mxu0 0.0
    %5758 = vmatprep.subr.mxu0 0.0
    %5759 = vmatpush2.msra.mxu0 %v5687
    %5760 = vmatprep.subr.mxu0 0.0
    %5761 = vmatpush2.msra.mxu0 %v5685
    %5762 = vmatprep.mubr.f32.mxu0 %v5693
    %5763 = vmatmul.mubr.f32.gmra.mxu0 %v5688
    %v5764 = vpop.f32.mrf.mxu0
    %v5765 = vadd.f32 0.0, %v5764
    %v5766 = vpop.f32.mrf.mxu0
    %5767 = vmatprep.mubr.f32.mxu0 %v5696
    %5768 = vmatmul.mubr.f32.gmra.mxu0 %v5690
    %v5769 = vpop.f32.mrf.mxu0
    %v5770 = vadd.f32 0.0, %v5769
    %v5771 = vpop.f32.mrf.mxu0
    %5772 = vdwg.mxu0
    %v5773 = vld [vmem:[%s121] sm:$0xff]
    %v5774 = vld [vmem:[%s121 + $0x8] sm:$0xff]
    %5776 = vset.pattern.permute.xlu0 0
    %5777 = vperm.xlu0 %5776, %v5773
    %v5778 = vpop.permute.xlu0 %5777
    %5781 = vset.pattern.permute.xlu0 0
    %5782 = vperm.xlu0 %5781, %v5774
    %v5783 = vpop.permute.xlu0 %5782
    %v5785 = vmul.f32 %v5765, %v5778
    %v5786 = vmul.f32 %v5770, %v5783
    %v5787 = vld [vmem:[%s123] sm:$0xff]
    %v5788 = vld [vmem:[%s123 + $0x8] sm:$0xff]
    %5790 = vset.pattern.permute.xlu0 0
    %5791 = vperm.xlu0 %5790, %v5787
    %v5792 = vpop.permute.xlu0 %5791
    %5795 = vset.pattern.permute.xlu0 0
    %5796 = vperm.xlu0 %5795, %v5788
    %v5797 = vpop.permute.xlu0 %5796
    %v5799 = vadd.f32 %v5785, %v5792
    %v5800 = vadd.f32 %v5786, %v5797
    %v5801 = vmul.f32 %v5799, %v5051
    %v5802 = vmul.f32 %v5800, %v5051
    %v5803 = vadd.f32 %v5652, %v5801
    %v5804 = vadd.f32 %v5653, %v5802
    %5805 = vrot.lane.b32.xlu0 %v5539, 7
    %v5806 = vpop.permute.xlu0 %5805
    %5807 = vrot.lane.b32.xlu0 %v5540, 7
    %v5808 = vpop.permute.xlu0 %5807
    %v5809 = vadd.f32 %v5539, %v5806
    %v5810 = vadd.f32 %v5540, %v5808
    %5811 = vrot.lane.b32.xlu0 %v5539, 6
    %v5812 = vpop.permute.xlu0 %5811
    %5813 = vrot.lane.b32.xlu0 %v5540, 6
    %v5814 = vpop.permute.xlu0 %5813
    %v5815 = vadd.f32 %v5809, %v5812
    %v5816 = vadd.f32 %v5810, %v5814
    %5817 = vrot.lane.b32.xlu0 %v5539, 5
    %v5818 = vpop.permute.xlu0 %5817
    %5819 = vrot.lane.b32.xlu0 %v5540, 5
    %v5820 = vpop.permute.xlu0 %5819
    %v5821 = vadd.f32 %v5815, %v5818
    %v5822 = vadd.f32 %v5816, %v5820
    %5823 = vrot.lane.b32.xlu0 %v5539, 1
    %v5824 = vpop.permute.xlu0 %5823
    %5825 = vrot.lane.b32.xlu0 %v5540, 1
    %v5826 = vpop.permute.xlu0 %5825
    %v5827 = vadd.f32 %v5821, %v5824
    %v5828 = vadd.f32 %v5822, %v5826
    %5829 = vrot.lane.b32.xlu0 %v5539, 127
    %v5830 = vpop.permute.xlu0 %5829
    %5831 = vrot.lane.b32.xlu0 %v5540, 127
    %v5832 = vpop.permute.xlu0 %5831
    %v5833 = vadd.f32 %v5827, %v5830
    %v5834 = vadd.f32 %v5828, %v5832
    %5835 = vrot.lane.b32.xlu0 %v5539, 123
    %v5836 = vpop.permute.xlu0 %5835
    %5837 = vrot.lane.b32.xlu0 %v5540, 123
    %v5838 = vpop.permute.xlu0 %5837
    %v5839 = vadd.f32 %v5833, %v5836
    %v5840 = vadd.f32 %v5834, %v5838
    %5841 = vrot.lane.b32.xlu0 %v5539, 122
    %v5842 = vpop.permute.xlu0 %5841
    %5843 = vrot.lane.b32.xlu0 %v5540, 122
    %v5844 = vpop.permute.xlu0 %5843
    %v5845 = vadd.f32 %v5839, %v5842
    %v5846 = vadd.f32 %v5840, %v5844
    %5847 = vrot.lane.b32.xlu0 %v5539, 121
    %v5848 = vpop.permute.xlu0 %5847
    %5849 = vrot.lane.b32.xlu0 %v5540, 121
    %v5850 = vpop.permute.xlu0 %5849
    %v5851 = vadd.f32 %v5845, %v5848
    %v5852 = vadd.f32 %v5846, %v5850
    %v5854 = vlaneseq
    %v5855 = vshrl.u32 %v5854, 7
    %v5856 = vsub.s32 0, %v5855
    %v5857 = vrot.slane %v614, %v5856
    %v5859 = vmul.f32 %v5851, %v5857
    %v5860 = vmul.f32 %v5852, %v5857
    %v5861 = vadd.f32 %v5390, %v5859
    %v5862 = vadd.f32 %v5391, %v5860
    %v5863 = vmax.f32 %v5803, 0.0
    %v5864 = vmax.f32 %v5804, 0.0
    %5865 = vrot.lane.b32.xlu0 %v5863, 7
    %v5866 = vpop.permute.xlu0 %5865
    %5867 = vrot.lane.b32.xlu0 %v5864, 7
    %v5868 = vpop.permute.xlu0 %5867
    %5869 = vrot.lane.b32.xlu0 %v5863, 6
    %v5870 = vpop.permute.xlu0 %5869
    %5871 = vrot.lane.b32.xlu0 %v5864, 6
    %v5872 = vpop.permute.xlu0 %5871
    %5873 = vrot.lane.b32.xlu0 %v5863, 5
    %v5874 = vpop.permute.xlu0 %5873
    %5875 = vrot.lane.b32.xlu0 %v5864, 5
    %v5876 = vpop.permute.xlu0 %5875
    %5877 = vrot.lane.b32.xlu0 %v5863, 1
    %v5878 = vpop.permute.xlu0 %5877
    %5879 = vrot.lane.b32.xlu0 %v5864, 1
    %v5880 = vpop.permute.xlu0 %5879
    %5881 = vrot.lane.b32.xlu0 %v5863, 127
    %v5882 = vpop.permute.xlu0 %5881
    %5883 = vrot.lane.b32.xlu0 %v5864, 127
    %v5884 = vpop.permute.xlu0 %5883
    %5885 = vrot.lane.b32.xlu0 %v5863, 123
    %v5886 = vpop.permute.xlu0 %5885
    %5887 = vrot.lane.b32.xlu0 %v5864, 123
    %v5888 = vpop.permute.xlu0 %5887
    %5889 = vrot.lane.b32.xlu0 %v5863, 122
    %v5890 = vpop.permute.xlu0 %5889
    %5891 = vrot.lane.b32.xlu0 %v5864, 122
    %v5892 = vpop.permute.xlu0 %5891
    %5893 = vrot.lane.b32.xlu0 %v5863, 121
    %v5894 = vpop.permute.xlu0 %5893
    %5895 = vrot.lane.b32.xlu0 %v5864, 121
    %v5896 = vpop.permute.xlu0 %5895
    %v5897 = vld [vmem:[%s125] sm:$0xff]
    %v5898 = vld [vmem:[%s125 + $0x8] sm:$0xff]
    %v5899 = vld [vmem:[%s125 + $0x10] sm:$0xff]
    %v5900 = vld [vmem:[%s125 + $0x18] sm:$0xff]
    %v5902 = vsel %vm5093, %v5898, 0
    %v5905 = vsel %vm5093, %v5900, 0
    %5907 = vmatprep.subr.mxu0 0.0
    %5908 = vmatpush1.msra.mxu0 %v5892
    %5909 = vmatprep.subr.mxu0 0.0
    %5910 = vmatpush1.msra.mxu0 %v5890
    %5911 = vmatprep.subr.mxu0 0.0
    %5912 = vmatpush1.msra.mxu0 %v5888
    %5913 = vmatprep.subr.mxu0 0.0
    %5914 = vmatpush1.msra.mxu0 %v5886
    %5915 = vmatprep.subr.mxu0 0.0
    %5916 = vmatpush1.msra.mxu0 %v5884
    %5917 = vmatprep.subr.mxu0 0.0
    %5918 = vmatpush1.msra.mxu0 %v5882
    %5919 = vmatprep.subr.mxu0 0.0
    %5920 = vmatpush1.msra.mxu0 %v5864
    %5921 = vmatprep.subr.mxu0 0.0
    %5922 = vmatpush1.msra.mxu0 %v5863
    %5923 = vmatprep.subr.mxu0 0.0
    %5924 = vmatpush1.msra.mxu0 %v5880
    %5925 = vmatprep.subr.mxu0 0.0
    %5926 = vmatpush1.msra.mxu0 %v5878
    %5927 = vmatprep.subr.mxu0 0.0
    %5928 = vmatpush1.msra.mxu0 %v5876
    %5929 = vmatprep.subr.mxu0 0.0
    %5930 = vmatpush1.msra.mxu0 %v5874
    %5931 = vmatprep.subr.mxu0 0.0
    %5932 = vmatpush1.msra.mxu0 %v5872
    %5933 = vmatprep.subr.mxu0 0.0
    %5934 = vmatpush1.msra.mxu0 %v5870
    %5935 = vmatprep.subr.mxu0 0.0
    %5936 = vmatpush1.msra.mxu0 %v5868
    %5937 = vmatprep.subr.mxu0 0.0
    %5938 = vmatpush1.msra.mxu0 %v5866
    %5939 = vmatprep.subr.mxu0 0.0
    %5940 = vmatpush2.msra.mxu0 0.0
    %5941 = vmatprep.subr.mxu0 0.0
    %5942 = vmatpush2.msra.mxu0 0.0
    %5943 = vmatprep.subr.mxu0 0.0
    %5944 = vmatpush2.msra.mxu0 0.0
    %5945 = vmatprep.subr.mxu0 0.0
    %5946 = vmatpush2.msra.mxu0 0.0
    %5947 = vmatprep.subr.mxu0 0.0
    %5948 = vmatpush2.msra.mxu0 0.0
    %5949 = vmatprep.subr.mxu0 0.0
    %5950 = vmatpush2.msra.mxu0 0.0
    %5951 = vmatprep.subr.mxu0 0.0
    %5952 = vmatpush2.msra.mxu0 0.0
    %5953 = vmatprep.subr.mxu0 0.0
    %5954 = vmatpush2.msra.mxu0 0.0
    %5955 = vmatprep.subr.mxu0 0.0
    %5956 = vmatpush2.msra.mxu0 0.0
    %5957 = vmatprep.subr.mxu0 0.0
    %5958 = vmatpush2.msra.mxu0 0.0
    %5959 = vmatprep.subr.mxu0 0.0
    %5960 = vmatpush2.msra.mxu0 0.0
    %5961 = vmatprep.subr.mxu0 0.0
    %5962 = vmatpush2.msra.mxu0 0.0
    %5963 = vmatprep.subr.mxu0 0.0
    %5964 = vmatpush2.msra.mxu0 0.0
    %5965 = vmatprep.subr.mxu0 0.0
    %5966 = vmatpush2.msra.mxu0 0.0
    %5967 = vmatprep.subr.mxu0 0.0
    %5968 = vmatpush2.msra.mxu0 %v5896
    %5969 = vmatprep.subr.mxu0 0.0
    %5970 = vmatpush2.msra.mxu0 %v5894
    %5971 = vmatprep.mubr.f32.mxu0 %v5902
    %5972 = vmatmul.mubr.f32.gmra.mxu0 %v5897
    %v5973 = vpop.f32.mrf.mxu0
    %v5974 = vadd.f32 0.0, %v5973
    %v5975 = vpop.f32.mrf.mxu0
    %5976 = vmatprep.mubr.f32.mxu0 %v5905
    %5977 = vmatmul.mubr.f32.gmra.mxu0 %v5899
    %v5978 = vpop.f32.mrf.mxu0
    %v5979 = vadd.f32 0.0, %v5978
    %v5980 = vpop.f32.mrf.mxu0
    %5981 = vdwg.mxu0
    %v5982 = vld [vmem:[%s127] sm:$0xff]
    %v5983 = vld [vmem:[%s127 + $0x8] sm:$0xff]
    %5985 = vset.pattern.permute.xlu0 0
    %5986 = vperm.xlu0 %5985, %v5982
    %v5987 = vpop.permute.xlu0 %5986
    %5990 = vset.pattern.permute.xlu0 0
    %5991 = vperm.xlu0 %5990, %v5983
    %v5992 = vpop.permute.xlu0 %5991
    %v5994 = vmul.f32 %v5974, %v5987
    %v5995 = vmul.f32 %v5979, %v5992
    %v5996 = vld [vmem:[%s129] sm:$0xff]
    %v5997 = vld [vmem:[%s129 + $0x8] sm:$0xff]
    %5999 = vset.pattern.permute.xlu0 0
    %6000 = vperm.xlu0 %5999, %v5996
    %v6001 = vpop.permute.xlu0 %6000
    %6004 = vset.pattern.permute.xlu0 0
    %6005 = vperm.xlu0 %6004, %v5997
    %v6006 = vpop.permute.xlu0 %6005
    %v6008 = vadd.f32 %v5994, %v6001
    %v6009 = vadd.f32 %v5995, %v6006
    %v6010 = vmul.f32 %v6008, %v5051
    %v6011 = vmul.f32 %v6009, %v5051
    %v6012 = vadd.f32 %v5861, %v6010
    %v6013 = vadd.f32 %v5862, %v6011
    %v6014 = vld [vmem:[%s131] sm:$0xff]
    %v6015 = vld [vmem:[%s131 + $0x8] sm:$0xff]
    %6017 = vset.pattern.permute.xlu0 0
    %6018 = vperm.xlu0 %6017, %v6014
    %v6019 = vpop.permute.xlu0 %6018
    %6022 = vset.pattern.permute.xlu0 0
    %6023 = vperm.xlu0 %6022, %v6015
    %v6024 = vpop.permute.xlu0 %6023
    %v6026 = vmul.f32 %v6012, %v6019
    %v6027 = vmul.f32 %v6013, %v6024
    %v6028 = vld [vmem:[%s133] sm:$0xff]
    %v6029 = vld [vmem:[%s133 + $0x8] sm:$0xff]
    %6031 = vset.pattern.permute.xlu0 0
    %6032 = vperm.xlu0 %6031, %v6028
    %v6033 = vpop.permute.xlu0 %6032
    %6036 = vset.pattern.permute.xlu0 0
    %6037 = vperm.xlu0 %6036, %v6029
    %v6038 = vpop.permute.xlu0 %6037
    %v6040 = vadd.f32 %v6026, %v6033
    %v6041 = vadd.f32 %v6027, %v6038
    %v6042 = vmax.f32 %v6040, 0.0
    %v6043 = vmax.f32 %v6041, 0.0
    %v6044 = vld [vmem:[%s23] sm:$0xff]
    %v6045 = vld [vmem:[%s23 + $0x8] sm:$0xff]
    %v6046 = vld [vmem:[%s23 + $0x10] sm:$0xff]
    %v6047 = vld [vmem:[%s23 + $0x18] sm:$0xff]
    %v6048 = vld [vmem:[%s23 + $0x20] sm:$0xff]
    %v6049 = vld [vmem:[%s23 + $0x28] sm:$0xff]
    %v6050 = vld [vmem:[%s23 + $0x30] sm:$0xff]
    %v6051 = vld [vmem:[%s23 + $0x38] sm:$0xff]
    %v6052 = vld [vmem:[%s23 + $0x40] sm:$0xff]
    %v6053 = vld [vmem:[%s23 + $0x48] sm:$0xff]
    %v6054 = vld [vmem:[%s23 + $0x50] sm:$0xff]
    %v6055 = vld [vmem:[%s23 + $0x58] sm:$0xff]
    %v6056 = vld [vmem:[%s23 + $0x60] sm:$0xff]
    %v6057 = vld [vmem:[%s23 + $0x68] sm:$0xff]
    %v6058 = vld [vmem:[%s23 + $0x70] sm:$0xff]
    %v6059 = vld [vmem:[%s23 + $0x78] sm:$0xff]
    %6060 = vmatprep.subr.mxu0 0.0
    %6061 = vmatpush1.msra.mxu0 %v6059
    %6062 = vmatprep.subr.mxu0 0.0
    %6063 = vmatpush1.msra.mxu0 %v6058
    %6064 = vmatprep.subr.mxu0 0.0
    %6065 = vmatpush1.msra.mxu0 %v6057
    %6066 = vmatprep.subr.mxu0 0.0
    %6067 = vmatpush1.msra.mxu0 %v6056
    %6068 = vmatprep.subr.mxu0 0.0
    %6069 = vmatpush1.msra.mxu0 %v6055
    %6070 = vmatprep.subr.mxu0 0.0
    %6071 = vmatpush1.msra.mxu0 %v6054
    %6072 = vmatprep.subr.mxu0 0.0
    %6073 = vmatpush1.msra.mxu0 %v6053
    %6074 = vmatprep.subr.mxu0 0.0
    %6075 = vmatpush1.msra.mxu0 %v6052
    %6076 = vmatprep.subr.mxu0 0.0
    %6077 = vmatpush1.msra.mxu0 %v6051
    %6078 = vmatprep.subr.mxu0 0.0
    %6079 = vmatpush1.msra.mxu0 %v6050
    %6080 = vmatprep.subr.mxu0 0.0
    %6081 = vmatpush1.msra.mxu0 %v6049
    %6082 = vmatprep.subr.mxu0 0.0
    %6083 = vmatpush1.msra.mxu0 %v6048
    %6084 = vmatprep.subr.mxu0 0.0
    %6085 = vmatpush1.msra.mxu0 %v6047
    %6086 = vmatprep.subr.mxu0 0.0
    %6087 = vmatpush1.msra.mxu0 %v6046
    %6088 = vmatprep.subr.mxu0 0.0
    %6089 = vmatpush1.msra.mxu0 %v6045
    %6090 = vmatprep.subr.mxu0 0.0
    %6091 = vmatpush1.msra.mxu0 %v6044
    %6092 = vmatprep.subr.mxu0 0.0
    %6093 = vmatpush2.msra.mxu0 0.0
    %6094 = vmatprep.subr.mxu0 0.0
    %6095 = vmatpush2.msra.mxu0 0.0
    %6096 = vmatprep.subr.mxu0 0.0
    %6097 = vmatpush2.msra.mxu0 0.0
    %6098 = vmatprep.subr.mxu0 0.0
    %6099 = vmatpush2.msra.mxu0 0.0
    %6100 = vmatprep.subr.mxu0 0.0
    %6101 = vmatpush2.msra.mxu0 0.0
    %6102 = vmatprep.subr.mxu0 0.0
    %6103 = vmatpush2.msra.mxu0 0.0
    %6104 = vmatprep.subr.mxu0 0.0
    %6105 = vmatpush2.msra.mxu0 0.0
    %6106 = vmatprep.subr.mxu0 0.0
    %6107 = vmatpush2.msra.mxu0 0.0
    %6108 = vmatprep.subr.mxu0 0.0
    %6109 = vmatpush2.msra.mxu0 0.0
    %6110 = vmatprep.subr.mxu0 0.0
    %6111 = vmatpush2.msra.mxu0 0.0
    %6112 = vmatprep.subr.mxu0 0.0
    %6113 = vmatpush2.msra.mxu0 0.0
    %6114 = vmatprep.subr.mxu0 0.0
    %6115 = vmatpush2.msra.mxu0 0.0
    %6116 = vmatprep.subr.mxu0 0.0
    %6117 = vmatpush2.msra.mxu0 0.0
    %6118 = vmatprep.subr.mxu0 0.0
    %6119 = vmatpush2.msra.mxu0 0.0
    %6120 = vmatprep.subr.mxu0 0.0
    %6121 = vmatpush2.msra.mxu0 0.0
    %6122 = vmatprep.subr.mxu0 0.0
    %6123 = vmatpush2.msra.mxu0 0.0
    %6124 = vmatprep.mubr.f32.mxu0 0.0
    %6125 = vmatmul.mubr.f32.gmra.mxu0 %v6042
    %v6126 = vpop.f32.mrf.mxu0
    %v6127 = vadd.f32 0.0, %v6126
    %v6128 = vpop.f32.mrf.mxu0
    %6129 = vmatprep.mubr.f32.mxu0 0.0
    %6130 = vmatmul.mubr.f32.gmra.mxu0 %v6043
    %v6131 = vpop.f32.mrf.mxu0
    %v6132 = vadd.f32 0.0, %v6131
    %v6133 = vpop.f32.mrf.mxu0
    %6134 = vdwg.mxu0
    %v6135 = vld [vmem:[%s135] sm:$0xff]
    %v6136 = vld [vmem:[%s135 + $0x8] sm:$0x3]
    %v6137 = vld [vmem:[%s137] sm:$0xff]
    %v6138 = vld [vmem:[%s137 + $0x8] sm:$0x3]
    %6140 = vset.pattern.permute.xlu0 0
    %6141 = vperm.xlu0 %6140, %v6137
    %v6142 = vpop.permute.xlu0 %6141
    %6145 = vset.pattern.permute.xlu0 0
    %6146 = vperm.xlu0 %6145, %v6138
    %v6147 = vpop.permute.xlu0 %6146
    %v6150 = vsel %vm5093, %v6135, 0
    %v6153 = vsel %vm5093, %v6136, 0
    %6155 = vmatprep.subr.mxu0 0.0
    %6156 = vmatpush1.msra.mxu0 0.0
    %6157 = vmatprep.subr.mxu0 0.0
    %6158 = vmatpush1.msra.mxu0 0.0
    %6159 = vmatprep.subr.mxu0 0.0
    %6160 = vmatpush1.msra.mxu0 0.0
    %6161 = vmatprep.subr.mxu0 0.0
    %6162 = vmatpush1.msra.mxu0 0.0
    %6163 = vmatprep.subr.mxu0 0.0
    %6164 = vmatpush1.msra.mxu0 0.0
    %6165 = vmatprep.subr.mxu0 0.0
    %6166 = vmatpush1.msra.mxu0 0.0
    %6167 = vmatprep.subr.mxu0 0.0
    %6168 = vmatpush1.msra.mxu0 0.0
    %6169 = vmatprep.subr.mxu0 0.0
    %6170 = vmatpush1.msra.mxu0 0.0
    %6171 = vmatprep.subr.mxu0 0.0
    %6172 = vmatpush1.msra.mxu0 0.0
    %6173 = vmatprep.subr.mxu0 0.0
    %6174 = vmatpush1.msra.mxu0 0.0
    %6175 = vmatprep.subr.mxu0 0.0
    %6176 = vmatpush1.msra.mxu0 0.0
    %6177 = vmatprep.subr.mxu0 0.0
    %6178 = vmatpush1.msra.mxu0 0.0
    %6179 = vmatprep.subr.mxu0 0.0
    %6180 = vmatpush1.msra.mxu0 0.0
    %6181 = vmatprep.subr.mxu0 0.0
    %6182 = vmatpush1.msra.mxu0 0.0
    %6183 = vmatprep.subr.mxu0 0.0
    %6184 = vmatpush1.msra.mxu0 %v6132
    %6185 = vmatprep.subr.mxu0 0.0
    %6186 = vmatpush1.msra.mxu0 %v6127
    %6187 = vmatprep.subr.mxu0 0.0
    %6188 = vmatpush2.msra.mxu0 0.0
    %6189 = vmatprep.subr.mxu0 0.0
    %6190 = vmatpush2.msra.mxu0 0.0
    %6191 = vmatprep.subr.mxu0 0.0
    %6192 = vmatpush2.msra.mxu0 0.0
    %6193 = vmatprep.subr.mxu0 0.0
    %6194 = vmatpush2.msra.mxu0 0.0
    %6195 = vmatprep.subr.mxu0 0.0
    %6196 = vmatpush2.msra.mxu0 0.0
    %6197 = vmatprep.subr.mxu0 0.0
    %6198 = vmatpush2.msra.mxu0 0.0
    %6199 = vmatprep.subr.mxu0 0.0
    %6200 = vmatpush2.msra.mxu0 0.0
    %6201 = vmatprep.subr.mxu0 0.0
    %6202 = vmatpush2.msra.mxu0 0.0
    %6203 = vmatprep.subr.mxu0 0.0
    %6204 = vmatpush2.msra.mxu0 0.0
    %6205 = vmatprep.subr.mxu0 0.0
    %6206 = vmatpush2.msra.mxu0 0.0
    %6207 = vmatprep.subr.mxu0 0.0
    %6208 = vmatpush2.msra.mxu0 0.0
    %6209 = vmatprep.subr.mxu0 0.0
    %6210 = vmatpush2.msra.mxu0 0.0
    %6211 = vmatprep.subr.mxu0 0.0
    %6212 = vmatpush2.msra.mxu0 0.0
    %6213 = vmatprep.subr.mxu0 0.0
    %6214 = vmatpush2.msra.mxu0 0.0
    %6215 = vmatprep.subr.mxu0 0.0
    %6216 = vmatpush2.msra.mxu0 0.0
    %6217 = vmatprep.subr.mxu0 0.0
    %6218 = vmatpush2.msra.mxu0 0.0
    %6219 = vmatprep.mubr.f32.mxu0 0.0
    %6220 = vmatmul.mubr.f32.gmra.mxu0 %v6150
    %v6221 = vpop.f32.mrf.mxu0
    %v6222 = vadd.f32 %v6142, %v6221
    %v6223 = vpop.f32.mrf.mxu0
    %6224 = vmatprep.mubr.f32.mxu0 0.0
    %6225 = vmatmul.mubr.f32.gmra.mxu0 %v6153
    %v6226 = vpop.f32.mrf.mxu0
    %v6227 = vadd.f32 %v6147, %v6226
    %v6228 = vpop.f32.mrf.mxu0
    %6229 = vdwg.mxu0
    %vm6230 = vcmask 15360
    %6231 = vst.msk [vmem:[%s139] sm:$0xff] %vm6230, %v6222
    %vm6232 = vcmask 9216
    %6233 = vst.msk [vmem:[%s139 + $0x8] sm:$0x3] %vm6232, %v6227
    // Predicated region
    $region390: #{forward.1} parent=1 // pred_check
      _
    $region391: #{forward.1} parent=1 // pred_check_branch
      %6235 = sbr.rel (0) target = $region393
    $region392: #{forward.1} parent=1 // pred_region
      _
    $region393: #{forward.1} parent=1 // pred_fallthru
      _
    // Predicated region
    $region394: #{forward.1} parent=1 // pred_check
      _
    $region395: #{forward.1} parent=1 // pred_check_branch
      %6237 = sbr.rel (0) target = $region397
    $region396: #{forward.1} parent=1 // pred_region
      _
    $region397: #{forward.1} parent=1 // pred_fallthru
      _
    %6238 = vsyncpa [#allocation3], 1
    %6239 = vsyncpa [#allocation5], 1
    %6240 = vsyncpa [#allocation8], 1
    %6241 = vsyncpa [#allocation11], 1
    %6242 = vsyncpa [#allocation14], 1
    %6243 = vsyncpa [#allocation17], 1
    %6244 = vsyncpa [#allocation20], 1
    %6245 = vsyncpa [#allocation23], 1
    %6246 = vsyncpa [#allocation26], 1
    %6247 = vsyncpa [#allocation29], 1
    %6248 = vsyncpa [#allocation32], 1
    %6249 = vsyncpa [#allocation35], 1
    %6250 = vsyncpa [#allocation38], 1
    %6251 = vsyncpa [#allocation41], 1
    %6252 = vsyncpa [#allocation44], 1

</llo_original>
